<compile_context>
chip_gen: v7x
topology: tpu7x:2x2x1
jax: 0.10.0
libtpu: 0.0.40
codegen_flags: <defaults>
</compile_context>

<pallas_src>
import numpy as np
import jax
import jax.numpy as jnp
from jax.experimental import pallas as pl
from jax.experimental.pallas import tpu as pltpu


# ---------------------------------------------------------------------------
# Pallas kernel: K-tiled matmul, bf16 inputs, f32 VMEM accumulator.
#   grid = (M/tm, N/tn, K/tk) with K innermost ("arbitrary").
# ---------------------------------------------------------------------------
def _matmul_kernel(a_ref, w_ref, o_ref, acc_ref):
    @pl.when(pl.program_id(2) == 0)
    def _init():
        acc_ref[...] = jnp.zeros_like(acc_ref)

    acc_ref[...] += jnp.dot(a_ref[...], w_ref[...],
                            preferred_element_type=jnp.float32)

    @pl.when(pl.program_id(2) == pl.num_programs(2) - 1)
    def _store():
        o_ref[...] = acc_ref[...].astype(o_ref.dtype)


def _round_up(x, m):
    return (x + m - 1) // m * m


def _pick_tm(M):
    """Largest divisor tile; prefer >=2 M-tiles (megacore on v7x) when M is big."""
    divisors = [c for c in (512, 256, 128, 64, 32, 16) if M % c == 0]
    if not divisors:
        return None
    multi = [c for c in divisors if c >= 128 and M // c >= 2]
    return multi[0] if multi else divisors[0]


def pallas_matmul(a, w, *, tk_max=512, tn_max=256, out_dtype=jnp.float32):
    """a @ w on the MXU: bf16 inputs, f32 accumulation.  a:[M,K]  w:[K,N]."""
    M, K = a.shape
    K2, N = w.shape
    assert K == K2
    a = a.astype(jnp.bfloat16)
    w = w.astype(jnp.bfloat16)

    # --- M tiling: avoid padding/slicing the big A matrix whenever possible ---
    tm = _pick_tm(M)
    if tm is None:                      # fallback only for awkward row counts
        tm = 128
        Mp = _round_up(M, tm)
        a = jnp.pad(a, ((0, Mp - M), (0, 0)))
    else:
        Mp = M

    # --- K tiling: single full-K block when small, else 512-wide K blocks ---
    if K <= tk_max:
        tk, Kp = K, K
    else:
        tk = tk_max
        Kp = _round_up(K, tk)
        if Kp != K:
            a = jnp.pad(a, ((0, 0), (0, Kp - K)))
            w = jnp.pad(w, ((0, Kp - K), (0, 0)))

    # --- N: single lane-dense tile unless N is large and 128-divisible ---
    if N > tn_max and N % 128 == 0:
        tn = 256 if N % 256 == 0 else 128
    else:
        tn = N

    out = pl.pallas_call(
        _matmul_kernel,
        out_shape=jax.ShapeDtypeStruct((Mp, N), out_dtype),
        grid_spec=pltpu.PrefetchScalarGridSpec(
            num_scalar_prefetch=0,
            grid=(Mp // tm, N // tn, Kp // tk),
            in_specs=[
                pl.BlockSpec((tm, tk), lambda i, j, k: (i, k)),
                pl.BlockSpec((tk, tn), lambda i, j, k: (k, j)),
            ],
            out_specs=pl.BlockSpec((tm, tn), lambda i, j, k: (i, j)),
            scratch_shapes=[pltpu.VMEM((tm, tn), jnp.float32)],
        ),
        compiler_params=pltpu.CompilerParams(
            dimension_semantics=("parallel", "parallel", "arbitrary"),
            vmem_limit_bytes=48 << 20),
    )(a, w)
    return out[:M] if Mp != M else out


# ---------------------------------------------------------------------------
# One conv layer: spatial 'same' 3D conv (Pallas hot path, conv-first) followed
# by the spherical Chebyshev contraction + bias + activation (XLA epilogue).
# conv and Chebyshev are both linear and act on disjoint axes, so they commute.
# ---------------------------------------------------------------------------
def cheb_spatial_conv(x, t_stack, w, b, act):
    """x:[B,V,X,Y,Z,Cin]  t_stack:[Ksph,V,V]  w:[ks,ks,ks,Ksph,Cin,Cout]  b:[Cout]."""
    B, V, X, Y, Z, Cin = x.shape
    ks, _, _, Ksph, _, Cout = w.shape
    p = ks // 2

    # --- spatial part: bf16 im2col (raw Cin channels only) + Pallas matmul ---
    xb = x.astype(jnp.bfloat16)
    xp = jnp.pad(xb, ((0, 0), (0, 0), (p, p), (p, p), (p, p), (0, 0)))
    cols = [xp[:, :, dx:dx + X, dy:dy + Y, dz:dz + Z, :]
            for dx in range(ks) for dy in range(ks) for dz in range(ks)]
    a = jnp.concatenate(cols, axis=-1).reshape(B * V * X * Y * Z, ks ** 3 * Cin)
    # effective weight [(dx,dy,dz,ci), (ksph,co)]
    wm = jnp.transpose(w, (0, 1, 2, 4, 3, 5)).reshape(ks ** 3 * Cin, Ksph * Cout)
    u = pallas_matmul(a, wm)                                   # [rows, Ksph*Cout] f32
    u = u.reshape(B, V, X, Y, Z, Ksph, Cout)

    # --- spherical Chebyshev contraction (tiny) + bias + activation in XLA ---
    y = jnp.einsum('kvw,bwxyzkc->bvxyzc', t_stack, u,
                   preferred_element_type=jnp.float32)
    y = y + b
    if act == 1:                                               # ReLU
        y = jnp.maximum(y, 0.0)
    elif act == 2:                                             # Softplus
        y = jax.nn.softplus(y)
    return y


# ---------------------------------------------------------------------------
# Max pooling / unpooling with indices (spherical factor 2, spatial 2x2x2).
# Index bookkeeping kept in plain JAX (glue, not the compute hot path).
# ---------------------------------------------------------------------------
def pool(x):
    B, V, X, Y, Z, C = x.shape
    assert V % 2 == 0 and X % 2 == 0 and Y % 2 == 0 and Z % 2 == 0
    xr = x.reshape(B, V // 2, 2, X, Y, Z, C)
    ind_sph = jnp.argmax(xr, axis=2)
    x = jnp.max(xr, axis=2)
    V2 = V // 2
    xr = x.reshape(B, V2, X // 2, 2, Y // 2, 2, Z // 2, 2, C)
    xr = xr.transpose(0, 1, 2, 4, 6, 3, 5, 7, 8).reshape(B, V2, X // 2, Y // 2, Z // 2, 8, C)
    ind_spa = jnp.argmax(xr, axis=5)
    x = jnp.max(xr, axis=5)
    return x, ind_spa, ind_sph


def unpool(x, ind_spa, ind_sph):
    B, V2, X2, Y2, Z2, C = x.shape
    # spatial max-unpooling: select-against-argmax (fuses; no one_hot tensors)
    pos8 = jnp.arange(8, dtype=ind_spa.dtype).reshape(1, 1, 1, 1, 1, 8, 1)
    xs = jnp.where(pos8 == ind_spa[:, :, :, :, :, None, :],
                   x[:, :, :, :, :, None, :], 0.0)
    xs = xs.reshape(B, V2, X2, Y2, Z2, 2, 2, 2, C).transpose(0, 1, 2, 5, 3, 6, 4, 7, 8)
    xs = xs.reshape(B, V2, X2 * 2, Y2 * 2, Z2 * 2, C)
    # spherical max-unpooling
    pos2 = jnp.arange(2, dtype=ind_sph.dtype).reshape(1, 1, 2, 1, 1, 1, 1)
    xv = jnp.where(pos2 == ind_sph[:, :, None], xs[:, :, None], 0.0)
    return xv.reshape(B, V2 * 2, X2 * 2, Y2 * 2, Z2 * 2, C)


# ---------------------------------------------------------------------------
# Deterministic parameter / graph setup
# ---------------------------------------------------------------------------
def ring_laplacian(V):
    A = np.zeros((V, V), np.float32)
    for i in range(V):
        A[i, (i + 1) % V] = 1.0
        A[i, (i - 1) % V] = 1.0
    L = np.diag(A.sum(1)) - A
    lmax = np.linalg.eigvalsh(L).max()
    return (2.0 * L / lmax - np.eye(V)).astype(np.float32)       # rescaled to [-1, 1]


def cheb_stack(L, K):
    V = L.shape[0]
    Ts = [np.eye(V, dtype=np.float32), L.astype(np.float32)]
    for _ in range(2, K):
        Ts.append(2 * L @ Ts[-1] - Ts[-2])
    return jnp.asarray(np.stack(Ts[:K], axis=0))                 # [K, V, V]


def init_conv_params(key, ks, Ksph, Cin, Cout):
    k1, k2 = jax.random.split(key)
    fan_in = ks ** 3 * Ksph * Cin
    bound = 1.0 / np.sqrt(fan_in)
    w = jax.random.uniform(k1, (ks, ks, ks, Ksph, Cin, Cout), jnp.float32, -bound, bound)
    b = jax.random.uniform(k2, (Cout,), jnp.float32, -bound, bound)
    return w, b


# ---------------------------------------------------------------------------
# GraphCNNUnet forward (Encoder + Decoder) built on the Pallas conv layer
# ---------------------------------------------------------------------------
class GraphCNNUnetPallas:
    def __init__(self, in_channels, out_channels, filter_start, block_depth,
                 in_depth, kernel_sizeSph, kernel_sizeSpa, laps, key):
        D = len(laps)
        assert D > 1
        fs = filter_start
        self.ks = kernel_sizeSpa
        self.Ksph = kernel_sizeSph
        # Chebyshev bases per resolution (laps ordered coarse -> fine)
        self.tk = [cheb_stack(lap, kernel_sizeSph) for lap in laps]

        def make_block(key, channels, lap_idx):
            layers = []
            for li in range(len(channels) - 1):
                key, sub = jax.random.split(key)
                w, b = init_conv_params(sub, self.ks, self.Ksph, channels[li], channels[li + 1])
                layers.append((w, b, lap_idx, 1))                # ReLU after each conv
            return key, layers

        # ----- encoder blocks (mirrors torch Encoder.__init__) -----
        enc_blocks = []
        key, blk = make_block(key, [in_channels] + [fs] * block_depth, D - 1)
        enc_blocks.append(blk)
        for i in range(D - 2):
            key, blk = make_block(key, [2 ** i * fs] + [2 ** (i + 1) * fs] * block_depth, D - i - 2)
            enc_blocks.append(blk)
        self.enc_blocks = enc_blocks

        # ----- decoder blocks (mirrors torch Decoder.__init__) -----
        dec_blocks = []
        key, blk = make_block(
            key, [2 ** (D - 2) * fs] + [2 ** (D - 1) * fs] * in_depth + [2 ** (D - 2) * fs], 0)
        dec_blocks.append(blk)
        for i in range(1, D - 1):
            key, blk = make_block(
                key, [2 ** (D - i) * fs] + [2 ** (D - i - 1) * fs] * in_depth + [2 ** (D - i - 2) * fs], i)
            dec_blocks.append(blk)
        key, blk = make_block(key, [2 * fs] + [fs] * in_depth + [fs], D - 1)
        dec_blocks.append(blk)
        self.dec_blocks = dec_blocks

        # ----- head (keepSphericalDim=True) + Softplus activation -----
        key, sub = jax.random.split(key)
        w, b = init_conv_params(sub, self.ks, self.Ksph, fs, out_channels)
        self.head = (w, b, D - 1)

    def _block(self, x, layers):
        # TODO(synk): original Block/BlockHead source not provided; any BatchNorm
        # it may contain is omitted (conv + ReLU only).
        for (w, b, lap_idx, act) in layers:
            x = cheb_spatial_conv(x, self.tk[lap_idx], w, b, act)
        return x

    def __call__(self, x):
        # x: [B, C_in, V, X, Y, Z]  (torch layout) -> internal channels-last
        x = jnp.transpose(x, (0, 2, 3, 4, 5, 1)).astype(jnp.float32)
        # ---------------- encoder ----------------
        ftrs, ind_spa_l, ind_sph_l = [], [], []
        for blk in self.enc_blocks:
            x = self._block(x, blk)
            ftrs.append(x)
            x, ind_spa, ind_sph = pool(x)
            ind_spa_l.append(ind_spa)
            ind_sph_l.append(ind_sph)
        # ---------------- decoder ----------------
        x = self._block(x, self.dec_blocks[0])
        x = unpool(x, ind_spa_l[-1], ind_sph_l[-1])
        x = jnp.concatenate([x, ftrs[-1]], axis=-1)
        for i in range(1, len(self.dec_blocks) - 1):
            x = self._block(x, self.dec_blocks[i])
            x = unpool(x, ind_spa_l[-1 - i], ind_sph_l[-1 - i])
            x = jnp.concatenate([x, ftrs[-1 - i]], axis=-1)
        x = self._block(x, self.dec_blocks[-1])
        # head conv with Softplus (== self.activation(self.head(x)))
        w, b, lap_idx = self.head
        x = cheb_spatial_conv(x, self.tk[lap_idx], w, b, act=2)
        # back to torch layout [B, C_out, V, X, Y, Z]
        return jnp.transpose(x, (0, 5, 1, 2, 3, 4))


if __name__ == "__main__":
    key = jax.random.PRNGKey(0)
    B, Cin, Cout = 2, 2, 3
    V_fine, V_coarse = 16, 8            # D = 2 spherical resolutions
    X = Y = Z = 4
    fs, block_depth, in_depth = 4, 2, 1
    Ksph, Kspa = 3, 3

    laps = [ring_laplacian(V_coarse), ring_laplacian(V_fine)]   # coarse -> fine
    k_param, k_data = jax.random.split(key)
    model = GraphCNNUnetPallas(Cin, Cout, fs, block_depth, in_depth,
                               Ksph, Kspa, laps, k_param)

    x = jax.random.normal(k_data, (B, Cin, V_fine, X, Y, Z), jnp.float32)
    y = jax.jit(model.__call__)(x)
    y = jax.block_until_ready(y)

    assert y.shape == (B, Cout, V_fine, X, Y, Z), y.shape
    assert bool(jnp.all(y > 0.0))       # Softplus output must be positive
    assert bool(jnp.all(jnp.isfinite(y)))
    print("KERNEL_OK")
</pallas_src>

<mosaic_0001>
module attributes {stable_mosaic.version = 11 : i64} {
  func.func @_matmul_kernel(%arg0: i32, %arg1: i32, %arg2: i32, %arg3: memref<512x54xbf16, #tpu.memory_space<vmem>>, %arg4: memref<54x12xbf16, #tpu.memory_space<vmem>>, %arg5: memref<512x12xf32, #tpu.memory_space<vmem>>, %arg6: memref<512x12xf32, #tpu.memory_space<vmem>>) attributes {dimension_semantics = [#tpu.dimension_semantics<parallel>, #tpu.dimension_semantics<parallel>, #tpu.dimension_semantics<arbitrary>], iteration_bounds = array<i64: 4, 1, 1>, scalar_prefetch = 0 : i64, scratch_operands = 1 : i64, tpu.core_type = #tpu.core_type<tc>, window_params = [{transform_indices = @transform_0, window_bounds = array<i64: 512, 54>}, {transform_indices = @transform_1, window_bounds = array<i64: 54, 12>}, {transform_indices = @transform_2, window_bounds = array<i64: 512, 12>}]} {
    %c0_i32 = arith.constant 0 : i32
    %0 = arith.cmpi eq, %arg2, %c0_i32 : i32
    %1 = arith.extui %0 : i1 to i32
    %c0_i32_0 = arith.constant 0 : i32
    %2 = arith.cmpi ne, %1, %c0_i32_0 : i32
    scf.if %2 {
      %cst_10 = arith.constant 0.000000e+00 : f32
      %12 = vector.broadcast %cst_10 : f32 to vector<512x12xf32>
      %c0_11 = arith.constant 0 : index
      %c0_12 = arith.constant 0 : index
      %13 = vector.load %arg6[%c0_11, %c0_12] : memref<512x12xf32, #tpu.memory_space<vmem>>, vector<512x12xf32>
      tpu.vector_store %arg6[%c0_11, %c0_12], %12 {strides = array<i32>} : memref<512x12xf32, #tpu.memory_space<vmem>>, vector<512x12xf32>,
    } else {
    }
    %c0 = arith.constant 0 : index
    %c0_1 = arith.constant 0 : index
    %3 = vector.load %arg6[%c0, %c0_1] : memref<512x12xf32, #tpu.memory_space<vmem>>, vector<512x12xf32>
    %c0_2 = arith.constant 0 : index
    %c0_3 = arith.constant 0 : index
    %4 = vector.load %arg3[%c0_2, %c0_3] : memref<512x54xbf16, #tpu.memory_space<vmem>>, vector<512x54xbf16>
    %c0_4 = arith.constant 0 : index
    %c0_5 = arith.constant 0 : index
    %5 = vector.load %arg4[%c0_4, %c0_5] : memref<54x12xbf16, #tpu.memory_space<vmem>>, vector<54x12xbf16>
    %cst = arith.constant dense<0.000000e+00> : vector<512x12xf32>
    %6 = tpu.matmul %4, %5, %cst {dimension_numbers = #tpu.dot_dimension_numbers<[1], [0], [0], [1], [0, 0, 1, 1], [], []>} : vector<512x54xbf16>, vector<54x12xbf16>, vector<512x12xf32> -> vector<512x12xf32>
    %7 = arith.addf %3, %6 : vector<512x12xf32>
    %c0_6 = arith.constant 0 : index
    %c0_7 = arith.constant 0 : index
    %8 = vector.load %arg6[%c0_6, %c0_7] : memref<512x12xf32, #tpu.memory_space<vmem>>, vector<512x12xf32>
    tpu.vector_store %arg6[%c0_6, %c0_7], %7 {strides = array<i32>} : memref<512x12xf32, #tpu.memory_space<vmem>>, vector<512x12xf32>,
    %c0_i32_8 = arith.constant 0 : i32
    %9 = arith.cmpi eq, %arg2, %c0_i32_8 : i32
    %10 = arith.extui %9 : i1 to i32
    %c0_i32_9 = arith.constant 0 : i32
    %11 = arith.cmpi ne, %10, %c0_i32_9 : i32
    scf.if %11 {
      %c0_10 = arith.constant 0 : index
      %c0_11 = arith.constant 0 : index
      %12 = vector.load %arg6[%c0_10, %c0_11] : memref<512x12xf32, #tpu.memory_space<vmem>>, vector<512x12xf32>
      %c0_12 = arith.constant 0 : index
      %c0_13 = arith.constant 0 : index
      %13 = vector.load %arg5[%c0_12, %c0_13] : memref<512x12xf32, #tpu.memory_space<vmem>>, vector<512x12xf32>
      tpu.vector_store %arg5[%c0_12, %c0_13], %12 {strides = array<i32>} : memref<512x12xf32, #tpu.memory_space<vmem>>, vector<512x12xf32>,
    } else {
    }
    return
  }
  func.func @transform_0(%arg0: i32, %arg1: i32, %arg2: i32) -> (i32, i32) {
    %c0_i32 = arith.constant 0 : i32
    return %arg0, %arg2 : i32, i32
  }
  func.func @transform_1(%arg0: i32, %arg1: i32, %arg2: i32) -> (i32, i32) {
    %c0_i32 = arith.constant 0 : i32
    return %arg2, %arg1 : i32, i32
  }
  func.func @transform_2(%arg0: i32, %arg1: i32, %arg2: i32) -> (i32, i32) {
    %c0_i32 = arith.constant 0 : i32
    return %arg0, %arg1 : i32, i32
  }
}

module attributes {stable_mosaic.version = 11 : i64} {
  func.func @_matmul_kernel(%arg0: i32, %arg1: i32, %arg2: i32, %arg3: memref<512x108xbf16, #tpu.memory_space<vmem>>, %arg4: memref<108x12xbf16, #tpu.memory_space<vmem>>, %arg5: memref<512x12xf32, #tpu.memory_space<vmem>>, %arg6: memref<512x12xf32, #tpu.memory_space<vmem>>) attributes {dimension_semantics = [#tpu.dimension_semantics<parallel>, #tpu.dimension_semantics<parallel>, #tpu.dimension_semantics<arbitrary>], iteration_bounds = array<i64: 4, 1, 1>, scalar_prefetch = 0 : i64, scratch_operands = 1 : i64, tpu.core_type = #tpu.core_type<tc>, window_params = [{transform_indices = @transform_0, window_bounds = array<i64: 512, 108>}, {transform_indices = @transform_1, window_bounds = array<i64: 108, 12>}, {transform_indices = @transform_2, window_bounds = array<i64: 512, 12>}]} {
    %c0_i32 = arith.constant 0 : i32
    %0 = arith.cmpi eq, %arg2, %c0_i32 : i32
    %1 = arith.extui %0 : i1 to i32
    %c0_i32_0 = arith.constant 0 : i32
    %2 = arith.cmpi ne, %1, %c0_i32_0 : i32
    scf.if %2 {
      %cst_10 = arith.constant 0.000000e+00 : f32
      %12 = vector.broadcast %cst_10 : f32 to vector<512x12xf32>
      %c0_11 = arith.constant 0 : index
      %c0_12 = arith.constant 0 : index
      %13 = vector.load %arg6[%c0_11, %c0_12] : memref<512x12xf32, #tpu.memory_space<vmem>>, vector<512x12xf32>
      tpu.vector_store %arg6[%c0_11, %c0_12], %12 {strides = array<i32>} : memref<512x12xf32, #tpu.memory_space<vmem>>, vector<512x12xf32>,
    } else {
    }
    %c0 = arith.constant 0 : index
    %c0_1 = arith.constant 0 : index
    %3 = vector.load %arg6[%c0, %c0_1] : memref<512x12xf32, #tpu.memory_space<vmem>>, vector<512x12xf32>
    %c0_2 = arith.constant 0 : index
    %c0_3 = arith.constant 0 : index
    %4 = vector.load %arg3[%c0_2, %c0_3] : memref<512x108xbf16, #tpu.memory_space<vmem>>, vector<512x108xbf16>
    %c0_4 = arith.constant 0 : index
    %c0_5 = arith.constant 0 : index
    %5 = vector.load %arg4[%c0_4, %c0_5] : memref<108x12xbf16, #tpu.memory_space<vmem>>, vector<108x12xbf16>
    %cst = arith.constant dense<0.000000e+00> : vector<512x12xf32>
    %6 = tpu.matmul %4, %5, %cst {dimension_numbers = #tpu.dot_dimension_numbers<[1], [0], [0], [1], [0, 0, 1, 1], [], []>} : vector<512x108xbf16>, vector<108x12xbf16>, vector<512x12xf32> -> vector<512x12xf32>
    %7 = arith.addf %3, %6 : vector<512x12xf32>
    %c0_6 = arith.constant 0 : index
    %c0_7 = arith.constant 0 : index
    %8 = vector.load %arg6[%c0_6, %c0_7] : memref<512x12xf32, #tpu.memory_space<vmem>>, vector<512x12xf32>
    tpu.vector_store %arg6[%c0_6, %c0_7], %7 {strides = array<i32>} : memref<512x12xf32, #tpu.memory_space<vmem>>, vector<512x12xf32>,
    %c0_i32_8 = arith.constant 0 : i32
    %9 = arith.cmpi eq, %arg2, %c0_i32_8 : i32
    %10 = arith.extui %9 : i1 to i32
    %c0_i32_9 = arith.constant 0 : i32
    %11 = arith.cmpi ne, %10, %c0_i32_9 : i32
    scf.if %11 {
      %c0_10 = arith.constant 0 : index
      %c0_11 = arith.constant 0 : index
      %12 = vector.load %arg6[%c0_10, %c0_11] : memref<512x12xf32, #tpu.memory_space<vmem>>, vector<512x12xf32>
      %c0_12 = arith.constant 0 : index
      %c0_13 = arith.constant 0 : index
      %13 = vector.load %arg5[%c0_12, %c0_13] : memref<512x12xf32, #tpu.memory_space<vmem>>, vector<512x12xf32>
      tpu.vector_store %arg5[%c0_12, %c0_13], %12 {strides = array<i32>} : memref<512x12xf32, #tpu.memory_space<vmem>>, vector<512x12xf32>,
    } else {
    }
    return
  }
  func.func @transform_0(%arg0: i32, %arg1: i32, %arg2: i32) -> (i32, i32) {
    %c0_i32 = arith.constant 0 : i32
    return %arg0, %arg2 : i32, i32
  }
  func.func @transform_1(%arg0: i32, %arg1: i32, %arg2: i32) -> (i32, i32) {
    %c0_i32 = arith.constant 0 : i32
    return %arg2, %arg1 : i32, i32
  }
  func.func @transform_2(%arg0: i32, %arg1: i32, %arg2: i32) -> (i32, i32) {
    %c0_i32 = arith.constant 0 : i32
    return %arg0, %arg1 : i32, i32
  }
}

module attributes {stable_mosaic.version = 11 : i64} {
  func.func @_matmul_kernel(%arg0: i32, %arg1: i32, %arg2: i32, %arg3: memref<128x108xbf16, #tpu.memory_space<vmem>>, %arg4: memref<108x24xbf16, #tpu.memory_space<vmem>>, %arg5: memref<128x24xf32, #tpu.memory_space<vmem>>, %arg6: memref<128x24xf32, #tpu.memory_space<vmem>>) attributes {dimension_semantics = [#tpu.dimension_semantics<parallel>, #tpu.dimension_semantics<parallel>, #tpu.dimension_semantics<arbitrary>], iteration_bounds = array<i64: 1, 1, 1>, scalar_prefetch = 0 : i64, scratch_operands = 1 : i64, tpu.core_type = #tpu.core_type<tc>, window_params = [{transform_indices = @transform_0, window_bounds = array<i64: 128, 108>}, {transform_indices = @transform_1, window_bounds = array<i64: 108, 24>}, {transform_indices = @transform_2, window_bounds = array<i64: 128, 24>}]} {
    %c0_i32 = arith.constant 0 : i32
    %0 = arith.cmpi eq, %arg2, %c0_i32 : i32
    %1 = arith.extui %0 : i1 to i32
    %c0_i32_0 = arith.constant 0 : i32
    %2 = arith.cmpi ne, %1, %c0_i32_0 : i32
    scf.if %2 {
      %cst_10 = arith.constant 0.000000e+00 : f32
      %12 = vector.broadcast %cst_10 : f32 to vector<128x24xf32>
      %c0_11 = arith.constant 0 : index
      %c0_12 = arith.constant 0 : index
      %13 = vector.load %arg6[%c0_11, %c0_12] : memref<128x24xf32, #tpu.memory_space<vmem>>, vector<128x24xf32>
      tpu.vector_store %arg6[%c0_11, %c0_12], %12 {strides = array<i32>} : memref<128x24xf32, #tpu.memory_space<vmem>>, vector<128x24xf32>,
    } else {
    }
    %c0 = arith.constant 0 : index
    %c0_1 = arith.constant 0 : index
    %3 = vector.load %arg6[%c0, %c0_1] : memref<128x24xf32, #tpu.memory_space<vmem>>, vector<128x24xf32>
    %c0_2 = arith.constant 0 : index
    %c0_3 = arith.constant 0 : index
    %4 = vector.load %arg3[%c0_2, %c0_3] : memref<128x108xbf16, #tpu.memory_space<vmem>>, vector<128x108xbf16>
    %c0_4 = arith.constant 0 : index
    %c0_5 = arith.constant 0 : index
    %5 = vector.load %arg4[%c0_4, %c0_5] : memref<108x24xbf16, #tpu.memory_space<vmem>>, vector<108x24xbf16>
    %cst = arith.constant dense<0.000000e+00> : vector<128x24xf32>
    %6 = tpu.matmul %4, %5, %cst {dimension_numbers = #tpu.dot_dimension_numbers<[1], [0], [0], [1], [0, 0, 1, 1], [], []>} : vector<128x108xbf16>, vector<108x24xbf16>, vector<128x24xf32> -> vector<128x24xf32>
    %7 = arith.addf %3, %6 : vector<128x24xf32>
    %c0_6 = arith.constant 0 : index
    %c0_7 = arith.constant 0 : index
    %8 = vector.load %arg6[%c0_6, %c0_7] : memref<128x24xf32, #tpu.memory_space<vmem>>, vector<128x24xf32>
    tpu.vector_store %arg6[%c0_6, %c0_7], %7 {strides = array<i32>} : memref<128x24xf32, #tpu.memory_space<vmem>>, vector<128x24xf32>,
    %c0_i32_8 = arith.constant 0 : i32
    %9 = arith.cmpi eq, %arg2, %c0_i32_8 : i32
    %10 = arith.extui %9 : i1 to i32
    %c0_i32_9 = arith.constant 0 : i32
    %11 = arith.cmpi ne, %10, %c0_i32_9 : i32
    scf.if %11 {
      %c0_10 = arith.constant 0 : index
      %c0_11 = arith.constant 0 : index
      %12 = vector.load %arg6[%c0_10, %c0_11] : memref<128x24xf32, #tpu.memory_space<vmem>>, vector<128x24xf32>
      %c0_12 = arith.constant 0 : index
      %c0_13 = arith.constant 0 : index
      %13 = vector.load %arg5[%c0_12, %c0_13] : memref<128x24xf32, #tpu.memory_space<vmem>>, vector<128x24xf32>
      tpu.vector_store %arg5[%c0_12, %c0_13], %12 {strides = array<i32>} : memref<128x24xf32, #tpu.memory_space<vmem>>, vector<128x24xf32>,
    } else {
    }
    return
  }
  func.func @transform_0(%arg0: i32, %arg1: i32, %arg2: i32) -> (i32, i32) {
    %c0_i32 = arith.constant 0 : i32
    return %arg0, %arg2 : i32, i32
  }
  func.func @transform_1(%arg0: i32, %arg1: i32, %arg2: i32) -> (i32, i32) {
    %c0_i32 = arith.constant 0 : i32
    return %arg2, %arg1 : i32, i32
  }
  func.func @transform_2(%arg0: i32, %arg1: i32, %arg2: i32) -> (i32, i32) {
    %c0_i32 = arith.constant 0 : i32
    return %arg0, %arg1 : i32, i32
  }
}

module attributes {stable_mosaic.version = 11 : i64} {
  func.func @_matmul_kernel(%arg0: i32, %arg1: i32, %arg2: i32, %arg3: memref<128x216xbf16, #tpu.memory_space<vmem>>, %arg4: memref<216x12xbf16, #tpu.memory_space<vmem>>, %arg5: memref<128x12xf32, #tpu.memory_space<vmem>>, %arg6: memref<128x12xf32, #tpu.memory_space<vmem>>) attributes {dimension_semantics = [#tpu.dimension_semantics<parallel>, #tpu.dimension_semantics<parallel>, #tpu.dimension_semantics<arbitrary>], iteration_bounds = array<i64: 1, 1, 1>, scalar_prefetch = 0 : i64, scratch_operands = 1 : i64, tpu.core_type = #tpu.core_type<tc>, window_params = [{transform_indices = @transform_0, window_bounds = array<i64: 128, 216>}, {transform_indices = @transform_1, window_bounds = array<i64: 216, 12>}, {transform_indices = @transform_2, window_bounds = array<i64: 128, 12>}]} {
    %c0_i32 = arith.constant 0 : i32
    %0 = arith.cmpi eq, %arg2, %c0_i32 : i32
    %1 = arith.extui %0 : i1 to i32
    %c0_i32_0 = arith.constant 0 : i32
    %2 = arith.cmpi ne, %1, %c0_i32_0 : i32
    scf.if %2 {
      %cst_10 = arith.constant 0.000000e+00 : f32
      %12 = vector.broadcast %cst_10 : f32 to vector<128x12xf32>
      %c0_11 = arith.constant 0 : index
      %c0_12 = arith.constant 0 : index
      %13 = vector.load %arg6[%c0_11, %c0_12] : memref<128x12xf32, #tpu.memory_space<vmem>>, vector<128x12xf32>
      tpu.vector_store %arg6[%c0_11, %c0_12], %12 {strides = array<i32>} : memref<128x12xf32, #tpu.memory_space<vmem>>, vector<128x12xf32>,
    } else {
    }
    %c0 = arith.constant 0 : index
    %c0_1 = arith.constant 0 : index
    %3 = vector.load %arg6[%c0, %c0_1] : memref<128x12xf32, #tpu.memory_space<vmem>>, vector<128x12xf32>
    %c0_2 = arith.constant 0 : index
    %c0_3 = arith.constant 0 : index
    %4 = vector.load %arg3[%c0_2, %c0_3] : memref<128x216xbf16, #tpu.memory_space<vmem>>, vector<128x216xbf16>
    %c0_4 = arith.constant 0 : index
    %c0_5 = arith.constant 0 : index
    %5 = vector.load %arg4[%c0_4, %c0_5] : memref<216x12xbf16, #tpu.memory_space<vmem>>, vector<216x12xbf16>
    %cst = arith.constant dense<0.000000e+00> : vector<128x12xf32>
    %6 = tpu.matmul %4, %5, %cst {dimension_numbers = #tpu.dot_dimension_numbers<[1], [0], [0], [1], [0, 0, 1, 1], [], []>} : vector<128x216xbf16>, vector<216x12xbf16>, vector<128x12xf32> -> vector<128x12xf32>
    %7 = arith.addf %3, %6 : vector<128x12xf32>
    %c0_6 = arith.constant 0 : index
    %c0_7 = arith.constant 0 : index
    %8 = vector.load %arg6[%c0_6, %c0_7] : memref<128x12xf32, #tpu.memory_space<vmem>>, vector<128x12xf32>
    tpu.vector_store %arg6[%c0_6, %c0_7], %7 {strides = array<i32>} : memref<128x12xf32, #tpu.memory_space<vmem>>, vector<128x12xf32>,
    %c0_i32_8 = arith.constant 0 : i32
    %9 = arith.cmpi eq, %arg2, %c0_i32_8 : i32
    %10 = arith.extui %9 : i1 to i32
    %c0_i32_9 = arith.constant 0 : i32
    %11 = arith.cmpi ne, %10, %c0_i32_9 : i32
    scf.if %11 {
      %c0_10 = arith.constant 0 : index
      %c0_11 = arith.constant 0 : index
      %12 = vector.load %arg6[%c0_10, %c0_11] : memref<128x12xf32, #tpu.memory_space<vmem>>, vector<128x12xf32>
      %c0_12 = arith.constant 0 : index
      %c0_13 = arith.constant 0 : index
      %13 = vector.load %arg5[%c0_12, %c0_13] : memref<128x12xf32, #tpu.memory_space<vmem>>, vector<128x12xf32>
      tpu.vector_store %arg5[%c0_12, %c0_13], %12 {strides = array<i32>} : memref<128x12xf32, #tpu.memory_space<vmem>>, vector<128x12xf32>,
    } else {
    }
    return
  }
  func.func @transform_0(%arg0: i32, %arg1: i32, %arg2: i32) -> (i32, i32) {
    %c0_i32 = arith.constant 0 : i32
    return %arg0, %arg2 : i32, i32
  }
  func.func @transform_1(%arg0: i32, %arg1: i32, %arg2: i32) -> (i32, i32) {
    %c0_i32 = arith.constant 0 : i32
    return %arg2, %arg1 : i32, i32
  }
  func.func @transform_2(%arg0: i32, %arg1: i32, %arg2: i32) -> (i32, i32) {
    %c0_i32 = arith.constant 0 : i32
    return %arg0, %arg1 : i32, i32
  }
}

module attributes {stable_mosaic.version = 11 : i64} {
  func.func @_matmul_kernel(%arg0: i32, %arg1: i32, %arg2: i32, %arg3: memref<512x216xbf16, #tpu.memory_space<vmem>>, %arg4: memref<216x12xbf16, #tpu.memory_space<vmem>>, %arg5: memref<512x12xf32, #tpu.memory_space<vmem>>, %arg6: memref<512x12xf32, #tpu.memory_space<vmem>>) attributes {dimension_semantics = [#tpu.dimension_semantics<parallel>, #tpu.dimension_semantics<parallel>, #tpu.dimension_semantics<arbitrary>], iteration_bounds = array<i64: 4, 1, 1>, scalar_prefetch = 0 : i64, scratch_operands = 1 : i64, tpu.core_type = #tpu.core_type<tc>, window_params = [{transform_indices = @transform_0, window_bounds = array<i64: 512, 216>}, {transform_indices = @transform_1, window_bounds = array<i64: 216, 12>}, {transform_indices = @transform_2, window_bounds = array<i64: 512, 12>}]} {
    %c0_i32 = arith.constant 0 : i32
    %0 = arith.cmpi eq, %arg2, %c0_i32 : i32
    %1 = arith.extui %0 : i1 to i32
    %c0_i32_0 = arith.constant 0 : i32
    %2 = arith.cmpi ne, %1, %c0_i32_0 : i32
    scf.if %2 {
      %cst_10 = arith.constant 0.000000e+00 : f32
      %12 = vector.broadcast %cst_10 : f32 to vector<512x12xf32>
      %c0_11 = arith.constant 0 : index
      %c0_12 = arith.constant 0 : index
      %13 = vector.load %arg6[%c0_11, %c0_12] : memref<512x12xf32, #tpu.memory_space<vmem>>, vector<512x12xf32>
      tpu.vector_store %arg6[%c0_11, %c0_12], %12 {strides = array<i32>} : memref<512x12xf32, #tpu.memory_space<vmem>>, vector<512x12xf32>,
    } else {
    }
    %c0 = arith.constant 0 : index
    %c0_1 = arith.constant 0 : index
    %3 = vector.load %arg6[%c0, %c0_1] : memref<512x12xf32, #tpu.memory_space<vmem>>, vector<512x12xf32>
    %c0_2 = arith.constant 0 : index
    %c0_3 = arith.constant 0 : index
    %4 = vector.load %arg3[%c0_2, %c0_3] : memref<512x216xbf16, #tpu.memory_space<vmem>>, vector<512x216xbf16>
    %c0_4 = arith.constant 0 : index
    %c0_5 = arith.constant 0 : index
    %5 = vector.load %arg4[%c0_4, %c0_5] : memref<216x12xbf16, #tpu.memory_space<vmem>>, vector<216x12xbf16>
    %cst = arith.constant dense<0.000000e+00> : vector<512x12xf32>
    %6 = tpu.matmul %4, %5, %cst {dimension_numbers = #tpu.dot_dimension_numbers<[1], [0], [0], [1], [0, 0, 1, 1], [], []>} : vector<512x216xbf16>, vector<216x12xbf16>, vector<512x12xf32> -> vector<512x12xf32>
    %7 = arith.addf %3, %6 : vector<512x12xf32>
    %c0_6 = arith.constant 0 : index
    %c0_7 = arith.constant 0 : index
    %8 = vector.load %arg6[%c0_6, %c0_7] : memref<512x12xf32, #tpu.memory_space<vmem>>, vector<512x12xf32>
    tpu.vector_store %arg6[%c0_6, %c0_7], %7 {strides = array<i32>} : memref<512x12xf32, #tpu.memory_space<vmem>>, vector<512x12xf32>,
    %c0_i32_8 = arith.constant 0 : i32
    %9 = arith.cmpi eq, %arg2, %c0_i32_8 : i32
    %10 = arith.extui %9 : i1 to i32
    %c0_i32_9 = arith.constant 0 : i32
    %11 = arith.cmpi ne, %10, %c0_i32_9 : i32
    scf.if %11 {
      %c0_10 = arith.constant 0 : index
      %c0_11 = arith.constant 0 : index
      %12 = vector.load %arg6[%c0_10, %c0_11] : memref<512x12xf32, #tpu.memory_space<vmem>>, vector<512x12xf32>
      %c0_12 = arith.constant 0 : index
      %c0_13 = arith.constant 0 : index
      %13 = vector.load %arg5[%c0_12, %c0_13] : memref<512x12xf32, #tpu.memory_space<vmem>>, vector<512x12xf32>
      tpu.vector_store %arg5[%c0_12, %c0_13], %12 {strides = array<i32>} : memref<512x12xf32, #tpu.memory_space<vmem>>, vector<512x12xf32>,
    } else {
    }
    return
  }
  func.func @transform_0(%arg0: i32, %arg1: i32, %arg2: i32) -> (i32, i32) {
    %c0_i32 = arith.constant 0 : i32
    return %arg0, %arg2 : i32, i32
  }
  func.func @transform_1(%arg0: i32, %arg1: i32, %arg2: i32) -> (i32, i32) {
    %c0_i32 = arith.constant 0 : i32
    return %arg2, %arg1 : i32, i32
  }
  func.func @transform_2(%arg0: i32, %arg1: i32, %arg2: i32) -> (i32, i32) {
    %c0_i32 = arith.constant 0 : i32
    return %arg0, %arg1 : i32, i32
  }
}

module attributes {stable_mosaic.version = 11 : i64} {
  func.func @_matmul_kernel(%arg0: i32, %arg1: i32, %arg2: i32, %arg3: memref<512x108xbf16, #tpu.memory_space<vmem>>, %arg4: memref<108x9xbf16, #tpu.memory_space<vmem>>, %arg5: memref<512x9xf32, #tpu.memory_space<vmem>>, %arg6: memref<512x9xf32, #tpu.memory_space<vmem>>) attributes {dimension_semantics = [#tpu.dimension_semantics<parallel>, #tpu.dimension_semantics<parallel>, #tpu.dimension_semantics<arbitrary>], iteration_bounds = array<i64: 4, 1, 1>, scalar_prefetch = 0 : i64, scratch_operands = 1 : i64, tpu.core_type = #tpu.core_type<tc>, window_params = [{transform_indices = @transform_0, window_bounds = array<i64: 512, 108>}, {transform_indices = @transform_1, window_bounds = array<i64: 108, 9>}, {transform_indices = @transform_2, window_bounds = array<i64: 512, 9>}]} {
    %c0_i32 = arith.constant 0 : i32
    %0 = arith.cmpi eq, %arg2, %c0_i32 : i32
    %1 = arith.extui %0 : i1 to i32
    %c0_i32_0 = arith.constant 0 : i32
    %2 = arith.cmpi ne, %1, %c0_i32_0 : i32
    scf.if %2 {
      %cst_10 = arith.constant 0.000000e+00 : f32
      %12 = vector.broadcast %cst_10 : f32 to vector<512x9xf32>
      %c0_11 = arith.constant 0 : index
      %c0_12 = arith.constant 0 : index
      %13 = vector.load %arg6[%c0_11, %c0_12] : memref<512x9xf32, #tpu.memory_space<vmem>>, vector<512x9xf32>
      tpu.vector_store %arg6[%c0_11, %c0_12], %12 {strides = array<i32>} : memref<512x9xf32, #tpu.memory_space<vmem>>, vector<512x9xf32>,
    } else {
    }
    %c0 = arith.constant 0 : index
    %c0_1 = arith.constant 0 : index
    %3 = vector.load %arg6[%c0, %c0_1] : memref<512x9xf32, #tpu.memory_space<vmem>>, vector<512x9xf32>
    %c0_2 = arith.constant 0 : index
    %c0_3 = arith.constant 0 : index
    %4 = vector.load %arg3[%c0_2, %c0_3] : memref<512x108xbf16, #tpu.memory_space<vmem>>, vector<512x108xbf16>
    %c0_4 = arith.constant 0 : index
    %c0_5 = arith.constant 0 : index
    %5 = vector.load %arg4[%c0_4, %c0_5] : memref<108x9xbf16, #tpu.memory_space<vmem>>, vector<108x9xbf16>
    %cst = arith.constant dense<0.000000e+00> : vector<512x9xf32>
    %6 = tpu.matmul %4, %5, %cst {dimension_numbers = #tpu.dot_dimension_numbers<[1], [0], [0], [1], [0, 0, 1, 1], [], []>} : vector<512x108xbf16>, vector<108x9xbf16>, vector<512x9xf32> -> vector<512x9xf32>
    %7 = arith.addf %3, %6 : vector<512x9xf32>
    %c0_6 = arith.constant 0 : index
    %c0_7 = arith.constant 0 : index
    %8 = vector.load %arg6[%c0_6, %c0_7] : memref<512x9xf32, #tpu.memory_space<vmem>>, vector<512x9xf32>
    tpu.vector_store %arg6[%c0_6, %c0_7], %7 {strides = array<i32>} : memref<512x9xf32, #tpu.memory_space<vmem>>, vector<512x9xf32>,
    %c0_i32_8 = arith.constant 0 : i32
    %9 = arith.cmpi eq, %arg2, %c0_i32_8 : i32
    %10 = arith.extui %9 : i1 to i32
    %c0_i32_9 = arith.constant 0 : i32
    %11 = arith.cmpi ne, %10, %c0_i32_9 : i32
    scf.if %11 {
      %c0_10 = arith.constant 0 : index
      %c0_11 = arith.constant 0 : index
      %12 = vector.load %arg6[%c0_10, %c0_11] : memref<512x9xf32, #tpu.memory_space<vmem>>, vector<512x9xf32>
      %c0_12 = arith.constant 0 : index
      %c0_13 = arith.constant 0 : index
      %13 = vector.load %arg5[%c0_12, %c0_13] : memref<512x9xf32, #tpu.memory_space<vmem>>, vector<512x9xf32>
      tpu.vector_store %arg5[%c0_12, %c0_13], %12 {strides = array<i32>} : memref<512x9xf32, #tpu.memory_space<vmem>>, vector<512x9xf32>,
    } else {
    }
    return
  }
  func.func @transform_0(%arg0: i32, %arg1: i32, %arg2: i32) -> (i32, i32) {
    %c0_i32 = arith.constant 0 : i32
    return %arg0, %arg2 : i32, i32
  }
  func.func @transform_1(%arg0: i32, %arg1: i32, %arg2: i32) -> (i32, i32) {
    %c0_i32 = arith.constant 0 : i32
    return %arg2, %arg1 : i32, i32
  }
  func.func @transform_2(%arg0: i32, %arg1: i32, %arg2: i32) -> (i32, i32) {
    %c0_i32 = arith.constant 0 : i32
    return %arg0, %arg1 : i32, i32
  }
}

</mosaic_0001>

<llo_original>
// kernel: a_call__.7
$region0: #{a_call__.7}
  #allocation0 [shape = 'u32[]', space=smem, size = 0x4, offset = 0x4, fixed_abs, tag = 'smem constant byte address 0x4 - core index']
  #allocation1 [shape = 'u32[144,128]{1,0:T(1,128)}', space=vmem, size = 0x12000, scoped, tag = 'internal scratch']
  #allocation2 [shape = 'f32[512,12]{1,0:T(8,128)}', space=vmem, size = 0x40000, scoped, tag = 'scratch operand']
  %s0 = inlined_call_operand.vmem [shape: bf16[2048,54], index: 0, kind: input, shape index: {}]
  %s1 = inlined_call_operand.vmem [shape: bf16[54,12], index: 1, kind: input, shape index: {}]
  %s2 = inlined_call_operand.vmem [shape: f32[2048,12], index: 2, kind: output, shape index: {}]
  %s3 = sld [smem:[#allocation0]]
  $region49: #{a_call__.7} parent=0
    _
  %s5 = ssub.s32 1, %s3
  %s6 = scalar_select 0, %s5, %s3
  loop: start=0, step=1, limit=6
  $region2: #{a_call__.7} parent=0 // loop_pre_header
    _
  $region3: #{a_call__.7} parent=0 // loop_header
    %s8 = sphi 0, %s12
    %p9 = scmp.ge.s32.totalorder %s8, 6
    %s15 = sphi 0, %s34
    %s16 = sphi 0, %s30
    %s17 = sphi 0, %s26
    %s18 = sphi 0, %s15
    %s19 = sphi 0, %s16
    %s20 = sphi 0, %s17
    %s21 = sphi 0, %s18
    %s22 = sphi 0, %s19
    %s23 = sphi 0, %s20
    %s39 = sphi 0, %s41
    %s42 = sphi 0, %s39
    %s43 = sphi 0, %s42
    %s59 = sphi 0, %s43
    %s67 = sphi 0, %s69
    %s70 = sphi 0, %s67
    %s71 = sphi 0, %s70
    %s87 = sphi 0, %s71
    %s95 = sphi 0, %s97
    %s98 = sphi 0, %s95
    %s99 = sphi 0, %s98
    %s115 = sphi 0, %s99
  $region4: #{a_call__.7} parent=0 // loop_header_branch
    %11 = sbr.rel (%p9) target = $region8
  $region5: #{a_call__.7} parent=0 // loop_body
    %s13 = ssub.s32 %s8, 1
    %s14 = ssub.s32 %s8, 2
    %s24 = sadd.s32 1, %s17
    %p25 = scmp.ge.s32.totalorder %s24, 1
    %s26 = scalar_select %p25, 0, %s24
    %s27 = sadd.s32 1, %s16
    %s28 = scalar_select %p25, %s27, %s16
    %p29 = scmp.ge.s32.totalorder %s28, 1
    %s30 = scalar_select %p29, 0, %s28
    %s31 = sadd.s32 1, %s15
    %s32 = scalar_select %p29, %s31, %s15
    %p33 = scmp.ge.s32.totalorder %s32, 4
    %s34 = scalar_select %p33, 0, %s32
    %s35 = ssub.s32 %s15, %s34
    %s36 = ssub.s32 %s17, %s26
    %s37 = sor.u32 %s35, %s36
    %p38 = scmp.eq.s32.totalorder %s37, 0
    %s40 = sadd.s32 %s39, 1
    %s41 = scalar_select %p38, %s39, %s40
    %p44 = pneg %p38
    %p45 = scmp.eq.s32.totalorder %s8, 3
    %p46 = por %p44, %p45
    %p47 = scmp.ne.s32.totalorder %s39, %s42
    %p48 = scmp.eq.s32.totalorder %s8, 0
    %p49 = por %p47, %p48
    %p50 = scmp.ne.s32.totalorder %s39, %s42
    %p51 = scmp.eq.s32.totalorder %s13, 3
    %p52 = por %p50, %p51
    %p53 = scmp.ne.s32.totalorder %s42, %s43
    %p54 = scmp.eq.s32.totalorder %s13, 0
    %p55 = por %p53, %p54
    %p56 = scmp.ne.s32.totalorder %s42, %s43
    %p57 = scmp.eq.s32.totalorder %s14, 3
    %p58 = por %p56, %p57
    %p60 = scmp.ne.s32.totalorder %s43, %s59
    %p61 = scmp.eq.s32.totalorder %s14, 0
    %p62 = por %p60, %p61
    %s63 = ssub.s32 %s17, %s26
    %s64 = ssub.s32 %s16, %s30
    %s65 = sor.u32 %s63, %s64
    %p66 = scmp.eq.s32.totalorder %s65, 0
    %s68 = sadd.s32 %s67, 1
    %s69 = scalar_select %p66, %s67, %s68
    %p72 = pneg %p66
    %p73 = scmp.eq.s32.totalorder %s8, 3
    %p74 = por %p72, %p73
    %p75 = scmp.ne.s32.totalorder %s67, %s70
    %p76 = scmp.eq.s32.totalorder %s8, 0
    %p77 = por %p75, %p76
    %p78 = scmp.ne.s32.totalorder %s67, %s70
    %p79 = scmp.eq.s32.totalorder %s13, 3
    %p80 = por %p78, %p79
    %p81 = scmp.ne.s32.totalorder %s70, %s71
    %p82 = scmp.eq.s32.totalorder %s13, 0
    %p83 = por %p81, %p82
    %p84 = scmp.ne.s32.totalorder %s70, %s71
    %p85 = scmp.eq.s32.totalorder %s14, 3
    %p86 = por %p84, %p85
    %p88 = scmp.ne.s32.totalorder %s71, %s87
    %p89 = scmp.eq.s32.totalorder %s14, 0
    %p90 = por %p88, %p89
    %s91 = ssub.s32 %s15, %s34
    %s92 = ssub.s32 %s16, %s30
    %s93 = sor.u32 %s91, %s92
    %p94 = scmp.eq.s32.totalorder %s93, 0
    %s96 = sadd.s32 %s95, 1
    %s97 = scalar_select %p94, %s95, %s96
    %p100 = pneg %p94
    %p101 = scmp.eq.s32.totalorder %s8, 3
    %p102 = por %p100, %p101
    %p103 = scmp.ne.s32.totalorder %s95, %s98
    %p104 = scmp.eq.s32.totalorder %s8, 0
    %p105 = por %p103, %p104
    %p106 = scmp.ne.s32.totalorder %s95, %s98
    %p107 = scmp.eq.s32.totalorder %s13, 3
    %p108 = por %p106, %p107
    %p109 = scmp.ne.s32.totalorder %s98, %s99
    %p110 = scmp.eq.s32.totalorder %s13, 0
    %p111 = por %p109, %p110
    %p112 = scmp.ne.s32.totalorder %s98, %s99
    %p113 = scmp.eq.s32.totalorder %s14, 3
    %p114 = por %p112, %p113
    %p116 = scmp.ne.s32.totalorder %s99, %s115
    %p117 = scmp.eq.s32.totalorder %s14, 0
    %p118 = por %p116, %p117
    %p119 = scmp.le.s32.totalorder 1, %s8
    %p120 = scmp.lt.s32.totalorder %s8, 5
    %p121 = pnand %p119, %p120
    %p122 = pneg %p121
    // Predicated region
    $region9: #{a_call__.7} parent=5 // pred_check
      _
    $region10: #{a_call__.7} parent=5 // pred_check_branch
      %124 = sbr.rel (%p121) target = $region12
    $region11: #{a_call__.7} parent=5 // pred_region
      %s125 = ssub.s32 %s8, 1
      // Predicated region
      $region13: #{a_call__.7} parent=11 // pred_check
        %p126 = pneg %p83
      $region14: #{a_call__.7} parent=11 // pred_check_branch
        %128 = sbr.rel (%p126) target = $region16
      $region15: #{a_call__.7} parent=11 // pred_region
        %s129 = smul.u32 7, %s20
        %p130 = scmp.lt.s32.totalorder %s129, 6
        %s131 = scalar_select %p130, %s129, 6
        %p132 = scmp.lt.s32.totalorder %s19, 0
        %s133 = scalar_select %p132, %s19, 0
        %s134 = sadd.s32 %s133, %s131
        %s135 = smul.addr %s134, 4
        %s136 = scalar_lea.vmem %s1, %s135
        %s137 = smul.u32 7, %s20
      $region16: #{a_call__.7} parent=11 // pred_fallthru
        _
    $region12: #{a_call__.7} parent=5 // pred_fallthru
      _
    %p138 = scmp.lt.s32.totalorder %s8, 4
    // Predicated region
    $region17: #{a_call__.7} parent=5 // pred_check
      %p139 = pneg %p138
    $region18: #{a_call__.7} parent=5 // pred_check_branch
      %141 = sbr.rel (%p139) target = $region20
    $region19: #{a_call__.7} parent=5 // pred_region
      // Predicated region
      $region21: #{a_call__.7} parent=19 // pred_check
        %p142 = pneg %p49
      $region22: #{a_call__.7} parent=19 // pred_check_branch
        %144 = sbr.rel (%p142) target = $region24
      $region23: #{a_call__.7} parent=19 // pred_region
        %s145 = smul.u32 64, %s15
        %p146 = scmp.lt.s32.totalorder %s145, 255
        %s147 = scalar_select %p146, %s145, 255
        %p148 = scmp.lt.s32.totalorder %s17, 0
        %s149 = scalar_select %p148, %s17, 0
        %s150 = sadd.s32 %s149, %s147
        %s151 = smul.addr %s150, 4
        %s152 = scalar_lea.vmem %s0, %s151
        %s153 = smul.u32 64, %s15
      $region24: #{a_call__.7} parent=19 // pred_fallthru
        _
    $region20: #{a_call__.7} parent=5 // pred_fallthru
      _
    %p154 = scmp.le.s32.totalorder 1, %s8
    %p155 = scmp.lt.s32.totalorder %s8, 5
    %p156 = pnand %p154, %p155
    %p157 = pneg %p156
    // Predicated region
    $region25: #{a_call__.7} parent=5 // pred_check
      _
    $region26: #{a_call__.7} parent=5 // pred_check_branch
      %159 = sbr.rel (%p156) target = $region28
    $region27: #{a_call__.7} parent=5 // pred_region
      %s160 = ssub.s32 %s8, 1
      %s161 = smul.u32 64, %s18
      %p162 = scmp.lt.s32.totalorder %s161, 255
      %s163 = scalar_select %p162, %s161, 255
      %p164 = scmp.lt.s32.totalorder %s20, 0
      %s165 = scalar_select %p164, %s20, 0
      %s166 = sadd.s32 %s165, %s163
      %s167 = smul.addr %s166, 4
      %s168 = scalar_lea.vmem %s0, %s167
      %p169 = pneg %p55
      %p170 = pneg %p52
      %s171 = smul.u32 7, %s20
      %p172 = scmp.lt.s32.totalorder %s171, 6
      %s173 = scalar_select %p172, %s171, 6
      %p174 = scmp.lt.s32.totalorder %s19, 0
      %s175 = scalar_select %p174, %s19, 0
      %s176 = sadd.s32 %s175, %s173
      %s177 = smul.addr %s176, 4
      %s178 = scalar_lea.vmem %s1, %s177
      %p179 = pneg %p83
      %p180 = pneg %p80
      %p181 = pneg %p111
      %p182 = pneg %p108
      %s183 = smul.u32 64, %s18
      %p184 = scmp.lt.s32.totalorder %s183, 255
      %s185 = scalar_select %p184, %s183, 255
      %p186 = scmp.lt.s32.totalorder %s19, 0
      %s187 = scalar_select %p186, %s19, 0
      %s188 = sadd.s32 %s187, %s185
      %s189 = smul.addr %s188, 8
      %s190 = scalar_lea.vmem %s2, %s189
      %s191 = smul.u32 64, %s18
      %p192 = scmp.lt.s32.totalorder %s191, 255
      %s193 = scalar_select %p192, %s191, 255
      %p194 = scmp.lt.s32.totalorder %s20, 0
      %s195 = scalar_select %p194, %s20, 0
      %s196 = sadd.s32 %s195, %s193
      %s197 = smul.addr %s196, 4
      %s198 = scalar_lea.vmem %s0, %s197
      %s199 = smul.u32 64, %s18
      %s200 = smul.u32 7, %s20
      %p201 = scmp.lt.s32.totalorder %s200, 6
      %s202 = scalar_select %p201, %s200, 6
      %p203 = scmp.lt.s32.totalorder %s19, 0
      %s204 = scalar_select %p203, %s19, 0
      %s205 = sadd.s32 %s204, %s202
      %s206 = smul.addr %s205, 4
      %s207 = scalar_lea.vmem %s1, %s206
      %s208 = smul.u32 7, %s20
      %s209 = smul.u32 64, %s18
      %p210 = scmp.lt.s32.totalorder %s209, 255
      %s211 = scalar_select %p210, %s209, 255
      %p212 = scmp.lt.s32.totalorder %s19, 0
      %s213 = scalar_select %p212, %s19, 0
      %s214 = sadd.s32 %s213, %s211
      %s215 = smul.addr %s214, 8
      %s216 = scalar_lea.vmem %s2, %s215
      %s217 = smul.u32 64, %s18
      %p219 = scmp.eq.s32.totalorder %s20, 0
      // Predicated region
      $region29: #{a_call__.7} parent=27 // pred_check
        %p220 = pneg %p219
      $region30: #{a_call__.7} parent=27 // pred_check_branch
        %222 = sbr.rel (%p220) target = $region32
      $region31: #{a_call__.7} parent=27 // pred_region
        %vm223 = vcmask 97280
        %224 = vst.msk [vmem:[#allocation2] sm:$0xff] %vm223, 0.0
        %225 = vst.msk [vmem:[#allocation2 + $0x8] sm:$0xff] %vm223, 0.0
        %226 = vst.msk [vmem:[#allocation2 + $0x10] sm:$0xff] %vm223, 0.0
        %227 = vst.msk [vmem:[#allocation2 + $0x18] sm:$0xff] %vm223, 0.0
        %228 = vst.msk [vmem:[#allocation2 + $0x20] sm:$0xff] %vm223, 0.0
        %229 = vst.msk [vmem:[#allocation2 + $0x28] sm:$0xff] %vm223, 0.0
        %230 = vst.msk [vmem:[#allocation2 + $0x30] sm:$0xff] %vm223, 0.0
        %231 = vst.msk [vmem:[#allocation2 + $0x38] sm:$0xff] %vm223, 0.0
        %232 = vst.msk [vmem:[#allocation2 + $0x40] sm:$0xff] %vm223, 0.0
        %233 = vst.msk [vmem:[#allocation2 + $0x48] sm:$0xff] %vm223, 0.0
        %234 = vst.msk [vmem:[#allocation2 + $0x50] sm:$0xff] %vm223, 0.0
        %235 = vst.msk [vmem:[#allocation2 + $0x58] sm:$0xff] %vm223, 0.0
        %236 = vst.msk [vmem:[#allocation2 + $0x60] sm:$0xff] %vm223, 0.0
        %237 = vst.msk [vmem:[#allocation2 + $0x68] sm:$0xff] %vm223, 0.0
        %238 = vst.msk [vmem:[#allocation2 + $0x70] sm:$0xff] %vm223, 0.0
        %239 = vst.msk [vmem:[#allocation2 + $0x78] sm:$0xff] %vm223, 0.0
        %240 = vst.msk [vmem:[#allocation2 + $0x80] sm:$0xff] %vm223, 0.0
        %241 = vst.msk [vmem:[#allocation2 + $0x88] sm:$0xff] %vm223, 0.0
        %242 = vst.msk [vmem:[#allocation2 + $0x90] sm:$0xff] %vm223, 0.0
        %243 = vst.msk [vmem:[#allocation2 + $0x98] sm:$0xff] %vm223, 0.0
        %244 = vst.msk [vmem:[#allocation2 + $0xa0] sm:$0xff] %vm223, 0.0
        %245 = vst.msk [vmem:[#allocation2 + $0xa8] sm:$0xff] %vm223, 0.0
        %246 = vst.msk [vmem:[#allocation2 + $0xb0] sm:$0xff] %vm223, 0.0
        %247 = vst.msk [vmem:[#allocation2 + $0xb8] sm:$0xff] %vm223, 0.0
        %248 = vst.msk [vmem:[#allocation2 + $0xc0] sm:$0xff] %vm223, 0.0
        %249 = vst.msk [vmem:[#allocation2 + $0xc8] sm:$0xff] %vm223, 0.0
        %250 = vst.msk [vmem:[#allocation2 + $0xd0] sm:$0xff] %vm223, 0.0
        %251 = vst.msk [vmem:[#allocation2 + $0xd8] sm:$0xff] %vm223, 0.0
        %252 = vst.msk [vmem:[#allocation2 + $0xe0] sm:$0xff] %vm223, 0.0
        %253 = vst.msk [vmem:[#allocation2 + $0xe8] sm:$0xff] %vm223, 0.0
        %254 = vst.msk [vmem:[#allocation2 + $0xf0] sm:$0xff] %vm223, 0.0
        %255 = vst.msk [vmem:[#allocation2 + $0xf8] sm:$0xff] %vm223, 0.0
        %256 = vst.msk [vmem:[#allocation2 + $0x100] sm:$0xff] %vm223, 0.0
        %257 = vst.msk [vmem:[#allocation2 + $0x108] sm:$0xff] %vm223, 0.0
        %258 = vst.msk [vmem:[#allocation2 + $0x110] sm:$0xff] %vm223, 0.0
        %259 = vst.msk [vmem:[#allocation2 + $0x118] sm:$0xff] %vm223, 0.0
        %260 = vst.msk [vmem:[#allocation2 + $0x120] sm:$0xff] %vm223, 0.0
        %261 = vst.msk [vmem:[#allocation2 + $0x128] sm:$0xff] %vm223, 0.0
        %262 = vst.msk [vmem:[#allocation2 + $0x130] sm:$0xff] %vm223, 0.0
        %263 = vst.msk [vmem:[#allocation2 + $0x138] sm:$0xff] %vm223, 0.0
        %264 = vst.msk [vmem:[#allocation2 + $0x140] sm:$0xff] %vm223, 0.0
        %265 = vst.msk [vmem:[#allocation2 + $0x148] sm:$0xff] %vm223, 0.0
        %266 = vst.msk [vmem:[#allocation2 + $0x150] sm:$0xff] %vm223, 0.0
        %267 = vst.msk [vmem:[#allocation2 + $0x158] sm:$0xff] %vm223, 0.0
        %268 = vst.msk [vmem:[#allocation2 + $0x160] sm:$0xff] %vm223, 0.0
        %269 = vst.msk [vmem:[#allocation2 + $0x168] sm:$0xff] %vm223, 0.0
        %270 = vst.msk [vmem:[#allocation2 + $0x170] sm:$0xff] %vm223, 0.0
        %271 = vst.msk [vmem:[#allocation2 + $0x178] sm:$0xff] %vm223, 0.0
        %272 = vst.msk [vmem:[#allocation2 + $0x180] sm:$0xff] %vm223, 0.0
        %273 = vst.msk [vmem:[#allocation2 + $0x188] sm:$0xff] %vm223, 0.0
        %274 = vst.msk [vmem:[#allocation2 + $0x190] sm:$0xff] %vm223, 0.0
        %275 = vst.msk [vmem:[#allocation2 + $0x198] sm:$0xff] %vm223, 0.0
        %276 = vst.msk [vmem:[#allocation2 + $0x1a0] sm:$0xff] %vm223, 0.0
        %277 = vst.msk [vmem:[#allocation2 + $0x1a8] sm:$0xff] %vm223, 0.0
        %278 = vst.msk [vmem:[#allocation2 + $0x1b0] sm:$0xff] %vm223, 0.0
        %279 = vst.msk [vmem:[#allocation2 + $0x1b8] sm:$0xff] %vm223, 0.0
        %280 = vst.msk [vmem:[#allocation2 + $0x1c0] sm:$0xff] %vm223, 0.0
        %281 = vst.msk [vmem:[#allocation2 + $0x1c8] sm:$0xff] %vm223, 0.0
        %282 = vst.msk [vmem:[#allocation2 + $0x1d0] sm:$0xff] %vm223, 0.0
        %283 = vst.msk [vmem:[#allocation2 + $0x1d8] sm:$0xff] %vm223, 0.0
        %284 = vst.msk [vmem:[#allocation2 + $0x1e0] sm:$0xff] %vm223, 0.0
        %285 = vst.msk [vmem:[#allocation2 + $0x1e8] sm:$0xff] %vm223, 0.0
        %286 = vst.msk [vmem:[#allocation2 + $0x1f0] sm:$0xff] %vm223, 0.0
        %287 = vst.msk [vmem:[#allocation2 + $0x1f8] sm:$0xff] %vm223, 0.0
      $region32: #{a_call__.7} parent=27 // pred_fallthru
        _
      %v288 = vld [vmem:[#allocation2] sm:$0xff]
      %v289 = vld [vmem:[#allocation2 + $0x8] sm:$0xff]
      %v290 = vld [vmem:[#allocation2 + $0x10] sm:$0xff]
      %v291 = vld [vmem:[#allocation2 + $0x18] sm:$0xff]
      %v292 = vld [vmem:[#allocation2 + $0x20] sm:$0xff]
      %v293 = vld [vmem:[#allocation2 + $0x28] sm:$0xff]
      %v294 = vld [vmem:[#allocation2 + $0x30] sm:$0xff]
      %v295 = vld [vmem:[#allocation2 + $0x38] sm:$0xff]
      %v296 = vld [vmem:[#allocation2 + $0x40] sm:$0xff]
      %v297 = vld [vmem:[#allocation2 + $0x48] sm:$0xff]
      %v298 = vld [vmem:[#allocation2 + $0x50] sm:$0xff]
      %v299 = vld [vmem:[#allocation2 + $0x58] sm:$0xff]
      %v300 = vld [vmem:[#allocation2 + $0x60] sm:$0xff]
      %v301 = vld [vmem:[#allocation2 + $0x68] sm:$0xff]
      %v302 = vld [vmem:[#allocation2 + $0x70] sm:$0xff]
      %v303 = vld [vmem:[#allocation2 + $0x78] sm:$0xff]
      %v304 = vld [vmem:[#allocation2 + $0x80] sm:$0xff]
      %v305 = vld [vmem:[#allocation2 + $0x88] sm:$0xff]
      %v306 = vld [vmem:[#allocation2 + $0x90] sm:$0xff]
      %v307 = vld [vmem:[#allocation2 + $0x98] sm:$0xff]
      %v308 = vld [vmem:[#allocation2 + $0xa0] sm:$0xff]
      %v309 = vld [vmem:[#allocation2 + $0xa8] sm:$0xff]
      %v310 = vld [vmem:[#allocation2 + $0xb0] sm:$0xff]
      %v311 = vld [vmem:[#allocation2 + $0xb8] sm:$0xff]
      %v312 = vld [vmem:[#allocation2 + $0xc0] sm:$0xff]
      %v313 = vld [vmem:[#allocation2 + $0xc8] sm:$0xff]
      %v314 = vld [vmem:[#allocation2 + $0xd0] sm:$0xff]
      %v315 = vld [vmem:[#allocation2 + $0xd8] sm:$0xff]
      %v316 = vld [vmem:[#allocation2 + $0xe0] sm:$0xff]
      %v317 = vld [vmem:[#allocation2 + $0xe8] sm:$0xff]
      %v318 = vld [vmem:[#allocation2 + $0xf0] sm:$0xff]
      %v319 = vld [vmem:[#allocation2 + $0xf8] sm:$0xff]
      %v320 = vld [vmem:[#allocation2 + $0x100] sm:$0xff]
      %v321 = vld [vmem:[#allocation2 + $0x108] sm:$0xff]
      %v322 = vld [vmem:[#allocation2 + $0x110] sm:$0xff]
      %v323 = vld [vmem:[#allocation2 + $0x118] sm:$0xff]
      %v324 = vld [vmem:[#allocation2 + $0x120] sm:$0xff]
      %v325 = vld [vmem:[#allocation2 + $0x128] sm:$0xff]
      %v326 = vld [vmem:[#allocation2 + $0x130] sm:$0xff]
      %v327 = vld [vmem:[#allocation2 + $0x138] sm:$0xff]
      %v328 = vld [vmem:[#allocation2 + $0x140] sm:$0xff]
      %v329 = vld [vmem:[#allocation2 + $0x148] sm:$0xff]
      %v330 = vld [vmem:[#allocation2 + $0x150] sm:$0xff]
      %v331 = vld [vmem:[#allocation2 + $0x158] sm:$0xff]
      %v332 = vld [vmem:[#allocation2 + $0x160] sm:$0xff]
      %v333 = vld [vmem:[#allocation2 + $0x168] sm:$0xff]
      %v334 = vld [vmem:[#allocation2 + $0x170] sm:$0xff]
      %v335 = vld [vmem:[#allocation2 + $0x178] sm:$0xff]
      %v336 = vld [vmem:[#allocation2 + $0x180] sm:$0xff]
      %v337 = vld [vmem:[#allocation2 + $0x188] sm:$0xff]
      %v338 = vld [vmem:[#allocation2 + $0x190] sm:$0xff]
      %v339 = vld [vmem:[#allocation2 + $0x198] sm:$0xff]
      %v340 = vld [vmem:[#allocation2 + $0x1a0] sm:$0xff]
      %v341 = vld [vmem:[#allocation2 + $0x1a8] sm:$0xff]
      %v342 = vld [vmem:[#allocation2 + $0x1b0] sm:$0xff]
      %v343 = vld [vmem:[#allocation2 + $0x1b8] sm:$0xff]
      %v344 = vld [vmem:[#allocation2 + $0x1c0] sm:$0xff]
      %v345 = vld [vmem:[#allocation2 + $0x1c8] sm:$0xff]
      %v346 = vld [vmem:[#allocation2 + $0x1d0] sm:$0xff]
      %v347 = vld [vmem:[#allocation2 + $0x1d8] sm:$0xff]
      %v348 = vld [vmem:[#allocation2 + $0x1e0] sm:$0xff]
      %v349 = vld [vmem:[#allocation2 + $0x1e8] sm:$0xff]
      %v350 = vld [vmem:[#allocation2 + $0x1f0] sm:$0xff]
      %v351 = vld [vmem:[#allocation2 + $0x1f8] sm:$0xff]
      %v352 = vld [vmem:[%s198] sm:$0xf]
      %v353 = vld [vmem:[%s198 + $0x4] sm:$0xf]
      %v354 = vld [vmem:[%s198 + $0x8] sm:$0xf]
      %v355 = vld [vmem:[%s198 + $0xc] sm:$0xf]
      %v356 = vld [vmem:[%s198 + $0x10] sm:$0xf]
      %v357 = vld [vmem:[%s198 + $0x14] sm:$0xf]
      %v358 = vld [vmem:[%s198 + $0x18] sm:$0xf]
      %v359 = vld [vmem:[%s198 + $0x1c] sm:$0xf]
      %v360 = vld [vmem:[%s198 + $0x20] sm:$0xf]
      %v361 = vld [vmem:[%s198 + $0x24] sm:$0xf]
      %v362 = vld [vmem:[%s198 + $0x28] sm:$0xf]
      %v363 = vld [vmem:[%s198 + $0x2c] sm:$0xf]
      %v364 = vld [vmem:[%s198 + $0x30] sm:$0xf]
      %v365 = vld [vmem:[%s198 + $0x34] sm:$0xf]
      %v366 = vld [vmem:[%s198 + $0x38] sm:$0xf]
      %v367 = vld [vmem:[%s198 + $0x3c] sm:$0xf]
      %v368 = vld [vmem:[%s198 + $0x40] sm:$0xf]
      %v369 = vld [vmem:[%s198 + $0x44] sm:$0xf]
      %v370 = vld [vmem:[%s198 + $0x48] sm:$0xf]
      %v371 = vld [vmem:[%s198 + $0x4c] sm:$0xf]
      %v372 = vld [vmem:[%s198 + $0x50] sm:$0xf]
      %v373 = vld [vmem:[%s198 + $0x54] sm:$0xf]
      %v374 = vld [vmem:[%s198 + $0x58] sm:$0xf]
      %v375 = vld [vmem:[%s198 + $0x5c] sm:$0xf]
      %v376 = vld [vmem:[%s198 + $0x60] sm:$0xf]
      %v377 = vld [vmem:[%s198 + $0x64] sm:$0xf]
      %v378 = vld [vmem:[%s198 + $0x68] sm:$0xf]
      %v379 = vld [vmem:[%s198 + $0x6c] sm:$0xf]
      %v380 = vld [vmem:[%s198 + $0x70] sm:$0xf]
      %v381 = vld [vmem:[%s198 + $0x74] sm:$0xf]
      %v382 = vld [vmem:[%s198 + $0x78] sm:$0xf]
      %v383 = vld [vmem:[%s198 + $0x7c] sm:$0xf]
      %v384 = vld [vmem:[%s198 + $0x80] sm:$0xf]
      %v385 = vld [vmem:[%s198 + $0x84] sm:$0xf]
      %v386 = vld [vmem:[%s198 + $0x88] sm:$0xf]
      %v387 = vld [vmem:[%s198 + $0x8c] sm:$0xf]
      %v388 = vld [vmem:[%s198 + $0x90] sm:$0xf]
      %v389 = vld [vmem:[%s198 + $0x94] sm:$0xf]
      %v390 = vld [vmem:[%s198 + $0x98] sm:$0xf]
      %v391 = vld [vmem:[%s198 + $0x9c] sm:$0xf]
      %v392 = vld [vmem:[%s198 + $0xa0] sm:$0xf]
      %v393 = vld [vmem:[%s198 + $0xa4] sm:$0xf]
      %v394 = vld [vmem:[%s198 + $0xa8] sm:$0xf]
      %v395 = vld [vmem:[%s198 + $0xac] sm:$0xf]
      %v396 = vld [vmem:[%s198 + $0xb0] sm:$0xf]
      %v397 = vld [vmem:[%s198 + $0xb4] sm:$0xf]
      %v398 = vld [vmem:[%s198 + $0xb8] sm:$0xf]
      %v399 = vld [vmem:[%s198 + $0xbc] sm:$0xf]
      %v400 = vld [vmem:[%s198 + $0xc0] sm:$0xf]
      %v401 = vld [vmem:[%s198 + $0xc4] sm:$0xf]
      %v402 = vld [vmem:[%s198 + $0xc8] sm:$0xf]
      %v403 = vld [vmem:[%s198 + $0xcc] sm:$0xf]
      %v404 = vld [vmem:[%s198 + $0xd0] sm:$0xf]
      %v405 = vld [vmem:[%s198 + $0xd4] sm:$0xf]
      %v406 = vld [vmem:[%s198 + $0xd8] sm:$0xf]
      %v407 = vld [vmem:[%s198 + $0xdc] sm:$0xf]
      %v408 = vld [vmem:[%s198 + $0xe0] sm:$0xf]
      %v409 = vld [vmem:[%s198 + $0xe4] sm:$0xf]
      %v410 = vld [vmem:[%s198 + $0xe8] sm:$0xf]
      %v411 = vld [vmem:[%s198 + $0xec] sm:$0xf]
      %v412 = vld [vmem:[%s198 + $0xf0] sm:$0xf]
      %v413 = vld [vmem:[%s198 + $0xf4] sm:$0xf]
      %v414 = vld [vmem:[%s198 + $0xf8] sm:$0xf]
      %v415 = vld [vmem:[%s198 + $0xfc] sm:$0xf]
      %v416 = vld [vmem:[%s207] sm:$0xf]
      %v417 = vld [vmem:[%s207 + $0x4] sm:$0xf]
      %v418 = vld [vmem:[%s207 + $0x8] sm:$0xf]
      %v419 = vld [vmem:[%s207 + $0xc] sm:$0xf]
      %v420 = vld [vmem:[%s207 + $0x10] sm:$0xf]
      %v421 = vld [vmem:[%s207 + $0x14] sm:$0xf]
      %v422 = vld [vmem:[%s207 + $0x18] sm:$0x7]
      %v487 = vunpack.c.l.b16 %v352
      %v488 = vunpack.c.l.b16 %v353
      %v489 = vunpack.c.l.b16 %v354
      %v490 = vunpack.c.l.b16 %v355
      %v491 = vunpack.c.l.b16 %v356
      %v492 = vunpack.c.l.b16 %v357
      %v493 = vunpack.c.l.b16 %v358
      %v494 = vunpack.c.l.b16 %v359
      %v495 = vunpack.c.l.b16 %v360
      %v496 = vunpack.c.l.b16 %v361
      %v497 = vunpack.c.l.b16 %v362
      %v498 = vunpack.c.l.b16 %v363
      %v499 = vunpack.c.l.b16 %v364
      %v500 = vunpack.c.l.b16 %v365
      %v501 = vunpack.c.l.b16 %v366
      %v502 = vunpack.c.l.b16 %v367
      %v503 = vunpack.c.l.b16 %v368
      %v504 = vunpack.c.l.b16 %v369
      %v505 = vunpack.c.l.b16 %v370
      %v506 = vunpack.c.l.b16 %v371
      %v507 = vunpack.c.l.b16 %v372
      %v508 = vunpack.c.l.b16 %v373
      %v509 = vunpack.c.l.b16 %v374
      %v510 = vunpack.c.l.b16 %v375
      %v511 = vunpack.c.l.b16 %v376
      %v512 = vunpack.c.l.b16 %v377
      %v513 = vunpack.c.l.b16 %v378
      %v514 = vunpack.c.l.b16 %v379
      %v515 = vunpack.c.l.b16 %v380
      %v516 = vunpack.c.l.b16 %v381
      %v517 = vunpack.c.l.b16 %v382
      %v518 = vunpack.c.l.b16 %v383
      %v519 = vunpack.c.l.b16 %v384
      %v520 = vunpack.c.l.b16 %v385
      %v521 = vunpack.c.l.b16 %v386
      %v522 = vunpack.c.l.b16 %v387
      %v523 = vunpack.c.l.b16 %v388
      %v524 = vunpack.c.l.b16 %v389
      %v525 = vunpack.c.l.b16 %v390
      %v526 = vunpack.c.l.b16 %v391
      %v527 = vunpack.c.l.b16 %v392
      %v528 = vunpack.c.l.b16 %v393
      %v529 = vunpack.c.l.b16 %v394
      %v530 = vunpack.c.l.b16 %v395
      %v531 = vunpack.c.l.b16 %v396
      %v532 = vunpack.c.l.b16 %v397
      %v533 = vunpack.c.l.b16 %v398
      %v534 = vunpack.c.l.b16 %v399
      %v535 = vunpack.c.l.b16 %v400
      %v536 = vunpack.c.l.b16 %v401
      %v537 = vunpack.c.l.b16 %v402
      %v538 = vunpack.c.l.b16 %v403
      %v539 = vunpack.c.l.b16 %v404
      %v540 = vunpack.c.l.b16 %v405
      %v541 = vunpack.c.l.b16 %v406
      %v542 = vunpack.c.l.b16 %v407
      %v543 = vunpack.c.l.b16 %v408
      %v544 = vunpack.c.l.b16 %v409
      %v545 = vunpack.c.l.b16 %v410
      %v546 = vunpack.c.l.b16 %v411
      %v547 = vunpack.c.l.b16 %v412
      %v548 = vunpack.c.l.b16 %v413
      %v549 = vunpack.c.l.b16 %v414
      %v550 = vunpack.c.l.b16 %v415
      %v551 = vpack.c.b16 %v488, %v487
      %v552 = vpack.c.b16 %v490, %v489
      %v553 = vpack.c.b16 %v492, %v491
      %v554 = vpack.c.b16 %v494, %v493
      %v555 = vpack.c.b16 %v496, %v495
      %v556 = vpack.c.b16 %v498, %v497
      %v557 = vpack.c.b16 %v500, %v499
      %v558 = vpack.c.b16 %v502, %v501
      %v559 = vpack.c.b16 %v504, %v503
      %v560 = vpack.c.b16 %v506, %v505
      %v561 = vpack.c.b16 %v508, %v507
      %v562 = vpack.c.b16 %v510, %v509
      %v563 = vpack.c.b16 %v512, %v511
      %v564 = vpack.c.b16 %v514, %v513
      %v565 = vpack.c.b16 %v516, %v515
      %v566 = vpack.c.b16 %v518, %v517
      %v567 = vpack.c.b16 %v520, %v519
      %v568 = vpack.c.b16 %v522, %v521
      %v569 = vpack.c.b16 %v524, %v523
      %v570 = vpack.c.b16 %v526, %v525
      %v571 = vpack.c.b16 %v528, %v527
      %v572 = vpack.c.b16 %v530, %v529
      %v573 = vpack.c.b16 %v532, %v531
      %v574 = vpack.c.b16 %v534, %v533
      %v575 = vpack.c.b16 %v536, %v535
      %v576 = vpack.c.b16 %v538, %v537
      %v577 = vpack.c.b16 %v540, %v539
      %v578 = vpack.c.b16 %v542, %v541
      %v579 = vpack.c.b16 %v544, %v543
      %v580 = vpack.c.b16 %v546, %v545
      %v581 = vpack.c.b16 %v548, %v547
      %v582 = vpack.c.b16 %v550, %v549
      %v590 = vunpack.c.l.b16 %v416
      %v591 = vunpack.c.l.b16 %v417
      %v592 = vunpack.c.l.b16 %v418
      %v593 = vunpack.c.l.b16 %v419
      %v594 = vunpack.c.l.b16 %v420
      %v595 = vunpack.c.l.b16 %v421
      %v596 = vunpack.c.l.b16 %v422
      %v597 = vpack.c.b16 %v591, %v590
      %v598 = vpack.c.b16 %v593, %v592
      %v599 = vpack.c.b16 %v595, %v594
      %v600 = vpack.c.b16 %v596, %v596
      %vm604 = vcmask 441344
      %v606 = vsel %vm604, %v551, 0
      %v609 = vsel %vm604, %v552, 0
      %v612 = vsel %vm604, %v553, 0
      %v615 = vsel %vm604, %v554, 0
      %v618 = vsel %vm604, %v555, 0
      %v621 = vsel %vm604, %v556, 0
      %v624 = vsel %vm604, %v557, 0
      %v627 = vsel %vm604, %v558, 0
      %v630 = vsel %vm604, %v559, 0
      %v633 = vsel %vm604, %v560, 0
      %v636 = vsel %vm604, %v561, 0
      %v639 = vsel %vm604, %v562, 0
      %v642 = vsel %vm604, %v563, 0
      %v645 = vsel %vm604, %v564, 0
      %v648 = vsel %vm604, %v565, 0
      %v651 = vsel %vm604, %v566, 0
      %v654 = vsel %vm604, %v567, 0
      %v657 = vsel %vm604, %v568, 0
      %v660 = vsel %vm604, %v569, 0
      %v663 = vsel %vm604, %v570, 0
      %v666 = vsel %vm604, %v571, 0
      %v669 = vsel %vm604, %v572, 0
      %v672 = vsel %vm604, %v573, 0
      %v675 = vsel %vm604, %v574, 0
      %v678 = vsel %vm604, %v575, 0
      %v681 = vsel %vm604, %v576, 0
      %v684 = vsel %vm604, %v577, 0
      %v687 = vsel %vm604, %v578, 0
      %v690 = vsel %vm604, %v579, 0
      %v693 = vsel %vm604, %v580, 0
      %v696 = vsel %vm604, %v581, 0
      %v699 = vsel %vm604, %v582, 0
      %vm701 = vcmask 1042432
      %v703 = vsel %vm701, %v600, 0
      %705 = vmatprep.subr.bf16.mxu0 0
      %706 = vmatpush1.bf16.msra.mxu0 %v597
      %707 = vmatprep.subr.bf16.mxu0 0
      %708 = vmatpush1.bf16.msra.mxu0 %v598
      %709 = vmatprep.subr.bf16.mxu0 0
      %710 = vmatpush1.bf16.msra.mxu0 %v599
      %711 = vmatprep.subr.bf16.mxu0 0
      %712 = vmatpush1.bf16.msra.mxu0 %v703
      %713 = vmatprep.subr.bf16.mxu0 0
      %714 = vmatpush1.bf16.msra.mxu0 0
      %715 = vmatprep.subr.bf16.mxu0 0
      %716 = vmatpush1.bf16.msra.mxu0 0
      %717 = vmatprep.subr.bf16.mxu0 0
      %718 = vmatpush1.bf16.msra.mxu0 0
      %719 = vmatprep.subr.bf16.mxu0 0
      %720 = vmatpush1.bf16.msra.mxu0 0
      %721 = vmatprep.subr.bf16.mxu0 0
      %722 = vmatpush1.bf16.msra.mxu0 0
      %723 = vmatprep.subr.bf16.mxu0 0
      %724 = vmatpush1.bf16.msra.mxu0 0
      %725 = vmatprep.subr.bf16.mxu0 0
      %726 = vmatpush1.bf16.msra.mxu0 0
      %727 = vmatprep.subr.bf16.mxu0 0
      %728 = vmatpush1.bf16.msra.mxu0 0
      %729 = vmatprep.subr.bf16.mxu0 0
      %730 = vmatpush1.bf16.msra.mxu0 0
      %731 = vmatprep.subr.bf16.mxu0 0
      %732 = vmatpush1.bf16.msra.mxu0 0
      %733 = vmatprep.subr.bf16.mxu0 0
      %734 = vmatpush1.bf16.msra.mxu0 0
      %735 = vmatprep.subr.bf16.mxu0 0
      %736 = vmatpush1.bf16.msra.mxu0 0
      %737 = vmatprep.mubr.bf16.mxu0 0
      %738 = vmatmul.mubr.bf16.gmra.mrb[0].mxu0 %v606
      %v739 = vpop.f32.mrb[0].mxu0
      %v740 = vadd.f32 0.0, %v739
      %v741 = vpop.f32.mrb[0].mxu0
      %v742 = vpop.f32.mrb[0].mxu0
      %v743 = vadd.f32 0.0, %v742
      %v744 = vpop.f32.mrb[0].mxu0
      %745 = vmatprep.mubr.bf16.mxu0 0
      %746 = vmatmul.mubr.bf16.gmra.mrb[0].mxu0 %v609
      %v747 = vpop.f32.mrb[0].mxu0
      %v748 = vadd.f32 0.0, %v747
      %v749 = vpop.f32.mrb[0].mxu0
      %v750 = vpop.f32.mrb[0].mxu0
      %v751 = vadd.f32 0.0, %v750
      %v752 = vpop.f32.mrb[0].mxu0
      %753 = vmatprep.mubr.bf16.mxu0 0
      %754 = vmatmul.mubr.bf16.gmra.mrb[0].mxu0 %v612
      %v755 = vpop.f32.mrb[0].mxu0
      %v756 = vadd.f32 0.0, %v755
      %v757 = vpop.f32.mrb[0].mxu0
      %v758 = vpop.f32.mrb[0].mxu0
      %v759 = vadd.f32 0.0, %v758
      %v760 = vpop.f32.mrb[0].mxu0
      %761 = vmatprep.mubr.bf16.mxu0 0
      %762 = vmatmul.mubr.bf16.gmra.mrb[0].mxu0 %v615
      %v763 = vpop.f32.mrb[0].mxu0
      %v764 = vadd.f32 0.0, %v763
      %v765 = vpop.f32.mrb[0].mxu0
      %v766 = vpop.f32.mrb[0].mxu0
      %v767 = vadd.f32 0.0, %v766
      %v768 = vpop.f32.mrb[0].mxu0
      %769 = vmatprep.mubr.bf16.mxu0 0
      %770 = vmatmul.mubr.bf16.gmra.mrb[0].mxu0 %v618
      %v771 = vpop.f32.mrb[0].mxu0
      %v772 = vadd.f32 0.0, %v771
      %v773 = vpop.f32.mrb[0].mxu0
      %v774 = vpop.f32.mrb[0].mxu0
      %v775 = vadd.f32 0.0, %v774
      %v776 = vpop.f32.mrb[0].mxu0
      %777 = vmatprep.mubr.bf16.mxu0 0
      %778 = vmatmul.mubr.bf16.gmra.mrb[0].mxu0 %v621
      %v779 = vpop.f32.mrb[0].mxu0
      %v780 = vadd.f32 0.0, %v779
      %v781 = vpop.f32.mrb[0].mxu0
      %v782 = vpop.f32.mrb[0].mxu0
      %v783 = vadd.f32 0.0, %v782
      %v784 = vpop.f32.mrb[0].mxu0
      %785 = vmatprep.mubr.bf16.mxu0 0
      %786 = vmatmul.mubr.bf16.gmra.mrb[0].mxu0 %v624
      %v787 = vpop.f32.mrb[0].mxu0
      %v788 = vadd.f32 0.0, %v787
      %v789 = vpop.f32.mrb[0].mxu0
      %v790 = vpop.f32.mrb[0].mxu0
      %v791 = vadd.f32 0.0, %v790
      %v792 = vpop.f32.mrb[0].mxu0
      %793 = vmatprep.mubr.bf16.mxu0 0
      %794 = vmatmul.mubr.bf16.gmra.mrb[0].mxu0 %v627
      %v795 = vpop.f32.mrb[0].mxu0
      %v796 = vadd.f32 0.0, %v795
      %v797 = vpop.f32.mrb[0].mxu0
      %v798 = vpop.f32.mrb[0].mxu0
      %v799 = vadd.f32 0.0, %v798
      %v800 = vpop.f32.mrb[0].mxu0
      %801 = vmatprep.mubr.bf16.mxu0 0
      %802 = vmatmul.mubr.bf16.gmra.mrb[0].mxu0 %v630
      %v803 = vpop.f32.mrb[0].mxu0
      %v804 = vadd.f32 0.0, %v803
      %v805 = vpop.f32.mrb[0].mxu0
      %v806 = vpop.f32.mrb[0].mxu0
      %v807 = vadd.f32 0.0, %v806
      %v808 = vpop.f32.mrb[0].mxu0
      %809 = vmatprep.mubr.bf16.mxu0 0
      %810 = vmatmul.mubr.bf16.gmra.mrb[0].mxu0 %v633
      %v811 = vpop.f32.mrb[0].mxu0
      %v812 = vadd.f32 0.0, %v811
      %v813 = vpop.f32.mrb[0].mxu0
      %v814 = vpop.f32.mrb[0].mxu0
      %v815 = vadd.f32 0.0, %v814
      %v816 = vpop.f32.mrb[0].mxu0
      %817 = vmatprep.mubr.bf16.mxu0 0
      %818 = vmatmul.mubr.bf16.gmra.mrb[0].mxu0 %v636
      %v819 = vpop.f32.mrb[0].mxu0
      %v820 = vadd.f32 0.0, %v819
      %v821 = vpop.f32.mrb[0].mxu0
      %v822 = vpop.f32.mrb[0].mxu0
      %v823 = vadd.f32 0.0, %v822
      %v824 = vpop.f32.mrb[0].mxu0
      %825 = vmatprep.mubr.bf16.mxu0 0
      %826 = vmatmul.mubr.bf16.gmra.mrb[0].mxu0 %v639
      %v827 = vpop.f32.mrb[0].mxu0
      %v828 = vadd.f32 0.0, %v827
      %v829 = vpop.f32.mrb[0].mxu0
      %v830 = vpop.f32.mrb[0].mxu0
      %v831 = vadd.f32 0.0, %v830
      %v832 = vpop.f32.mrb[0].mxu0
      %833 = vmatprep.mubr.bf16.mxu0 0
      %834 = vmatmul.mubr.bf16.gmra.mrb[0].mxu0 %v642
      %v835 = vpop.f32.mrb[0].mxu0
      %v836 = vadd.f32 0.0, %v835
      %v837 = vpop.f32.mrb[0].mxu0
      %v838 = vpop.f32.mrb[0].mxu0
      %v839 = vadd.f32 0.0, %v838
      %v840 = vpop.f32.mrb[0].mxu0
      %841 = vmatprep.mubr.bf16.mxu0 0
      %842 = vmatmul.mubr.bf16.gmra.mrb[0].mxu0 %v645
      %v843 = vpop.f32.mrb[0].mxu0
      %v844 = vadd.f32 0.0, %v843
      %v845 = vpop.f32.mrb[0].mxu0
      %v846 = vpop.f32.mrb[0].mxu0
      %v847 = vadd.f32 0.0, %v846
      %v848 = vpop.f32.mrb[0].mxu0
      %849 = vmatprep.mubr.bf16.mxu0 0
      %850 = vmatmul.mubr.bf16.gmra.mrb[0].mxu0 %v648
      %v851 = vpop.f32.mrb[0].mxu0
      %v852 = vadd.f32 0.0, %v851
      %v853 = vpop.f32.mrb[0].mxu0
      %v854 = vpop.f32.mrb[0].mxu0
      %v855 = vadd.f32 0.0, %v854
      %v856 = vpop.f32.mrb[0].mxu0
      %857 = vmatprep.mubr.bf16.mxu0 0
      %858 = vmatmul.mubr.bf16.gmra.mrb[0].mxu0 %v651
      %v859 = vpop.f32.mrb[0].mxu0
      %v860 = vadd.f32 0.0, %v859
      %v861 = vpop.f32.mrb[0].mxu0
      %v862 = vpop.f32.mrb[0].mxu0
      %v863 = vadd.f32 0.0, %v862
      %v864 = vpop.f32.mrb[0].mxu0
      %865 = vmatprep.mubr.bf16.mxu0 0
      %866 = vmatmul.mubr.bf16.gmra.mrb[0].mxu0 %v654
      %v867 = vpop.f32.mrb[0].mxu0
      %v868 = vadd.f32 0.0, %v867
      %v869 = vpop.f32.mrb[0].mxu0
      %v870 = vpop.f32.mrb[0].mxu0
      %v871 = vadd.f32 0.0, %v870
      %v872 = vpop.f32.mrb[0].mxu0
      %873 = vmatprep.mubr.bf16.mxu0 0
      %874 = vmatmul.mubr.bf16.gmra.mrb[0].mxu0 %v657
      %v875 = vpop.f32.mrb[0].mxu0
      %v876 = vadd.f32 0.0, %v875
      %v877 = vpop.f32.mrb[0].mxu0
      %v878 = vpop.f32.mrb[0].mxu0
      %v879 = vadd.f32 0.0, %v878
      %v880 = vpop.f32.mrb[0].mxu0
      %881 = vmatprep.mubr.bf16.mxu0 0
      %882 = vmatmul.mubr.bf16.gmra.mrb[0].mxu0 %v660
      %v883 = vpop.f32.mrb[0].mxu0
      %v884 = vadd.f32 0.0, %v883
      %v885 = vpop.f32.mrb[0].mxu0
      %v886 = vpop.f32.mrb[0].mxu0
      %v887 = vadd.f32 0.0, %v886
      %v888 = vpop.f32.mrb[0].mxu0
      %889 = vmatprep.mubr.bf16.mxu0 0
      %890 = vmatmul.mubr.bf16.gmra.mrb[0].mxu0 %v663
      %v891 = vpop.f32.mrb[0].mxu0
      %v892 = vadd.f32 0.0, %v891
      %v893 = vpop.f32.mrb[0].mxu0
      %v894 = vpop.f32.mrb[0].mxu0
      %v895 = vadd.f32 0.0, %v894
      %v896 = vpop.f32.mrb[0].mxu0
      %897 = vmatprep.mubr.bf16.mxu0 0
      %898 = vmatmul.mubr.bf16.gmra.mrb[0].mxu0 %v666
      %v899 = vpop.f32.mrb[0].mxu0
      %v900 = vadd.f32 0.0, %v899
      %v901 = vpop.f32.mrb[0].mxu0
      %v902 = vpop.f32.mrb[0].mxu0
      %v903 = vadd.f32 0.0, %v902
      %v904 = vpop.f32.mrb[0].mxu0
      %905 = vmatprep.mubr.bf16.mxu0 0
      %906 = vmatmul.mubr.bf16.gmra.mrb[0].mxu0 %v669
      %v907 = vpop.f32.mrb[0].mxu0
      %v908 = vadd.f32 0.0, %v907
      %v909 = vpop.f32.mrb[0].mxu0
      %v910 = vpop.f32.mrb[0].mxu0
      %v911 = vadd.f32 0.0, %v910
      %v912 = vpop.f32.mrb[0].mxu0
      %913 = vmatprep.mubr.bf16.mxu0 0
      %914 = vmatmul.mubr.bf16.gmra.mrb[0].mxu0 %v672
      %v915 = vpop.f32.mrb[0].mxu0
      %v916 = vadd.f32 0.0, %v915
      %v917 = vpop.f32.mrb[0].mxu0
      %v918 = vpop.f32.mrb[0].mxu0
      %v919 = vadd.f32 0.0, %v918
      %v920 = vpop.f32.mrb[0].mxu0
      %921 = vmatprep.mubr.bf16.mxu0 0
      %922 = vmatmul.mubr.bf16.gmra.mrb[0].mxu0 %v675
      %v923 = vpop.f32.mrb[0].mxu0
      %v924 = vadd.f32 0.0, %v923
      %v925 = vpop.f32.mrb[0].mxu0
      %v926 = vpop.f32.mrb[0].mxu0
      %v927 = vadd.f32 0.0, %v926
      %v928 = vpop.f32.mrb[0].mxu0
      %929 = vmatprep.mubr.bf16.mxu0 0
      %930 = vmatmul.mubr.bf16.gmra.mrb[0].mxu0 %v678
      %v931 = vpop.f32.mrb[0].mxu0
      %v932 = vadd.f32 0.0, %v931
      %v933 = vpop.f32.mrb[0].mxu0
      %v934 = vpop.f32.mrb[0].mxu0
      %v935 = vadd.f32 0.0, %v934
      %v936 = vpop.f32.mrb[0].mxu0
      %937 = vmatprep.mubr.bf16.mxu0 0
      %938 = vmatmul.mubr.bf16.gmra.mrb[0].mxu0 %v681
      %v939 = vpop.f32.mrb[0].mxu0
      %v940 = vadd.f32 0.0, %v939
      %v941 = vpop.f32.mrb[0].mxu0
      %v942 = vpop.f32.mrb[0].mxu0
      %v943 = vadd.f32 0.0, %v942
      %v944 = vpop.f32.mrb[0].mxu0
      %945 = vmatprep.mubr.bf16.mxu0 0
      %946 = vmatmul.mubr.bf16.gmra.mrb[0].mxu0 %v684
      %v947 = vpop.f32.mrb[0].mxu0
      %v948 = vadd.f32 0.0, %v947
      %v949 = vpop.f32.mrb[0].mxu0
      %v950 = vpop.f32.mrb[0].mxu0
      %v951 = vadd.f32 0.0, %v950
      %v952 = vpop.f32.mrb[0].mxu0
      %953 = vmatprep.mubr.bf16.mxu0 0
      %954 = vmatmul.mubr.bf16.gmra.mrb[0].mxu0 %v687
      %v955 = vpop.f32.mrb[0].mxu0
      %v956 = vadd.f32 0.0, %v955
      %v957 = vpop.f32.mrb[0].mxu0
      %v958 = vpop.f32.mrb[0].mxu0
      %v959 = vadd.f32 0.0, %v958
      %v960 = vpop.f32.mrb[0].mxu0
      %961 = vmatprep.mubr.bf16.mxu0 0
      %962 = vmatmul.mubr.bf16.gmra.mrb[0].mxu0 %v690
      %v963 = vpop.f32.mrb[0].mxu0
      %v964 = vadd.f32 0.0, %v963
      %v965 = vpop.f32.mrb[0].mxu0
      %v966 = vpop.f32.mrb[0].mxu0
      %v967 = vadd.f32 0.0, %v966
      %v968 = vpop.f32.mrb[0].mxu0
      %969 = vmatprep.mubr.bf16.mxu0 0
      %970 = vmatmul.mubr.bf16.gmra.mrb[0].mxu0 %v693
      %v971 = vpop.f32.mrb[0].mxu0
      %v972 = vadd.f32 0.0, %v971
      %v973 = vpop.f32.mrb[0].mxu0
      %v974 = vpop.f32.mrb[0].mxu0
      %v975 = vadd.f32 0.0, %v974
      %v976 = vpop.f32.mrb[0].mxu0
      %977 = vmatprep.mubr.bf16.mxu0 0
      %978 = vmatmul.mubr.bf16.gmra.mrb[0].mxu0 %v696
      %v979 = vpop.f32.mrb[0].mxu0
      %v980 = vadd.f32 0.0, %v979
      %v981 = vpop.f32.mrb[0].mxu0
      %v982 = vpop.f32.mrb[0].mxu0
      %v983 = vadd.f32 0.0, %v982
      %v984 = vpop.f32.mrb[0].mxu0
      %985 = vmatprep.mubr.bf16.mxu0 0
      %986 = vmatmul.mubr.bf16.gmra.mrb[0].mxu0 %v699
      %v987 = vpop.f32.mrb[0].mxu0
      %v988 = vadd.f32 0.0, %v987
      %v989 = vpop.f32.mrb[0].mxu0
      %v990 = vpop.f32.mrb[0].mxu0
      %v991 = vadd.f32 0.0, %v990
      %v992 = vpop.f32.mrb[0].mxu0
      %993 = vdwg.mxu0
      %v994 = vadd.f32 %v288, %v740
      %v995 = vadd.f32 %v289, %v743
      %v996 = vadd.f32 %v290, %v748
      %v997 = vadd.f32 %v291, %v751
      %v998 = vadd.f32 %v292, %v756
      %v999 = vadd.f32 %v293, %v759
      %v1000 = vadd.f32 %v294, %v764
      %v1001 = vadd.f32 %v295, %v767
      %v1002 = vadd.f32 %v296, %v772
      %v1003 = vadd.f32 %v297, %v775
      %v1004 = vadd.f32 %v298, %v780
      %v1005 = vadd.f32 %v299, %v783
      %v1006 = vadd.f32 %v300, %v788
      %v1007 = vadd.f32 %v301, %v791
      %v1008 = vadd.f32 %v302, %v796
      %v1009 = vadd.f32 %v303, %v799
      %v1010 = vadd.f32 %v304, %v804
      %v1011 = vadd.f32 %v305, %v807
      %v1012 = vadd.f32 %v306, %v812
      %v1013 = vadd.f32 %v307, %v815
      %v1014 = vadd.f32 %v308, %v820
      %v1015 = vadd.f32 %v309, %v823
      %v1016 = vadd.f32 %v310, %v828
      %v1017 = vadd.f32 %v311, %v831
      %v1018 = vadd.f32 %v312, %v836
      %v1019 = vadd.f32 %v313, %v839
      %v1020 = vadd.f32 %v314, %v844
      %v1021 = vadd.f32 %v315, %v847
      %v1022 = vadd.f32 %v316, %v852
      %v1023 = vadd.f32 %v317, %v855
      %v1024 = vadd.f32 %v318, %v860
      %v1025 = vadd.f32 %v319, %v863
      %v1026 = vadd.f32 %v320, %v868
      %v1027 = vadd.f32 %v321, %v871
      %v1028 = vadd.f32 %v322, %v876
      %v1029 = vadd.f32 %v323, %v879
      %v1030 = vadd.f32 %v324, %v884
      %v1031 = vadd.f32 %v325, %v887
      %v1032 = vadd.f32 %v326, %v892
      %v1033 = vadd.f32 %v327, %v895
      %v1034 = vadd.f32 %v328, %v900
      %v1035 = vadd.f32 %v329, %v903
      %v1036 = vadd.f32 %v330, %v908
      %v1037 = vadd.f32 %v331, %v911
      %v1038 = vadd.f32 %v332, %v916
      %v1039 = vadd.f32 %v333, %v919
      %v1040 = vadd.f32 %v334, %v924
      %v1041 = vadd.f32 %v335, %v927
      %v1042 = vadd.f32 %v336, %v932
      %v1043 = vadd.f32 %v337, %v935
      %v1044 = vadd.f32 %v338, %v940
      %v1045 = vadd.f32 %v339, %v943
      %v1046 = vadd.f32 %v340, %v948
      %v1047 = vadd.f32 %v341, %v951
      %v1048 = vadd.f32 %v342, %v956
      %v1049 = vadd.f32 %v343, %v959
      %v1050 = vadd.f32 %v344, %v964
      %v1051 = vadd.f32 %v345, %v967
      %v1052 = vadd.f32 %v346, %v972
      %v1053 = vadd.f32 %v347, %v975
      %v1054 = vadd.f32 %v348, %v980
      %v1055 = vadd.f32 %v349, %v983
      %v1056 = vadd.f32 %v350, %v988
      %v1057 = vadd.f32 %v351, %v991
      %vm1058 = vcmask 97280
      %1059 = vst.msk [vmem:[#allocation2] sm:$0xff] %vm1058, %v994
      %1060 = vst.msk [vmem:[#allocation2 + $0x8] sm:$0xff] %vm1058, %v995
      %1061 = vst.msk [vmem:[#allocation2 + $0x10] sm:$0xff] %vm1058, %v996
      %1062 = vst.msk [vmem:[#allocation2 + $0x18] sm:$0xff] %vm1058, %v997
      %1063 = vst.msk [vmem:[#allocation2 + $0x20] sm:$0xff] %vm1058, %v998
      %1064 = vst.msk [vmem:[#allocation2 + $0x28] sm:$0xff] %vm1058, %v999
      %1065 = vst.msk [vmem:[#allocation2 + $0x30] sm:$0xff] %vm1058, %v1000
      %1066 = vst.msk [vmem:[#allocation2 + $0x38] sm:$0xff] %vm1058, %v1001
      %1067 = vst.msk [vmem:[#allocation2 + $0x40] sm:$0xff] %vm1058, %v1002
      %1068 = vst.msk [vmem:[#allocation2 + $0x48] sm:$0xff] %vm1058, %v1003
      %1069 = vst.msk [vmem:[#allocation2 + $0x50] sm:$0xff] %vm1058, %v1004
      %1070 = vst.msk [vmem:[#allocation2 + $0x58] sm:$0xff] %vm1058, %v1005
      %1071 = vst.msk [vmem:[#allocation2 + $0x60] sm:$0xff] %vm1058, %v1006
      %1072 = vst.msk [vmem:[#allocation2 + $0x68] sm:$0xff] %vm1058, %v1007
      %1073 = vst.msk [vmem:[#allocation2 + $0x70] sm:$0xff] %vm1058, %v1008
      %1074 = vst.msk [vmem:[#allocation2 + $0x78] sm:$0xff] %vm1058, %v1009
      %1075 = vst.msk [vmem:[#allocation2 + $0x80] sm:$0xff] %vm1058, %v1010
      %1076 = vst.msk [vmem:[#allocation2 + $0x88] sm:$0xff] %vm1058, %v1011
      %1077 = vst.msk [vmem:[#allocation2 + $0x90] sm:$0xff] %vm1058, %v1012
      %1078 = vst.msk [vmem:[#allocation2 + $0x98] sm:$0xff] %vm1058, %v1013
      %1079 = vst.msk [vmem:[#allocation2 + $0xa0] sm:$0xff] %vm1058, %v1014
      %1080 = vst.msk [vmem:[#allocation2 + $0xa8] sm:$0xff] %vm1058, %v1015
      %1081 = vst.msk [vmem:[#allocation2 + $0xb0] sm:$0xff] %vm1058, %v1016
      %1082 = vst.msk [vmem:[#allocation2 + $0xb8] sm:$0xff] %vm1058, %v1017
      %1083 = vst.msk [vmem:[#allocation2 + $0xc0] sm:$0xff] %vm1058, %v1018
      %1084 = vst.msk [vmem:[#allocation2 + $0xc8] sm:$0xff] %vm1058, %v1019
      %1085 = vst.msk [vmem:[#allocation2 + $0xd0] sm:$0xff] %vm1058, %v1020
      %1086 = vst.msk [vmem:[#allocation2 + $0xd8] sm:$0xff] %vm1058, %v1021
      %1087 = vst.msk [vmem:[#allocation2 + $0xe0] sm:$0xff] %vm1058, %v1022
      %1088 = vst.msk [vmem:[#allocation2 + $0xe8] sm:$0xff] %vm1058, %v1023
      %1089 = vst.msk [vmem:[#allocation2 + $0xf0] sm:$0xff] %vm1058, %v1024
      %1090 = vst.msk [vmem:[#allocation2 + $0xf8] sm:$0xff] %vm1058, %v1025
      %1091 = vst.msk [vmem:[#allocation2 + $0x100] sm:$0xff] %vm1058, %v1026
      %1092 = vst.msk [vmem:[#allocation2 + $0x108] sm:$0xff] %vm1058, %v1027
      %1093 = vst.msk [vmem:[#allocation2 + $0x110] sm:$0xff] %vm1058, %v1028
      %1094 = vst.msk [vmem:[#allocation2 + $0x118] sm:$0xff] %vm1058, %v1029
      %1095 = vst.msk [vmem:[#allocation2 + $0x120] sm:$0xff] %vm1058, %v1030
      %1096 = vst.msk [vmem:[#allocation2 + $0x128] sm:$0xff] %vm1058, %v1031
      %1097 = vst.msk [vmem:[#allocation2 + $0x130] sm:$0xff] %vm1058, %v1032
      %1098 = vst.msk [vmem:[#allocation2 + $0x138] sm:$0xff] %vm1058, %v1033
      %1099 = vst.msk [vmem:[#allocation2 + $0x140] sm:$0xff] %vm1058, %v1034
      %1100 = vst.msk [vmem:[#allocation2 + $0x148] sm:$0xff] %vm1058, %v1035
      %1101 = vst.msk [vmem:[#allocation2 + $0x150] sm:$0xff] %vm1058, %v1036
      %1102 = vst.msk [vmem:[#allocation2 + $0x158] sm:$0xff] %vm1058, %v1037
      %1103 = vst.msk [vmem:[#allocation2 + $0x160] sm:$0xff] %vm1058, %v1038
      %1104 = vst.msk [vmem:[#allocation2 + $0x168] sm:$0xff] %vm1058, %v1039
      %1105 = vst.msk [vmem:[#allocation2 + $0x170] sm:$0xff] %vm1058, %v1040
      %1106 = vst.msk [vmem:[#allocation2 + $0x178] sm:$0xff] %vm1058, %v1041
      %1107 = vst.msk [vmem:[#allocation2 + $0x180] sm:$0xff] %vm1058, %v1042
      %1108 = vst.msk [vmem:[#allocation2 + $0x188] sm:$0xff] %vm1058, %v1043
      %1109 = vst.msk [vmem:[#allocation2 + $0x190] sm:$0xff] %vm1058, %v1044
      %1110 = vst.msk [vmem:[#allocation2 + $0x198] sm:$0xff] %vm1058, %v1045
      %1111 = vst.msk [vmem:[#allocation2 + $0x1a0] sm:$0xff] %vm1058, %v1046
      %1112 = vst.msk [vmem:[#allocation2 + $0x1a8] sm:$0xff] %vm1058, %v1047
      %1113 = vst.msk [vmem:[#allocation2 + $0x1b0] sm:$0xff] %vm1058, %v1048
      %1114 = vst.msk [vmem:[#allocation2 + $0x1b8] sm:$0xff] %vm1058, %v1049
      %1115 = vst.msk [vmem:[#allocation2 + $0x1c0] sm:$0xff] %vm1058, %v1050
      %1116 = vst.msk [vmem:[#allocation2 + $0x1c8] sm:$0xff] %vm1058, %v1051
      %1117 = vst.msk [vmem:[#allocation2 + $0x1d0] sm:$0xff] %vm1058, %v1052
      %1118 = vst.msk [vmem:[#allocation2 + $0x1d8] sm:$0xff] %vm1058, %v1053
      %1119 = vst.msk [vmem:[#allocation2 + $0x1e0] sm:$0xff] %vm1058, %v1054
      %1120 = vst.msk [vmem:[#allocation2 + $0x1e8] sm:$0xff] %vm1058, %v1055
      %1121 = vst.msk [vmem:[#allocation2 + $0x1f0] sm:$0xff] %vm1058, %v1056
      %1122 = vst.msk [vmem:[#allocation2 + $0x1f8] sm:$0xff] %vm1058, %v1057
      // Predicated region
      $region33: #{a_call__.7} parent=27 // pred_check
        %p1123 = pneg %p219
      $region34: #{a_call__.7} parent=27 // pred_check_branch
        %1125 = sbr.rel (%p1123) target = $region36
      $region35: #{a_call__.7} parent=27 // pred_region
        %v1126 = vld [vmem:[#allocation2] sm:$0xff]
        %v1127 = vld [vmem:[#allocation2 + $0x8] sm:$0xff]
        %v1128 = vld [vmem:[#allocation2 + $0x10] sm:$0xff]
        %v1129 = vld [vmem:[#allocation2 + $0x18] sm:$0xff]
        %v1130 = vld [vmem:[#allocation2 + $0x20] sm:$0xff]
        %v1131 = vld [vmem:[#allocation2 + $0x28] sm:$0xff]
        %v1132 = vld [vmem:[#allocation2 + $0x30] sm:$0xff]
        %v1133 = vld [vmem:[#allocation2 + $0x38] sm:$0xff]
        %v1134 = vld [vmem:[#allocation2 + $0x40] sm:$0xff]
        %v1135 = vld [vmem:[#allocation2 + $0x48] sm:$0xff]
        %v1136 = vld [vmem:[#allocation2 + $0x50] sm:$0xff]
        %v1137 = vld [vmem:[#allocation2 + $0x58] sm:$0xff]
        %v1138 = vld [vmem:[#allocation2 + $0x60] sm:$0xff]
        %v1139 = vld [vmem:[#allocation2 + $0x68] sm:$0xff]
        %v1140 = vld [vmem:[#allocation2 + $0x70] sm:$0xff]
        %v1141 = vld [vmem:[#allocation2 + $0x78] sm:$0xff]
        %v1142 = vld [vmem:[#allocation2 + $0x80] sm:$0xff]
        %v1143 = vld [vmem:[#allocation2 + $0x88] sm:$0xff]
        %v1144 = vld [vmem:[#allocation2 + $0x90] sm:$0xff]
        %v1145 = vld [vmem:[#allocation2 + $0x98] sm:$0xff]
        %v1146 = vld [vmem:[#allocation2 + $0xa0] sm:$0xff]
        %v1147 = vld [vmem:[#allocation2 + $0xa8] sm:$0xff]
        %v1148 = vld [vmem:[#allocation2 + $0xb0] sm:$0xff]
        %v1149 = vld [vmem:[#allocation2 + $0xb8] sm:$0xff]
        %v1150 = vld [vmem:[#allocation2 + $0xc0] sm:$0xff]
        %v1151 = vld [vmem:[#allocation2 + $0xc8] sm:$0xff]
        %v1152 = vld [vmem:[#allocation2 + $0xd0] sm:$0xff]
        %v1153 = vld [vmem:[#allocation2 + $0xd8] sm:$0xff]
        %v1154 = vld [vmem:[#allocation2 + $0xe0] sm:$0xff]
        %v1155 = vld [vmem:[#allocation2 + $0xe8] sm:$0xff]
        %v1156 = vld [vmem:[#allocation2 + $0xf0] sm:$0xff]
        %v1157 = vld [vmem:[#allocation2 + $0xf8] sm:$0xff]
        %v1158 = vld [vmem:[#allocation2 + $0x100] sm:$0xff]
        %v1159 = vld [vmem:[#allocation2 + $0x108] sm:$0xff]
        %v1160 = vld [vmem:[#allocation2 + $0x110] sm:$0xff]
        %v1161 = vld [vmem:[#allocation2 + $0x118] sm:$0xff]
        %v1162 = vld [vmem:[#allocation2 + $0x120] sm:$0xff]
        %v1163 = vld [vmem:[#allocation2 + $0x128] sm:$0xff]
        %v1164 = vld [vmem:[#allocation2 + $0x130] sm:$0xff]
        %v1165 = vld [vmem:[#allocation2 + $0x138] sm:$0xff]
        %v1166 = vld [vmem:[#allocation2 + $0x140] sm:$0xff]
        %v1167 = vld [vmem:[#allocation2 + $0x148] sm:$0xff]
        %v1168 = vld [vmem:[#allocation2 + $0x150] sm:$0xff]
        %v1169 = vld [vmem:[#allocation2 + $0x158] sm:$0xff]
        %v1170 = vld [vmem:[#allocation2 + $0x160] sm:$0xff]
        %v1171 = vld [vmem:[#allocation2 + $0x168] sm:$0xff]
        %v1172 = vld [vmem:[#allocation2 + $0x170] sm:$0xff]
        %v1173 = vld [vmem:[#allocation2 + $0x178] sm:$0xff]
        %v1174 = vld [vmem:[#allocation2 + $0x180] sm:$0xff]
        %v1175 = vld [vmem:[#allocation2 + $0x188] sm:$0xff]
        %v1176 = vld [vmem:[#allocation2 + $0x190] sm:$0xff]
        %v1177 = vld [vmem:[#allocation2 + $0x198] sm:$0xff]
        %v1178 = vld [vmem:[#allocation2 + $0x1a0] sm:$0xff]
        %v1179 = vld [vmem:[#allocation2 + $0x1a8] sm:$0xff]
        %v1180 = vld [vmem:[#allocation2 + $0x1b0] sm:$0xff]
        %v1181 = vld [vmem:[#allocation2 + $0x1b8] sm:$0xff]
        %v1182 = vld [vmem:[#allocation2 + $0x1c0] sm:$0xff]
        %v1183 = vld [vmem:[#allocation2 + $0x1c8] sm:$0xff]
        %v1184 = vld [vmem:[#allocation2 + $0x1d0] sm:$0xff]
        %v1185 = vld [vmem:[#allocation2 + $0x1d8] sm:$0xff]
        %v1186 = vld [vmem:[#allocation2 + $0x1e0] sm:$0xff]
        %v1187 = vld [vmem:[#allocation2 + $0x1e8] sm:$0xff]
        %v1188 = vld [vmem:[#allocation2 + $0x1f0] sm:$0xff]
        %v1189 = vld [vmem:[#allocation2 + $0x1f8] sm:$0xff]
        %1190 = vst.msk [vmem:[%s216] sm:$0xff] %vm1058, %v1126
        %1191 = vst.msk [vmem:[%s216 + $0x8] sm:$0xff] %vm1058, %v1127
        %1192 = vst.msk [vmem:[%s216 + $0x10] sm:$0xff] %vm1058, %v1128
        %1193 = vst.msk [vmem:[%s216 + $0x18] sm:$0xff] %vm1058, %v1129
        %1194 = vst.msk [vmem:[%s216 + $0x20] sm:$0xff] %vm1058, %v1130
        %1195 = vst.msk [vmem:[%s216 + $0x28] sm:$0xff] %vm1058, %v1131
        %1196 = vst.msk [vmem:[%s216 + $0x30] sm:$0xff] %vm1058, %v1132
        %1197 = vst.msk [vmem:[%s216 + $0x38] sm:$0xff] %vm1058, %v1133
        %1198 = vst.msk [vmem:[%s216 + $0x40] sm:$0xff] %vm1058, %v1134
        %1199 = vst.msk [vmem:[%s216 + $0x48] sm:$0xff] %vm1058, %v1135
        %1200 = vst.msk [vmem:[%s216 + $0x50] sm:$0xff] %vm1058, %v1136
        %1201 = vst.msk [vmem:[%s216 + $0x58] sm:$0xff] %vm1058, %v1137
        %1202 = vst.msk [vmem:[%s216 + $0x60] sm:$0xff] %vm1058, %v1138
        %1203 = vst.msk [vmem:[%s216 + $0x68] sm:$0xff] %vm1058, %v1139
        %1204 = vst.msk [vmem:[%s216 + $0x70] sm:$0xff] %vm1058, %v1140
        %1205 = vst.msk [vmem:[%s216 + $0x78] sm:$0xff] %vm1058, %v1141
        %1206 = vst.msk [vmem:[%s216 + $0x80] sm:$0xff] %vm1058, %v1142
        %1207 = vst.msk [vmem:[%s216 + $0x88] sm:$0xff] %vm1058, %v1143
        %1208 = vst.msk [vmem:[%s216 + $0x90] sm:$0xff] %vm1058, %v1144
        %1209 = vst.msk [vmem:[%s216 + $0x98] sm:$0xff] %vm1058, %v1145
        %1210 = vst.msk [vmem:[%s216 + $0xa0] sm:$0xff] %vm1058, %v1146
        %1211 = vst.msk [vmem:[%s216 + $0xa8] sm:$0xff] %vm1058, %v1147
        %1212 = vst.msk [vmem:[%s216 + $0xb0] sm:$0xff] %vm1058, %v1148
        %1213 = vst.msk [vmem:[%s216 + $0xb8] sm:$0xff] %vm1058, %v1149
        %1214 = vst.msk [vmem:[%s216 + $0xc0] sm:$0xff] %vm1058, %v1150
        %1215 = vst.msk [vmem:[%s216 + $0xc8] sm:$0xff] %vm1058, %v1151
        %1216 = vst.msk [vmem:[%s216 + $0xd0] sm:$0xff] %vm1058, %v1152
        %1217 = vst.msk [vmem:[%s216 + $0xd8] sm:$0xff] %vm1058, %v1153
        %1218 = vst.msk [vmem:[%s216 + $0xe0] sm:$0xff] %vm1058, %v1154
        %1219 = vst.msk [vmem:[%s216 + $0xe8] sm:$0xff] %vm1058, %v1155
        %1220 = vst.msk [vmem:[%s216 + $0xf0] sm:$0xff] %vm1058, %v1156
        %1221 = vst.msk [vmem:[%s216 + $0xf8] sm:$0xff] %vm1058, %v1157
        %1222 = vst.msk [vmem:[%s216 + $0x100] sm:$0xff] %vm1058, %v1158
        %1223 = vst.msk [vmem:[%s216 + $0x108] sm:$0xff] %vm1058, %v1159
        %1224 = vst.msk [vmem:[%s216 + $0x110] sm:$0xff] %vm1058, %v1160
        %1225 = vst.msk [vmem:[%s216 + $0x118] sm:$0xff] %vm1058, %v1161
        %1226 = vst.msk [vmem:[%s216 + $0x120] sm:$0xff] %vm1058, %v1162
        %1227 = vst.msk [vmem:[%s216 + $0x128] sm:$0xff] %vm1058, %v1163
        %1228 = vst.msk [vmem:[%s216 + $0x130] sm:$0xff] %vm1058, %v1164
        %1229 = vst.msk [vmem:[%s216 + $0x138] sm:$0xff] %vm1058, %v1165
        %1230 = vst.msk [vmem:[%s216 + $0x140] sm:$0xff] %vm1058, %v1166
        %1231 = vst.msk [vmem:[%s216 + $0x148] sm:$0xff] %vm1058, %v1167
        %1232 = vst.msk [vmem:[%s216 + $0x150] sm:$0xff] %vm1058, %v1168
        %1233 = vst.msk [vmem:[%s216 + $0x158] sm:$0xff] %vm1058, %v1169
        %1234 = vst.msk [vmem:[%s216 + $0x160] sm:$0xff] %vm1058, %v1170
        %1235 = vst.msk [vmem:[%s216 + $0x168] sm:$0xff] %vm1058, %v1171
        %1236 = vst.msk [vmem:[%s216 + $0x170] sm:$0xff] %vm1058, %v1172
        %1237 = vst.msk [vmem:[%s216 + $0x178] sm:$0xff] %vm1058, %v1173
        %1238 = vst.msk [vmem:[%s216 + $0x180] sm:$0xff] %vm1058, %v1174
        %1239 = vst.msk [vmem:[%s216 + $0x188] sm:$0xff] %vm1058, %v1175
        %1240 = vst.msk [vmem:[%s216 + $0x190] sm:$0xff] %vm1058, %v1176
        %1241 = vst.msk [vmem:[%s216 + $0x198] sm:$0xff] %vm1058, %v1177
        %1242 = vst.msk [vmem:[%s216 + $0x1a0] sm:$0xff] %vm1058, %v1178
        %1243 = vst.msk [vmem:[%s216 + $0x1a8] sm:$0xff] %vm1058, %v1179
        %1244 = vst.msk [vmem:[%s216 + $0x1b0] sm:$0xff] %vm1058, %v1180
        %1245 = vst.msk [vmem:[%s216 + $0x1b8] sm:$0xff] %vm1058, %v1181
        %1246 = vst.msk [vmem:[%s216 + $0x1c0] sm:$0xff] %vm1058, %v1182
        %1247 = vst.msk [vmem:[%s216 + $0x1c8] sm:$0xff] %vm1058, %v1183
        %1248 = vst.msk [vmem:[%s216 + $0x1d0] sm:$0xff] %vm1058, %v1184
        %1249 = vst.msk [vmem:[%s216 + $0x1d8] sm:$0xff] %vm1058, %v1185
        %1250 = vst.msk [vmem:[%s216 + $0x1e0] sm:$0xff] %vm1058, %v1186
        %1251 = vst.msk [vmem:[%s216 + $0x1e8] sm:$0xff] %vm1058, %v1187
        %1252 = vst.msk [vmem:[%s216 + $0x1f0] sm:$0xff] %vm1058, %v1188
        %1253 = vst.msk [vmem:[%s216 + $0x1f8] sm:$0xff] %vm1058, %v1189
      $region36: #{a_call__.7} parent=27 // pred_fallthru
        _
      %s1254 = smul.u32 64, %s18
      %p1255 = scmp.lt.s32.totalorder %s1254, 255
      %s1256 = scalar_select %p1255, %s1254, 255
      %p1257 = scmp.lt.s32.totalorder %s19, 0
      %s1258 = scalar_select %p1257, %s19, 0
      %s1259 = sadd.s32 %s1258, %s1256
      %s1260 = smul.addr %s1259, 8
      %s1261 = scalar_lea.vmem %s2, %s1260
      // Predicated region
      $region37: #{a_call__.7} parent=27 // pred_check
        %p1262 = pneg %p108
      $region38: #{a_call__.7} parent=27 // pred_check_branch
        %1264 = sbr.rel (%p1262) target = $region40
      $region39: #{a_call__.7} parent=27 // pred_region
        %s1265 = smul.u32 64, %s18
      $region40: #{a_call__.7} parent=27 // pred_fallthru
        _
    $region28: #{a_call__.7} parent=5 // pred_fallthru
      _
    %p1266 = scmp.le.s32.totalorder 2, %s8
    // Predicated region
    $region41: #{a_call__.7} parent=5 // pred_check
      %p1267 = pneg %p1266
    $region42: #{a_call__.7} parent=5 // pred_check_branch
      %1269 = sbr.rel (%p1267) target = $region44
    $region43: #{a_call__.7} parent=5 // pred_region
      %s1270 = ssub.s32 %s8, 2
      // Predicated region
      $region45: #{a_call__.7} parent=43 // pred_check
        %p1271 = pneg %p114
      $region46: #{a_call__.7} parent=43 // pred_check_branch
        %1273 = sbr.rel (%p1271) target = $region48
      $region47: #{a_call__.7} parent=43 // pred_region
        %s1274 = smul.u32 64, %s21
        %p1275 = scmp.lt.s32.totalorder %s1274, 255
        %s1276 = scalar_select %p1275, %s1274, 255
        %p1277 = scmp.lt.s32.totalorder %s22, 0
        %s1278 = scalar_select %p1277, %s22, 0
        %s1279 = sadd.s32 %s1278, %s1276
        %s1280 = smul.addr %s1279, 8
        %s1281 = scalar_lea.vmem %s2, %s1280
      $region48: #{a_call__.7} parent=43 // pred_fallthru
        _
    $region44: #{a_call__.7} parent=5 // pred_fallthru
      _
  $region6: #{a_call__.7} parent=0 // loop_footer
    %s12 = sadd.s32 1, %s8
  $region7: #{a_call__.7} parent=0 // loop_footer_branch
    %7 = sbr.rel target = $region3
  $region8: #{a_call__.7} parent=0 // loop_exit
    _

// kernel: a_call__.8
$region0: #{a_call__.8}
  #allocation0 [shape = 'u32[]', space=smem, size = 0x4, offset = 0x4, fixed_abs, tag = 'smem constant byte address 0x4 - core index']
  #allocation1 [shape = 'u32[144,128]{1,0:T(1,128)}', space=vmem, size = 0x12000, scoped, tag = 'internal scratch']
  #allocation2 [shape = 'f32[512,12]{1,0:T(8,128)}', space=vmem, size = 0x40000, scoped, tag = 'scratch operand']
  %s0 = inlined_call_operand.vmem [shape: bf16[2048,108], index: 0, kind: input, shape index: {}]
  %s1 = inlined_call_operand.vmem [shape: bf16[108,12], index: 1, kind: input, shape index: {}]
  %s2 = inlined_call_operand.vmem [shape: f32[2048,12], index: 2, kind: output, shape index: {}]
  %s3 = sld [smem:[#allocation0]]
  $region49: #{a_call__.8} parent=0
    _
  %s5 = ssub.s32 1, %s3
  %s6 = scalar_select 0, %s5, %s3
  loop: start=0, step=1, limit=6
  $region2: #{a_call__.8} parent=0 // loop_pre_header
    _
  $region3: #{a_call__.8} parent=0 // loop_header
    %s8 = sphi 0, %s12
    %p9 = scmp.ge.s32.totalorder %s8, 6
    %s15 = sphi 0, %s34
    %s16 = sphi 0, %s30
    %s17 = sphi 0, %s26
    %s18 = sphi 0, %s15
    %s19 = sphi 0, %s16
    %s20 = sphi 0, %s17
    %s21 = sphi 0, %s18
    %s22 = sphi 0, %s19
    %s23 = sphi 0, %s20
    %s39 = sphi 0, %s41
    %s42 = sphi 0, %s39
    %s43 = sphi 0, %s42
    %s59 = sphi 0, %s43
    %s67 = sphi 0, %s69
    %s70 = sphi 0, %s67
    %s71 = sphi 0, %s70
    %s87 = sphi 0, %s71
    %s95 = sphi 0, %s97
    %s98 = sphi 0, %s95
    %s99 = sphi 0, %s98
    %s115 = sphi 0, %s99
  $region4: #{a_call__.8} parent=0 // loop_header_branch
    %11 = sbr.rel (%p9) target = $region8
  $region5: #{a_call__.8} parent=0 // loop_body
    %s13 = ssub.s32 %s8, 1
    %s14 = ssub.s32 %s8, 2
    %s24 = sadd.s32 1, %s17
    %p25 = scmp.ge.s32.totalorder %s24, 1
    %s26 = scalar_select %p25, 0, %s24
    %s27 = sadd.s32 1, %s16
    %s28 = scalar_select %p25, %s27, %s16
    %p29 = scmp.ge.s32.totalorder %s28, 1
    %s30 = scalar_select %p29, 0, %s28
    %s31 = sadd.s32 1, %s15
    %s32 = scalar_select %p29, %s31, %s15
    %p33 = scmp.ge.s32.totalorder %s32, 4
    %s34 = scalar_select %p33, 0, %s32
    %s35 = ssub.s32 %s15, %s34
    %s36 = ssub.s32 %s17, %s26
    %s37 = sor.u32 %s35, %s36
    %p38 = scmp.eq.s32.totalorder %s37, 0
    %s40 = sadd.s32 %s39, 1
    %s41 = scalar_select %p38, %s39, %s40
    %p44 = pneg %p38
    %p45 = scmp.eq.s32.totalorder %s8, 3
    %p46 = por %p44, %p45
    %p47 = scmp.ne.s32.totalorder %s39, %s42
    %p48 = scmp.eq.s32.totalorder %s8, 0
    %p49 = por %p47, %p48
    %p50 = scmp.ne.s32.totalorder %s39, %s42
    %p51 = scmp.eq.s32.totalorder %s13, 3
    %p52 = por %p50, %p51
    %p53 = scmp.ne.s32.totalorder %s42, %s43
    %p54 = scmp.eq.s32.totalorder %s13, 0
    %p55 = por %p53, %p54
    %p56 = scmp.ne.s32.totalorder %s42, %s43
    %p57 = scmp.eq.s32.totalorder %s14, 3
    %p58 = por %p56, %p57
    %p60 = scmp.ne.s32.totalorder %s43, %s59
    %p61 = scmp.eq.s32.totalorder %s14, 0
    %p62 = por %p60, %p61
    %s63 = ssub.s32 %s17, %s26
    %s64 = ssub.s32 %s16, %s30
    %s65 = sor.u32 %s63, %s64
    %p66 = scmp.eq.s32.totalorder %s65, 0
    %s68 = sadd.s32 %s67, 1
    %s69 = scalar_select %p66, %s67, %s68
    %p72 = pneg %p66
    %p73 = scmp.eq.s32.totalorder %s8, 3
    %p74 = por %p72, %p73
    %p75 = scmp.ne.s32.totalorder %s67, %s70
    %p76 = scmp.eq.s32.totalorder %s8, 0
    %p77 = por %p75, %p76
    %p78 = scmp.ne.s32.totalorder %s67, %s70
    %p79 = scmp.eq.s32.totalorder %s13, 3
    %p80 = por %p78, %p79
    %p81 = scmp.ne.s32.totalorder %s70, %s71
    %p82 = scmp.eq.s32.totalorder %s13, 0
    %p83 = por %p81, %p82
    %p84 = scmp.ne.s32.totalorder %s70, %s71
    %p85 = scmp.eq.s32.totalorder %s14, 3
    %p86 = por %p84, %p85
    %p88 = scmp.ne.s32.totalorder %s71, %s87
    %p89 = scmp.eq.s32.totalorder %s14, 0
    %p90 = por %p88, %p89
    %s91 = ssub.s32 %s15, %s34
    %s92 = ssub.s32 %s16, %s30
    %s93 = sor.u32 %s91, %s92
    %p94 = scmp.eq.s32.totalorder %s93, 0
    %s96 = sadd.s32 %s95, 1
    %s97 = scalar_select %p94, %s95, %s96
    %p100 = pneg %p94
    %p101 = scmp.eq.s32.totalorder %s8, 3
    %p102 = por %p100, %p101
    %p103 = scmp.ne.s32.totalorder %s95, %s98
    %p104 = scmp.eq.s32.totalorder %s8, 0
    %p105 = por %p103, %p104
    %p106 = scmp.ne.s32.totalorder %s95, %s98
    %p107 = scmp.eq.s32.totalorder %s13, 3
    %p108 = por %p106, %p107
    %p109 = scmp.ne.s32.totalorder %s98, %s99
    %p110 = scmp.eq.s32.totalorder %s13, 0
    %p111 = por %p109, %p110
    %p112 = scmp.ne.s32.totalorder %s98, %s99
    %p113 = scmp.eq.s32.totalorder %s14, 3
    %p114 = por %p112, %p113
    %p116 = scmp.ne.s32.totalorder %s99, %s115
    %p117 = scmp.eq.s32.totalorder %s14, 0
    %p118 = por %p116, %p117
    %p119 = scmp.le.s32.totalorder 1, %s8
    %p120 = scmp.lt.s32.totalorder %s8, 5
    %p121 = pnand %p119, %p120
    %p122 = pneg %p121
    // Predicated region
    $region9: #{a_call__.8} parent=5 // pred_check
      _
    $region10: #{a_call__.8} parent=5 // pred_check_branch
      %124 = sbr.rel (%p121) target = $region12
    $region11: #{a_call__.8} parent=5 // pred_region
      %s125 = ssub.s32 %s8, 1
      // Predicated region
      $region13: #{a_call__.8} parent=11 // pred_check
        %p126 = pneg %p83
      $region14: #{a_call__.8} parent=11 // pred_check_branch
        %128 = sbr.rel (%p126) target = $region16
      $region15: #{a_call__.8} parent=11 // pred_region
        %s129 = smul.u32 14, %s20
        %p130 = scmp.lt.s32.totalorder %s129, 13
        %s131 = scalar_select %p130, %s129, 13
        %p132 = scmp.lt.s32.totalorder %s19, 0
        %s133 = scalar_select %p132, %s19, 0
        %s134 = sadd.s32 %s133, %s131
        %s135 = smul.addr %s134, 4
        %s136 = scalar_lea.vmem %s1, %s135
        %s137 = smul.u32 14, %s20
      $region16: #{a_call__.8} parent=11 // pred_fallthru
        _
    $region12: #{a_call__.8} parent=5 // pred_fallthru
      _
    %p138 = scmp.lt.s32.totalorder %s8, 4
    // Predicated region
    $region17: #{a_call__.8} parent=5 // pred_check
      %p139 = pneg %p138
    $region18: #{a_call__.8} parent=5 // pred_check_branch
      %141 = sbr.rel (%p139) target = $region20
    $region19: #{a_call__.8} parent=5 // pred_region
      // Predicated region
      $region21: #{a_call__.8} parent=19 // pred_check
        %p142 = pneg %p49
      $region22: #{a_call__.8} parent=19 // pred_check_branch
        %144 = sbr.rel (%p142) target = $region24
      $region23: #{a_call__.8} parent=19 // pred_region
        %s145 = smul.u32 64, %s15
        %p146 = scmp.lt.s32.totalorder %s145, 255
        %s147 = scalar_select %p146, %s145, 255
        %p148 = scmp.lt.s32.totalorder %s17, 0
        %s149 = scalar_select %p148, %s17, 0
        %s150 = sadd.s32 %s149, %s147
        %s151 = smul.addr %s150, 4
        %s152 = scalar_lea.vmem %s0, %s151
        %s153 = smul.u32 64, %s15
      $region24: #{a_call__.8} parent=19 // pred_fallthru
        _
    $region20: #{a_call__.8} parent=5 // pred_fallthru
      _
    %p154 = scmp.le.s32.totalorder 1, %s8
    %p155 = scmp.lt.s32.totalorder %s8, 5
    %p156 = pnand %p154, %p155
    %p157 = pneg %p156
    // Predicated region
    $region25: #{a_call__.8} parent=5 // pred_check
      _
    $region26: #{a_call__.8} parent=5 // pred_check_branch
      %159 = sbr.rel (%p156) target = $region28
    $region27: #{a_call__.8} parent=5 // pred_region
      %s160 = ssub.s32 %s8, 1
      %s161 = smul.u32 64, %s18
      %p162 = scmp.lt.s32.totalorder %s161, 255
      %s163 = scalar_select %p162, %s161, 255
      %p164 = scmp.lt.s32.totalorder %s20, 0
      %s165 = scalar_select %p164, %s20, 0
      %s166 = sadd.s32 %s165, %s163
      %s167 = smul.addr %s166, 4
      %s168 = scalar_lea.vmem %s0, %s167
      %p169 = pneg %p55
      %p170 = pneg %p52
      %s171 = smul.u32 14, %s20
      %p172 = scmp.lt.s32.totalorder %s171, 13
      %s173 = scalar_select %p172, %s171, 13
      %p174 = scmp.lt.s32.totalorder %s19, 0
      %s175 = scalar_select %p174, %s19, 0
      %s176 = sadd.s32 %s175, %s173
      %s177 = smul.addr %s176, 4
      %s178 = scalar_lea.vmem %s1, %s177
      %p179 = pneg %p83
      %p180 = pneg %p80
      %p181 = pneg %p111
      %p182 = pneg %p108
      %s183 = smul.u32 64, %s18
      %p184 = scmp.lt.s32.totalorder %s183, 255
      %s185 = scalar_select %p184, %s183, 255
      %p186 = scmp.lt.s32.totalorder %s19, 0
      %s187 = scalar_select %p186, %s19, 0
      %s188 = sadd.s32 %s187, %s185
      %s189 = smul.addr %s188, 8
      %s190 = scalar_lea.vmem %s2, %s189
      %s191 = smul.u32 64, %s18
      %p192 = scmp.lt.s32.totalorder %s191, 255
      %s193 = scalar_select %p192, %s191, 255
      %p194 = scmp.lt.s32.totalorder %s20, 0
      %s195 = scalar_select %p194, %s20, 0
      %s196 = sadd.s32 %s195, %s193
      %s197 = smul.addr %s196, 4
      %s198 = scalar_lea.vmem %s0, %s197
      %s199 = smul.u32 64, %s18
      %s200 = smul.u32 14, %s20
      %p201 = scmp.lt.s32.totalorder %s200, 13
      %s202 = scalar_select %p201, %s200, 13
      %p203 = scmp.lt.s32.totalorder %s19, 0
      %s204 = scalar_select %p203, %s19, 0
      %s205 = sadd.s32 %s204, %s202
      %s206 = smul.addr %s205, 4
      %s207 = scalar_lea.vmem %s1, %s206
      %s208 = smul.u32 14, %s20
      %s209 = smul.u32 64, %s18
      %p210 = scmp.lt.s32.totalorder %s209, 255
      %s211 = scalar_select %p210, %s209, 255
      %p212 = scmp.lt.s32.totalorder %s19, 0
      %s213 = scalar_select %p212, %s19, 0
      %s214 = sadd.s32 %s213, %s211
      %s215 = smul.addr %s214, 8
      %s216 = scalar_lea.vmem %s2, %s215
      %s217 = smul.u32 64, %s18
      %p219 = scmp.eq.s32.totalorder %s20, 0
      // Predicated region
      $region29: #{a_call__.8} parent=27 // pred_check
        %p220 = pneg %p219
      $region30: #{a_call__.8} parent=27 // pred_check_branch
        %222 = sbr.rel (%p220) target = $region32
      $region31: #{a_call__.8} parent=27 // pred_region
        %vm223 = vcmask 97280
        %224 = vst.msk [vmem:[#allocation2] sm:$0xff] %vm223, 0.0
        %225 = vst.msk [vmem:[#allocation2 + $0x8] sm:$0xff] %vm223, 0.0
        %226 = vst.msk [vmem:[#allocation2 + $0x10] sm:$0xff] %vm223, 0.0
        %227 = vst.msk [vmem:[#allocation2 + $0x18] sm:$0xff] %vm223, 0.0
        %228 = vst.msk [vmem:[#allocation2 + $0x20] sm:$0xff] %vm223, 0.0
        %229 = vst.msk [vmem:[#allocation2 + $0x28] sm:$0xff] %vm223, 0.0
        %230 = vst.msk [vmem:[#allocation2 + $0x30] sm:$0xff] %vm223, 0.0
        %231 = vst.msk [vmem:[#allocation2 + $0x38] sm:$0xff] %vm223, 0.0
        %232 = vst.msk [vmem:[#allocation2 + $0x40] sm:$0xff] %vm223, 0.0
        %233 = vst.msk [vmem:[#allocation2 + $0x48] sm:$0xff] %vm223, 0.0
        %234 = vst.msk [vmem:[#allocation2 + $0x50] sm:$0xff] %vm223, 0.0
        %235 = vst.msk [vmem:[#allocation2 + $0x58] sm:$0xff] %vm223, 0.0
        %236 = vst.msk [vmem:[#allocation2 + $0x60] sm:$0xff] %vm223, 0.0
        %237 = vst.msk [vmem:[#allocation2 + $0x68] sm:$0xff] %vm223, 0.0
        %238 = vst.msk [vmem:[#allocation2 + $0x70] sm:$0xff] %vm223, 0.0
        %239 = vst.msk [vmem:[#allocation2 + $0x78] sm:$0xff] %vm223, 0.0
        %240 = vst.msk [vmem:[#allocation2 + $0x80] sm:$0xff] %vm223, 0.0
        %241 = vst.msk [vmem:[#allocation2 + $0x88] sm:$0xff] %vm223, 0.0
        %242 = vst.msk [vmem:[#allocation2 + $0x90] sm:$0xff] %vm223, 0.0
        %243 = vst.msk [vmem:[#allocation2 + $0x98] sm:$0xff] %vm223, 0.0
        %244 = vst.msk [vmem:[#allocation2 + $0xa0] sm:$0xff] %vm223, 0.0
        %245 = vst.msk [vmem:[#allocation2 + $0xa8] sm:$0xff] %vm223, 0.0
        %246 = vst.msk [vmem:[#allocation2 + $0xb0] sm:$0xff] %vm223, 0.0
        %247 = vst.msk [vmem:[#allocation2 + $0xb8] sm:$0xff] %vm223, 0.0
        %248 = vst.msk [vmem:[#allocation2 + $0xc0] sm:$0xff] %vm223, 0.0
        %249 = vst.msk [vmem:[#allocation2 + $0xc8] sm:$0xff] %vm223, 0.0
        %250 = vst.msk [vmem:[#allocation2 + $0xd0] sm:$0xff] %vm223, 0.0
        %251 = vst.msk [vmem:[#allocation2 + $0xd8] sm:$0xff] %vm223, 0.0
        %252 = vst.msk [vmem:[#allocation2 + $0xe0] sm:$0xff] %vm223, 0.0
        %253 = vst.msk [vmem:[#allocation2 + $0xe8] sm:$0xff] %vm223, 0.0
        %254 = vst.msk [vmem:[#allocation2 + $0xf0] sm:$0xff] %vm223, 0.0
        %255 = vst.msk [vmem:[#allocation2 + $0xf8] sm:$0xff] %vm223, 0.0
        %256 = vst.msk [vmem:[#allocation2 + $0x100] sm:$0xff] %vm223, 0.0
        %257 = vst.msk [vmem:[#allocation2 + $0x108] sm:$0xff] %vm223, 0.0
        %258 = vst.msk [vmem:[#allocation2 + $0x110] sm:$0xff] %vm223, 0.0
        %259 = vst.msk [vmem:[#allocation2 + $0x118] sm:$0xff] %vm223, 0.0
        %260 = vst.msk [vmem:[#allocation2 + $0x120] sm:$0xff] %vm223, 0.0
        %261 = vst.msk [vmem:[#allocation2 + $0x128] sm:$0xff] %vm223, 0.0
        %262 = vst.msk [vmem:[#allocation2 + $0x130] sm:$0xff] %vm223, 0.0
        %263 = vst.msk [vmem:[#allocation2 + $0x138] sm:$0xff] %vm223, 0.0
        %264 = vst.msk [vmem:[#allocation2 + $0x140] sm:$0xff] %vm223, 0.0
        %265 = vst.msk [vmem:[#allocation2 + $0x148] sm:$0xff] %vm223, 0.0
        %266 = vst.msk [vmem:[#allocation2 + $0x150] sm:$0xff] %vm223, 0.0
        %267 = vst.msk [vmem:[#allocation2 + $0x158] sm:$0xff] %vm223, 0.0
        %268 = vst.msk [vmem:[#allocation2 + $0x160] sm:$0xff] %vm223, 0.0
        %269 = vst.msk [vmem:[#allocation2 + $0x168] sm:$0xff] %vm223, 0.0
        %270 = vst.msk [vmem:[#allocation2 + $0x170] sm:$0xff] %vm223, 0.0
        %271 = vst.msk [vmem:[#allocation2 + $0x178] sm:$0xff] %vm223, 0.0
        %272 = vst.msk [vmem:[#allocation2 + $0x180] sm:$0xff] %vm223, 0.0
        %273 = vst.msk [vmem:[#allocation2 + $0x188] sm:$0xff] %vm223, 0.0
        %274 = vst.msk [vmem:[#allocation2 + $0x190] sm:$0xff] %vm223, 0.0
        %275 = vst.msk [vmem:[#allocation2 + $0x198] sm:$0xff] %vm223, 0.0
        %276 = vst.msk [vmem:[#allocation2 + $0x1a0] sm:$0xff] %vm223, 0.0
        %277 = vst.msk [vmem:[#allocation2 + $0x1a8] sm:$0xff] %vm223, 0.0
        %278 = vst.msk [vmem:[#allocation2 + $0x1b0] sm:$0xff] %vm223, 0.0
        %279 = vst.msk [vmem:[#allocation2 + $0x1b8] sm:$0xff] %vm223, 0.0
        %280 = vst.msk [vmem:[#allocation2 + $0x1c0] sm:$0xff] %vm223, 0.0
        %281 = vst.msk [vmem:[#allocation2 + $0x1c8] sm:$0xff] %vm223, 0.0
        %282 = vst.msk [vmem:[#allocation2 + $0x1d0] sm:$0xff] %vm223, 0.0
        %283 = vst.msk [vmem:[#allocation2 + $0x1d8] sm:$0xff] %vm223, 0.0
        %284 = vst.msk [vmem:[#allocation2 + $0x1e0] sm:$0xff] %vm223, 0.0
        %285 = vst.msk [vmem:[#allocation2 + $0x1e8] sm:$0xff] %vm223, 0.0
        %286 = vst.msk [vmem:[#allocation2 + $0x1f0] sm:$0xff] %vm223, 0.0
        %287 = vst.msk [vmem:[#allocation2 + $0x1f8] sm:$0xff] %vm223, 0.0
      $region32: #{a_call__.8} parent=27 // pred_fallthru
        _
      %v288 = vld [vmem:[#allocation2] sm:$0xff]
      %v289 = vld [vmem:[#allocation2 + $0x8] sm:$0xff]
      %v290 = vld [vmem:[#allocation2 + $0x10] sm:$0xff]
      %v291 = vld [vmem:[#allocation2 + $0x18] sm:$0xff]
      %v292 = vld [vmem:[#allocation2 + $0x20] sm:$0xff]
      %v293 = vld [vmem:[#allocation2 + $0x28] sm:$0xff]
      %v294 = vld [vmem:[#allocation2 + $0x30] sm:$0xff]
      %v295 = vld [vmem:[#allocation2 + $0x38] sm:$0xff]
      %v296 = vld [vmem:[#allocation2 + $0x40] sm:$0xff]
      %v297 = vld [vmem:[#allocation2 + $0x48] sm:$0xff]
      %v298 = vld [vmem:[#allocation2 + $0x50] sm:$0xff]
      %v299 = vld [vmem:[#allocation2 + $0x58] sm:$0xff]
      %v300 = vld [vmem:[#allocation2 + $0x60] sm:$0xff]
      %v301 = vld [vmem:[#allocation2 + $0x68] sm:$0xff]
      %v302 = vld [vmem:[#allocation2 + $0x70] sm:$0xff]
      %v303 = vld [vmem:[#allocation2 + $0x78] sm:$0xff]
      %v304 = vld [vmem:[#allocation2 + $0x80] sm:$0xff]
      %v305 = vld [vmem:[#allocation2 + $0x88] sm:$0xff]
      %v306 = vld [vmem:[#allocation2 + $0x90] sm:$0xff]
      %v307 = vld [vmem:[#allocation2 + $0x98] sm:$0xff]
      %v308 = vld [vmem:[#allocation2 + $0xa0] sm:$0xff]
      %v309 = vld [vmem:[#allocation2 + $0xa8] sm:$0xff]
      %v310 = vld [vmem:[#allocation2 + $0xb0] sm:$0xff]
      %v311 = vld [vmem:[#allocation2 + $0xb8] sm:$0xff]
      %v312 = vld [vmem:[#allocation2 + $0xc0] sm:$0xff]
      %v313 = vld [vmem:[#allocation2 + $0xc8] sm:$0xff]
      %v314 = vld [vmem:[#allocation2 + $0xd0] sm:$0xff]
      %v315 = vld [vmem:[#allocation2 + $0xd8] sm:$0xff]
      %v316 = vld [vmem:[#allocation2 + $0xe0] sm:$0xff]
      %v317 = vld [vmem:[#allocation2 + $0xe8] sm:$0xff]
      %v318 = vld [vmem:[#allocation2 + $0xf0] sm:$0xff]
      %v319 = vld [vmem:[#allocation2 + $0xf8] sm:$0xff]
      %v320 = vld [vmem:[#allocation2 + $0x100] sm:$0xff]
      %v321 = vld [vmem:[#allocation2 + $0x108] sm:$0xff]
      %v322 = vld [vmem:[#allocation2 + $0x110] sm:$0xff]
      %v323 = vld [vmem:[#allocation2 + $0x118] sm:$0xff]
      %v324 = vld [vmem:[#allocation2 + $0x120] sm:$0xff]
      %v325 = vld [vmem:[#allocation2 + $0x128] sm:$0xff]
      %v326 = vld [vmem:[#allocation2 + $0x130] sm:$0xff]
      %v327 = vld [vmem:[#allocation2 + $0x138] sm:$0xff]
      %v328 = vld [vmem:[#allocation2 + $0x140] sm:$0xff]
      %v329 = vld [vmem:[#allocation2 + $0x148] sm:$0xff]
      %v330 = vld [vmem:[#allocation2 + $0x150] sm:$0xff]
      %v331 = vld [vmem:[#allocation2 + $0x158] sm:$0xff]
      %v332 = vld [vmem:[#allocation2 + $0x160] sm:$0xff]
      %v333 = vld [vmem:[#allocation2 + $0x168] sm:$0xff]
      %v334 = vld [vmem:[#allocation2 + $0x170] sm:$0xff]
      %v335 = vld [vmem:[#allocation2 + $0x178] sm:$0xff]
      %v336 = vld [vmem:[#allocation2 + $0x180] sm:$0xff]
      %v337 = vld [vmem:[#allocation2 + $0x188] sm:$0xff]
      %v338 = vld [vmem:[#allocation2 + $0x190] sm:$0xff]
      %v339 = vld [vmem:[#allocation2 + $0x198] sm:$0xff]
      %v340 = vld [vmem:[#allocation2 + $0x1a0] sm:$0xff]
      %v341 = vld [vmem:[#allocation2 + $0x1a8] sm:$0xff]
      %v342 = vld [vmem:[#allocation2 + $0x1b0] sm:$0xff]
      %v343 = vld [vmem:[#allocation2 + $0x1b8] sm:$0xff]
      %v344 = vld [vmem:[#allocation2 + $0x1c0] sm:$0xff]
      %v345 = vld [vmem:[#allocation2 + $0x1c8] sm:$0xff]
      %v346 = vld [vmem:[#allocation2 + $0x1d0] sm:$0xff]
      %v347 = vld [vmem:[#allocation2 + $0x1d8] sm:$0xff]
      %v348 = vld [vmem:[#allocation2 + $0x1e0] sm:$0xff]
      %v349 = vld [vmem:[#allocation2 + $0x1e8] sm:$0xff]
      %v350 = vld [vmem:[#allocation2 + $0x1f0] sm:$0xff]
      %v351 = vld [vmem:[#allocation2 + $0x1f8] sm:$0xff]
      %v352 = vld [vmem:[%s198] sm:$0xf]
      %v353 = vld [vmem:[%s198 + $0x4] sm:$0xf]
      %v354 = vld [vmem:[%s198 + $0x8] sm:$0xf]
      %v355 = vld [vmem:[%s198 + $0xc] sm:$0xf]
      %v356 = vld [vmem:[%s198 + $0x10] sm:$0xf]
      %v357 = vld [vmem:[%s198 + $0x14] sm:$0xf]
      %v358 = vld [vmem:[%s198 + $0x18] sm:$0xf]
      %v359 = vld [vmem:[%s198 + $0x1c] sm:$0xf]
      %v360 = vld [vmem:[%s198 + $0x20] sm:$0xf]
      %v361 = vld [vmem:[%s198 + $0x24] sm:$0xf]
      %v362 = vld [vmem:[%s198 + $0x28] sm:$0xf]
      %v363 = vld [vmem:[%s198 + $0x2c] sm:$0xf]
      %v364 = vld [vmem:[%s198 + $0x30] sm:$0xf]
      %v365 = vld [vmem:[%s198 + $0x34] sm:$0xf]
      %v366 = vld [vmem:[%s198 + $0x38] sm:$0xf]
      %v367 = vld [vmem:[%s198 + $0x3c] sm:$0xf]
      %v368 = vld [vmem:[%s198 + $0x40] sm:$0xf]
      %v369 = vld [vmem:[%s198 + $0x44] sm:$0xf]
      %v370 = vld [vmem:[%s198 + $0x48] sm:$0xf]
      %v371 = vld [vmem:[%s198 + $0x4c] sm:$0xf]
      %v372 = vld [vmem:[%s198 + $0x50] sm:$0xf]
      %v373 = vld [vmem:[%s198 + $0x54] sm:$0xf]
      %v374 = vld [vmem:[%s198 + $0x58] sm:$0xf]
      %v375 = vld [vmem:[%s198 + $0x5c] sm:$0xf]
      %v376 = vld [vmem:[%s198 + $0x60] sm:$0xf]
      %v377 = vld [vmem:[%s198 + $0x64] sm:$0xf]
      %v378 = vld [vmem:[%s198 + $0x68] sm:$0xf]
      %v379 = vld [vmem:[%s198 + $0x6c] sm:$0xf]
      %v380 = vld [vmem:[%s198 + $0x70] sm:$0xf]
      %v381 = vld [vmem:[%s198 + $0x74] sm:$0xf]
      %v382 = vld [vmem:[%s198 + $0x78] sm:$0xf]
      %v383 = vld [vmem:[%s198 + $0x7c] sm:$0xf]
      %v384 = vld [vmem:[%s198 + $0x80] sm:$0xf]
      %v385 = vld [vmem:[%s198 + $0x84] sm:$0xf]
      %v386 = vld [vmem:[%s198 + $0x88] sm:$0xf]
      %v387 = vld [vmem:[%s198 + $0x8c] sm:$0xf]
      %v388 = vld [vmem:[%s198 + $0x90] sm:$0xf]
      %v389 = vld [vmem:[%s198 + $0x94] sm:$0xf]
      %v390 = vld [vmem:[%s198 + $0x98] sm:$0xf]
      %v391 = vld [vmem:[%s198 + $0x9c] sm:$0xf]
      %v392 = vld [vmem:[%s198 + $0xa0] sm:$0xf]
      %v393 = vld [vmem:[%s198 + $0xa4] sm:$0xf]
      %v394 = vld [vmem:[%s198 + $0xa8] sm:$0xf]
      %v395 = vld [vmem:[%s198 + $0xac] sm:$0xf]
      %v396 = vld [vmem:[%s198 + $0xb0] sm:$0xf]
      %v397 = vld [vmem:[%s198 + $0xb4] sm:$0xf]
      %v398 = vld [vmem:[%s198 + $0xb8] sm:$0xf]
      %v399 = vld [vmem:[%s198 + $0xbc] sm:$0xf]
      %v400 = vld [vmem:[%s198 + $0xc0] sm:$0xf]
      %v401 = vld [vmem:[%s198 + $0xc4] sm:$0xf]
      %v402 = vld [vmem:[%s198 + $0xc8] sm:$0xf]
      %v403 = vld [vmem:[%s198 + $0xcc] sm:$0xf]
      %v404 = vld [vmem:[%s198 + $0xd0] sm:$0xf]
      %v405 = vld [vmem:[%s198 + $0xd4] sm:$0xf]
      %v406 = vld [vmem:[%s198 + $0xd8] sm:$0xf]
      %v407 = vld [vmem:[%s198 + $0xdc] sm:$0xf]
      %v408 = vld [vmem:[%s198 + $0xe0] sm:$0xf]
      %v409 = vld [vmem:[%s198 + $0xe4] sm:$0xf]
      %v410 = vld [vmem:[%s198 + $0xe8] sm:$0xf]
      %v411 = vld [vmem:[%s198 + $0xec] sm:$0xf]
      %v412 = vld [vmem:[%s198 + $0xf0] sm:$0xf]
      %v413 = vld [vmem:[%s198 + $0xf4] sm:$0xf]
      %v414 = vld [vmem:[%s198 + $0xf8] sm:$0xf]
      %v415 = vld [vmem:[%s198 + $0xfc] sm:$0xf]
      %v416 = vld [vmem:[%s207] sm:$0xf]
      %v417 = vld [vmem:[%s207 + $0x4] sm:$0xf]
      %v418 = vld [vmem:[%s207 + $0x8] sm:$0xf]
      %v419 = vld [vmem:[%s207 + $0xc] sm:$0xf]
      %v420 = vld [vmem:[%s207 + $0x10] sm:$0xf]
      %v421 = vld [vmem:[%s207 + $0x14] sm:$0xf]
      %v422 = vld [vmem:[%s207 + $0x18] sm:$0xf]
      %v423 = vld [vmem:[%s207 + $0x1c] sm:$0xf]
      %v424 = vld [vmem:[%s207 + $0x20] sm:$0xf]
      %v425 = vld [vmem:[%s207 + $0x24] sm:$0xf]
      %v426 = vld [vmem:[%s207 + $0x28] sm:$0xf]
      %v427 = vld [vmem:[%s207 + $0x2c] sm:$0xf]
      %v428 = vld [vmem:[%s207 + $0x30] sm:$0xf]
      %v429 = vld [vmem:[%s207 + $0x34] sm:$0x3]
      %v494 = vunpack.c.l.b16 %v352
      %v495 = vunpack.c.l.b16 %v353
      %v496 = vunpack.c.l.b16 %v354
      %v497 = vunpack.c.l.b16 %v355
      %v498 = vunpack.c.l.b16 %v356
      %v499 = vunpack.c.l.b16 %v357
      %v500 = vunpack.c.l.b16 %v358
      %v501 = vunpack.c.l.b16 %v359
      %v502 = vunpack.c.l.b16 %v360
      %v503 = vunpack.c.l.b16 %v361
      %v504 = vunpack.c.l.b16 %v362
      %v505 = vunpack.c.l.b16 %v363
      %v506 = vunpack.c.l.b16 %v364
      %v507 = vunpack.c.l.b16 %v365
      %v508 = vunpack.c.l.b16 %v366
      %v509 = vunpack.c.l.b16 %v367
      %v510 = vunpack.c.l.b16 %v368
      %v511 = vunpack.c.l.b16 %v369
      %v512 = vunpack.c.l.b16 %v370
      %v513 = vunpack.c.l.b16 %v371
      %v514 = vunpack.c.l.b16 %v372
      %v515 = vunpack.c.l.b16 %v373
      %v516 = vunpack.c.l.b16 %v374
      %v517 = vunpack.c.l.b16 %v375
      %v518 = vunpack.c.l.b16 %v376
      %v519 = vunpack.c.l.b16 %v377
      %v520 = vunpack.c.l.b16 %v378
      %v521 = vunpack.c.l.b16 %v379
      %v522 = vunpack.c.l.b16 %v380
      %v523 = vunpack.c.l.b16 %v381
      %v524 = vunpack.c.l.b16 %v382
      %v525 = vunpack.c.l.b16 %v383
      %v526 = vunpack.c.l.b16 %v384
      %v527 = vunpack.c.l.b16 %v385
      %v528 = vunpack.c.l.b16 %v386
      %v529 = vunpack.c.l.b16 %v387
      %v530 = vunpack.c.l.b16 %v388
      %v531 = vunpack.c.l.b16 %v389
      %v532 = vunpack.c.l.b16 %v390
      %v533 = vunpack.c.l.b16 %v391
      %v534 = vunpack.c.l.b16 %v392
      %v535 = vunpack.c.l.b16 %v393
      %v536 = vunpack.c.l.b16 %v394
      %v537 = vunpack.c.l.b16 %v395
      %v538 = vunpack.c.l.b16 %v396
      %v539 = vunpack.c.l.b16 %v397
      %v540 = vunpack.c.l.b16 %v398
      %v541 = vunpack.c.l.b16 %v399
      %v542 = vunpack.c.l.b16 %v400
      %v543 = vunpack.c.l.b16 %v401
      %v544 = vunpack.c.l.b16 %v402
      %v545 = vunpack.c.l.b16 %v403
      %v546 = vunpack.c.l.b16 %v404
      %v547 = vunpack.c.l.b16 %v405
      %v548 = vunpack.c.l.b16 %v406
      %v549 = vunpack.c.l.b16 %v407
      %v550 = vunpack.c.l.b16 %v408
      %v551 = vunpack.c.l.b16 %v409
      %v552 = vunpack.c.l.b16 %v410
      %v553 = vunpack.c.l.b16 %v411
      %v554 = vunpack.c.l.b16 %v412
      %v555 = vunpack.c.l.b16 %v413
      %v556 = vunpack.c.l.b16 %v414
      %v557 = vunpack.c.l.b16 %v415
      %v558 = vpack.c.b16 %v495, %v494
      %v559 = vpack.c.b16 %v497, %v496
      %v560 = vpack.c.b16 %v499, %v498
      %v561 = vpack.c.b16 %v501, %v500
      %v562 = vpack.c.b16 %v503, %v502
      %v563 = vpack.c.b16 %v505, %v504
      %v564 = vpack.c.b16 %v507, %v506
      %v565 = vpack.c.b16 %v509, %v508
      %v566 = vpack.c.b16 %v511, %v510
      %v567 = vpack.c.b16 %v513, %v512
      %v568 = vpack.c.b16 %v515, %v514
      %v569 = vpack.c.b16 %v517, %v516
      %v570 = vpack.c.b16 %v519, %v518
      %v571 = vpack.c.b16 %v521, %v520
      %v572 = vpack.c.b16 %v523, %v522
      %v573 = vpack.c.b16 %v525, %v524
      %v574 = vpack.c.b16 %v527, %v526
      %v575 = vpack.c.b16 %v529, %v528
      %v576 = vpack.c.b16 %v531, %v530
      %v577 = vpack.c.b16 %v533, %v532
      %v578 = vpack.c.b16 %v535, %v534
      %v579 = vpack.c.b16 %v537, %v536
      %v580 = vpack.c.b16 %v539, %v538
      %v581 = vpack.c.b16 %v541, %v540
      %v582 = vpack.c.b16 %v543, %v542
      %v583 = vpack.c.b16 %v545, %v544
      %v584 = vpack.c.b16 %v547, %v546
      %v585 = vpack.c.b16 %v549, %v548
      %v586 = vpack.c.b16 %v551, %v550
      %v587 = vpack.c.b16 %v553, %v552
      %v588 = vpack.c.b16 %v555, %v554
      %v589 = vpack.c.b16 %v557, %v556
      %v604 = vunpack.c.l.b16 %v416
      %v605 = vunpack.c.l.b16 %v417
      %v606 = vunpack.c.l.b16 %v418
      %v607 = vunpack.c.l.b16 %v419
      %v608 = vunpack.c.l.b16 %v420
      %v609 = vunpack.c.l.b16 %v421
      %v610 = vunpack.c.l.b16 %v422
      %v611 = vunpack.c.l.b16 %v423
      %v612 = vunpack.c.l.b16 %v424
      %v613 = vunpack.c.l.b16 %v425
      %v614 = vunpack.c.l.b16 %v426
      %v615 = vunpack.c.l.b16 %v427
      %v616 = vunpack.c.l.b16 %v428
      %v617 = vunpack.c.l.b16 %v429
      %v618 = vpack.c.b16 %v605, %v604
      %v619 = vpack.c.b16 %v607, %v606
      %v620 = vpack.c.b16 %v609, %v608
      %v621 = vpack.c.b16 %v611, %v610
      %v622 = vpack.c.b16 %v613, %v612
      %v623 = vpack.c.b16 %v615, %v614
      %v624 = vpack.c.b16 %v617, %v616
      %vm631 = vcmask 883712
      %v633 = vsel %vm631, %v558, 0
      %v636 = vsel %vm631, %v559, 0
      %v639 = vsel %vm631, %v560, 0
      %v642 = vsel %vm631, %v561, 0
      %v645 = vsel %vm631, %v562, 0
      %v648 = vsel %vm631, %v563, 0
      %v651 = vsel %vm631, %v564, 0
      %v654 = vsel %vm631, %v565, 0
      %v657 = vsel %vm631, %v566, 0
      %v660 = vsel %vm631, %v567, 0
      %v663 = vsel %vm631, %v568, 0
      %v666 = vsel %vm631, %v569, 0
      %v669 = vsel %vm631, %v570, 0
      %v672 = vsel %vm631, %v571, 0
      %v675 = vsel %vm631, %v572, 0
      %v678 = vsel %vm631, %v573, 0
      %v681 = vsel %vm631, %v574, 0
      %v684 = vsel %vm631, %v575, 0
      %v687 = vsel %vm631, %v576, 0
      %v690 = vsel %vm631, %v577, 0
      %v693 = vsel %vm631, %v578, 0
      %v696 = vsel %vm631, %v579, 0
      %v699 = vsel %vm631, %v580, 0
      %v702 = vsel %vm631, %v581, 0
      %v705 = vsel %vm631, %v582, 0
      %v708 = vsel %vm631, %v583, 0
      %v711 = vsel %vm631, %v584, 0
      %v714 = vsel %vm631, %v585, 0
      %v717 = vsel %vm631, %v586, 0
      %v720 = vsel %vm631, %v587, 0
      %v723 = vsel %vm631, %v588, 0
      %v726 = vsel %vm631, %v589, 0
      %vm728 = vcmask 1045504
      %v730 = vsel %vm728, %v624, 0
      %732 = vmatprep.subr.bf16.mxu0 0
      %733 = vmatpush1.bf16.msra.mxu0 %v618
      %734 = vmatprep.subr.bf16.mxu0 0
      %735 = vmatpush1.bf16.msra.mxu0 %v619
      %736 = vmatprep.subr.bf16.mxu0 0
      %737 = vmatpush1.bf16.msra.mxu0 %v620
      %738 = vmatprep.subr.bf16.mxu0 0
      %739 = vmatpush1.bf16.msra.mxu0 %v621
      %740 = vmatprep.subr.bf16.mxu0 0
      %741 = vmatpush1.bf16.msra.mxu0 %v622
      %742 = vmatprep.subr.bf16.mxu0 0
      %743 = vmatpush1.bf16.msra.mxu0 %v623
      %744 = vmatprep.subr.bf16.mxu0 0
      %745 = vmatpush1.bf16.msra.mxu0 %v730
      %746 = vmatprep.subr.bf16.mxu0 0
      %747 = vmatpush1.bf16.msra.mxu0 0
      %748 = vmatprep.subr.bf16.mxu0 0
      %749 = vmatpush1.bf16.msra.mxu0 0
      %750 = vmatprep.subr.bf16.mxu0 0
      %751 = vmatpush1.bf16.msra.mxu0 0
      %752 = vmatprep.subr.bf16.mxu0 0
      %753 = vmatpush1.bf16.msra.mxu0 0
      %754 = vmatprep.subr.bf16.mxu0 0
      %755 = vmatpush1.bf16.msra.mxu0 0
      %756 = vmatprep.subr.bf16.mxu0 0
      %757 = vmatpush1.bf16.msra.mxu0 0
      %758 = vmatprep.subr.bf16.mxu0 0
      %759 = vmatpush1.bf16.msra.mxu0 0
      %760 = vmatprep.subr.bf16.mxu0 0
      %761 = vmatpush1.bf16.msra.mxu0 0
      %762 = vmatprep.subr.bf16.mxu0 0
      %763 = vmatpush1.bf16.msra.mxu0 0
      %764 = vmatprep.mubr.bf16.mxu0 0
      %765 = vmatmul.mubr.bf16.gmra.mrb[0].mxu0 %v633
      %v766 = vpop.f32.mrb[0].mxu0
      %v767 = vadd.f32 0.0, %v766
      %v768 = vpop.f32.mrb[0].mxu0
      %v769 = vpop.f32.mrb[0].mxu0
      %v770 = vadd.f32 0.0, %v769
      %v771 = vpop.f32.mrb[0].mxu0
      %772 = vmatprep.mubr.bf16.mxu0 0
      %773 = vmatmul.mubr.bf16.gmra.mrb[0].mxu0 %v636
      %v774 = vpop.f32.mrb[0].mxu0
      %v775 = vadd.f32 0.0, %v774
      %v776 = vpop.f32.mrb[0].mxu0
      %v777 = vpop.f32.mrb[0].mxu0
      %v778 = vadd.f32 0.0, %v777
      %v779 = vpop.f32.mrb[0].mxu0
      %780 = vmatprep.mubr.bf16.mxu0 0
      %781 = vmatmul.mubr.bf16.gmra.mrb[0].mxu0 %v639
      %v782 = vpop.f32.mrb[0].mxu0
      %v783 = vadd.f32 0.0, %v782
      %v784 = vpop.f32.mrb[0].mxu0
      %v785 = vpop.f32.mrb[0].mxu0
      %v786 = vadd.f32 0.0, %v785
      %v787 = vpop.f32.mrb[0].mxu0
      %788 = vmatprep.mubr.bf16.mxu0 0
      %789 = vmatmul.mubr.bf16.gmra.mrb[0].mxu0 %v642
      %v790 = vpop.f32.mrb[0].mxu0
      %v791 = vadd.f32 0.0, %v790
      %v792 = vpop.f32.mrb[0].mxu0
      %v793 = vpop.f32.mrb[0].mxu0
      %v794 = vadd.f32 0.0, %v793
      %v795 = vpop.f32.mrb[0].mxu0
      %796 = vmatprep.mubr.bf16.mxu0 0
      %797 = vmatmul.mubr.bf16.gmra.mrb[0].mxu0 %v645
      %v798 = vpop.f32.mrb[0].mxu0
      %v799 = vadd.f32 0.0, %v798
      %v800 = vpop.f32.mrb[0].mxu0
      %v801 = vpop.f32.mrb[0].mxu0
      %v802 = vadd.f32 0.0, %v801
      %v803 = vpop.f32.mrb[0].mxu0
      %804 = vmatprep.mubr.bf16.mxu0 0
      %805 = vmatmul.mubr.bf16.gmra.mrb[0].mxu0 %v648
      %v806 = vpop.f32.mrb[0].mxu0
      %v807 = vadd.f32 0.0, %v806
      %v808 = vpop.f32.mrb[0].mxu0
      %v809 = vpop.f32.mrb[0].mxu0
      %v810 = vadd.f32 0.0, %v809
      %v811 = vpop.f32.mrb[0].mxu0
      %812 = vmatprep.mubr.bf16.mxu0 0
      %813 = vmatmul.mubr.bf16.gmra.mrb[0].mxu0 %v651
      %v814 = vpop.f32.mrb[0].mxu0
      %v815 = vadd.f32 0.0, %v814
      %v816 = vpop.f32.mrb[0].mxu0
      %v817 = vpop.f32.mrb[0].mxu0
      %v818 = vadd.f32 0.0, %v817
      %v819 = vpop.f32.mrb[0].mxu0
      %820 = vmatprep.mubr.bf16.mxu0 0
      %821 = vmatmul.mubr.bf16.gmra.mrb[0].mxu0 %v654
      %v822 = vpop.f32.mrb[0].mxu0
      %v823 = vadd.f32 0.0, %v822
      %v824 = vpop.f32.mrb[0].mxu0
      %v825 = vpop.f32.mrb[0].mxu0
      %v826 = vadd.f32 0.0, %v825
      %v827 = vpop.f32.mrb[0].mxu0
      %828 = vmatprep.mubr.bf16.mxu0 0
      %829 = vmatmul.mubr.bf16.gmra.mrb[0].mxu0 %v657
      %v830 = vpop.f32.mrb[0].mxu0
      %v831 = vadd.f32 0.0, %v830
      %v832 = vpop.f32.mrb[0].mxu0
      %v833 = vpop.f32.mrb[0].mxu0
      %v834 = vadd.f32 0.0, %v833
      %v835 = vpop.f32.mrb[0].mxu0
      %836 = vmatprep.mubr.bf16.mxu0 0
      %837 = vmatmul.mubr.bf16.gmra.mrb[0].mxu0 %v660
      %v838 = vpop.f32.mrb[0].mxu0
      %v839 = vadd.f32 0.0, %v838
      %v840 = vpop.f32.mrb[0].mxu0
      %v841 = vpop.f32.mrb[0].mxu0
      %v842 = vadd.f32 0.0, %v841
      %v843 = vpop.f32.mrb[0].mxu0
      %844 = vmatprep.mubr.bf16.mxu0 0
      %845 = vmatmul.mubr.bf16.gmra.mrb[0].mxu0 %v663
      %v846 = vpop.f32.mrb[0].mxu0
      %v847 = vadd.f32 0.0, %v846
      %v848 = vpop.f32.mrb[0].mxu0
      %v849 = vpop.f32.mrb[0].mxu0
      %v850 = vadd.f32 0.0, %v849
      %v851 = vpop.f32.mrb[0].mxu0
      %852 = vmatprep.mubr.bf16.mxu0 0
      %853 = vmatmul.mubr.bf16.gmra.mrb[0].mxu0 %v666
      %v854 = vpop.f32.mrb[0].mxu0
      %v855 = vadd.f32 0.0, %v854
      %v856 = vpop.f32.mrb[0].mxu0
      %v857 = vpop.f32.mrb[0].mxu0
      %v858 = vadd.f32 0.0, %v857
      %v859 = vpop.f32.mrb[0].mxu0
      %860 = vmatprep.mubr.bf16.mxu0 0
      %861 = vmatmul.mubr.bf16.gmra.mrb[0].mxu0 %v669
      %v862 = vpop.f32.mrb[0].mxu0
      %v863 = vadd.f32 0.0, %v862
      %v864 = vpop.f32.mrb[0].mxu0
      %v865 = vpop.f32.mrb[0].mxu0
      %v866 = vadd.f32 0.0, %v865
      %v867 = vpop.f32.mrb[0].mxu0
      %868 = vmatprep.mubr.bf16.mxu0 0
      %869 = vmatmul.mubr.bf16.gmra.mrb[0].mxu0 %v672
      %v870 = vpop.f32.mrb[0].mxu0
      %v871 = vadd.f32 0.0, %v870
      %v872 = vpop.f32.mrb[0].mxu0
      %v873 = vpop.f32.mrb[0].mxu0
      %v874 = vadd.f32 0.0, %v873
      %v875 = vpop.f32.mrb[0].mxu0
      %876 = vmatprep.mubr.bf16.mxu0 0
      %877 = vmatmul.mubr.bf16.gmra.mrb[0].mxu0 %v675
      %v878 = vpop.f32.mrb[0].mxu0
      %v879 = vadd.f32 0.0, %v878
      %v880 = vpop.f32.mrb[0].mxu0
      %v881 = vpop.f32.mrb[0].mxu0
      %v882 = vadd.f32 0.0, %v881
      %v883 = vpop.f32.mrb[0].mxu0
      %884 = vmatprep.mubr.bf16.mxu0 0
      %885 = vmatmul.mubr.bf16.gmra.mrb[0].mxu0 %v678
      %v886 = vpop.f32.mrb[0].mxu0
      %v887 = vadd.f32 0.0, %v886
      %v888 = vpop.f32.mrb[0].mxu0
      %v889 = vpop.f32.mrb[0].mxu0
      %v890 = vadd.f32 0.0, %v889
      %v891 = vpop.f32.mrb[0].mxu0
      %892 = vmatprep.mubr.bf16.mxu0 0
      %893 = vmatmul.mubr.bf16.gmra.mrb[0].mxu0 %v681
      %v894 = vpop.f32.mrb[0].mxu0
      %v895 = vadd.f32 0.0, %v894
      %v896 = vpop.f32.mrb[0].mxu0
      %v897 = vpop.f32.mrb[0].mxu0
      %v898 = vadd.f32 0.0, %v897
      %v899 = vpop.f32.mrb[0].mxu0
      %900 = vmatprep.mubr.bf16.mxu0 0
      %901 = vmatmul.mubr.bf16.gmra.mrb[0].mxu0 %v684
      %v902 = vpop.f32.mrb[0].mxu0
      %v903 = vadd.f32 0.0, %v902
      %v904 = vpop.f32.mrb[0].mxu0
      %v905 = vpop.f32.mrb[0].mxu0
      %v906 = vadd.f32 0.0, %v905
      %v907 = vpop.f32.mrb[0].mxu0
      %908 = vmatprep.mubr.bf16.mxu0 0
      %909 = vmatmul.mubr.bf16.gmra.mrb[0].mxu0 %v687
      %v910 = vpop.f32.mrb[0].mxu0
      %v911 = vadd.f32 0.0, %v910
      %v912 = vpop.f32.mrb[0].mxu0
      %v913 = vpop.f32.mrb[0].mxu0
      %v914 = vadd.f32 0.0, %v913
      %v915 = vpop.f32.mrb[0].mxu0
      %916 = vmatprep.mubr.bf16.mxu0 0
      %917 = vmatmul.mubr.bf16.gmra.mrb[0].mxu0 %v690
      %v918 = vpop.f32.mrb[0].mxu0
      %v919 = vadd.f32 0.0, %v918
      %v920 = vpop.f32.mrb[0].mxu0
      %v921 = vpop.f32.mrb[0].mxu0
      %v922 = vadd.f32 0.0, %v921
      %v923 = vpop.f32.mrb[0].mxu0
      %924 = vmatprep.mubr.bf16.mxu0 0
      %925 = vmatmul.mubr.bf16.gmra.mrb[0].mxu0 %v693
      %v926 = vpop.f32.mrb[0].mxu0
      %v927 = vadd.f32 0.0, %v926
      %v928 = vpop.f32.mrb[0].mxu0
      %v929 = vpop.f32.mrb[0].mxu0
      %v930 = vadd.f32 0.0, %v929
      %v931 = vpop.f32.mrb[0].mxu0
      %932 = vmatprep.mubr.bf16.mxu0 0
      %933 = vmatmul.mubr.bf16.gmra.mrb[0].mxu0 %v696
      %v934 = vpop.f32.mrb[0].mxu0
      %v935 = vadd.f32 0.0, %v934
      %v936 = vpop.f32.mrb[0].mxu0
      %v937 = vpop.f32.mrb[0].mxu0
      %v938 = vadd.f32 0.0, %v937
      %v939 = vpop.f32.mrb[0].mxu0
      %940 = vmatprep.mubr.bf16.mxu0 0
      %941 = vmatmul.mubr.bf16.gmra.mrb[0].mxu0 %v699
      %v942 = vpop.f32.mrb[0].mxu0
      %v943 = vadd.f32 0.0, %v942
      %v944 = vpop.f32.mrb[0].mxu0
      %v945 = vpop.f32.mrb[0].mxu0
      %v946 = vadd.f32 0.0, %v945
      %v947 = vpop.f32.mrb[0].mxu0
      %948 = vmatprep.mubr.bf16.mxu0 0
      %949 = vmatmul.mubr.bf16.gmra.mrb[0].mxu0 %v702
      %v950 = vpop.f32.mrb[0].mxu0
      %v951 = vadd.f32 0.0, %v950
      %v952 = vpop.f32.mrb[0].mxu0
      %v953 = vpop.f32.mrb[0].mxu0
      %v954 = vadd.f32 0.0, %v953
      %v955 = vpop.f32.mrb[0].mxu0
      %956 = vmatprep.mubr.bf16.mxu0 0
      %957 = vmatmul.mubr.bf16.gmra.mrb[0].mxu0 %v705
      %v958 = vpop.f32.mrb[0].mxu0
      %v959 = vadd.f32 0.0, %v958
      %v960 = vpop.f32.mrb[0].mxu0
      %v961 = vpop.f32.mrb[0].mxu0
      %v962 = vadd.f32 0.0, %v961
      %v963 = vpop.f32.mrb[0].mxu0
      %964 = vmatprep.mubr.bf16.mxu0 0
      %965 = vmatmul.mubr.bf16.gmra.mrb[0].mxu0 %v708
      %v966 = vpop.f32.mrb[0].mxu0
      %v967 = vadd.f32 0.0, %v966
      %v968 = vpop.f32.mrb[0].mxu0
      %v969 = vpop.f32.mrb[0].mxu0
      %v970 = vadd.f32 0.0, %v969
      %v971 = vpop.f32.mrb[0].mxu0
      %972 = vmatprep.mubr.bf16.mxu0 0
      %973 = vmatmul.mubr.bf16.gmra.mrb[0].mxu0 %v711
      %v974 = vpop.f32.mrb[0].mxu0
      %v975 = vadd.f32 0.0, %v974
      %v976 = vpop.f32.mrb[0].mxu0
      %v977 = vpop.f32.mrb[0].mxu0
      %v978 = vadd.f32 0.0, %v977
      %v979 = vpop.f32.mrb[0].mxu0
      %980 = vmatprep.mubr.bf16.mxu0 0
      %981 = vmatmul.mubr.bf16.gmra.mrb[0].mxu0 %v714
      %v982 = vpop.f32.mrb[0].mxu0
      %v983 = vadd.f32 0.0, %v982
      %v984 = vpop.f32.mrb[0].mxu0
      %v985 = vpop.f32.mrb[0].mxu0
      %v986 = vadd.f32 0.0, %v985
      %v987 = vpop.f32.mrb[0].mxu0
      %988 = vmatprep.mubr.bf16.mxu0 0
      %989 = vmatmul.mubr.bf16.gmra.mrb[0].mxu0 %v717
      %v990 = vpop.f32.mrb[0].mxu0
      %v991 = vadd.f32 0.0, %v990
      %v992 = vpop.f32.mrb[0].mxu0
      %v993 = vpop.f32.mrb[0].mxu0
      %v994 = vadd.f32 0.0, %v993
      %v995 = vpop.f32.mrb[0].mxu0
      %996 = vmatprep.mubr.bf16.mxu0 0
      %997 = vmatmul.mubr.bf16.gmra.mrb[0].mxu0 %v720
      %v998 = vpop.f32.mrb[0].mxu0
      %v999 = vadd.f32 0.0, %v998
      %v1000 = vpop.f32.mrb[0].mxu0
      %v1001 = vpop.f32.mrb[0].mxu0
      %v1002 = vadd.f32 0.0, %v1001
      %v1003 = vpop.f32.mrb[0].mxu0
      %1004 = vmatprep.mubr.bf16.mxu0 0
      %1005 = vmatmul.mubr.bf16.gmra.mrb[0].mxu0 %v723
      %v1006 = vpop.f32.mrb[0].mxu0
      %v1007 = vadd.f32 0.0, %v1006
      %v1008 = vpop.f32.mrb[0].mxu0
      %v1009 = vpop.f32.mrb[0].mxu0
      %v1010 = vadd.f32 0.0, %v1009
      %v1011 = vpop.f32.mrb[0].mxu0
      %1012 = vmatprep.mubr.bf16.mxu0 0
      %1013 = vmatmul.mubr.bf16.gmra.mrb[0].mxu0 %v726
      %v1014 = vpop.f32.mrb[0].mxu0
      %v1015 = vadd.f32 0.0, %v1014
      %v1016 = vpop.f32.mrb[0].mxu0
      %v1017 = vpop.f32.mrb[0].mxu0
      %v1018 = vadd.f32 0.0, %v1017
      %v1019 = vpop.f32.mrb[0].mxu0
      %1020 = vdwg.mxu0
      %v1021 = vadd.f32 %v288, %v767
      %v1022 = vadd.f32 %v289, %v770
      %v1023 = vadd.f32 %v290, %v775
      %v1024 = vadd.f32 %v291, %v778
      %v1025 = vadd.f32 %v292, %v783
      %v1026 = vadd.f32 %v293, %v786
      %v1027 = vadd.f32 %v294, %v791
      %v1028 = vadd.f32 %v295, %v794
      %v1029 = vadd.f32 %v296, %v799
      %v1030 = vadd.f32 %v297, %v802
      %v1031 = vadd.f32 %v298, %v807
      %v1032 = vadd.f32 %v299, %v810
      %v1033 = vadd.f32 %v300, %v815
      %v1034 = vadd.f32 %v301, %v818
      %v1035 = vadd.f32 %v302, %v823
      %v1036 = vadd.f32 %v303, %v826
      %v1037 = vadd.f32 %v304, %v831
      %v1038 = vadd.f32 %v305, %v834
      %v1039 = vadd.f32 %v306, %v839
      %v1040 = vadd.f32 %v307, %v842
      %v1041 = vadd.f32 %v308, %v847
      %v1042 = vadd.f32 %v309, %v850
      %v1043 = vadd.f32 %v310, %v855
      %v1044 = vadd.f32 %v311, %v858
      %v1045 = vadd.f32 %v312, %v863
      %v1046 = vadd.f32 %v313, %v866
      %v1047 = vadd.f32 %v314, %v871
      %v1048 = vadd.f32 %v315, %v874
      %v1049 = vadd.f32 %v316, %v879
      %v1050 = vadd.f32 %v317, %v882
      %v1051 = vadd.f32 %v318, %v887
      %v1052 = vadd.f32 %v319, %v890
      %v1053 = vadd.f32 %v320, %v895
      %v1054 = vadd.f32 %v321, %v898
      %v1055 = vadd.f32 %v322, %v903
      %v1056 = vadd.f32 %v323, %v906
      %v1057 = vadd.f32 %v324, %v911
      %v1058 = vadd.f32 %v325, %v914
      %v1059 = vadd.f32 %v326, %v919
      %v1060 = vadd.f32 %v327, %v922
      %v1061 = vadd.f32 %v328, %v927
      %v1062 = vadd.f32 %v329, %v930
      %v1063 = vadd.f32 %v330, %v935
      %v1064 = vadd.f32 %v331, %v938
      %v1065 = vadd.f32 %v332, %v943
      %v1066 = vadd.f32 %v333, %v946
      %v1067 = vadd.f32 %v334, %v951
      %v1068 = vadd.f32 %v335, %v954
      %v1069 = vadd.f32 %v336, %v959
      %v1070 = vadd.f32 %v337, %v962
      %v1071 = vadd.f32 %v338, %v967
      %v1072 = vadd.f32 %v339, %v970
      %v1073 = vadd.f32 %v340, %v975
      %v1074 = vadd.f32 %v341, %v978
      %v1075 = vadd.f32 %v342, %v983
      %v1076 = vadd.f32 %v343, %v986
      %v1077 = vadd.f32 %v344, %v991
      %v1078 = vadd.f32 %v345, %v994
      %v1079 = vadd.f32 %v346, %v999
      %v1080 = vadd.f32 %v347, %v1002
      %v1081 = vadd.f32 %v348, %v1007
      %v1082 = vadd.f32 %v349, %v1010
      %v1083 = vadd.f32 %v350, %v1015
      %v1084 = vadd.f32 %v351, %v1018
      %vm1085 = vcmask 97280
      %1086 = vst.msk [vmem:[#allocation2] sm:$0xff] %vm1085, %v1021
      %1087 = vst.msk [vmem:[#allocation2 + $0x8] sm:$0xff] %vm1085, %v1022
      %1088 = vst.msk [vmem:[#allocation2 + $0x10] sm:$0xff] %vm1085, %v1023
      %1089 = vst.msk [vmem:[#allocation2 + $0x18] sm:$0xff] %vm1085, %v1024
      %1090 = vst.msk [vmem:[#allocation2 + $0x20] sm:$0xff] %vm1085, %v1025
      %1091 = vst.msk [vmem:[#allocation2 + $0x28] sm:$0xff] %vm1085, %v1026
      %1092 = vst.msk [vmem:[#allocation2 + $0x30] sm:$0xff] %vm1085, %v1027
      %1093 = vst.msk [vmem:[#allocation2 + $0x38] sm:$0xff] %vm1085, %v1028
      %1094 = vst.msk [vmem:[#allocation2 + $0x40] sm:$0xff] %vm1085, %v1029
      %1095 = vst.msk [vmem:[#allocation2 + $0x48] sm:$0xff] %vm1085, %v1030
      %1096 = vst.msk [vmem:[#allocation2 + $0x50] sm:$0xff] %vm1085, %v1031
      %1097 = vst.msk [vmem:[#allocation2 + $0x58] sm:$0xff] %vm1085, %v1032
      %1098 = vst.msk [vmem:[#allocation2 + $0x60] sm:$0xff] %vm1085, %v1033
      %1099 = vst.msk [vmem:[#allocation2 + $0x68] sm:$0xff] %vm1085, %v1034
      %1100 = vst.msk [vmem:[#allocation2 + $0x70] sm:$0xff] %vm1085, %v1035
      %1101 = vst.msk [vmem:[#allocation2 + $0x78] sm:$0xff] %vm1085, %v1036
      %1102 = vst.msk [vmem:[#allocation2 + $0x80] sm:$0xff] %vm1085, %v1037
      %1103 = vst.msk [vmem:[#allocation2 + $0x88] sm:$0xff] %vm1085, %v1038
      %1104 = vst.msk [vmem:[#allocation2 + $0x90] sm:$0xff] %vm1085, %v1039
      %1105 = vst.msk [vmem:[#allocation2 + $0x98] sm:$0xff] %vm1085, %v1040
      %1106 = vst.msk [vmem:[#allocation2 + $0xa0] sm:$0xff] %vm1085, %v1041
      %1107 = vst.msk [vmem:[#allocation2 + $0xa8] sm:$0xff] %vm1085, %v1042
      %1108 = vst.msk [vmem:[#allocation2 + $0xb0] sm:$0xff] %vm1085, %v1043
      %1109 = vst.msk [vmem:[#allocation2 + $0xb8] sm:$0xff] %vm1085, %v1044
      %1110 = vst.msk [vmem:[#allocation2 + $0xc0] sm:$0xff] %vm1085, %v1045
      %1111 = vst.msk [vmem:[#allocation2 + $0xc8] sm:$0xff] %vm1085, %v1046
      %1112 = vst.msk [vmem:[#allocation2 + $0xd0] sm:$0xff] %vm1085, %v1047
      %1113 = vst.msk [vmem:[#allocation2 + $0xd8] sm:$0xff] %vm1085, %v1048
      %1114 = vst.msk [vmem:[#allocation2 + $0xe0] sm:$0xff] %vm1085, %v1049
      %1115 = vst.msk [vmem:[#allocation2 + $0xe8] sm:$0xff] %vm1085, %v1050
      %1116 = vst.msk [vmem:[#allocation2 + $0xf0] sm:$0xff] %vm1085, %v1051
      %1117 = vst.msk [vmem:[#allocation2 + $0xf8] sm:$0xff] %vm1085, %v1052
      %1118 = vst.msk [vmem:[#allocation2 + $0x100] sm:$0xff] %vm1085, %v1053
      %1119 = vst.msk [vmem:[#allocation2 + $0x108] sm:$0xff] %vm1085, %v1054
      %1120 = vst.msk [vmem:[#allocation2 + $0x110] sm:$0xff] %vm1085, %v1055
      %1121 = vst.msk [vmem:[#allocation2 + $0x118] sm:$0xff] %vm1085, %v1056
      %1122 = vst.msk [vmem:[#allocation2 + $0x120] sm:$0xff] %vm1085, %v1057
      %1123 = vst.msk [vmem:[#allocation2 + $0x128] sm:$0xff] %vm1085, %v1058
      %1124 = vst.msk [vmem:[#allocation2 + $0x130] sm:$0xff] %vm1085, %v1059
      %1125 = vst.msk [vmem:[#allocation2 + $0x138] sm:$0xff] %vm1085, %v1060
      %1126 = vst.msk [vmem:[#allocation2 + $0x140] sm:$0xff] %vm1085, %v1061
      %1127 = vst.msk [vmem:[#allocation2 + $0x148] sm:$0xff] %vm1085, %v1062
      %1128 = vst.msk [vmem:[#allocation2 + $0x150] sm:$0xff] %vm1085, %v1063
      %1129 = vst.msk [vmem:[#allocation2 + $0x158] sm:$0xff] %vm1085, %v1064
      %1130 = vst.msk [vmem:[#allocation2 + $0x160] sm:$0xff] %vm1085, %v1065
      %1131 = vst.msk [vmem:[#allocation2 + $0x168] sm:$0xff] %vm1085, %v1066
      %1132 = vst.msk [vmem:[#allocation2 + $0x170] sm:$0xff] %vm1085, %v1067
      %1133 = vst.msk [vmem:[#allocation2 + $0x178] sm:$0xff] %vm1085, %v1068
      %1134 = vst.msk [vmem:[#allocation2 + $0x180] sm:$0xff] %vm1085, %v1069
      %1135 = vst.msk [vmem:[#allocation2 + $0x188] sm:$0xff] %vm1085, %v1070
      %1136 = vst.msk [vmem:[#allocation2 + $0x190] sm:$0xff] %vm1085, %v1071
      %1137 = vst.msk [vmem:[#allocation2 + $0x198] sm:$0xff] %vm1085, %v1072
      %1138 = vst.msk [vmem:[#allocation2 + $0x1a0] sm:$0xff] %vm1085, %v1073
      %1139 = vst.msk [vmem:[#allocation2 + $0x1a8] sm:$0xff] %vm1085, %v1074
      %1140 = vst.msk [vmem:[#allocation2 + $0x1b0] sm:$0xff] %vm1085, %v1075
      %1141 = vst.msk [vmem:[#allocation2 + $0x1b8] sm:$0xff] %vm1085, %v1076
      %1142 = vst.msk [vmem:[#allocation2 + $0x1c0] sm:$0xff] %vm1085, %v1077
      %1143 = vst.msk [vmem:[#allocation2 + $0x1c8] sm:$0xff] %vm1085, %v1078
      %1144 = vst.msk [vmem:[#allocation2 + $0x1d0] sm:$0xff] %vm1085, %v1079
      %1145 = vst.msk [vmem:[#allocation2 + $0x1d8] sm:$0xff] %vm1085, %v1080
      %1146 = vst.msk [vmem:[#allocation2 + $0x1e0] sm:$0xff] %vm1085, %v1081
      %1147 = vst.msk [vmem:[#allocation2 + $0x1e8] sm:$0xff] %vm1085, %v1082
      %1148 = vst.msk [vmem:[#allocation2 + $0x1f0] sm:$0xff] %vm1085, %v1083
      %1149 = vst.msk [vmem:[#allocation2 + $0x1f8] sm:$0xff] %vm1085, %v1084
      // Predicated region
      $region33: #{a_call__.8} parent=27 // pred_check
        %p1150 = pneg %p219
      $region34: #{a_call__.8} parent=27 // pred_check_branch
        %1152 = sbr.rel (%p1150) target = $region36
      $region35: #{a_call__.8} parent=27 // pred_region
        %v1153 = vld [vmem:[#allocation2] sm:$0xff]
        %v1154 = vld [vmem:[#allocation2 + $0x8] sm:$0xff]
        %v1155 = vld [vmem:[#allocation2 + $0x10] sm:$0xff]
        %v1156 = vld [vmem:[#allocation2 + $0x18] sm:$0xff]
        %v1157 = vld [vmem:[#allocation2 + $0x20] sm:$0xff]
        %v1158 = vld [vmem:[#allocation2 + $0x28] sm:$0xff]
        %v1159 = vld [vmem:[#allocation2 + $0x30] sm:$0xff]
        %v1160 = vld [vmem:[#allocation2 + $0x38] sm:$0xff]
        %v1161 = vld [vmem:[#allocation2 + $0x40] sm:$0xff]
        %v1162 = vld [vmem:[#allocation2 + $0x48] sm:$0xff]
        %v1163 = vld [vmem:[#allocation2 + $0x50] sm:$0xff]
        %v1164 = vld [vmem:[#allocation2 + $0x58] sm:$0xff]
        %v1165 = vld [vmem:[#allocation2 + $0x60] sm:$0xff]
        %v1166 = vld [vmem:[#allocation2 + $0x68] sm:$0xff]
        %v1167 = vld [vmem:[#allocation2 + $0x70] sm:$0xff]
        %v1168 = vld [vmem:[#allocation2 + $0x78] sm:$0xff]
        %v1169 = vld [vmem:[#allocation2 + $0x80] sm:$0xff]
        %v1170 = vld [vmem:[#allocation2 + $0x88] sm:$0xff]
        %v1171 = vld [vmem:[#allocation2 + $0x90] sm:$0xff]
        %v1172 = vld [vmem:[#allocation2 + $0x98] sm:$0xff]
        %v1173 = vld [vmem:[#allocation2 + $0xa0] sm:$0xff]
        %v1174 = vld [vmem:[#allocation2 + $0xa8] sm:$0xff]
        %v1175 = vld [vmem:[#allocation2 + $0xb0] sm:$0xff]
        %v1176 = vld [vmem:[#allocation2 + $0xb8] sm:$0xff]
        %v1177 = vld [vmem:[#allocation2 + $0xc0] sm:$0xff]
        %v1178 = vld [vmem:[#allocation2 + $0xc8] sm:$0xff]
        %v1179 = vld [vmem:[#allocation2 + $0xd0] sm:$0xff]
        %v1180 = vld [vmem:[#allocation2 + $0xd8] sm:$0xff]
        %v1181 = vld [vmem:[#allocation2 + $0xe0] sm:$0xff]
        %v1182 = vld [vmem:[#allocation2 + $0xe8] sm:$0xff]
        %v1183 = vld [vmem:[#allocation2 + $0xf0] sm:$0xff]
        %v1184 = vld [vmem:[#allocation2 + $0xf8] sm:$0xff]
        %v1185 = vld [vmem:[#allocation2 + $0x100] sm:$0xff]
        %v1186 = vld [vmem:[#allocation2 + $0x108] sm:$0xff]
        %v1187 = vld [vmem:[#allocation2 + $0x110] sm:$0xff]
        %v1188 = vld [vmem:[#allocation2 + $0x118] sm:$0xff]
        %v1189 = vld [vmem:[#allocation2 + $0x120] sm:$0xff]
        %v1190 = vld [vmem:[#allocation2 + $0x128] sm:$0xff]
        %v1191 = vld [vmem:[#allocation2 + $0x130] sm:$0xff]
        %v1192 = vld [vmem:[#allocation2 + $0x138] sm:$0xff]
        %v1193 = vld [vmem:[#allocation2 + $0x140] sm:$0xff]
        %v1194 = vld [vmem:[#allocation2 + $0x148] sm:$0xff]
        %v1195 = vld [vmem:[#allocation2 + $0x150] sm:$0xff]
        %v1196 = vld [vmem:[#allocation2 + $0x158] sm:$0xff]
        %v1197 = vld [vmem:[#allocation2 + $0x160] sm:$0xff]
        %v1198 = vld [vmem:[#allocation2 + $0x168] sm:$0xff]
        %v1199 = vld [vmem:[#allocation2 + $0x170] sm:$0xff]
        %v1200 = vld [vmem:[#allocation2 + $0x178] sm:$0xff]
        %v1201 = vld [vmem:[#allocation2 + $0x180] sm:$0xff]
        %v1202 = vld [vmem:[#allocation2 + $0x188] sm:$0xff]
        %v1203 = vld [vmem:[#allocation2 + $0x190] sm:$0xff]
        %v1204 = vld [vmem:[#allocation2 + $0x198] sm:$0xff]
        %v1205 = vld [vmem:[#allocation2 + $0x1a0] sm:$0xff]
        %v1206 = vld [vmem:[#allocation2 + $0x1a8] sm:$0xff]
        %v1207 = vld [vmem:[#allocation2 + $0x1b0] sm:$0xff]
        %v1208 = vld [vmem:[#allocation2 + $0x1b8] sm:$0xff]
        %v1209 = vld [vmem:[#allocation2 + $0x1c0] sm:$0xff]
        %v1210 = vld [vmem:[#allocation2 + $0x1c8] sm:$0xff]
        %v1211 = vld [vmem:[#allocation2 + $0x1d0] sm:$0xff]
        %v1212 = vld [vmem:[#allocation2 + $0x1d8] sm:$0xff]
        %v1213 = vld [vmem:[#allocation2 + $0x1e0] sm:$0xff]
        %v1214 = vld [vmem:[#allocation2 + $0x1e8] sm:$0xff]
        %v1215 = vld [vmem:[#allocation2 + $0x1f0] sm:$0xff]
        %v1216 = vld [vmem:[#allocation2 + $0x1f8] sm:$0xff]
        %1217 = vst.msk [vmem:[%s216] sm:$0xff] %vm1085, %v1153
        %1218 = vst.msk [vmem:[%s216 + $0x8] sm:$0xff] %vm1085, %v1154
        %1219 = vst.msk [vmem:[%s216 + $0x10] sm:$0xff] %vm1085, %v1155
        %1220 = vst.msk [vmem:[%s216 + $0x18] sm:$0xff] %vm1085, %v1156
        %1221 = vst.msk [vmem:[%s216 + $0x20] sm:$0xff] %vm1085, %v1157
        %1222 = vst.msk [vmem:[%s216 + $0x28] sm:$0xff] %vm1085, %v1158
        %1223 = vst.msk [vmem:[%s216 + $0x30] sm:$0xff] %vm1085, %v1159
        %1224 = vst.msk [vmem:[%s216 + $0x38] sm:$0xff] %vm1085, %v1160
        %1225 = vst.msk [vmem:[%s216 + $0x40] sm:$0xff] %vm1085, %v1161
        %1226 = vst.msk [vmem:[%s216 + $0x48] sm:$0xff] %vm1085, %v1162
        %1227 = vst.msk [vmem:[%s216 + $0x50] sm:$0xff] %vm1085, %v1163
        %1228 = vst.msk [vmem:[%s216 + $0x58] sm:$0xff] %vm1085, %v1164
        %1229 = vst.msk [vmem:[%s216 + $0x60] sm:$0xff] %vm1085, %v1165
        %1230 = vst.msk [vmem:[%s216 + $0x68] sm:$0xff] %vm1085, %v1166
        %1231 = vst.msk [vmem:[%s216 + $0x70] sm:$0xff] %vm1085, %v1167
        %1232 = vst.msk [vmem:[%s216 + $0x78] sm:$0xff] %vm1085, %v1168
        %1233 = vst.msk [vmem:[%s216 + $0x80] sm:$0xff] %vm1085, %v1169
        %1234 = vst.msk [vmem:[%s216 + $0x88] sm:$0xff] %vm1085, %v1170
        %1235 = vst.msk [vmem:[%s216 + $0x90] sm:$0xff] %vm1085, %v1171
        %1236 = vst.msk [vmem:[%s216 + $0x98] sm:$0xff] %vm1085, %v1172
        %1237 = vst.msk [vmem:[%s216 + $0xa0] sm:$0xff] %vm1085, %v1173
        %1238 = vst.msk [vmem:[%s216 + $0xa8] sm:$0xff] %vm1085, %v1174
        %1239 = vst.msk [vmem:[%s216 + $0xb0] sm:$0xff] %vm1085, %v1175
        %1240 = vst.msk [vmem:[%s216 + $0xb8] sm:$0xff] %vm1085, %v1176
        %1241 = vst.msk [vmem:[%s216 + $0xc0] sm:$0xff] %vm1085, %v1177
        %1242 = vst.msk [vmem:[%s216 + $0xc8] sm:$0xff] %vm1085, %v1178
        %1243 = vst.msk [vmem:[%s216 + $0xd0] sm:$0xff] %vm1085, %v1179
        %1244 = vst.msk [vmem:[%s216 + $0xd8] sm:$0xff] %vm1085, %v1180
        %1245 = vst.msk [vmem:[%s216 + $0xe0] sm:$0xff] %vm1085, %v1181
        %1246 = vst.msk [vmem:[%s216 + $0xe8] sm:$0xff] %vm1085, %v1182
        %1247 = vst.msk [vmem:[%s216 + $0xf0] sm:$0xff] %vm1085, %v1183
        %1248 = vst.msk [vmem:[%s216 + $0xf8] sm:$0xff] %vm1085, %v1184
        %1249 = vst.msk [vmem:[%s216 + $0x100] sm:$0xff] %vm1085, %v1185
        %1250 = vst.msk [vmem:[%s216 + $0x108] sm:$0xff] %vm1085, %v1186
        %1251 = vst.msk [vmem:[%s216 + $0x110] sm:$0xff] %vm1085, %v1187
        %1252 = vst.msk [vmem:[%s216 + $0x118] sm:$0xff] %vm1085, %v1188
        %1253 = vst.msk [vmem:[%s216 + $0x120] sm:$0xff] %vm1085, %v1189
        %1254 = vst.msk [vmem:[%s216 + $0x128] sm:$0xff] %vm1085, %v1190
        %1255 = vst.msk [vmem:[%s216 + $0x130] sm:$0xff] %vm1085, %v1191
        %1256 = vst.msk [vmem:[%s216 + $0x138] sm:$0xff] %vm1085, %v1192
        %1257 = vst.msk [vmem:[%s216 + $0x140] sm:$0xff] %vm1085, %v1193
        %1258 = vst.msk [vmem:[%s216 + $0x148] sm:$0xff] %vm1085, %v1194
        %1259 = vst.msk [vmem:[%s216 + $0x150] sm:$0xff] %vm1085, %v1195
        %1260 = vst.msk [vmem:[%s216 + $0x158] sm:$0xff] %vm1085, %v1196
        %1261 = vst.msk [vmem:[%s216 + $0x160] sm:$0xff] %vm1085, %v1197
        %1262 = vst.msk [vmem:[%s216 + $0x168] sm:$0xff] %vm1085, %v1198
        %1263 = vst.msk [vmem:[%s216 + $0x170] sm:$0xff] %vm1085, %v1199
        %1264 = vst.msk [vmem:[%s216 + $0x178] sm:$0xff] %vm1085, %v1200
        %1265 = vst.msk [vmem:[%s216 + $0x180] sm:$0xff] %vm1085, %v1201
        %1266 = vst.msk [vmem:[%s216 + $0x188] sm:$0xff] %vm1085, %v1202
        %1267 = vst.msk [vmem:[%s216 + $0x190] sm:$0xff] %vm1085, %v1203
        %1268 = vst.msk [vmem:[%s216 + $0x198] sm:$0xff] %vm1085, %v1204
        %1269 = vst.msk [vmem:[%s216 + $0x1a0] sm:$0xff] %vm1085, %v1205
        %1270 = vst.msk [vmem:[%s216 + $0x1a8] sm:$0xff] %vm1085, %v1206
        %1271 = vst.msk [vmem:[%s216 + $0x1b0] sm:$0xff] %vm1085, %v1207
        %1272 = vst.msk [vmem:[%s216 + $0x1b8] sm:$0xff] %vm1085, %v1208
        %1273 = vst.msk [vmem:[%s216 + $0x1c0] sm:$0xff] %vm1085, %v1209
        %1274 = vst.msk [vmem:[%s216 + $0x1c8] sm:$0xff] %vm1085, %v1210
        %1275 = vst.msk [vmem:[%s216 + $0x1d0] sm:$0xff] %vm1085, %v1211
        %1276 = vst.msk [vmem:[%s216 + $0x1d8] sm:$0xff] %vm1085, %v1212
        %1277 = vst.msk [vmem:[%s216 + $0x1e0] sm:$0xff] %vm1085, %v1213
        %1278 = vst.msk [vmem:[%s216 + $0x1e8] sm:$0xff] %vm1085, %v1214
        %1279 = vst.msk [vmem:[%s216 + $0x1f0] sm:$0xff] %vm1085, %v1215
        %1280 = vst.msk [vmem:[%s216 + $0x1f8] sm:$0xff] %vm1085, %v1216
      $region36: #{a_call__.8} parent=27 // pred_fallthru
        _
      %s1281 = smul.u32 64, %s18
      %p1282 = scmp.lt.s32.totalorder %s1281, 255
      %s1283 = scalar_select %p1282, %s1281, 255
      %p1284 = scmp.lt.s32.totalorder %s19, 0
      %s1285 = scalar_select %p1284, %s19, 0
      %s1286 = sadd.s32 %s1285, %s1283
      %s1287 = smul.addr %s1286, 8
      %s1288 = scalar_lea.vmem %s2, %s1287
      // Predicated region
      $region37: #{a_call__.8} parent=27 // pred_check
        %p1289 = pneg %p108
      $region38: #{a_call__.8} parent=27 // pred_check_branch
        %1291 = sbr.rel (%p1289) target = $region40
      $region39: #{a_call__.8} parent=27 // pred_region
        %s1292 = smul.u32 64, %s18
      $region40: #{a_call__.8} parent=27 // pred_fallthru
        _
    $region28: #{a_call__.8} parent=5 // pred_fallthru
      _
    %p1293 = scmp.le.s32.totalorder 2, %s8
    // Predicated region
    $region41: #{a_call__.8} parent=5 // pred_check
      %p1294 = pneg %p1293
    $region42: #{a_call__.8} parent=5 // pred_check_branch
      %1296 = sbr.rel (%p1294) target = $region44
    $region43: #{a_call__.8} parent=5 // pred_region
      %s1297 = ssub.s32 %s8, 2
      // Predicated region
      $region45: #{a_call__.8} parent=43 // pred_check
        %p1298 = pneg %p114
      $region46: #{a_call__.8} parent=43 // pred_check_branch
        %1300 = sbr.rel (%p1298) target = $region48
      $region47: #{a_call__.8} parent=43 // pred_region
        %s1301 = smul.u32 64, %s21
        %p1302 = scmp.lt.s32.totalorder %s1301, 255
        %s1303 = scalar_select %p1302, %s1301, 255
        %p1304 = scmp.lt.s32.totalorder %s22, 0
        %s1305 = scalar_select %p1304, %s22, 0
        %s1306 = sadd.s32 %s1305, %s1303
        %s1307 = smul.addr %s1306, 8
        %s1308 = scalar_lea.vmem %s2, %s1307
      $region48: #{a_call__.8} parent=43 // pred_fallthru
        _
    $region44: #{a_call__.8} parent=5 // pred_fallthru
      _
  $region6: #{a_call__.8} parent=0 // loop_footer
    %s12 = sadd.s32 1, %s8
  $region7: #{a_call__.8} parent=0 // loop_footer_branch
    %7 = sbr.rel target = $region3
  $region8: #{a_call__.8} parent=0 // loop_exit
    _

// kernel: a_call__.9
$region0: #{a_call__.9}
  #allocation0 [shape = 'u32[]', space=smem, size = 0x4, offset = 0x4, fixed_abs, tag = 'smem constant byte address 0x4 - core index']
  #allocation1 [shape = 'u32[144,128]{1,0:T(1,128)}', space=vmem, size = 0x12000, scoped, tag = 'internal scratch']
  #allocation2 [shape = 'f32[128,24]{1,0:T(8,128)}', space=vmem, size = 0x10000, scoped, tag = 'scratch operand']
  %s0 = inlined_call_operand.vmem [shape: bf16[128,108], index: 0, kind: input, shape index: {}]
  %s1 = inlined_call_operand.vmem [shape: bf16[108,24], index: 1, kind: input, shape index: {}]
  %s2 = inlined_call_operand.vmem [shape: f32[128,24], index: 2, kind: output, shape index: {}]
  %s3 = sld [smem:[#allocation0]]
  $region26: #{a_call__.9} parent=0
    _
  %s5 = ssub.s32 1, %s3
  %s6 = scalar_select 0, %s5, %s3
  // Predicated region
  $region2: #{a_call__.9} parent=0 // pred_check
    _
  $region3: #{a_call__.9} parent=0 // pred_check_branch
    %8 = sbr.rel (0) target = $region5
  $region4: #{a_call__.9} parent=0 // pred_region
    _
  $region5: #{a_call__.9} parent=0 // pred_fallthru
    _
  // Predicated region
  $region6: #{a_call__.9} parent=0 // pred_check
    _
  $region7: #{a_call__.9} parent=0 // pred_check_branch
    %10 = sbr.rel (0) target = $region9
  $region8: #{a_call__.9} parent=0 // pred_region
    _
  $region9: #{a_call__.9} parent=0 // pred_fallthru
    _
  %p12 = scmp.eq.s32.totalorder 0, 0
  // Predicated region
  $region10: #{a_call__.9} parent=0 // pred_check
    %p13 = pneg %p12
  $region11: #{a_call__.9} parent=0 // pred_check_branch
    %15 = sbr.rel (%p13) target = $region13
  $region12: #{a_call__.9} parent=0 // pred_region
    %vm16 = vcmask 195584
    %17 = vst.msk [vmem:[#allocation2] sm:$0xff] %vm16, 0.0
    %18 = vst.msk [vmem:[#allocation2 + $0x8] sm:$0xff] %vm16, 0.0
    %19 = vst.msk [vmem:[#allocation2 + $0x10] sm:$0xff] %vm16, 0.0
    %20 = vst.msk [vmem:[#allocation2 + $0x18] sm:$0xff] %vm16, 0.0
    %21 = vst.msk [vmem:[#allocation2 + $0x20] sm:$0xff] %vm16, 0.0
    %22 = vst.msk [vmem:[#allocation2 + $0x28] sm:$0xff] %vm16, 0.0
    %23 = vst.msk [vmem:[#allocation2 + $0x30] sm:$0xff] %vm16, 0.0
    %24 = vst.msk [vmem:[#allocation2 + $0x38] sm:$0xff] %vm16, 0.0
    %25 = vst.msk [vmem:[#allocation2 + $0x40] sm:$0xff] %vm16, 0.0
    %26 = vst.msk [vmem:[#allocation2 + $0x48] sm:$0xff] %vm16, 0.0
    %27 = vst.msk [vmem:[#allocation2 + $0x50] sm:$0xff] %vm16, 0.0
    %28 = vst.msk [vmem:[#allocation2 + $0x58] sm:$0xff] %vm16, 0.0
    %29 = vst.msk [vmem:[#allocation2 + $0x60] sm:$0xff] %vm16, 0.0
    %30 = vst.msk [vmem:[#allocation2 + $0x68] sm:$0xff] %vm16, 0.0
    %31 = vst.msk [vmem:[#allocation2 + $0x70] sm:$0xff] %vm16, 0.0
    %32 = vst.msk [vmem:[#allocation2 + $0x78] sm:$0xff] %vm16, 0.0
  $region13: #{a_call__.9} parent=0 // pred_fallthru
    _
  %v33 = vld [vmem:[#allocation2] sm:$0xff]
  %v34 = vld [vmem:[#allocation2 + $0x8] sm:$0xff]
  %v35 = vld [vmem:[#allocation2 + $0x10] sm:$0xff]
  %v36 = vld [vmem:[#allocation2 + $0x18] sm:$0xff]
  %v37 = vld [vmem:[#allocation2 + $0x20] sm:$0xff]
  %v38 = vld [vmem:[#allocation2 + $0x28] sm:$0xff]
  %v39 = vld [vmem:[#allocation2 + $0x30] sm:$0xff]
  %v40 = vld [vmem:[#allocation2 + $0x38] sm:$0xff]
  %v41 = vld [vmem:[#allocation2 + $0x40] sm:$0xff]
  %v42 = vld [vmem:[#allocation2 + $0x48] sm:$0xff]
  %v43 = vld [vmem:[#allocation2 + $0x50] sm:$0xff]
  %v44 = vld [vmem:[#allocation2 + $0x58] sm:$0xff]
  %v45 = vld [vmem:[#allocation2 + $0x60] sm:$0xff]
  %v46 = vld [vmem:[#allocation2 + $0x68] sm:$0xff]
  %v47 = vld [vmem:[#allocation2 + $0x70] sm:$0xff]
  %v48 = vld [vmem:[#allocation2 + $0x78] sm:$0xff]
  %v49 = vld [vmem:[%s0] sm:$0xf]
  %v50 = vld [vmem:[%s0 + $0x4] sm:$0xf]
  %v51 = vld [vmem:[%s0 + $0x8] sm:$0xf]
  %v52 = vld [vmem:[%s0 + $0xc] sm:$0xf]
  %v53 = vld [vmem:[%s0 + $0x10] sm:$0xf]
  %v54 = vld [vmem:[%s0 + $0x14] sm:$0xf]
  %v55 = vld [vmem:[%s0 + $0x18] sm:$0xf]
  %v56 = vld [vmem:[%s0 + $0x1c] sm:$0xf]
  %v57 = vld [vmem:[%s0 + $0x20] sm:$0xf]
  %v58 = vld [vmem:[%s0 + $0x24] sm:$0xf]
  %v59 = vld [vmem:[%s0 + $0x28] sm:$0xf]
  %v60 = vld [vmem:[%s0 + $0x2c] sm:$0xf]
  %v61 = vld [vmem:[%s0 + $0x30] sm:$0xf]
  %v62 = vld [vmem:[%s0 + $0x34] sm:$0xf]
  %v63 = vld [vmem:[%s0 + $0x38] sm:$0xf]
  %v64 = vld [vmem:[%s0 + $0x3c] sm:$0xf]
  %v65 = vld [vmem:[%s1] sm:$0xf]
  %v66 = vld [vmem:[%s1 + $0x4] sm:$0xf]
  %v67 = vld [vmem:[%s1 + $0x8] sm:$0xf]
  %v68 = vld [vmem:[%s1 + $0xc] sm:$0xf]
  %v69 = vld [vmem:[%s1 + $0x10] sm:$0xf]
  %v70 = vld [vmem:[%s1 + $0x14] sm:$0xf]
  %v71 = vld [vmem:[%s1 + $0x18] sm:$0xf]
  %v72 = vld [vmem:[%s1 + $0x1c] sm:$0xf]
  %v73 = vld [vmem:[%s1 + $0x20] sm:$0xf]
  %v74 = vld [vmem:[%s1 + $0x24] sm:$0xf]
  %v75 = vld [vmem:[%s1 + $0x28] sm:$0xf]
  %v76 = vld [vmem:[%s1 + $0x2c] sm:$0xf]
  %v77 = vld [vmem:[%s1 + $0x30] sm:$0xf]
  %v78 = vld [vmem:[%s1 + $0x34] sm:$0x3]
  %v95 = vunpack.c.l.b16 %v49
  %v96 = vunpack.c.l.b16 %v50
  %v97 = vunpack.c.l.b16 %v51
  %v98 = vunpack.c.l.b16 %v52
  %v99 = vunpack.c.l.b16 %v53
  %v100 = vunpack.c.l.b16 %v54
  %v101 = vunpack.c.l.b16 %v55
  %v102 = vunpack.c.l.b16 %v56
  %v103 = vunpack.c.l.b16 %v57
  %v104 = vunpack.c.l.b16 %v58
  %v105 = vunpack.c.l.b16 %v59
  %v106 = vunpack.c.l.b16 %v60
  %v107 = vunpack.c.l.b16 %v61
  %v108 = vunpack.c.l.b16 %v62
  %v109 = vunpack.c.l.b16 %v63
  %v110 = vunpack.c.l.b16 %v64
  %v111 = vpack.c.b16 %v96, %v95
  %v112 = vpack.c.b16 %v98, %v97
  %v113 = vpack.c.b16 %v100, %v99
  %v114 = vpack.c.b16 %v102, %v101
  %v115 = vpack.c.b16 %v104, %v103
  %v116 = vpack.c.b16 %v106, %v105
  %v117 = vpack.c.b16 %v108, %v107
  %v118 = vpack.c.b16 %v110, %v109
  %v133 = vunpack.c.l.b16 %v65
  %v134 = vunpack.c.l.b16 %v66
  %v135 = vunpack.c.l.b16 %v67
  %v136 = vunpack.c.l.b16 %v68
  %v137 = vunpack.c.l.b16 %v69
  %v138 = vunpack.c.l.b16 %v70
  %v139 = vunpack.c.l.b16 %v71
  %v140 = vunpack.c.l.b16 %v72
  %v141 = vunpack.c.l.b16 %v73
  %v142 = vunpack.c.l.b16 %v74
  %v143 = vunpack.c.l.b16 %v75
  %v144 = vunpack.c.l.b16 %v76
  %v145 = vunpack.c.l.b16 %v77
  %v146 = vunpack.c.l.b16 %v78
  %v147 = vpack.c.b16 %v134, %v133
  %v148 = vpack.c.b16 %v136, %v135
  %v149 = vpack.c.b16 %v138, %v137
  %v150 = vpack.c.b16 %v140, %v139
  %v151 = vpack.c.b16 %v142, %v141
  %v152 = vpack.c.b16 %v144, %v143
  %v153 = vpack.c.b16 %v146, %v145
  %vm160 = vcmask 883712
  %v162 = vsel %vm160, %v111, 0
  %v165 = vsel %vm160, %v112, 0
  %v168 = vsel %vm160, %v113, 0
  %v171 = vsel %vm160, %v114, 0
  %v174 = vsel %vm160, %v115, 0
  %v177 = vsel %vm160, %v116, 0
  %v180 = vsel %vm160, %v117, 0
  %v183 = vsel %vm160, %v118, 0
  %vm185 = vcmask 1045504
  %v187 = vsel %vm185, %v153, 0
  %189 = vmatprep.subr.bf16.mxu0 0
  %190 = vmatpush1.bf16.msra.mxu0 %v147
  %191 = vmatprep.subr.bf16.mxu0 0
  %192 = vmatpush1.bf16.msra.mxu0 %v148
  %193 = vmatprep.subr.bf16.mxu0 0
  %194 = vmatpush1.bf16.msra.mxu0 %v149
  %195 = vmatprep.subr.bf16.mxu0 0
  %196 = vmatpush1.bf16.msra.mxu0 %v150
  %197 = vmatprep.subr.bf16.mxu0 0
  %198 = vmatpush1.bf16.msra.mxu0 %v151
  %199 = vmatprep.subr.bf16.mxu0 0
  %200 = vmatpush1.bf16.msra.mxu0 %v152
  %201 = vmatprep.subr.bf16.mxu0 0
  %202 = vmatpush1.bf16.msra.mxu0 %v187
  %203 = vmatprep.subr.bf16.mxu0 0
  %204 = vmatpush1.bf16.msra.mxu0 0
  %205 = vmatprep.subr.bf16.mxu0 0
  %206 = vmatpush1.bf16.msra.mxu0 0
  %207 = vmatprep.subr.bf16.mxu0 0
  %208 = vmatpush1.bf16.msra.mxu0 0
  %209 = vmatprep.subr.bf16.mxu0 0
  %210 = vmatpush1.bf16.msra.mxu0 0
  %211 = vmatprep.subr.bf16.mxu0 0
  %212 = vmatpush1.bf16.msra.mxu0 0
  %213 = vmatprep.subr.bf16.mxu0 0
  %214 = vmatpush1.bf16.msra.mxu0 0
  %215 = vmatprep.subr.bf16.mxu0 0
  %216 = vmatpush1.bf16.msra.mxu0 0
  %217 = vmatprep.subr.bf16.mxu0 0
  %218 = vmatpush1.bf16.msra.mxu0 0
  %219 = vmatprep.subr.bf16.mxu0 0
  %220 = vmatpush1.bf16.msra.mxu0 0
  %221 = vmatprep.mubr.bf16.mxu0 0
  %222 = vmatmul.mubr.bf16.gmra.mrb[0].mxu0 %v162
  %v223 = vpop.f32.mrb[0].mxu0
  %v224 = vadd.f32 0.0, %v223
  %v225 = vpop.f32.mrb[0].mxu0
  %v226 = vpop.f32.mrb[0].mxu0
  %v227 = vadd.f32 0.0, %v226
  %v228 = vpop.f32.mrb[0].mxu0
  %229 = vmatprep.mubr.bf16.mxu0 0
  %230 = vmatmul.mubr.bf16.gmra.mrb[0].mxu0 %v165
  %v231 = vpop.f32.mrb[0].mxu0
  %v232 = vadd.f32 0.0, %v231
  %v233 = vpop.f32.mrb[0].mxu0
  %v234 = vpop.f32.mrb[0].mxu0
  %v235 = vadd.f32 0.0, %v234
  %v236 = vpop.f32.mrb[0].mxu0
  %237 = vmatprep.mubr.bf16.mxu0 0
  %238 = vmatmul.mubr.bf16.gmra.mrb[0].mxu0 %v168
  %v239 = vpop.f32.mrb[0].mxu0
  %v240 = vadd.f32 0.0, %v239
  %v241 = vpop.f32.mrb[0].mxu0
  %v242 = vpop.f32.mrb[0].mxu0
  %v243 = vadd.f32 0.0, %v242
  %v244 = vpop.f32.mrb[0].mxu0
  %245 = vmatprep.mubr.bf16.mxu0 0
  %246 = vmatmul.mubr.bf16.gmra.mrb[0].mxu0 %v171
  %v247 = vpop.f32.mrb[0].mxu0
  %v248 = vadd.f32 0.0, %v247
  %v249 = vpop.f32.mrb[0].mxu0
  %v250 = vpop.f32.mrb[0].mxu0
  %v251 = vadd.f32 0.0, %v250
  %v252 = vpop.f32.mrb[0].mxu0
  %253 = vmatprep.mubr.bf16.mxu0 0
  %254 = vmatmul.mubr.bf16.gmra.mrb[0].mxu0 %v174
  %v255 = vpop.f32.mrb[0].mxu0
  %v256 = vadd.f32 0.0, %v255
  %v257 = vpop.f32.mrb[0].mxu0
  %v258 = vpop.f32.mrb[0].mxu0
  %v259 = vadd.f32 0.0, %v258
  %v260 = vpop.f32.mrb[0].mxu0
  %261 = vmatprep.mubr.bf16.mxu0 0
  %262 = vmatmul.mubr.bf16.gmra.mrb[0].mxu0 %v177
  %v263 = vpop.f32.mrb[0].mxu0
  %v264 = vadd.f32 0.0, %v263
  %v265 = vpop.f32.mrb[0].mxu0
  %v266 = vpop.f32.mrb[0].mxu0
  %v267 = vadd.f32 0.0, %v266
  %v268 = vpop.f32.mrb[0].mxu0
  %269 = vmatprep.mubr.bf16.mxu0 0
  %270 = vmatmul.mubr.bf16.gmra.mrb[0].mxu0 %v180
  %v271 = vpop.f32.mrb[0].mxu0
  %v272 = vadd.f32 0.0, %v271
  %v273 = vpop.f32.mrb[0].mxu0
  %v274 = vpop.f32.mrb[0].mxu0
  %v275 = vadd.f32 0.0, %v274
  %v276 = vpop.f32.mrb[0].mxu0
  %277 = vmatprep.mubr.bf16.mxu0 0
  %278 = vmatmul.mubr.bf16.gmra.mrb[0].mxu0 %v183
  %v279 = vpop.f32.mrb[0].mxu0
  %v280 = vadd.f32 0.0, %v279
  %v281 = vpop.f32.mrb[0].mxu0
  %v282 = vpop.f32.mrb[0].mxu0
  %v283 = vadd.f32 0.0, %v282
  %v284 = vpop.f32.mrb[0].mxu0
  %285 = vdwg.mxu0
  %v286 = vadd.f32 %v33, %v224
  %v287 = vadd.f32 %v34, %v227
  %v288 = vadd.f32 %v35, %v232
  %v289 = vadd.f32 %v36, %v235
  %v290 = vadd.f32 %v37, %v240
  %v291 = vadd.f32 %v38, %v243
  %v292 = vadd.f32 %v39, %v248
  %v293 = vadd.f32 %v40, %v251
  %v294 = vadd.f32 %v41, %v256
  %v295 = vadd.f32 %v42, %v259
  %v296 = vadd.f32 %v43, %v264
  %v297 = vadd.f32 %v44, %v267
  %v298 = vadd.f32 %v45, %v272
  %v299 = vadd.f32 %v46, %v275
  %v300 = vadd.f32 %v47, %v280
  %v301 = vadd.f32 %v48, %v283
  %vm302 = vcmask 195584
  %303 = vst.msk [vmem:[#allocation2] sm:$0xff] %vm302, %v286
  %304 = vst.msk [vmem:[#allocation2 + $0x8] sm:$0xff] %vm302, %v287
  %305 = vst.msk [vmem:[#allocation2 + $0x10] sm:$0xff] %vm302, %v288
  %306 = vst.msk [vmem:[#allocation2 + $0x18] sm:$0xff] %vm302, %v289
  %307 = vst.msk [vmem:[#allocation2 + $0x20] sm:$0xff] %vm302, %v290
  %308 = vst.msk [vmem:[#allocation2 + $0x28] sm:$0xff] %vm302, %v291
  %309 = vst.msk [vmem:[#allocation2 + $0x30] sm:$0xff] %vm302, %v292
  %310 = vst.msk [vmem:[#allocation2 + $0x38] sm:$0xff] %vm302, %v293
  %311 = vst.msk [vmem:[#allocation2 + $0x40] sm:$0xff] %vm302, %v294
  %312 = vst.msk [vmem:[#allocation2 + $0x48] sm:$0xff] %vm302, %v295
  %313 = vst.msk [vmem:[#allocation2 + $0x50] sm:$0xff] %vm302, %v296
  %314 = vst.msk [vmem:[#allocation2 + $0x58] sm:$0xff] %vm302, %v297
  %315 = vst.msk [vmem:[#allocation2 + $0x60] sm:$0xff] %vm302, %v298
  %316 = vst.msk [vmem:[#allocation2 + $0x68] sm:$0xff] %vm302, %v299
  %317 = vst.msk [vmem:[#allocation2 + $0x70] sm:$0xff] %vm302, %v300
  %318 = vst.msk [vmem:[#allocation2 + $0x78] sm:$0xff] %vm302, %v301
  // Predicated region
  $region14: #{a_call__.9} parent=0 // pred_check
    %p319 = pneg %p12
  $region15: #{a_call__.9} parent=0 // pred_check_branch
    %321 = sbr.rel (%p319) target = $region17
  $region16: #{a_call__.9} parent=0 // pred_region
    %v322 = vld [vmem:[#allocation2] sm:$0xff]
    %v323 = vld [vmem:[#allocation2 + $0x8] sm:$0xff]
    %v324 = vld [vmem:[#allocation2 + $0x10] sm:$0xff]
    %v325 = vld [vmem:[#allocation2 + $0x18] sm:$0xff]
    %v326 = vld [vmem:[#allocation2 + $0x20] sm:$0xff]
    %v327 = vld [vmem:[#allocation2 + $0x28] sm:$0xff]
    %v328 = vld [vmem:[#allocation2 + $0x30] sm:$0xff]
    %v329 = vld [vmem:[#allocation2 + $0x38] sm:$0xff]
    %v330 = vld [vmem:[#allocation2 + $0x40] sm:$0xff]
    %v331 = vld [vmem:[#allocation2 + $0x48] sm:$0xff]
    %v332 = vld [vmem:[#allocation2 + $0x50] sm:$0xff]
    %v333 = vld [vmem:[#allocation2 + $0x58] sm:$0xff]
    %v334 = vld [vmem:[#allocation2 + $0x60] sm:$0xff]
    %v335 = vld [vmem:[#allocation2 + $0x68] sm:$0xff]
    %v336 = vld [vmem:[#allocation2 + $0x70] sm:$0xff]
    %v337 = vld [vmem:[#allocation2 + $0x78] sm:$0xff]
    %338 = vst.msk [vmem:[%s2] sm:$0xff] %vm302, %v322
    %339 = vst.msk [vmem:[%s2 + $0x8] sm:$0xff] %vm302, %v323
    %340 = vst.msk [vmem:[%s2 + $0x10] sm:$0xff] %vm302, %v324
    %341 = vst.msk [vmem:[%s2 + $0x18] sm:$0xff] %vm302, %v325
    %342 = vst.msk [vmem:[%s2 + $0x20] sm:$0xff] %vm302, %v326
    %343 = vst.msk [vmem:[%s2 + $0x28] sm:$0xff] %vm302, %v327
    %344 = vst.msk [vmem:[%s2 + $0x30] sm:$0xff] %vm302, %v328
    %345 = vst.msk [vmem:[%s2 + $0x38] sm:$0xff] %vm302, %v329
    %346 = vst.msk [vmem:[%s2 + $0x40] sm:$0xff] %vm302, %v330
    %347 = vst.msk [vmem:[%s2 + $0x48] sm:$0xff] %vm302, %v331
    %348 = vst.msk [vmem:[%s2 + $0x50] sm:$0xff] %vm302, %v332
    %349 = vst.msk [vmem:[%s2 + $0x58] sm:$0xff] %vm302, %v333
    %350 = vst.msk [vmem:[%s2 + $0x60] sm:$0xff] %vm302, %v334
    %351 = vst.msk [vmem:[%s2 + $0x68] sm:$0xff] %vm302, %v335
    %352 = vst.msk [vmem:[%s2 + $0x70] sm:$0xff] %vm302, %v336
    %353 = vst.msk [vmem:[%s2 + $0x78] sm:$0xff] %vm302, %v337
  $region17: #{a_call__.9} parent=0 // pred_fallthru
    _
  // Predicated region
  $region18: #{a_call__.9} parent=0 // pred_check
    _
  $region19: #{a_call__.9} parent=0 // pred_check_branch
    %355 = sbr.rel (0) target = $region21
  $region20: #{a_call__.9} parent=0 // pred_region
    _
  $region21: #{a_call__.9} parent=0 // pred_fallthru
    _
  // Predicated region
  $region22: #{a_call__.9} parent=0 // pred_check
    _
  $region23: #{a_call__.9} parent=0 // pred_check_branch
    %357 = sbr.rel (0) target = $region25
  $region24: #{a_call__.9} parent=0 // pred_region
    _
  $region25: #{a_call__.9} parent=0 // pred_fallthru
    _

// kernel: a_call__.10
$region0: #{a_call__.10}
  #allocation0 [shape = 'u32[]', space=smem, size = 0x4, offset = 0x4, fixed_abs, tag = 'smem constant byte address 0x4 - core index']
  #allocation1 [shape = 'u32[144,128]{1,0:T(1,128)}', space=vmem, size = 0x12000, scoped, tag = 'internal scratch']
  #allocation2 [shape = 'f32[128,12]{1,0:T(8,128)}', space=vmem, size = 0x10000, scoped, tag = 'scratch operand']
  %s0 = inlined_call_operand.vmem [shape: bf16[128,216], index: 0, kind: input, shape index: {}]
  %s1 = inlined_call_operand.vmem [shape: bf16[216,12], index: 1, kind: input, shape index: {}]
  %s2 = inlined_call_operand.vmem [shape: f32[128,12], index: 2, kind: output, shape index: {}]
  %s3 = sld [smem:[#allocation0]]
  $region26: #{a_call__.10} parent=0
    _
  %s5 = ssub.s32 1, %s3
  %s6 = scalar_select 0, %s5, %s3
  // Predicated region
  $region2: #{a_call__.10} parent=0 // pred_check
    _
  $region3: #{a_call__.10} parent=0 // pred_check_branch
    %8 = sbr.rel (0) target = $region5
  $region4: #{a_call__.10} parent=0 // pred_region
    _
  $region5: #{a_call__.10} parent=0 // pred_fallthru
    _
  // Predicated region
  $region6: #{a_call__.10} parent=0 // pred_check
    _
  $region7: #{a_call__.10} parent=0 // pred_check_branch
    %10 = sbr.rel (0) target = $region9
  $region8: #{a_call__.10} parent=0 // pred_region
    _
  $region9: #{a_call__.10} parent=0 // pred_fallthru
    _
  %p12 = scmp.eq.s32.totalorder 0, 0
  // Predicated region
  $region10: #{a_call__.10} parent=0 // pred_check
    %p13 = pneg %p12
  $region11: #{a_call__.10} parent=0 // pred_check_branch
    %15 = sbr.rel (%p13) target = $region13
  $region12: #{a_call__.10} parent=0 // pred_region
    %vm16 = vcmask 97280
    %17 = vst.msk [vmem:[#allocation2] sm:$0xff] %vm16, 0.0
    %18 = vst.msk [vmem:[#allocation2 + $0x8] sm:$0xff] %vm16, 0.0
    %19 = vst.msk [vmem:[#allocation2 + $0x10] sm:$0xff] %vm16, 0.0
    %20 = vst.msk [vmem:[#allocation2 + $0x18] sm:$0xff] %vm16, 0.0
    %21 = vst.msk [vmem:[#allocation2 + $0x20] sm:$0xff] %vm16, 0.0
    %22 = vst.msk [vmem:[#allocation2 + $0x28] sm:$0xff] %vm16, 0.0
    %23 = vst.msk [vmem:[#allocation2 + $0x30] sm:$0xff] %vm16, 0.0
    %24 = vst.msk [vmem:[#allocation2 + $0x38] sm:$0xff] %vm16, 0.0
    %25 = vst.msk [vmem:[#allocation2 + $0x40] sm:$0xff] %vm16, 0.0
    %26 = vst.msk [vmem:[#allocation2 + $0x48] sm:$0xff] %vm16, 0.0
    %27 = vst.msk [vmem:[#allocation2 + $0x50] sm:$0xff] %vm16, 0.0
    %28 = vst.msk [vmem:[#allocation2 + $0x58] sm:$0xff] %vm16, 0.0
    %29 = vst.msk [vmem:[#allocation2 + $0x60] sm:$0xff] %vm16, 0.0
    %30 = vst.msk [vmem:[#allocation2 + $0x68] sm:$0xff] %vm16, 0.0
    %31 = vst.msk [vmem:[#allocation2 + $0x70] sm:$0xff] %vm16, 0.0
    %32 = vst.msk [vmem:[#allocation2 + $0x78] sm:$0xff] %vm16, 0.0
  $region13: #{a_call__.10} parent=0 // pred_fallthru
    _
  %v33 = vld [vmem:[#allocation2] sm:$0xff]
  %v34 = vld [vmem:[#allocation2 + $0x8] sm:$0xff]
  %v35 = vld [vmem:[#allocation2 + $0x10] sm:$0xff]
  %v36 = vld [vmem:[#allocation2 + $0x18] sm:$0xff]
  %v37 = vld [vmem:[#allocation2 + $0x20] sm:$0xff]
  %v38 = vld [vmem:[#allocation2 + $0x28] sm:$0xff]
  %v39 = vld [vmem:[#allocation2 + $0x30] sm:$0xff]
  %v40 = vld [vmem:[#allocation2 + $0x38] sm:$0xff]
  %v41 = vld [vmem:[#allocation2 + $0x40] sm:$0xff]
  %v42 = vld [vmem:[#allocation2 + $0x48] sm:$0xff]
  %v43 = vld [vmem:[#allocation2 + $0x50] sm:$0xff]
  %v44 = vld [vmem:[#allocation2 + $0x58] sm:$0xff]
  %v45 = vld [vmem:[#allocation2 + $0x60] sm:$0xff]
  %v46 = vld [vmem:[#allocation2 + $0x68] sm:$0xff]
  %v47 = vld [vmem:[#allocation2 + $0x70] sm:$0xff]
  %v48 = vld [vmem:[#allocation2 + $0x78] sm:$0xff]
  %v49 = vld [vmem:[%s0] sm:$0xff]
  %v50 = vld [vmem:[%s0 + $0x8] sm:$0xff]
  %v51 = vld [vmem:[%s0 + $0x10] sm:$0xff]
  %v52 = vld [vmem:[%s0 + $0x18] sm:$0xff]
  %v53 = vld [vmem:[%s0 + $0x20] sm:$0xff]
  %v54 = vld [vmem:[%s0 + $0x28] sm:$0xff]
  %v55 = vld [vmem:[%s0 + $0x30] sm:$0xff]
  %v56 = vld [vmem:[%s0 + $0x38] sm:$0xff]
  %v57 = vld [vmem:[%s0 + $0x40] sm:$0xff]
  %v58 = vld [vmem:[%s0 + $0x48] sm:$0xff]
  %v59 = vld [vmem:[%s0 + $0x50] sm:$0xff]
  %v60 = vld [vmem:[%s0 + $0x58] sm:$0xff]
  %v61 = vld [vmem:[%s0 + $0x60] sm:$0xff]
  %v62 = vld [vmem:[%s0 + $0x68] sm:$0xff]
  %v63 = vld [vmem:[%s0 + $0x70] sm:$0xff]
  %v64 = vld [vmem:[%s0 + $0x78] sm:$0xff]
  %v65 = vld [vmem:[%s1] sm:$0xf]
  %v66 = vld [vmem:[%s1 + $0x4] sm:$0xf]
  %v67 = vld [vmem:[%s1 + $0x8] sm:$0xf]
  %v68 = vld [vmem:[%s1 + $0xc] sm:$0xf]
  %v69 = vld [vmem:[%s1 + $0x10] sm:$0xf]
  %v70 = vld [vmem:[%s1 + $0x14] sm:$0xf]
  %v71 = vld [vmem:[%s1 + $0x18] sm:$0xf]
  %v72 = vld [vmem:[%s1 + $0x1c] sm:$0xf]
  %v73 = vld [vmem:[%s1 + $0x20] sm:$0xf]
  %v74 = vld [vmem:[%s1 + $0x24] sm:$0xf]
  %v75 = vld [vmem:[%s1 + $0x28] sm:$0xf]
  %v76 = vld [vmem:[%s1 + $0x2c] sm:$0xf]
  %v77 = vld [vmem:[%s1 + $0x30] sm:$0xf]
  %v78 = vld [vmem:[%s1 + $0x34] sm:$0xf]
  %v79 = vld [vmem:[%s1 + $0x38] sm:$0xf]
  %v80 = vld [vmem:[%s1 + $0x3c] sm:$0xf]
  %v81 = vld [vmem:[%s1 + $0x40] sm:$0xf]
  %v82 = vld [vmem:[%s1 + $0x44] sm:$0xf]
  %v83 = vld [vmem:[%s1 + $0x48] sm:$0xf]
  %v84 = vld [vmem:[%s1 + $0x4c] sm:$0xf]
  %v85 = vld [vmem:[%s1 + $0x50] sm:$0xf]
  %v86 = vld [vmem:[%s1 + $0x54] sm:$0xf]
  %v87 = vld [vmem:[%s1 + $0x58] sm:$0xf]
  %v88 = vld [vmem:[%s1 + $0x5c] sm:$0xf]
  %v89 = vld [vmem:[%s1 + $0x60] sm:$0xf]
  %v90 = vld [vmem:[%s1 + $0x64] sm:$0xf]
  %v91 = vld [vmem:[%s1 + $0x68] sm:$0xf]
  %v108 = vunpack.c.l.b16 %v49
  %v109 = vunpack.c.h.b16 %v49
  %v110 = vunpack.c.l.b16 %v50
  %v111 = vunpack.c.h.b16 %v50
  %v112 = vunpack.c.l.b16 %v51
  %v113 = vunpack.c.h.b16 %v51
  %v114 = vunpack.c.l.b16 %v52
  %v115 = vunpack.c.h.b16 %v52
  %v116 = vunpack.c.l.b16 %v53
  %v117 = vunpack.c.h.b16 %v53
  %v118 = vunpack.c.l.b16 %v54
  %v119 = vunpack.c.h.b16 %v54
  %v120 = vunpack.c.l.b16 %v55
  %v121 = vunpack.c.h.b16 %v55
  %v122 = vunpack.c.l.b16 %v56
  %v123 = vunpack.c.h.b16 %v56
  %v124 = vunpack.c.l.b16 %v57
  %v125 = vunpack.c.h.b16 %v57
  %v126 = vunpack.c.l.b16 %v58
  %v127 = vunpack.c.h.b16 %v58
  %v128 = vunpack.c.l.b16 %v59
  %v129 = vunpack.c.h.b16 %v59
  %v130 = vunpack.c.l.b16 %v60
  %v131 = vunpack.c.h.b16 %v60
  %v132 = vunpack.c.l.b16 %v61
  %v133 = vunpack.c.h.b16 %v61
  %v134 = vunpack.c.l.b16 %v62
  %v135 = vunpack.c.h.b16 %v62
  %v136 = vunpack.c.l.b16 %v63
  %v137 = vunpack.c.h.b16 %v63
  %v138 = vunpack.c.l.b16 %v64
  %v139 = vunpack.c.h.b16 %v64
  %v140 = vpack.c.b16 %v110, %v108
  %v141 = vpack.c.b16 %v111, %v109
  %v142 = vpack.c.b16 %v114, %v112
  %v143 = vpack.c.b16 %v115, %v113
  %v144 = vpack.c.b16 %v118, %v116
  %v145 = vpack.c.b16 %v119, %v117
  %v146 = vpack.c.b16 %v122, %v120
  %v147 = vpack.c.b16 %v123, %v121
  %v148 = vpack.c.b16 %v126, %v124
  %v149 = vpack.c.b16 %v127, %v125
  %v150 = vpack.c.b16 %v130, %v128
  %v151 = vpack.c.b16 %v131, %v129
  %v152 = vpack.c.b16 %v134, %v132
  %v153 = vpack.c.b16 %v135, %v133
  %v154 = vpack.c.b16 %v138, %v136
  %v155 = vpack.c.b16 %v139, %v137
  %v191 = vunpack.c.l.b16 %v65
  %v192 = vunpack.c.l.b16 %v66
  %v193 = vunpack.c.l.b16 %v67
  %v194 = vunpack.c.l.b16 %v68
  %v195 = vunpack.c.l.b16 %v69
  %v196 = vunpack.c.l.b16 %v70
  %v197 = vunpack.c.l.b16 %v71
  %v198 = vunpack.c.l.b16 %v72
  %v199 = vunpack.c.l.b16 %v73
  %v200 = vunpack.c.l.b16 %v74
  %v201 = vunpack.c.l.b16 %v75
  %v202 = vunpack.c.l.b16 %v76
  %v203 = vunpack.c.l.b16 %v77
  %v204 = vunpack.c.l.b16 %v78
  %v205 = vunpack.c.l.b16 %v79
  %v206 = vunpack.c.l.b16 %v80
  %v207 = vunpack.c.l.b16 %v81
  %v208 = vunpack.c.l.b16 %v82
  %v209 = vunpack.c.l.b16 %v83
  %v210 = vunpack.c.l.b16 %v84
  %v211 = vunpack.c.l.b16 %v85
  %v212 = vunpack.c.l.b16 %v86
  %v213 = vunpack.c.l.b16 %v87
  %v214 = vunpack.c.l.b16 %v88
  %v215 = vunpack.c.l.b16 %v89
  %v216 = vunpack.c.l.b16 %v90
  %v217 = vunpack.c.l.b16 %v91
  %v218 = vpack.c.b16 %v192, %v191
  %v219 = vpack.c.b16 %v194, %v193
  %v220 = vpack.c.b16 %v196, %v195
  %v221 = vpack.c.b16 %v198, %v197
  %v222 = vpack.c.b16 %v200, %v199
  %v223 = vpack.c.b16 %v202, %v201
  %v224 = vpack.c.b16 %v204, %v203
  %v225 = vpack.c.b16 %v206, %v205
  %v226 = vpack.c.b16 %v208, %v207
  %v227 = vpack.c.b16 %v210, %v209
  %v228 = vpack.c.b16 %v212, %v211
  %v229 = vpack.c.b16 %v214, %v213
  %v230 = vpack.c.b16 %v216, %v215
  %v231 = vpack.c.b16 %v217, %v217
  %vm245 = vcmask 719872
  %v247 = vsel %vm245, %v141, 0
  %v250 = vsel %vm245, %v143, 0
  %v253 = vsel %vm245, %v145, 0
  %v256 = vsel %vm245, %v147, 0
  %v259 = vsel %vm245, %v149, 0
  %v262 = vsel %vm245, %v151, 0
  %v265 = vsel %vm245, %v153, 0
  %v268 = vsel %vm245, %v155, 0
  %vm270 = vcmask 1043456
  %v272 = vsel %vm270, %v231, 0
  %274 = vmatprep.subr.bf16.mxu0 0
  %275 = vmatpush1.bf16.msra.mxu0 %v218
  %276 = vmatprep.subr.bf16.mxu0 0
  %277 = vmatpush1.bf16.msra.mxu0 %v219
  %278 = vmatprep.subr.bf16.mxu0 0
  %279 = vmatpush1.bf16.msra.mxu0 %v220
  %280 = vmatprep.subr.bf16.mxu0 0
  %281 = vmatpush1.bf16.msra.mxu0 %v221
  %282 = vmatprep.subr.bf16.mxu0 0
  %283 = vmatpush1.bf16.msra.mxu0 %v222
  %284 = vmatprep.subr.bf16.mxu0 0
  %285 = vmatpush1.bf16.msra.mxu0 %v223
  %286 = vmatprep.subr.bf16.mxu0 0
  %287 = vmatpush1.bf16.msra.mxu0 %v224
  %288 = vmatprep.subr.bf16.mxu0 0
  %289 = vmatpush1.bf16.msra.mxu0 %v225
  %290 = vmatprep.subr.bf16.mxu0 0
  %291 = vmatpush1.bf16.msra.mxu0 %v226
  %292 = vmatprep.subr.bf16.mxu0 0
  %293 = vmatpush1.bf16.msra.mxu0 %v227
  %294 = vmatprep.subr.bf16.mxu0 0
  %295 = vmatpush1.bf16.msra.mxu0 %v228
  %296 = vmatprep.subr.bf16.mxu0 0
  %297 = vmatpush1.bf16.msra.mxu0 %v229
  %298 = vmatprep.subr.bf16.mxu0 0
  %299 = vmatpush1.bf16.msra.mxu0 %v230
  %300 = vmatprep.subr.bf16.mxu0 0
  %301 = vmatpush1.bf16.msra.mxu0 %v272
  %302 = vmatprep.subr.bf16.mxu0 0
  %303 = vmatpush1.bf16.msra.mxu0 0
  %304 = vmatprep.subr.bf16.mxu0 0
  %305 = vmatpush1.bf16.msra.mxu0 0
  %306 = vmatprep.mubr.bf16.mxu0 %v247
  %307 = vmatmul.mubr.bf16.gmra.mrb[0].mxu0 %v140
  %v308 = vpop.f32.mrb[0].mxu0
  %v309 = vadd.f32 0.0, %v308
  %v310 = vpop.f32.mrb[0].mxu0
  %v311 = vpop.f32.mrb[0].mxu0
  %v312 = vadd.f32 0.0, %v311
  %v313 = vpop.f32.mrb[0].mxu0
  %314 = vmatprep.mubr.bf16.mxu0 %v250
  %315 = vmatmul.mubr.bf16.gmra.mrb[0].mxu0 %v142
  %v316 = vpop.f32.mrb[0].mxu0
  %v317 = vadd.f32 0.0, %v316
  %v318 = vpop.f32.mrb[0].mxu0
  %v319 = vpop.f32.mrb[0].mxu0
  %v320 = vadd.f32 0.0, %v319
  %v321 = vpop.f32.mrb[0].mxu0
  %322 = vmatprep.mubr.bf16.mxu0 %v253
  %323 = vmatmul.mubr.bf16.gmra.mrb[0].mxu0 %v144
  %v324 = vpop.f32.mrb[0].mxu0
  %v325 = vadd.f32 0.0, %v324
  %v326 = vpop.f32.mrb[0].mxu0
  %v327 = vpop.f32.mrb[0].mxu0
  %v328 = vadd.f32 0.0, %v327
  %v329 = vpop.f32.mrb[0].mxu0
  %330 = vmatprep.mubr.bf16.mxu0 %v256
  %331 = vmatmul.mubr.bf16.gmra.mrb[0].mxu0 %v146
  %v332 = vpop.f32.mrb[0].mxu0
  %v333 = vadd.f32 0.0, %v332
  %v334 = vpop.f32.mrb[0].mxu0
  %v335 = vpop.f32.mrb[0].mxu0
  %v336 = vadd.f32 0.0, %v335
  %v337 = vpop.f32.mrb[0].mxu0
  %338 = vmatprep.mubr.bf16.mxu0 %v259
  %339 = vmatmul.mubr.bf16.gmra.mrb[0].mxu0 %v148
  %v340 = vpop.f32.mrb[0].mxu0
  %v341 = vadd.f32 0.0, %v340
  %v342 = vpop.f32.mrb[0].mxu0
  %v343 = vpop.f32.mrb[0].mxu0
  %v344 = vadd.f32 0.0, %v343
  %v345 = vpop.f32.mrb[0].mxu0
  %346 = vmatprep.mubr.bf16.mxu0 %v262
  %347 = vmatmul.mubr.bf16.gmra.mrb[0].mxu0 %v150
  %v348 = vpop.f32.mrb[0].mxu0
  %v349 = vadd.f32 0.0, %v348
  %v350 = vpop.f32.mrb[0].mxu0
  %v351 = vpop.f32.mrb[0].mxu0
  %v352 = vadd.f32 0.0, %v351
  %v353 = vpop.f32.mrb[0].mxu0
  %354 = vmatprep.mubr.bf16.mxu0 %v265
  %355 = vmatmul.mubr.bf16.gmra.mrb[0].mxu0 %v152
  %v356 = vpop.f32.mrb[0].mxu0
  %v357 = vadd.f32 0.0, %v356
  %v358 = vpop.f32.mrb[0].mxu0
  %v359 = vpop.f32.mrb[0].mxu0
  %v360 = vadd.f32 0.0, %v359
  %v361 = vpop.f32.mrb[0].mxu0
  %362 = vmatprep.mubr.bf16.mxu0 %v268
  %363 = vmatmul.mubr.bf16.gmra.mrb[0].mxu0 %v154
  %v364 = vpop.f32.mrb[0].mxu0
  %v365 = vadd.f32 0.0, %v364
  %v366 = vpop.f32.mrb[0].mxu0
  %v367 = vpop.f32.mrb[0].mxu0
  %v368 = vadd.f32 0.0, %v367
  %v369 = vpop.f32.mrb[0].mxu0
  %370 = vdwg.mxu0
  %v371 = vadd.f32 %v33, %v309
  %v372 = vadd.f32 %v34, %v312
  %v373 = vadd.f32 %v35, %v317
  %v374 = vadd.f32 %v36, %v320
  %v375 = vadd.f32 %v37, %v325
  %v376 = vadd.f32 %v38, %v328
  %v377 = vadd.f32 %v39, %v333
  %v378 = vadd.f32 %v40, %v336
  %v379 = vadd.f32 %v41, %v341
  %v380 = vadd.f32 %v42, %v344
  %v381 = vadd.f32 %v43, %v349
  %v382 = vadd.f32 %v44, %v352
  %v383 = vadd.f32 %v45, %v357
  %v384 = vadd.f32 %v46, %v360
  %v385 = vadd.f32 %v47, %v365
  %v386 = vadd.f32 %v48, %v368
  %vm387 = vcmask 97280
  %388 = vst.msk [vmem:[#allocation2] sm:$0xff] %vm387, %v371
  %389 = vst.msk [vmem:[#allocation2 + $0x8] sm:$0xff] %vm387, %v372
  %390 = vst.msk [vmem:[#allocation2 + $0x10] sm:$0xff] %vm387, %v373
  %391 = vst.msk [vmem:[#allocation2 + $0x18] sm:$0xff] %vm387, %v374
  %392 = vst.msk [vmem:[#allocation2 + $0x20] sm:$0xff] %vm387, %v375
  %393 = vst.msk [vmem:[#allocation2 + $0x28] sm:$0xff] %vm387, %v376
  %394 = vst.msk [vmem:[#allocation2 + $0x30] sm:$0xff] %vm387, %v377
  %395 = vst.msk [vmem:[#allocation2 + $0x38] sm:$0xff] %vm387, %v378
  %396 = vst.msk [vmem:[#allocation2 + $0x40] sm:$0xff] %vm387, %v379
  %397 = vst.msk [vmem:[#allocation2 + $0x48] sm:$0xff] %vm387, %v380
  %398 = vst.msk [vmem:[#allocation2 + $0x50] sm:$0xff] %vm387, %v381
  %399 = vst.msk [vmem:[#allocation2 + $0x58] sm:$0xff] %vm387, %v382
  %400 = vst.msk [vmem:[#allocation2 + $0x60] sm:$0xff] %vm387, %v383
  %401 = vst.msk [vmem:[#allocation2 + $0x68] sm:$0xff] %vm387, %v384
  %402 = vst.msk [vmem:[#allocation2 + $0x70] sm:$0xff] %vm387, %v385
  %403 = vst.msk [vmem:[#allocation2 + $0x78] sm:$0xff] %vm387, %v386
  // Predicated region
  $region14: #{a_call__.10} parent=0 // pred_check
    %p404 = pneg %p12
  $region15: #{a_call__.10} parent=0 // pred_check_branch
    %406 = sbr.rel (%p404) target = $region17
  $region16: #{a_call__.10} parent=0 // pred_region
    %v407 = vld [vmem:[#allocation2] sm:$0xff]
    %v408 = vld [vmem:[#allocation2 + $0x8] sm:$0xff]
    %v409 = vld [vmem:[#allocation2 + $0x10] sm:$0xff]
    %v410 = vld [vmem:[#allocation2 + $0x18] sm:$0xff]
    %v411 = vld [vmem:[#allocation2 + $0x20] sm:$0xff]
    %v412 = vld [vmem:[#allocation2 + $0x28] sm:$0xff]
    %v413 = vld [vmem:[#allocation2 + $0x30] sm:$0xff]
    %v414 = vld [vmem:[#allocation2 + $0x38] sm:$0xff]
    %v415 = vld [vmem:[#allocation2 + $0x40] sm:$0xff]
    %v416 = vld [vmem:[#allocation2 + $0x48] sm:$0xff]
    %v417 = vld [vmem:[#allocation2 + $0x50] sm:$0xff]
    %v418 = vld [vmem:[#allocation2 + $0x58] sm:$0xff]
    %v419 = vld [vmem:[#allocation2 + $0x60] sm:$0xff]
    %v420 = vld [vmem:[#allocation2 + $0x68] sm:$0xff]
    %v421 = vld [vmem:[#allocation2 + $0x70] sm:$0xff]
    %v422 = vld [vmem:[#allocation2 + $0x78] sm:$0xff]
    %423 = vst.msk [vmem:[%s2] sm:$0xff] %vm387, %v407
    %424 = vst.msk [vmem:[%s2 + $0x8] sm:$0xff] %vm387, %v408
    %425 = vst.msk [vmem:[%s2 + $0x10] sm:$0xff] %vm387, %v409
    %426 = vst.msk [vmem:[%s2 + $0x18] sm:$0xff] %vm387, %v410
    %427 = vst.msk [vmem:[%s2 + $0x20] sm:$0xff] %vm387, %v411
    %428 = vst.msk [vmem:[%s2 + $0x28] sm:$0xff] %vm387, %v412
    %429 = vst.msk [vmem:[%s2 + $0x30] sm:$0xff] %vm387, %v413
    %430 = vst.msk [vmem:[%s2 + $0x38] sm:$0xff] %vm387, %v414
    %431 = vst.msk [vmem:[%s2 + $0x40] sm:$0xff] %vm387, %v415
    %432 = vst.msk [vmem:[%s2 + $0x48] sm:$0xff] %vm387, %v416
    %433 = vst.msk [vmem:[%s2 + $0x50] sm:$0xff] %vm387, %v417
    %434 = vst.msk [vmem:[%s2 + $0x58] sm:$0xff] %vm387, %v418
    %435 = vst.msk [vmem:[%s2 + $0x60] sm:$0xff] %vm387, %v419
    %436 = vst.msk [vmem:[%s2 + $0x68] sm:$0xff] %vm387, %v420
    %437 = vst.msk [vmem:[%s2 + $0x70] sm:$0xff] %vm387, %v421
    %438 = vst.msk [vmem:[%s2 + $0x78] sm:$0xff] %vm387, %v422
  $region17: #{a_call__.10} parent=0 // pred_fallthru
    _
  // Predicated region
  $region18: #{a_call__.10} parent=0 // pred_check
    _
  $region19: #{a_call__.10} parent=0 // pred_check_branch
    %440 = sbr.rel (0) target = $region21
  $region20: #{a_call__.10} parent=0 // pred_region
    _
  $region21: #{a_call__.10} parent=0 // pred_fallthru
    _
  // Predicated region
  $region22: #{a_call__.10} parent=0 // pred_check
    _
  $region23: #{a_call__.10} parent=0 // pred_check_branch
    %442 = sbr.rel (0) target = $region25
  $region24: #{a_call__.10} parent=0 // pred_region
    _
  $region25: #{a_call__.10} parent=0 // pred_fallthru
    _

// kernel: a_call__.11
$region0: #{a_call__.11}
  #allocation0 [shape = 'u32[]', space=smem, size = 0x4, offset = 0x4, fixed_abs, tag = 'smem constant byte address 0x4 - core index']
  #allocation1 [shape = 'u32[144,128]{1,0:T(1,128)}', space=vmem, size = 0x12000, scoped, tag = 'internal scratch']
  #allocation2 [shape = 'f32[512,12]{1,0:T(8,128)}', space=vmem, size = 0x40000, scoped, tag = 'scratch operand']
  %s0 = inlined_call_operand.vmem [shape: bf16[2048,216], index: 0, kind: input, shape index: {}]
  %s1 = inlined_call_operand.vmem [shape: bf16[216,12], index: 1, kind: input, shape index: {}]
  %s2 = inlined_call_operand.vmem [shape: f32[2048,12], index: 2, kind: output, shape index: {}]
  %s3 = sld [smem:[#allocation0]]
  $region49: #{a_call__.11} parent=0
    _
  %s5 = ssub.s32 1, %s3
  %s6 = scalar_select 0, %s5, %s3
  loop: start=0, step=1, limit=6
  $region2: #{a_call__.11} parent=0 // loop_pre_header
    _
  $region3: #{a_call__.11} parent=0 // loop_header
    %s8 = sphi 0, %s12
    %p9 = scmp.ge.s32.totalorder %s8, 6
    %s15 = sphi 0, %s34
    %s16 = sphi 0, %s30
    %s17 = sphi 0, %s26
    %s18 = sphi 0, %s15
    %s19 = sphi 0, %s16
    %s20 = sphi 0, %s17
    %s21 = sphi 0, %s18
    %s22 = sphi 0, %s19
    %s23 = sphi 0, %s20
    %s39 = sphi 0, %s41
    %s42 = sphi 0, %s39
    %s43 = sphi 0, %s42
    %s59 = sphi 0, %s43
    %s67 = sphi 0, %s69
    %s70 = sphi 0, %s67
    %s71 = sphi 0, %s70
    %s87 = sphi 0, %s71
    %s95 = sphi 0, %s97
    %s98 = sphi 0, %s95
    %s99 = sphi 0, %s98
    %s115 = sphi 0, %s99
  $region4: #{a_call__.11} parent=0 // loop_header_branch
    %11 = sbr.rel (%p9) target = $region8
  $region5: #{a_call__.11} parent=0 // loop_body
    %s13 = ssub.s32 %s8, 1
    %s14 = ssub.s32 %s8, 2
    %s24 = sadd.s32 1, %s17
    %p25 = scmp.ge.s32.totalorder %s24, 1
    %s26 = scalar_select %p25, 0, %s24
    %s27 = sadd.s32 1, %s16
    %s28 = scalar_select %p25, %s27, %s16
    %p29 = scmp.ge.s32.totalorder %s28, 1
    %s30 = scalar_select %p29, 0, %s28
    %s31 = sadd.s32 1, %s15
    %s32 = scalar_select %p29, %s31, %s15
    %p33 = scmp.ge.s32.totalorder %s32, 4
    %s34 = scalar_select %p33, 0, %s32
    %s35 = ssub.s32 %s15, %s34
    %s36 = ssub.s32 %s17, %s26
    %s37 = sor.u32 %s35, %s36
    %p38 = scmp.eq.s32.totalorder %s37, 0
    %s40 = sadd.s32 %s39, 1
    %s41 = scalar_select %p38, %s39, %s40
    %p44 = pneg %p38
    %p45 = scmp.eq.s32.totalorder %s8, 3
    %p46 = por %p44, %p45
    %p47 = scmp.ne.s32.totalorder %s39, %s42
    %p48 = scmp.eq.s32.totalorder %s8, 0
    %p49 = por %p47, %p48
    %p50 = scmp.ne.s32.totalorder %s39, %s42
    %p51 = scmp.eq.s32.totalorder %s13, 3
    %p52 = por %p50, %p51
    %p53 = scmp.ne.s32.totalorder %s42, %s43
    %p54 = scmp.eq.s32.totalorder %s13, 0
    %p55 = por %p53, %p54
    %p56 = scmp.ne.s32.totalorder %s42, %s43
    %p57 = scmp.eq.s32.totalorder %s14, 3
    %p58 = por %p56, %p57
    %p60 = scmp.ne.s32.totalorder %s43, %s59
    %p61 = scmp.eq.s32.totalorder %s14, 0
    %p62 = por %p60, %p61
    %s63 = ssub.s32 %s17, %s26
    %s64 = ssub.s32 %s16, %s30
    %s65 = sor.u32 %s63, %s64
    %p66 = scmp.eq.s32.totalorder %s65, 0
    %s68 = sadd.s32 %s67, 1
    %s69 = scalar_select %p66, %s67, %s68
    %p72 = pneg %p66
    %p73 = scmp.eq.s32.totalorder %s8, 3
    %p74 = por %p72, %p73
    %p75 = scmp.ne.s32.totalorder %s67, %s70
    %p76 = scmp.eq.s32.totalorder %s8, 0
    %p77 = por %p75, %p76
    %p78 = scmp.ne.s32.totalorder %s67, %s70
    %p79 = scmp.eq.s32.totalorder %s13, 3
    %p80 = por %p78, %p79
    %p81 = scmp.ne.s32.totalorder %s70, %s71
    %p82 = scmp.eq.s32.totalorder %s13, 0
    %p83 = por %p81, %p82
    %p84 = scmp.ne.s32.totalorder %s70, %s71
    %p85 = scmp.eq.s32.totalorder %s14, 3
    %p86 = por %p84, %p85
    %p88 = scmp.ne.s32.totalorder %s71, %s87
    %p89 = scmp.eq.s32.totalorder %s14, 0
    %p90 = por %p88, %p89
    %s91 = ssub.s32 %s15, %s34
    %s92 = ssub.s32 %s16, %s30
    %s93 = sor.u32 %s91, %s92
    %p94 = scmp.eq.s32.totalorder %s93, 0
    %s96 = sadd.s32 %s95, 1
    %s97 = scalar_select %p94, %s95, %s96
    %p100 = pneg %p94
    %p101 = scmp.eq.s32.totalorder %s8, 3
    %p102 = por %p100, %p101
    %p103 = scmp.ne.s32.totalorder %s95, %s98
    %p104 = scmp.eq.s32.totalorder %s8, 0
    %p105 = por %p103, %p104
    %p106 = scmp.ne.s32.totalorder %s95, %s98
    %p107 = scmp.eq.s32.totalorder %s13, 3
    %p108 = por %p106, %p107
    %p109 = scmp.ne.s32.totalorder %s98, %s99
    %p110 = scmp.eq.s32.totalorder %s13, 0
    %p111 = por %p109, %p110
    %p112 = scmp.ne.s32.totalorder %s98, %s99
    %p113 = scmp.eq.s32.totalorder %s14, 3
    %p114 = por %p112, %p113
    %p116 = scmp.ne.s32.totalorder %s99, %s115
    %p117 = scmp.eq.s32.totalorder %s14, 0
    %p118 = por %p116, %p117
    %p119 = scmp.le.s32.totalorder 1, %s8
    %p120 = scmp.lt.s32.totalorder %s8, 5
    %p121 = pnand %p119, %p120
    %p122 = pneg %p121
    // Predicated region
    $region9: #{a_call__.11} parent=5 // pred_check
      _
    $region10: #{a_call__.11} parent=5 // pred_check_branch
      %124 = sbr.rel (%p121) target = $region12
    $region11: #{a_call__.11} parent=5 // pred_region
      %s125 = ssub.s32 %s8, 1
      // Predicated region
      $region13: #{a_call__.11} parent=11 // pred_check
        %p126 = pneg %p83
      $region14: #{a_call__.11} parent=11 // pred_check_branch
        %128 = sbr.rel (%p126) target = $region16
      $region15: #{a_call__.11} parent=11 // pred_region
        %s129 = smul.u32 27, %s20
        %p130 = scmp.lt.s32.totalorder %s129, 26
        %s131 = scalar_select %p130, %s129, 26
        %p132 = scmp.lt.s32.totalorder %s19, 0
        %s133 = scalar_select %p132, %s19, 0
        %s134 = sadd.s32 %s133, %s131
        %s135 = smul.addr %s134, 4
        %s136 = scalar_lea.vmem %s1, %s135
        %s137 = smul.u32 27, %s20
      $region16: #{a_call__.11} parent=11 // pred_fallthru
        _
    $region12: #{a_call__.11} parent=5 // pred_fallthru
      _
    %p138 = scmp.lt.s32.totalorder %s8, 4
    // Predicated region
    $region17: #{a_call__.11} parent=5 // pred_check
      %p139 = pneg %p138
    $region18: #{a_call__.11} parent=5 // pred_check_branch
      %141 = sbr.rel (%p139) target = $region20
    $region19: #{a_call__.11} parent=5 // pred_region
      // Predicated region
      $region21: #{a_call__.11} parent=19 // pred_check
        %p142 = pneg %p49
      $region22: #{a_call__.11} parent=19 // pred_check_branch
        %144 = sbr.rel (%p142) target = $region24
      $region23: #{a_call__.11} parent=19 // pred_region
        %s145 = smul.u32 64, %s15
        %s146 = smul.u32 2, %s17
        %p147 = scmp.lt.s32.totalorder %s145, 255
        %s148 = scalar_select %p147, %s145, 255
        %p149 = scmp.lt.s32.totalorder %s146, 1
        %s150 = scalar_select %p149, %s146, 1
        %s151 = smul.addr %s148, 2
        %s152 = sadd.s32 %s150, %s151
        %s153 = smul.addr %s152, 4
        %s154 = scalar_lea.vmem %s0, %s153
        %s155 = smul.u32 64, %s15
        %s156 = smul.u32 2, %s17
      $region24: #{a_call__.11} parent=19 // pred_fallthru
        _
    $region20: #{a_call__.11} parent=5 // pred_fallthru
      _
    %p157 = scmp.le.s32.totalorder 1, %s8
    %p158 = scmp.lt.s32.totalorder %s8, 5
    %p159 = pnand %p157, %p158
    %p160 = pneg %p159
    // Predicated region
    $region25: #{a_call__.11} parent=5 // pred_check
      _
    $region26: #{a_call__.11} parent=5 // pred_check_branch
      %162 = sbr.rel (%p159) target = $region28
    $region27: #{a_call__.11} parent=5 // pred_region
      %s163 = ssub.s32 %s8, 1
      %s164 = smul.u32 64, %s18
      %s165 = smul.u32 2, %s20
      %p166 = scmp.lt.s32.totalorder %s164, 255
      %s167 = scalar_select %p166, %s164, 255
      %p168 = scmp.lt.s32.totalorder %s165, 1
      %s169 = scalar_select %p168, %s165, 1
      %s170 = smul.addr %s167, 2
      %s171 = sadd.s32 %s169, %s170
      %s172 = smul.addr %s171, 4
      %s173 = scalar_lea.vmem %s0, %s172
      %p174 = pneg %p55
      %p175 = pneg %p52
      %s176 = smul.u32 27, %s20
      %p177 = scmp.lt.s32.totalorder %s176, 26
      %s178 = scalar_select %p177, %s176, 26
      %p179 = scmp.lt.s32.totalorder %s19, 0
      %s180 = scalar_select %p179, %s19, 0
      %s181 = sadd.s32 %s180, %s178
      %s182 = smul.addr %s181, 4
      %s183 = scalar_lea.vmem %s1, %s182
      %p184 = pneg %p83
      %p185 = pneg %p80
      %p186 = pneg %p111
      %p187 = pneg %p108
      %s188 = smul.u32 64, %s18
      %p189 = scmp.lt.s32.totalorder %s188, 255
      %s190 = scalar_select %p189, %s188, 255
      %p191 = scmp.lt.s32.totalorder %s19, 0
      %s192 = scalar_select %p191, %s19, 0
      %s193 = sadd.s32 %s192, %s190
      %s194 = smul.addr %s193, 8
      %s195 = scalar_lea.vmem %s2, %s194
      %s196 = smul.u32 64, %s18
      %s197 = smul.u32 2, %s20
      %p198 = scmp.lt.s32.totalorder %s196, 255
      %s199 = scalar_select %p198, %s196, 255
      %p200 = scmp.lt.s32.totalorder %s197, 1
      %s201 = scalar_select %p200, %s197, 1
      %s202 = smul.addr %s199, 2
      %s203 = sadd.s32 %s201, %s202
      %s204 = smul.addr %s203, 4
      %s205 = scalar_lea.vmem %s0, %s204
      %s206 = smul.u32 64, %s18
      %s207 = smul.u32 2, %s20
      %s208 = smul.u32 27, %s20
      %p209 = scmp.lt.s32.totalorder %s208, 26
      %s210 = scalar_select %p209, %s208, 26
      %p211 = scmp.lt.s32.totalorder %s19, 0
      %s212 = scalar_select %p211, %s19, 0
      %s213 = sadd.s32 %s212, %s210
      %s214 = smul.addr %s213, 4
      %s215 = scalar_lea.vmem %s1, %s214
      %s216 = smul.u32 27, %s20
      %s217 = smul.u32 64, %s18
      %p218 = scmp.lt.s32.totalorder %s217, 255
      %s219 = scalar_select %p218, %s217, 255
      %p220 = scmp.lt.s32.totalorder %s19, 0
      %s221 = scalar_select %p220, %s19, 0
      %s222 = sadd.s32 %s221, %s219
      %s223 = smul.addr %s222, 8
      %s224 = scalar_lea.vmem %s2, %s223
      %s225 = smul.u32 64, %s18
      %p227 = scmp.eq.s32.totalorder %s20, 0
      // Predicated region
      $region29: #{a_call__.11} parent=27 // pred_check
        %p228 = pneg %p227
      $region30: #{a_call__.11} parent=27 // pred_check_branch
        %230 = sbr.rel (%p228) target = $region32
      $region31: #{a_call__.11} parent=27 // pred_region
        %vm231 = vcmask 97280
        %232 = vst.msk [vmem:[#allocation2] sm:$0xff] %vm231, 0.0
        %233 = vst.msk [vmem:[#allocation2 + $0x8] sm:$0xff] %vm231, 0.0
        %234 = vst.msk [vmem:[#allocation2 + $0x10] sm:$0xff] %vm231, 0.0
        %235 = vst.msk [vmem:[#allocation2 + $0x18] sm:$0xff] %vm231, 0.0
        %236 = vst.msk [vmem:[#allocation2 + $0x20] sm:$0xff] %vm231, 0.0
        %237 = vst.msk [vmem:[#allocation2 + $0x28] sm:$0xff] %vm231, 0.0
        %238 = vst.msk [vmem:[#allocation2 + $0x30] sm:$0xff] %vm231, 0.0
        %239 = vst.msk [vmem:[#allocation2 + $0x38] sm:$0xff] %vm231, 0.0
        %240 = vst.msk [vmem:[#allocation2 + $0x40] sm:$0xff] %vm231, 0.0
        %241 = vst.msk [vmem:[#allocation2 + $0x48] sm:$0xff] %vm231, 0.0
        %242 = vst.msk [vmem:[#allocation2 + $0x50] sm:$0xff] %vm231, 0.0
        %243 = vst.msk [vmem:[#allocation2 + $0x58] sm:$0xff] %vm231, 0.0
        %244 = vst.msk [vmem:[#allocation2 + $0x60] sm:$0xff] %vm231, 0.0
        %245 = vst.msk [vmem:[#allocation2 + $0x68] sm:$0xff] %vm231, 0.0
        %246 = vst.msk [vmem:[#allocation2 + $0x70] sm:$0xff] %vm231, 0.0
        %247 = vst.msk [vmem:[#allocation2 + $0x78] sm:$0xff] %vm231, 0.0
        %248 = vst.msk [vmem:[#allocation2 + $0x80] sm:$0xff] %vm231, 0.0
        %249 = vst.msk [vmem:[#allocation2 + $0x88] sm:$0xff] %vm231, 0.0
        %250 = vst.msk [vmem:[#allocation2 + $0x90] sm:$0xff] %vm231, 0.0
        %251 = vst.msk [vmem:[#allocation2 + $0x98] sm:$0xff] %vm231, 0.0
        %252 = vst.msk [vmem:[#allocation2 + $0xa0] sm:$0xff] %vm231, 0.0
        %253 = vst.msk [vmem:[#allocation2 + $0xa8] sm:$0xff] %vm231, 0.0
        %254 = vst.msk [vmem:[#allocation2 + $0xb0] sm:$0xff] %vm231, 0.0
        %255 = vst.msk [vmem:[#allocation2 + $0xb8] sm:$0xff] %vm231, 0.0
        %256 = vst.msk [vmem:[#allocation2 + $0xc0] sm:$0xff] %vm231, 0.0
        %257 = vst.msk [vmem:[#allocation2 + $0xc8] sm:$0xff] %vm231, 0.0
        %258 = vst.msk [vmem:[#allocation2 + $0xd0] sm:$0xff] %vm231, 0.0
        %259 = vst.msk [vmem:[#allocation2 + $0xd8] sm:$0xff] %vm231, 0.0
        %260 = vst.msk [vmem:[#allocation2 + $0xe0] sm:$0xff] %vm231, 0.0
        %261 = vst.msk [vmem:[#allocation2 + $0xe8] sm:$0xff] %vm231, 0.0
        %262 = vst.msk [vmem:[#allocation2 + $0xf0] sm:$0xff] %vm231, 0.0
        %263 = vst.msk [vmem:[#allocation2 + $0xf8] sm:$0xff] %vm231, 0.0
        %264 = vst.msk [vmem:[#allocation2 + $0x100] sm:$0xff] %vm231, 0.0
        %265 = vst.msk [vmem:[#allocation2 + $0x108] sm:$0xff] %vm231, 0.0
        %266 = vst.msk [vmem:[#allocation2 + $0x110] sm:$0xff] %vm231, 0.0
        %267 = vst.msk [vmem:[#allocation2 + $0x118] sm:$0xff] %vm231, 0.0
        %268 = vst.msk [vmem:[#allocation2 + $0x120] sm:$0xff] %vm231, 0.0
        %269 = vst.msk [vmem:[#allocation2 + $0x128] sm:$0xff] %vm231, 0.0
        %270 = vst.msk [vmem:[#allocation2 + $0x130] sm:$0xff] %vm231, 0.0
        %271 = vst.msk [vmem:[#allocation2 + $0x138] sm:$0xff] %vm231, 0.0
        %272 = vst.msk [vmem:[#allocation2 + $0x140] sm:$0xff] %vm231, 0.0
        %273 = vst.msk [vmem:[#allocation2 + $0x148] sm:$0xff] %vm231, 0.0
        %274 = vst.msk [vmem:[#allocation2 + $0x150] sm:$0xff] %vm231, 0.0
        %275 = vst.msk [vmem:[#allocation2 + $0x158] sm:$0xff] %vm231, 0.0
        %276 = vst.msk [vmem:[#allocation2 + $0x160] sm:$0xff] %vm231, 0.0
        %277 = vst.msk [vmem:[#allocation2 + $0x168] sm:$0xff] %vm231, 0.0
        %278 = vst.msk [vmem:[#allocation2 + $0x170] sm:$0xff] %vm231, 0.0
        %279 = vst.msk [vmem:[#allocation2 + $0x178] sm:$0xff] %vm231, 0.0
        %280 = vst.msk [vmem:[#allocation2 + $0x180] sm:$0xff] %vm231, 0.0
        %281 = vst.msk [vmem:[#allocation2 + $0x188] sm:$0xff] %vm231, 0.0
        %282 = vst.msk [vmem:[#allocation2 + $0x190] sm:$0xff] %vm231, 0.0
        %283 = vst.msk [vmem:[#allocation2 + $0x198] sm:$0xff] %vm231, 0.0
        %284 = vst.msk [vmem:[#allocation2 + $0x1a0] sm:$0xff] %vm231, 0.0
        %285 = vst.msk [vmem:[#allocation2 + $0x1a8] sm:$0xff] %vm231, 0.0
        %286 = vst.msk [vmem:[#allocation2 + $0x1b0] sm:$0xff] %vm231, 0.0
        %287 = vst.msk [vmem:[#allocation2 + $0x1b8] sm:$0xff] %vm231, 0.0
        %288 = vst.msk [vmem:[#allocation2 + $0x1c0] sm:$0xff] %vm231, 0.0
        %289 = vst.msk [vmem:[#allocation2 + $0x1c8] sm:$0xff] %vm231, 0.0
        %290 = vst.msk [vmem:[#allocation2 + $0x1d0] sm:$0xff] %vm231, 0.0
        %291 = vst.msk [vmem:[#allocation2 + $0x1d8] sm:$0xff] %vm231, 0.0
        %292 = vst.msk [vmem:[#allocation2 + $0x1e0] sm:$0xff] %vm231, 0.0
        %293 = vst.msk [vmem:[#allocation2 + $0x1e8] sm:$0xff] %vm231, 0.0
        %294 = vst.msk [vmem:[#allocation2 + $0x1f0] sm:$0xff] %vm231, 0.0
        %295 = vst.msk [vmem:[#allocation2 + $0x1f8] sm:$0xff] %vm231, 0.0
      $region32: #{a_call__.11} parent=27 // pred_fallthru
        _
      %v296 = vld [vmem:[#allocation2] sm:$0xff]
      %v297 = vld [vmem:[#allocation2 + $0x8] sm:$0xff]
      %v298 = vld [vmem:[#allocation2 + $0x10] sm:$0xff]
      %v299 = vld [vmem:[#allocation2 + $0x18] sm:$0xff]
      %v300 = vld [vmem:[#allocation2 + $0x20] sm:$0xff]
      %v301 = vld [vmem:[#allocation2 + $0x28] sm:$0xff]
      %v302 = vld [vmem:[#allocation2 + $0x30] sm:$0xff]
      %v303 = vld [vmem:[#allocation2 + $0x38] sm:$0xff]
      %v304 = vld [vmem:[#allocation2 + $0x40] sm:$0xff]
      %v305 = vld [vmem:[#allocation2 + $0x48] sm:$0xff]
      %v306 = vld [vmem:[#allocation2 + $0x50] sm:$0xff]
      %v307 = vld [vmem:[#allocation2 + $0x58] sm:$0xff]
      %v308 = vld [vmem:[#allocation2 + $0x60] sm:$0xff]
      %v309 = vld [vmem:[#allocation2 + $0x68] sm:$0xff]
      %v310 = vld [vmem:[#allocation2 + $0x70] sm:$0xff]
      %v311 = vld [vmem:[#allocation2 + $0x78] sm:$0xff]
      %v312 = vld [vmem:[#allocation2 + $0x80] sm:$0xff]
      %v313 = vld [vmem:[#allocation2 + $0x88] sm:$0xff]
      %v314 = vld [vmem:[#allocation2 + $0x90] sm:$0xff]
      %v315 = vld [vmem:[#allocation2 + $0x98] sm:$0xff]
      %v316 = vld [vmem:[#allocation2 + $0xa0] sm:$0xff]
      %v317 = vld [vmem:[#allocation2 + $0xa8] sm:$0xff]
      %v318 = vld [vmem:[#allocation2 + $0xb0] sm:$0xff]
      %v319 = vld [vmem:[#allocation2 + $0xb8] sm:$0xff]
      %v320 = vld [vmem:[#allocation2 + $0xc0] sm:$0xff]
      %v321 = vld [vmem:[#allocation2 + $0xc8] sm:$0xff]
      %v322 = vld [vmem:[#allocation2 + $0xd0] sm:$0xff]
      %v323 = vld [vmem:[#allocation2 + $0xd8] sm:$0xff]
      %v324 = vld [vmem:[#allocation2 + $0xe0] sm:$0xff]
      %v325 = vld [vmem:[#allocation2 + $0xe8] sm:$0xff]
      %v326 = vld [vmem:[#allocation2 + $0xf0] sm:$0xff]
      %v327 = vld [vmem:[#allocation2 + $0xf8] sm:$0xff]
      %v328 = vld [vmem:[#allocation2 + $0x100] sm:$0xff]
      %v329 = vld [vmem:[#allocation2 + $0x108] sm:$0xff]
      %v330 = vld [vmem:[#allocation2 + $0x110] sm:$0xff]
      %v331 = vld [vmem:[#allocation2 + $0x118] sm:$0xff]
      %v332 = vld [vmem:[#allocation2 + $0x120] sm:$0xff]
      %v333 = vld [vmem:[#allocation2 + $0x128] sm:$0xff]
      %v334 = vld [vmem:[#allocation2 + $0x130] sm:$0xff]
      %v335 = vld [vmem:[#allocation2 + $0x138] sm:$0xff]
      %v336 = vld [vmem:[#allocation2 + $0x140] sm:$0xff]
      %v337 = vld [vmem:[#allocation2 + $0x148] sm:$0xff]
      %v338 = vld [vmem:[#allocation2 + $0x150] sm:$0xff]
      %v339 = vld [vmem:[#allocation2 + $0x158] sm:$0xff]
      %v340 = vld [vmem:[#allocation2 + $0x160] sm:$0xff]
      %v341 = vld [vmem:[#allocation2 + $0x168] sm:$0xff]
      %v342 = vld [vmem:[#allocation2 + $0x170] sm:$0xff]
      %v343 = vld [vmem:[#allocation2 + $0x178] sm:$0xff]
      %v344 = vld [vmem:[#allocation2 + $0x180] sm:$0xff]
      %v345 = vld [vmem:[#allocation2 + $0x188] sm:$0xff]
      %v346 = vld [vmem:[#allocation2 + $0x190] sm:$0xff]
      %v347 = vld [vmem:[#allocation2 + $0x198] sm:$0xff]
      %v348 = vld [vmem:[#allocation2 + $0x1a0] sm:$0xff]
      %v349 = vld [vmem:[#allocation2 + $0x1a8] sm:$0xff]
      %v350 = vld [vmem:[#allocation2 + $0x1b0] sm:$0xff]
      %v351 = vld [vmem:[#allocation2 + $0x1b8] sm:$0xff]
      %v352 = vld [vmem:[#allocation2 + $0x1c0] sm:$0xff]
      %v353 = vld [vmem:[#allocation2 + $0x1c8] sm:$0xff]
      %v354 = vld [vmem:[#allocation2 + $0x1d0] sm:$0xff]
      %v355 = vld [vmem:[#allocation2 + $0x1d8] sm:$0xff]
      %v356 = vld [vmem:[#allocation2 + $0x1e0] sm:$0xff]
      %v357 = vld [vmem:[#allocation2 + $0x1e8] sm:$0xff]
      %v358 = vld [vmem:[#allocation2 + $0x1f0] sm:$0xff]
      %v359 = vld [vmem:[#allocation2 + $0x1f8] sm:$0xff]
      %v360 = vld [vmem:[%s205] sm:$0xff]
      %v361 = vld [vmem:[%s205 + $0x8] sm:$0xff]
      %v362 = vld [vmem:[%s205 + $0x10] sm:$0xff]
      %v363 = vld [vmem:[%s205 + $0x18] sm:$0xff]
      %v364 = vld [vmem:[%s205 + $0x20] sm:$0xff]
      %v365 = vld [vmem:[%s205 + $0x28] sm:$0xff]
      %v366 = vld [vmem:[%s205 + $0x30] sm:$0xff]
      %v367 = vld [vmem:[%s205 + $0x38] sm:$0xff]
      %v368 = vld [vmem:[%s205 + $0x40] sm:$0xff]
      %v369 = vld [vmem:[%s205 + $0x48] sm:$0xff]
      %v370 = vld [vmem:[%s205 + $0x50] sm:$0xff]
      %v371 = vld [vmem:[%s205 + $0x58] sm:$0xff]
      %v372 = vld [vmem:[%s205 + $0x60] sm:$0xff]
      %v373 = vld [vmem:[%s205 + $0x68] sm:$0xff]
      %v374 = vld [vmem:[%s205 + $0x70] sm:$0xff]
      %v375 = vld [vmem:[%s205 + $0x78] sm:$0xff]
      %v376 = vld [vmem:[%s205 + $0x80] sm:$0xff]
      %v377 = vld [vmem:[%s205 + $0x88] sm:$0xff]
      %v378 = vld [vmem:[%s205 + $0x90] sm:$0xff]
      %v379 = vld [vmem:[%s205 + $0x98] sm:$0xff]
      %v380 = vld [vmem:[%s205 + $0xa0] sm:$0xff]
      %v381 = vld [vmem:[%s205 + $0xa8] sm:$0xff]
      %v382 = vld [vmem:[%s205 + $0xb0] sm:$0xff]
      %v383 = vld [vmem:[%s205 + $0xb8] sm:$0xff]
      %v384 = vld [vmem:[%s205 + $0xc0] sm:$0xff]
      %v385 = vld [vmem:[%s205 + $0xc8] sm:$0xff]
      %v386 = vld [vmem:[%s205 + $0xd0] sm:$0xff]
      %v387 = vld [vmem:[%s205 + $0xd8] sm:$0xff]
      %v388 = vld [vmem:[%s205 + $0xe0] sm:$0xff]
      %v389 = vld [vmem:[%s205 + $0xe8] sm:$0xff]
      %v390 = vld [vmem:[%s205 + $0xf0] sm:$0xff]
      %v391 = vld [vmem:[%s205 + $0xf8] sm:$0xff]
      %v392 = vld [vmem:[%s205 + $0x100] sm:$0xff]
      %v393 = vld [vmem:[%s205 + $0x108] sm:$0xff]
      %v394 = vld [vmem:[%s205 + $0x110] sm:$0xff]
      %v395 = vld [vmem:[%s205 + $0x118] sm:$0xff]
      %v396 = vld [vmem:[%s205 + $0x120] sm:$0xff]
      %v397 = vld [vmem:[%s205 + $0x128] sm:$0xff]
      %v398 = vld [vmem:[%s205 + $0x130] sm:$0xff]
      %v399 = vld [vmem:[%s205 + $0x138] sm:$0xff]
      %v400 = vld [vmem:[%s205 + $0x140] sm:$0xff]
      %v401 = vld [vmem:[%s205 + $0x148] sm:$0xff]
      %v402 = vld [vmem:[%s205 + $0x150] sm:$0xff]
      %v403 = vld [vmem:[%s205 + $0x158] sm:$0xff]
      %v404 = vld [vmem:[%s205 + $0x160] sm:$0xff]
      %v405 = vld [vmem:[%s205 + $0x168] sm:$0xff]
      %v406 = vld [vmem:[%s205 + $0x170] sm:$0xff]
      %v407 = vld [vmem:[%s205 + $0x178] sm:$0xff]
      %v408 = vld [vmem:[%s205 + $0x180] sm:$0xff]
      %v409 = vld [vmem:[%s205 + $0x188] sm:$0xff]
      %v410 = vld [vmem:[%s205 + $0x190] sm:$0xff]
      %v411 = vld [vmem:[%s205 + $0x198] sm:$0xff]
      %v412 = vld [vmem:[%s205 + $0x1a0] sm:$0xff]
      %v413 = vld [vmem:[%s205 + $0x1a8] sm:$0xff]
      %v414 = vld [vmem:[%s205 + $0x1b0] sm:$0xff]
      %v415 = vld [vmem:[%s205 + $0x1b8] sm:$0xff]
      %v416 = vld [vmem:[%s205 + $0x1c0] sm:$0xff]
      %v417 = vld [vmem:[%s205 + $0x1c8] sm:$0xff]
      %v418 = vld [vmem:[%s205 + $0x1d0] sm:$0xff]
      %v419 = vld [vmem:[%s205 + $0x1d8] sm:$0xff]
      %v420 = vld [vmem:[%s205 + $0x1e0] sm:$0xff]
      %v421 = vld [vmem:[%s205 + $0x1e8] sm:$0xff]
      %v422 = vld [vmem:[%s205 + $0x1f0] sm:$0xff]
      %v423 = vld [vmem:[%s205 + $0x1f8] sm:$0xff]
      %v424 = vld [vmem:[%s215] sm:$0xf]
      %v425 = vld [vmem:[%s215 + $0x4] sm:$0xf]
      %v426 = vld [vmem:[%s215 + $0x8] sm:$0xf]
      %v427 = vld [vmem:[%s215 + $0xc] sm:$0xf]
      %v428 = vld [vmem:[%s215 + $0x10] sm:$0xf]
      %v429 = vld [vmem:[%s215 + $0x14] sm:$0xf]
      %v430 = vld [vmem:[%s215 + $0x18] sm:$0xf]
      %v431 = vld [vmem:[%s215 + $0x1c] sm:$0xf]
      %v432 = vld [vmem:[%s215 + $0x20] sm:$0xf]
      %v433 = vld [vmem:[%s215 + $0x24] sm:$0xf]
      %v434 = vld [vmem:[%s215 + $0x28] sm:$0xf]
      %v435 = vld [vmem:[%s215 + $0x2c] sm:$0xf]
      %v436 = vld [vmem:[%s215 + $0x30] sm:$0xf]
      %v437 = vld [vmem:[%s215 + $0x34] sm:$0xf]
      %v438 = vld [vmem:[%s215 + $0x38] sm:$0xf]
      %v439 = vld [vmem:[%s215 + $0x3c] sm:$0xf]
      %v440 = vld [vmem:[%s215 + $0x40] sm:$0xf]
      %v441 = vld [vmem:[%s215 + $0x44] sm:$0xf]
      %v442 = vld [vmem:[%s215 + $0x48] sm:$0xf]
      %v443 = vld [vmem:[%s215 + $0x4c] sm:$0xf]
      %v444 = vld [vmem:[%s215 + $0x50] sm:$0xf]
      %v445 = vld [vmem:[%s215 + $0x54] sm:$0xf]
      %v446 = vld [vmem:[%s215 + $0x58] sm:$0xf]
      %v447 = vld [vmem:[%s215 + $0x5c] sm:$0xf]
      %v448 = vld [vmem:[%s215 + $0x60] sm:$0xf]
      %v449 = vld [vmem:[%s215 + $0x64] sm:$0xf]
      %v450 = vld [vmem:[%s215 + $0x68] sm:$0xf]
      %v515 = vunpack.c.l.b16 %v360
      %v516 = vunpack.c.h.b16 %v360
      %v517 = vunpack.c.l.b16 %v361
      %v518 = vunpack.c.h.b16 %v361
      %v519 = vunpack.c.l.b16 %v362
      %v520 = vunpack.c.h.b16 %v362
      %v521 = vunpack.c.l.b16 %v363
      %v522 = vunpack.c.h.b16 %v363
      %v523 = vunpack.c.l.b16 %v364
      %v524 = vunpack.c.h.b16 %v364
      %v525 = vunpack.c.l.b16 %v365
      %v526 = vunpack.c.h.b16 %v365
      %v527 = vunpack.c.l.b16 %v366
      %v528 = vunpack.c.h.b16 %v366
      %v529 = vunpack.c.l.b16 %v367
      %v530 = vunpack.c.h.b16 %v367
      %v531 = vunpack.c.l.b16 %v368
      %v532 = vunpack.c.h.b16 %v368
      %v533 = vunpack.c.l.b16 %v369
      %v534 = vunpack.c.h.b16 %v369
      %v535 = vunpack.c.l.b16 %v370
      %v536 = vunpack.c.h.b16 %v370
      %v537 = vunpack.c.l.b16 %v371
      %v538 = vunpack.c.h.b16 %v371
      %v539 = vunpack.c.l.b16 %v372
      %v540 = vunpack.c.h.b16 %v372
      %v541 = vunpack.c.l.b16 %v373
      %v542 = vunpack.c.h.b16 %v373
      %v543 = vunpack.c.l.b16 %v374
      %v544 = vunpack.c.h.b16 %v374
      %v545 = vunpack.c.l.b16 %v375
      %v546 = vunpack.c.h.b16 %v375
      %v547 = vunpack.c.l.b16 %v376
      %v548 = vunpack.c.h.b16 %v376
      %v549 = vunpack.c.l.b16 %v377
      %v550 = vunpack.c.h.b16 %v377
      %v551 = vunpack.c.l.b16 %v378
      %v552 = vunpack.c.h.b16 %v378
      %v553 = vunpack.c.l.b16 %v379
      %v554 = vunpack.c.h.b16 %v379
      %v555 = vunpack.c.l.b16 %v380
      %v556 = vunpack.c.h.b16 %v380
      %v557 = vunpack.c.l.b16 %v381
      %v558 = vunpack.c.h.b16 %v381
      %v559 = vunpack.c.l.b16 %v382
      %v560 = vunpack.c.h.b16 %v382
      %v561 = vunpack.c.l.b16 %v383
      %v562 = vunpack.c.h.b16 %v383
      %v563 = vunpack.c.l.b16 %v384
      %v564 = vunpack.c.h.b16 %v384
      %v565 = vunpack.c.l.b16 %v385
      %v566 = vunpack.c.h.b16 %v385
      %v567 = vunpack.c.l.b16 %v386
      %v568 = vunpack.c.h.b16 %v386
      %v569 = vunpack.c.l.b16 %v387
      %v570 = vunpack.c.h.b16 %v387
      %v571 = vunpack.c.l.b16 %v388
      %v572 = vunpack.c.h.b16 %v388
      %v573 = vunpack.c.l.b16 %v389
      %v574 = vunpack.c.h.b16 %v389
      %v575 = vunpack.c.l.b16 %v390
      %v576 = vunpack.c.h.b16 %v390
      %v577 = vunpack.c.l.b16 %v391
      %v578 = vunpack.c.h.b16 %v391
      %v579 = vunpack.c.l.b16 %v392
      %v580 = vunpack.c.h.b16 %v392
      %v581 = vunpack.c.l.b16 %v393
      %v582 = vunpack.c.h.b16 %v393
      %v583 = vunpack.c.l.b16 %v394
      %v584 = vunpack.c.h.b16 %v394
      %v585 = vunpack.c.l.b16 %v395
      %v586 = vunpack.c.h.b16 %v395
      %v587 = vunpack.c.l.b16 %v396
      %v588 = vunpack.c.h.b16 %v396
      %v589 = vunpack.c.l.b16 %v397
      %v590 = vunpack.c.h.b16 %v397
      %v591 = vunpack.c.l.b16 %v398
      %v592 = vunpack.c.h.b16 %v398
      %v593 = vunpack.c.l.b16 %v399
      %v594 = vunpack.c.h.b16 %v399
      %v595 = vunpack.c.l.b16 %v400
      %v596 = vunpack.c.h.b16 %v400
      %v597 = vunpack.c.l.b16 %v401
      %v598 = vunpack.c.h.b16 %v401
      %v599 = vunpack.c.l.b16 %v402
      %v600 = vunpack.c.h.b16 %v402
      %v601 = vunpack.c.l.b16 %v403
      %v602 = vunpack.c.h.b16 %v403
      %v603 = vunpack.c.l.b16 %v404
      %v604 = vunpack.c.h.b16 %v404
      %v605 = vunpack.c.l.b16 %v405
      %v606 = vunpack.c.h.b16 %v405
      %v607 = vunpack.c.l.b16 %v406
      %v608 = vunpack.c.h.b16 %v406
      %v609 = vunpack.c.l.b16 %v407
      %v610 = vunpack.c.h.b16 %v407
      %v611 = vunpack.c.l.b16 %v408
      %v612 = vunpack.c.h.b16 %v408
      %v613 = vunpack.c.l.b16 %v409
      %v614 = vunpack.c.h.b16 %v409
      %v615 = vunpack.c.l.b16 %v410
      %v616 = vunpack.c.h.b16 %v410
      %v617 = vunpack.c.l.b16 %v411
      %v618 = vunpack.c.h.b16 %v411
      %v619 = vunpack.c.l.b16 %v412
      %v620 = vunpack.c.h.b16 %v412
      %v621 = vunpack.c.l.b16 %v413
      %v622 = vunpack.c.h.b16 %v413
      %v623 = vunpack.c.l.b16 %v414
      %v624 = vunpack.c.h.b16 %v414
      %v625 = vunpack.c.l.b16 %v415
      %v626 = vunpack.c.h.b16 %v415
      %v627 = vunpack.c.l.b16 %v416
      %v628 = vunpack.c.h.b16 %v416
      %v629 = vunpack.c.l.b16 %v417
      %v630 = vunpack.c.h.b16 %v417
      %v631 = vunpack.c.l.b16 %v418
      %v632 = vunpack.c.h.b16 %v418
      %v633 = vunpack.c.l.b16 %v419
      %v634 = vunpack.c.h.b16 %v419
      %v635 = vunpack.c.l.b16 %v420
      %v636 = vunpack.c.h.b16 %v420
      %v637 = vunpack.c.l.b16 %v421
      %v638 = vunpack.c.h.b16 %v421
      %v639 = vunpack.c.l.b16 %v422
      %v640 = vunpack.c.h.b16 %v422
      %v641 = vunpack.c.l.b16 %v423
      %v642 = vunpack.c.h.b16 %v423
      %v643 = vpack.c.b16 %v517, %v515
      %v644 = vpack.c.b16 %v518, %v516
      %v645 = vpack.c.b16 %v521, %v519
      %v646 = vpack.c.b16 %v522, %v520
      %v647 = vpack.c.b16 %v525, %v523
      %v648 = vpack.c.b16 %v526, %v524
      %v649 = vpack.c.b16 %v529, %v527
      %v650 = vpack.c.b16 %v530, %v528
      %v651 = vpack.c.b16 %v533, %v531
      %v652 = vpack.c.b16 %v534, %v532
      %v653 = vpack.c.b16 %v537, %v535
      %v654 = vpack.c.b16 %v538, %v536
      %v655 = vpack.c.b16 %v541, %v539
      %v656 = vpack.c.b16 %v542, %v540
      %v657 = vpack.c.b16 %v545, %v543
      %v658 = vpack.c.b16 %v546, %v544
      %v659 = vpack.c.b16 %v549, %v547
      %v660 = vpack.c.b16 %v550, %v548
      %v661 = vpack.c.b16 %v553, %v551
      %v662 = vpack.c.b16 %v554, %v552
      %v663 = vpack.c.b16 %v557, %v555
      %v664 = vpack.c.b16 %v558, %v556
      %v665 = vpack.c.b16 %v561, %v559
      %v666 = vpack.c.b16 %v562, %v560
      %v667 = vpack.c.b16 %v565, %v563
      %v668 = vpack.c.b16 %v566, %v564
      %v669 = vpack.c.b16 %v569, %v567
      %v670 = vpack.c.b16 %v570, %v568
      %v671 = vpack.c.b16 %v573, %v571
      %v672 = vpack.c.b16 %v574, %v572
      %v673 = vpack.c.b16 %v577, %v575
      %v674 = vpack.c.b16 %v578, %v576
      %v675 = vpack.c.b16 %v581, %v579
      %v676 = vpack.c.b16 %v582, %v580
      %v677 = vpack.c.b16 %v585, %v583
      %v678 = vpack.c.b16 %v586, %v584
      %v679 = vpack.c.b16 %v589, %v587
      %v680 = vpack.c.b16 %v590, %v588
      %v681 = vpack.c.b16 %v593, %v591
      %v682 = vpack.c.b16 %v594, %v592
      %v683 = vpack.c.b16 %v597, %v595
      %v684 = vpack.c.b16 %v598, %v596
      %v685 = vpack.c.b16 %v601, %v599
      %v686 = vpack.c.b16 %v602, %v600
      %v687 = vpack.c.b16 %v605, %v603
      %v688 = vpack.c.b16 %v606, %v604
      %v689 = vpack.c.b16 %v609, %v607
      %v690 = vpack.c.b16 %v610, %v608
      %v691 = vpack.c.b16 %v613, %v611
      %v692 = vpack.c.b16 %v614, %v612
      %v693 = vpack.c.b16 %v617, %v615
      %v694 = vpack.c.b16 %v618, %v616
      %v695 = vpack.c.b16 %v621, %v619
      %v696 = vpack.c.b16 %v622, %v620
      %v697 = vpack.c.b16 %v625, %v623
      %v698 = vpack.c.b16 %v626, %v624
      %v699 = vpack.c.b16 %v629, %v627
      %v700 = vpack.c.b16 %v630, %v628
      %v701 = vpack.c.b16 %v633, %v631
      %v702 = vpack.c.b16 %v634, %v632
      %v703 = vpack.c.b16 %v637, %v635
      %v704 = vpack.c.b16 %v638, %v636
      %v705 = vpack.c.b16 %v641, %v639
      %v706 = vpack.c.b16 %v642, %v640
      %v766 = vunpack.c.l.b16 %v424
      %v767 = vunpack.c.l.b16 %v425
      %v768 = vunpack.c.l.b16 %v426
      %v769 = vunpack.c.l.b16 %v427
      %v770 = vunpack.c.l.b16 %v428
      %v771 = vunpack.c.l.b16 %v429
      %v772 = vunpack.c.l.b16 %v430
      %v773 = vunpack.c.l.b16 %v431
      %v774 = vunpack.c.l.b16 %v432
      %v775 = vunpack.c.l.b16 %v433
      %v776 = vunpack.c.l.b16 %v434
      %v777 = vunpack.c.l.b16 %v435
      %v778 = vunpack.c.l.b16 %v436
      %v779 = vunpack.c.l.b16 %v437
      %v780 = vunpack.c.l.b16 %v438
      %v781 = vunpack.c.l.b16 %v439
      %v782 = vunpack.c.l.b16 %v440
      %v783 = vunpack.c.l.b16 %v441
      %v784 = vunpack.c.l.b16 %v442
      %v785 = vunpack.c.l.b16 %v443
      %v786 = vunpack.c.l.b16 %v444
      %v787 = vunpack.c.l.b16 %v445
      %v788 = vunpack.c.l.b16 %v446
      %v789 = vunpack.c.l.b16 %v447
      %v790 = vunpack.c.l.b16 %v448
      %v791 = vunpack.c.l.b16 %v449
      %v792 = vunpack.c.l.b16 %v450
      %v793 = vpack.c.b16 %v767, %v766
      %v794 = vpack.c.b16 %v769, %v768
      %v795 = vpack.c.b16 %v771, %v770
      %v796 = vpack.c.b16 %v773, %v772
      %v797 = vpack.c.b16 %v775, %v774
      %v798 = vpack.c.b16 %v777, %v776
      %v799 = vpack.c.b16 %v779, %v778
      %v800 = vpack.c.b16 %v781, %v780
      %v801 = vpack.c.b16 %v783, %v782
      %v802 = vpack.c.b16 %v785, %v784
      %v803 = vpack.c.b16 %v787, %v786
      %v804 = vpack.c.b16 %v789, %v788
      %v805 = vpack.c.b16 %v791, %v790
      %v806 = vpack.c.b16 %v792, %v792
      %vm820 = vcmask 719872
      %v822 = vsel %vm820, %v644, 0
      %v825 = vsel %vm820, %v646, 0
      %v828 = vsel %vm820, %v648, 0
      %v831 = vsel %vm820, %v650, 0
      %v834 = vsel %vm820, %v652, 0
      %v837 = vsel %vm820, %v654, 0
      %v840 = vsel %vm820, %v656, 0
      %v843 = vsel %vm820, %v658, 0
      %v846 = vsel %vm820, %v660, 0
      %v849 = vsel %vm820, %v662, 0
      %v852 = vsel %vm820, %v664, 0
      %v855 = vsel %vm820, %v666, 0
      %v858 = vsel %vm820, %v668, 0
      %v861 = vsel %vm820, %v670, 0
      %v864 = vsel %vm820, %v672, 0
      %v867 = vsel %vm820, %v674, 0
      %v870 = vsel %vm820, %v676, 0
      %v873 = vsel %vm820, %v678, 0
      %v876 = vsel %vm820, %v680, 0
      %v879 = vsel %vm820, %v682, 0
      %v882 = vsel %vm820, %v684, 0
      %v885 = vsel %vm820, %v686, 0
      %v888 = vsel %vm820, %v688, 0
      %v891 = vsel %vm820, %v690, 0
      %v894 = vsel %vm820, %v692, 0
      %v897 = vsel %vm820, %v694, 0
      %v900 = vsel %vm820, %v696, 0
      %v903 = vsel %vm820, %v698, 0
      %v906 = vsel %vm820, %v700, 0
      %v909 = vsel %vm820, %v702, 0
      %v912 = vsel %vm820, %v704, 0
      %v915 = vsel %vm820, %v706, 0
      %vm917 = vcmask 1043456
      %v919 = vsel %vm917, %v806, 0
      %921 = vmatprep.subr.bf16.mxu0 0
      %922 = vmatpush1.bf16.msra.mxu0 %v793
      %923 = vmatprep.subr.bf16.mxu0 0
      %924 = vmatpush1.bf16.msra.mxu0 %v794
      %925 = vmatprep.subr.bf16.mxu0 0
      %926 = vmatpush1.bf16.msra.mxu0 %v795
      %927 = vmatprep.subr.bf16.mxu0 0
      %928 = vmatpush1.bf16.msra.mxu0 %v796
      %929 = vmatprep.subr.bf16.mxu0 0
      %930 = vmatpush1.bf16.msra.mxu0 %v797
      %931 = vmatprep.subr.bf16.mxu0 0
      %932 = vmatpush1.bf16.msra.mxu0 %v798
      %933 = vmatprep.subr.bf16.mxu0 0
      %934 = vmatpush1.bf16.msra.mxu0 %v799
      %935 = vmatprep.subr.bf16.mxu0 0
      %936 = vmatpush1.bf16.msra.mxu0 %v800
      %937 = vmatprep.subr.bf16.mxu0 0
      %938 = vmatpush1.bf16.msra.mxu0 %v801
      %939 = vmatprep.subr.bf16.mxu0 0
      %940 = vmatpush1.bf16.msra.mxu0 %v802
      %941 = vmatprep.subr.bf16.mxu0 0
      %942 = vmatpush1.bf16.msra.mxu0 %v803
      %943 = vmatprep.subr.bf16.mxu0 0
      %944 = vmatpush1.bf16.msra.mxu0 %v804
      %945 = vmatprep.subr.bf16.mxu0 0
      %946 = vmatpush1.bf16.msra.mxu0 %v805
      %947 = vmatprep.subr.bf16.mxu0 0
      %948 = vmatpush1.bf16.msra.mxu0 %v919
      %949 = vmatprep.subr.bf16.mxu0 0
      %950 = vmatpush1.bf16.msra.mxu0 0
      %951 = vmatprep.subr.bf16.mxu0 0
      %952 = vmatpush1.bf16.msra.mxu0 0
      %953 = vmatprep.mubr.bf16.mxu0 %v822
      %954 = vmatmul.mubr.bf16.gmra.mrb[0].mxu0 %v643
      %v955 = vpop.f32.mrb[0].mxu0
      %v956 = vadd.f32 0.0, %v955
      %v957 = vpop.f32.mrb[0].mxu0
      %v958 = vpop.f32.mrb[0].mxu0
      %v959 = vadd.f32 0.0, %v958
      %v960 = vpop.f32.mrb[0].mxu0
      %961 = vmatprep.mubr.bf16.mxu0 %v825
      %962 = vmatmul.mubr.bf16.gmra.mrb[0].mxu0 %v645
      %v963 = vpop.f32.mrb[0].mxu0
      %v964 = vadd.f32 0.0, %v963
      %v965 = vpop.f32.mrb[0].mxu0
      %v966 = vpop.f32.mrb[0].mxu0
      %v967 = vadd.f32 0.0, %v966
      %v968 = vpop.f32.mrb[0].mxu0
      %969 = vmatprep.mubr.bf16.mxu0 %v828
      %970 = vmatmul.mubr.bf16.gmra.mrb[0].mxu0 %v647
      %v971 = vpop.f32.mrb[0].mxu0
      %v972 = vadd.f32 0.0, %v971
      %v973 = vpop.f32.mrb[0].mxu0
      %v974 = vpop.f32.mrb[0].mxu0
      %v975 = vadd.f32 0.0, %v974
      %v976 = vpop.f32.mrb[0].mxu0
      %977 = vmatprep.mubr.bf16.mxu0 %v831
      %978 = vmatmul.mubr.bf16.gmra.mrb[0].mxu0 %v649
      %v979 = vpop.f32.mrb[0].mxu0
      %v980 = vadd.f32 0.0, %v979
      %v981 = vpop.f32.mrb[0].mxu0
      %v982 = vpop.f32.mrb[0].mxu0
      %v983 = vadd.f32 0.0, %v982
      %v984 = vpop.f32.mrb[0].mxu0
      %985 = vmatprep.mubr.bf16.mxu0 %v834
      %986 = vmatmul.mubr.bf16.gmra.mrb[0].mxu0 %v651
      %v987 = vpop.f32.mrb[0].mxu0
      %v988 = vadd.f32 0.0, %v987
      %v989 = vpop.f32.mrb[0].mxu0
      %v990 = vpop.f32.mrb[0].mxu0
      %v991 = vadd.f32 0.0, %v990
      %v992 = vpop.f32.mrb[0].mxu0
      %993 = vmatprep.mubr.bf16.mxu0 %v837
      %994 = vmatmul.mubr.bf16.gmra.mrb[0].mxu0 %v653
      %v995 = vpop.f32.mrb[0].mxu0
      %v996 = vadd.f32 0.0, %v995
      %v997 = vpop.f32.mrb[0].mxu0
      %v998 = vpop.f32.mrb[0].mxu0
      %v999 = vadd.f32 0.0, %v998
      %v1000 = vpop.f32.mrb[0].mxu0
      %1001 = vmatprep.mubr.bf16.mxu0 %v840
      %1002 = vmatmul.mubr.bf16.gmra.mrb[0].mxu0 %v655
      %v1003 = vpop.f32.mrb[0].mxu0
      %v1004 = vadd.f32 0.0, %v1003
      %v1005 = vpop.f32.mrb[0].mxu0
      %v1006 = vpop.f32.mrb[0].mxu0
      %v1007 = vadd.f32 0.0, %v1006
      %v1008 = vpop.f32.mrb[0].mxu0
      %1009 = vmatprep.mubr.bf16.mxu0 %v843
      %1010 = vmatmul.mubr.bf16.gmra.mrb[0].mxu0 %v657
      %v1011 = vpop.f32.mrb[0].mxu0
      %v1012 = vadd.f32 0.0, %v1011
      %v1013 = vpop.f32.mrb[0].mxu0
      %v1014 = vpop.f32.mrb[0].mxu0
      %v1015 = vadd.f32 0.0, %v1014
      %v1016 = vpop.f32.mrb[0].mxu0
      %1017 = vmatprep.mubr.bf16.mxu0 %v846
      %1018 = vmatmul.mubr.bf16.gmra.mrb[0].mxu0 %v659
      %v1019 = vpop.f32.mrb[0].mxu0
      %v1020 = vadd.f32 0.0, %v1019
      %v1021 = vpop.f32.mrb[0].mxu0
      %v1022 = vpop.f32.mrb[0].mxu0
      %v1023 = vadd.f32 0.0, %v1022
      %v1024 = vpop.f32.mrb[0].mxu0
      %1025 = vmatprep.mubr.bf16.mxu0 %v849
      %1026 = vmatmul.mubr.bf16.gmra.mrb[0].mxu0 %v661
      %v1027 = vpop.f32.mrb[0].mxu0
      %v1028 = vadd.f32 0.0, %v1027
      %v1029 = vpop.f32.mrb[0].mxu0
      %v1030 = vpop.f32.mrb[0].mxu0
      %v1031 = vadd.f32 0.0, %v1030
      %v1032 = vpop.f32.mrb[0].mxu0
      %1033 = vmatprep.mubr.bf16.mxu0 %v852
      %1034 = vmatmul.mubr.bf16.gmra.mrb[0].mxu0 %v663
      %v1035 = vpop.f32.mrb[0].mxu0
      %v1036 = vadd.f32 0.0, %v1035
      %v1037 = vpop.f32.mrb[0].mxu0
      %v1038 = vpop.f32.mrb[0].mxu0
      %v1039 = vadd.f32 0.0, %v1038
      %v1040 = vpop.f32.mrb[0].mxu0
      %1041 = vmatprep.mubr.bf16.mxu0 %v855
      %1042 = vmatmul.mubr.bf16.gmra.mrb[0].mxu0 %v665
      %v1043 = vpop.f32.mrb[0].mxu0
      %v1044 = vadd.f32 0.0, %v1043
      %v1045 = vpop.f32.mrb[0].mxu0
      %v1046 = vpop.f32.mrb[0].mxu0
      %v1047 = vadd.f32 0.0, %v1046
      %v1048 = vpop.f32.mrb[0].mxu0
      %1049 = vmatprep.mubr.bf16.mxu0 %v858
      %1050 = vmatmul.mubr.bf16.gmra.mrb[0].mxu0 %v667
      %v1051 = vpop.f32.mrb[0].mxu0
      %v1052 = vadd.f32 0.0, %v1051
      %v1053 = vpop.f32.mrb[0].mxu0
      %v1054 = vpop.f32.mrb[0].mxu0
      %v1055 = vadd.f32 0.0, %v1054
      %v1056 = vpop.f32.mrb[0].mxu0
      %1057 = vmatprep.mubr.bf16.mxu0 %v861
      %1058 = vmatmul.mubr.bf16.gmra.mrb[0].mxu0 %v669
      %v1059 = vpop.f32.mrb[0].mxu0
      %v1060 = vadd.f32 0.0, %v1059
      %v1061 = vpop.f32.mrb[0].mxu0
      %v1062 = vpop.f32.mrb[0].mxu0
      %v1063 = vadd.f32 0.0, %v1062
      %v1064 = vpop.f32.mrb[0].mxu0
      %1065 = vmatprep.mubr.bf16.mxu0 %v864
      %1066 = vmatmul.mubr.bf16.gmra.mrb[0].mxu0 %v671
      %v1067 = vpop.f32.mrb[0].mxu0
      %v1068 = vadd.f32 0.0, %v1067
      %v1069 = vpop.f32.mrb[0].mxu0
      %v1070 = vpop.f32.mrb[0].mxu0
      %v1071 = vadd.f32 0.0, %v1070
      %v1072 = vpop.f32.mrb[0].mxu0
      %1073 = vmatprep.mubr.bf16.mxu0 %v867
      %1074 = vmatmul.mubr.bf16.gmra.mrb[0].mxu0 %v673
      %v1075 = vpop.f32.mrb[0].mxu0
      %v1076 = vadd.f32 0.0, %v1075
      %v1077 = vpop.f32.mrb[0].mxu0
      %v1078 = vpop.f32.mrb[0].mxu0
      %v1079 = vadd.f32 0.0, %v1078
      %v1080 = vpop.f32.mrb[0].mxu0
      %1081 = vmatprep.mubr.bf16.mxu0 %v870
      %1082 = vmatmul.mubr.bf16.gmra.mrb[0].mxu0 %v675
      %v1083 = vpop.f32.mrb[0].mxu0
      %v1084 = vadd.f32 0.0, %v1083
      %v1085 = vpop.f32.mrb[0].mxu0
      %v1086 = vpop.f32.mrb[0].mxu0
      %v1087 = vadd.f32 0.0, %v1086
      %v1088 = vpop.f32.mrb[0].mxu0
      %1089 = vmatprep.mubr.bf16.mxu0 %v873
      %1090 = vmatmul.mubr.bf16.gmra.mrb[0].mxu0 %v677
      %v1091 = vpop.f32.mrb[0].mxu0
      %v1092 = vadd.f32 0.0, %v1091
      %v1093 = vpop.f32.mrb[0].mxu0
      %v1094 = vpop.f32.mrb[0].mxu0
      %v1095 = vadd.f32 0.0, %v1094
      %v1096 = vpop.f32.mrb[0].mxu0
      %1097 = vmatprep.mubr.bf16.mxu0 %v876
      %1098 = vmatmul.mubr.bf16.gmra.mrb[0].mxu0 %v679
      %v1099 = vpop.f32.mrb[0].mxu0
      %v1100 = vadd.f32 0.0, %v1099
      %v1101 = vpop.f32.mrb[0].mxu0
      %v1102 = vpop.f32.mrb[0].mxu0
      %v1103 = vadd.f32 0.0, %v1102
      %v1104 = vpop.f32.mrb[0].mxu0
      %1105 = vmatprep.mubr.bf16.mxu0 %v879
      %1106 = vmatmul.mubr.bf16.gmra.mrb[0].mxu0 %v681
      %v1107 = vpop.f32.mrb[0].mxu0
      %v1108 = vadd.f32 0.0, %v1107
      %v1109 = vpop.f32.mrb[0].mxu0
      %v1110 = vpop.f32.mrb[0].mxu0
      %v1111 = vadd.f32 0.0, %v1110
      %v1112 = vpop.f32.mrb[0].mxu0
      %1113 = vmatprep.mubr.bf16.mxu0 %v882
      %1114 = vmatmul.mubr.bf16.gmra.mrb[0].mxu0 %v683
      %v1115 = vpop.f32.mrb[0].mxu0
      %v1116 = vadd.f32 0.0, %v1115
      %v1117 = vpop.f32.mrb[0].mxu0
      %v1118 = vpop.f32.mrb[0].mxu0
      %v1119 = vadd.f32 0.0, %v1118
      %v1120 = vpop.f32.mrb[0].mxu0
      %1121 = vmatprep.mubr.bf16.mxu0 %v885
      %1122 = vmatmul.mubr.bf16.gmra.mrb[0].mxu0 %v685
      %v1123 = vpop.f32.mrb[0].mxu0
      %v1124 = vadd.f32 0.0, %v1123
      %v1125 = vpop.f32.mrb[0].mxu0
      %v1126 = vpop.f32.mrb[0].mxu0
      %v1127 = vadd.f32 0.0, %v1126
      %v1128 = vpop.f32.mrb[0].mxu0
      %1129 = vmatprep.mubr.bf16.mxu0 %v888
      %1130 = vmatmul.mubr.bf16.gmra.mrb[0].mxu0 %v687
      %v1131 = vpop.f32.mrb[0].mxu0
      %v1132 = vadd.f32 0.0, %v1131
      %v1133 = vpop.f32.mrb[0].mxu0
      %v1134 = vpop.f32.mrb[0].mxu0
      %v1135 = vadd.f32 0.0, %v1134
      %v1136 = vpop.f32.mrb[0].mxu0
      %1137 = vmatprep.mubr.bf16.mxu0 %v891
      %1138 = vmatmul.mubr.bf16.gmra.mrb[0].mxu0 %v689
      %v1139 = vpop.f32.mrb[0].mxu0
      %v1140 = vadd.f32 0.0, %v1139
      %v1141 = vpop.f32.mrb[0].mxu0
      %v1142 = vpop.f32.mrb[0].mxu0
      %v1143 = vadd.f32 0.0, %v1142
      %v1144 = vpop.f32.mrb[0].mxu0
      %1145 = vmatprep.mubr.bf16.mxu0 %v894
      %1146 = vmatmul.mubr.bf16.gmra.mrb[0].mxu0 %v691
      %v1147 = vpop.f32.mrb[0].mxu0
      %v1148 = vadd.f32 0.0, %v1147
      %v1149 = vpop.f32.mrb[0].mxu0
      %v1150 = vpop.f32.mrb[0].mxu0
      %v1151 = vadd.f32 0.0, %v1150
      %v1152 = vpop.f32.mrb[0].mxu0
      %1153 = vmatprep.mubr.bf16.mxu0 %v897
      %1154 = vmatmul.mubr.bf16.gmra.mrb[0].mxu0 %v693
      %v1155 = vpop.f32.mrb[0].mxu0
      %v1156 = vadd.f32 0.0, %v1155
      %v1157 = vpop.f32.mrb[0].mxu0
      %v1158 = vpop.f32.mrb[0].mxu0
      %v1159 = vadd.f32 0.0, %v1158
      %v1160 = vpop.f32.mrb[0].mxu0
      %1161 = vmatprep.mubr.bf16.mxu0 %v900
      %1162 = vmatmul.mubr.bf16.gmra.mrb[0].mxu0 %v695
      %v1163 = vpop.f32.mrb[0].mxu0
      %v1164 = vadd.f32 0.0, %v1163
      %v1165 = vpop.f32.mrb[0].mxu0
      %v1166 = vpop.f32.mrb[0].mxu0
      %v1167 = vadd.f32 0.0, %v1166
      %v1168 = vpop.f32.mrb[0].mxu0
      %1169 = vmatprep.mubr.bf16.mxu0 %v903
      %1170 = vmatmul.mubr.bf16.gmra.mrb[0].mxu0 %v697
      %v1171 = vpop.f32.mrb[0].mxu0
      %v1172 = vadd.f32 0.0, %v1171
      %v1173 = vpop.f32.mrb[0].mxu0
      %v1174 = vpop.f32.mrb[0].mxu0
      %v1175 = vadd.f32 0.0, %v1174
      %v1176 = vpop.f32.mrb[0].mxu0
      %1177 = vmatprep.mubr.bf16.mxu0 %v906
      %1178 = vmatmul.mubr.bf16.gmra.mrb[0].mxu0 %v699
      %v1179 = vpop.f32.mrb[0].mxu0
      %v1180 = vadd.f32 0.0, %v1179
      %v1181 = vpop.f32.mrb[0].mxu0
      %v1182 = vpop.f32.mrb[0].mxu0
      %v1183 = vadd.f32 0.0, %v1182
      %v1184 = vpop.f32.mrb[0].mxu0
      %1185 = vmatprep.mubr.bf16.mxu0 %v909
      %1186 = vmatmul.mubr.bf16.gmra.mrb[0].mxu0 %v701
      %v1187 = vpop.f32.mrb[0].mxu0
      %v1188 = vadd.f32 0.0, %v1187
      %v1189 = vpop.f32.mrb[0].mxu0
      %v1190 = vpop.f32.mrb[0].mxu0
      %v1191 = vadd.f32 0.0, %v1190
      %v1192 = vpop.f32.mrb[0].mxu0
      %1193 = vmatprep.mubr.bf16.mxu0 %v912
      %1194 = vmatmul.mubr.bf16.gmra.mrb[0].mxu0 %v703
      %v1195 = vpop.f32.mrb[0].mxu0
      %v1196 = vadd.f32 0.0, %v1195
      %v1197 = vpop.f32.mrb[0].mxu0
      %v1198 = vpop.f32.mrb[0].mxu0
      %v1199 = vadd.f32 0.0, %v1198
      %v1200 = vpop.f32.mrb[0].mxu0
      %1201 = vmatprep.mubr.bf16.mxu0 %v915
      %1202 = vmatmul.mubr.bf16.gmra.mrb[0].mxu0 %v705
      %v1203 = vpop.f32.mrb[0].mxu0
      %v1204 = vadd.f32 0.0, %v1203
      %v1205 = vpop.f32.mrb[0].mxu0
      %v1206 = vpop.f32.mrb[0].mxu0
      %v1207 = vadd.f32 0.0, %v1206
      %v1208 = vpop.f32.mrb[0].mxu0
      %1209 = vdwg.mxu0
      %v1210 = vadd.f32 %v296, %v956
      %v1211 = vadd.f32 %v297, %v959
      %v1212 = vadd.f32 %v298, %v964
      %v1213 = vadd.f32 %v299, %v967
      %v1214 = vadd.f32 %v300, %v972
      %v1215 = vadd.f32 %v301, %v975
      %v1216 = vadd.f32 %v302, %v980
      %v1217 = vadd.f32 %v303, %v983
      %v1218 = vadd.f32 %v304, %v988
      %v1219 = vadd.f32 %v305, %v991
      %v1220 = vadd.f32 %v306, %v996
      %v1221 = vadd.f32 %v307, %v999
      %v1222 = vadd.f32 %v308, %v1004
      %v1223 = vadd.f32 %v309, %v1007
      %v1224 = vadd.f32 %v310, %v1012
      %v1225 = vadd.f32 %v311, %v1015
      %v1226 = vadd.f32 %v312, %v1020
      %v1227 = vadd.f32 %v313, %v1023
      %v1228 = vadd.f32 %v314, %v1028
      %v1229 = vadd.f32 %v315, %v1031
      %v1230 = vadd.f32 %v316, %v1036
      %v1231 = vadd.f32 %v317, %v1039
      %v1232 = vadd.f32 %v318, %v1044
      %v1233 = vadd.f32 %v319, %v1047
      %v1234 = vadd.f32 %v320, %v1052
      %v1235 = vadd.f32 %v321, %v1055
      %v1236 = vadd.f32 %v322, %v1060
      %v1237 = vadd.f32 %v323, %v1063
      %v1238 = vadd.f32 %v324, %v1068
      %v1239 = vadd.f32 %v325, %v1071
      %v1240 = vadd.f32 %v326, %v1076
      %v1241 = vadd.f32 %v327, %v1079
      %v1242 = vadd.f32 %v328, %v1084
      %v1243 = vadd.f32 %v329, %v1087
      %v1244 = vadd.f32 %v330, %v1092
      %v1245 = vadd.f32 %v331, %v1095
      %v1246 = vadd.f32 %v332, %v1100
      %v1247 = vadd.f32 %v333, %v1103
      %v1248 = vadd.f32 %v334, %v1108
      %v1249 = vadd.f32 %v335, %v1111
      %v1250 = vadd.f32 %v336, %v1116
      %v1251 = vadd.f32 %v337, %v1119
      %v1252 = vadd.f32 %v338, %v1124
      %v1253 = vadd.f32 %v339, %v1127
      %v1254 = vadd.f32 %v340, %v1132
      %v1255 = vadd.f32 %v341, %v1135
      %v1256 = vadd.f32 %v342, %v1140
      %v1257 = vadd.f32 %v343, %v1143
      %v1258 = vadd.f32 %v344, %v1148
      %v1259 = vadd.f32 %v345, %v1151
      %v1260 = vadd.f32 %v346, %v1156
      %v1261 = vadd.f32 %v347, %v1159
      %v1262 = vadd.f32 %v348, %v1164
      %v1263 = vadd.f32 %v349, %v1167
      %v1264 = vadd.f32 %v350, %v1172
      %v1265 = vadd.f32 %v351, %v1175
      %v1266 = vadd.f32 %v352, %v1180
      %v1267 = vadd.f32 %v353, %v1183
      %v1268 = vadd.f32 %v354, %v1188
      %v1269 = vadd.f32 %v355, %v1191
      %v1270 = vadd.f32 %v356, %v1196
      %v1271 = vadd.f32 %v357, %v1199
      %v1272 = vadd.f32 %v358, %v1204
      %v1273 = vadd.f32 %v359, %v1207
      %vm1274 = vcmask 97280
      %1275 = vst.msk [vmem:[#allocation2] sm:$0xff] %vm1274, %v1210
      %1276 = vst.msk [vmem:[#allocation2 + $0x8] sm:$0xff] %vm1274, %v1211
      %1277 = vst.msk [vmem:[#allocation2 + $0x10] sm:$0xff] %vm1274, %v1212
      %1278 = vst.msk [vmem:[#allocation2 + $0x18] sm:$0xff] %vm1274, %v1213
      %1279 = vst.msk [vmem:[#allocation2 + $0x20] sm:$0xff] %vm1274, %v1214
      %1280 = vst.msk [vmem:[#allocation2 + $0x28] sm:$0xff] %vm1274, %v1215
      %1281 = vst.msk [vmem:[#allocation2 + $0x30] sm:$0xff] %vm1274, %v1216
      %1282 = vst.msk [vmem:[#allocation2 + $0x38] sm:$0xff] %vm1274, %v1217
      %1283 = vst.msk [vmem:[#allocation2 + $0x40] sm:$0xff] %vm1274, %v1218
      %1284 = vst.msk [vmem:[#allocation2 + $0x48] sm:$0xff] %vm1274, %v1219
      %1285 = vst.msk [vmem:[#allocation2 + $0x50] sm:$0xff] %vm1274, %v1220
      %1286 = vst.msk [vmem:[#allocation2 + $0x58] sm:$0xff] %vm1274, %v1221
      %1287 = vst.msk [vmem:[#allocation2 + $0x60] sm:$0xff] %vm1274, %v1222
      %1288 = vst.msk [vmem:[#allocation2 + $0x68] sm:$0xff] %vm1274, %v1223
      %1289 = vst.msk [vmem:[#allocation2 + $0x70] sm:$0xff] %vm1274, %v1224
      %1290 = vst.msk [vmem:[#allocation2 + $0x78] sm:$0xff] %vm1274, %v1225
      %1291 = vst.msk [vmem:[#allocation2 + $0x80] sm:$0xff] %vm1274, %v1226
      %1292 = vst.msk [vmem:[#allocation2 + $0x88] sm:$0xff] %vm1274, %v1227
      %1293 = vst.msk [vmem:[#allocation2 + $0x90] sm:$0xff] %vm1274, %v1228
      %1294 = vst.msk [vmem:[#allocation2 + $0x98] sm:$0xff] %vm1274, %v1229
      %1295 = vst.msk [vmem:[#allocation2 + $0xa0] sm:$0xff] %vm1274, %v1230
      %1296 = vst.msk [vmem:[#allocation2 + $0xa8] sm:$0xff] %vm1274, %v1231
      %1297 = vst.msk [vmem:[#allocation2 + $0xb0] sm:$0xff] %vm1274, %v1232
      %1298 = vst.msk [vmem:[#allocation2 + $0xb8] sm:$0xff] %vm1274, %v1233
      %1299 = vst.msk [vmem:[#allocation2 + $0xc0] sm:$0xff] %vm1274, %v1234
      %1300 = vst.msk [vmem:[#allocation2 + $0xc8] sm:$0xff] %vm1274, %v1235
      %1301 = vst.msk [vmem:[#allocation2 + $0xd0] sm:$0xff] %vm1274, %v1236
      %1302 = vst.msk [vmem:[#allocation2 + $0xd8] sm:$0xff] %vm1274, %v1237
      %1303 = vst.msk [vmem:[#allocation2 + $0xe0] sm:$0xff] %vm1274, %v1238
      %1304 = vst.msk [vmem:[#allocation2 + $0xe8] sm:$0xff] %vm1274, %v1239
      %1305 = vst.msk [vmem:[#allocation2 + $0xf0] sm:$0xff] %vm1274, %v1240
      %1306 = vst.msk [vmem:[#allocation2 + $0xf8] sm:$0xff] %vm1274, %v1241
      %1307 = vst.msk [vmem:[#allocation2 + $0x100] sm:$0xff] %vm1274, %v1242
      %1308 = vst.msk [vmem:[#allocation2 + $0x108] sm:$0xff] %vm1274, %v1243
      %1309 = vst.msk [vmem:[#allocation2 + $0x110] sm:$0xff] %vm1274, %v1244
      %1310 = vst.msk [vmem:[#allocation2 + $0x118] sm:$0xff] %vm1274, %v1245
      %1311 = vst.msk [vmem:[#allocation2 + $0x120] sm:$0xff] %vm1274, %v1246
      %1312 = vst.msk [vmem:[#allocation2 + $0x128] sm:$0xff] %vm1274, %v1247
      %1313 = vst.msk [vmem:[#allocation2 + $0x130] sm:$0xff] %vm1274, %v1248
      %1314 = vst.msk [vmem:[#allocation2 + $0x138] sm:$0xff] %vm1274, %v1249
      %1315 = vst.msk [vmem:[#allocation2 + $0x140] sm:$0xff] %vm1274, %v1250
      %1316 = vst.msk [vmem:[#allocation2 + $0x148] sm:$0xff] %vm1274, %v1251
      %1317 = vst.msk [vmem:[#allocation2 + $0x150] sm:$0xff] %vm1274, %v1252
      %1318 = vst.msk [vmem:[#allocation2 + $0x158] sm:$0xff] %vm1274, %v1253
      %1319 = vst.msk [vmem:[#allocation2 + $0x160] sm:$0xff] %vm1274, %v1254
      %1320 = vst.msk [vmem:[#allocation2 + $0x168] sm:$0xff] %vm1274, %v1255
      %1321 = vst.msk [vmem:[#allocation2 + $0x170] sm:$0xff] %vm1274, %v1256
      %1322 = vst.msk [vmem:[#allocation2 + $0x178] sm:$0xff] %vm1274, %v1257
      %1323 = vst.msk [vmem:[#allocation2 + $0x180] sm:$0xff] %vm1274, %v1258
      %1324 = vst.msk [vmem:[#allocation2 + $0x188] sm:$0xff] %vm1274, %v1259
      %1325 = vst.msk [vmem:[#allocation2 + $0x190] sm:$0xff] %vm1274, %v1260
      %1326 = vst.msk [vmem:[#allocation2 + $0x198] sm:$0xff] %vm1274, %v1261
      %1327 = vst.msk [vmem:[#allocation2 + $0x1a0] sm:$0xff] %vm1274, %v1262
      %1328 = vst.msk [vmem:[#allocation2 + $0x1a8] sm:$0xff] %vm1274, %v1263
      %1329 = vst.msk [vmem:[#allocation2 + $0x1b0] sm:$0xff] %vm1274, %v1264
      %1330 = vst.msk [vmem:[#allocation2 + $0x1b8] sm:$0xff] %vm1274, %v1265
      %1331 = vst.msk [vmem:[#allocation2 + $0x1c0] sm:$0xff] %vm1274, %v1266
      %1332 = vst.msk [vmem:[#allocation2 + $0x1c8] sm:$0xff] %vm1274, %v1267
      %1333 = vst.msk [vmem:[#allocation2 + $0x1d0] sm:$0xff] %vm1274, %v1268
      %1334 = vst.msk [vmem:[#allocation2 + $0x1d8] sm:$0xff] %vm1274, %v1269
      %1335 = vst.msk [vmem:[#allocation2 + $0x1e0] sm:$0xff] %vm1274, %v1270
      %1336 = vst.msk [vmem:[#allocation2 + $0x1e8] sm:$0xff] %vm1274, %v1271
      %1337 = vst.msk [vmem:[#allocation2 + $0x1f0] sm:$0xff] %vm1274, %v1272
      %1338 = vst.msk [vmem:[#allocation2 + $0x1f8] sm:$0xff] %vm1274, %v1273
      // Predicated region
      $region33: #{a_call__.11} parent=27 // pred_check
        %p1339 = pneg %p227
      $region34: #{a_call__.11} parent=27 // pred_check_branch
        %1341 = sbr.rel (%p1339) target = $region36
      $region35: #{a_call__.11} parent=27 // pred_region
        %v1342 = vld [vmem:[#allocation2] sm:$0xff]
        %v1343 = vld [vmem:[#allocation2 + $0x8] sm:$0xff]
        %v1344 = vld [vmem:[#allocation2 + $0x10] sm:$0xff]
        %v1345 = vld [vmem:[#allocation2 + $0x18] sm:$0xff]
        %v1346 = vld [vmem:[#allocation2 + $0x20] sm:$0xff]
        %v1347 = vld [vmem:[#allocation2 + $0x28] sm:$0xff]
        %v1348 = vld [vmem:[#allocation2 + $0x30] sm:$0xff]
        %v1349 = vld [vmem:[#allocation2 + $0x38] sm:$0xff]
        %v1350 = vld [vmem:[#allocation2 + $0x40] sm:$0xff]
        %v1351 = vld [vmem:[#allocation2 + $0x48] sm:$0xff]
        %v1352 = vld [vmem:[#allocation2 + $0x50] sm:$0xff]
        %v1353 = vld [vmem:[#allocation2 + $0x58] sm:$0xff]
        %v1354 = vld [vmem:[#allocation2 + $0x60] sm:$0xff]
        %v1355 = vld [vmem:[#allocation2 + $0x68] sm:$0xff]
        %v1356 = vld [vmem:[#allocation2 + $0x70] sm:$0xff]
        %v1357 = vld [vmem:[#allocation2 + $0x78] sm:$0xff]
        %v1358 = vld [vmem:[#allocation2 + $0x80] sm:$0xff]
        %v1359 = vld [vmem:[#allocation2 + $0x88] sm:$0xff]
        %v1360 = vld [vmem:[#allocation2 + $0x90] sm:$0xff]
        %v1361 = vld [vmem:[#allocation2 + $0x98] sm:$0xff]
        %v1362 = vld [vmem:[#allocation2 + $0xa0] sm:$0xff]
        %v1363 = vld [vmem:[#allocation2 + $0xa8] sm:$0xff]
        %v1364 = vld [vmem:[#allocation2 + $0xb0] sm:$0xff]
        %v1365 = vld [vmem:[#allocation2 + $0xb8] sm:$0xff]
        %v1366 = vld [vmem:[#allocation2 + $0xc0] sm:$0xff]
        %v1367 = vld [vmem:[#allocation2 + $0xc8] sm:$0xff]
        %v1368 = vld [vmem:[#allocation2 + $0xd0] sm:$0xff]
        %v1369 = vld [vmem:[#allocation2 + $0xd8] sm:$0xff]
        %v1370 = vld [vmem:[#allocation2 + $0xe0] sm:$0xff]
        %v1371 = vld [vmem:[#allocation2 + $0xe8] sm:$0xff]
        %v1372 = vld [vmem:[#allocation2 + $0xf0] sm:$0xff]
        %v1373 = vld [vmem:[#allocation2 + $0xf8] sm:$0xff]
        %v1374 = vld [vmem:[#allocation2 + $0x100] sm:$0xff]
        %v1375 = vld [vmem:[#allocation2 + $0x108] sm:$0xff]
        %v1376 = vld [vmem:[#allocation2 + $0x110] sm:$0xff]
        %v1377 = vld [vmem:[#allocation2 + $0x118] sm:$0xff]
        %v1378 = vld [vmem:[#allocation2 + $0x120] sm:$0xff]
        %v1379 = vld [vmem:[#allocation2 + $0x128] sm:$0xff]
        %v1380 = vld [vmem:[#allocation2 + $0x130] sm:$0xff]
        %v1381 = vld [vmem:[#allocation2 + $0x138] sm:$0xff]
        %v1382 = vld [vmem:[#allocation2 + $0x140] sm:$0xff]
        %v1383 = vld [vmem:[#allocation2 + $0x148] sm:$0xff]
        %v1384 = vld [vmem:[#allocation2 + $0x150] sm:$0xff]
        %v1385 = vld [vmem:[#allocation2 + $0x158] sm:$0xff]
        %v1386 = vld [vmem:[#allocation2 + $0x160] sm:$0xff]
        %v1387 = vld [vmem:[#allocation2 + $0x168] sm:$0xff]
        %v1388 = vld [vmem:[#allocation2 + $0x170] sm:$0xff]
        %v1389 = vld [vmem:[#allocation2 + $0x178] sm:$0xff]
        %v1390 = vld [vmem:[#allocation2 + $0x180] sm:$0xff]
        %v1391 = vld [vmem:[#allocation2 + $0x188] sm:$0xff]
        %v1392 = vld [vmem:[#allocation2 + $0x190] sm:$0xff]
        %v1393 = vld [vmem:[#allocation2 + $0x198] sm:$0xff]
        %v1394 = vld [vmem:[#allocation2 + $0x1a0] sm:$0xff]
        %v1395 = vld [vmem:[#allocation2 + $0x1a8] sm:$0xff]
        %v1396 = vld [vmem:[#allocation2 + $0x1b0] sm:$0xff]
        %v1397 = vld [vmem:[#allocation2 + $0x1b8] sm:$0xff]
        %v1398 = vld [vmem:[#allocation2 + $0x1c0] sm:$0xff]
        %v1399 = vld [vmem:[#allocation2 + $0x1c8] sm:$0xff]
        %v1400 = vld [vmem:[#allocation2 + $0x1d0] sm:$0xff]
        %v1401 = vld [vmem:[#allocation2 + $0x1d8] sm:$0xff]
        %v1402 = vld [vmem:[#allocation2 + $0x1e0] sm:$0xff]
        %v1403 = vld [vmem:[#allocation2 + $0x1e8] sm:$0xff]
        %v1404 = vld [vmem:[#allocation2 + $0x1f0] sm:$0xff]
        %v1405 = vld [vmem:[#allocation2 + $0x1f8] sm:$0xff]
        %1406 = vst.msk [vmem:[%s224] sm:$0xff] %vm1274, %v1342
        %1407 = vst.msk [vmem:[%s224 + $0x8] sm:$0xff] %vm1274, %v1343
        %1408 = vst.msk [vmem:[%s224 + $0x10] sm:$0xff] %vm1274, %v1344
        %1409 = vst.msk [vmem:[%s224 + $0x18] sm:$0xff] %vm1274, %v1345
        %1410 = vst.msk [vmem:[%s224 + $0x20] sm:$0xff] %vm1274, %v1346
        %1411 = vst.msk [vmem:[%s224 + $0x28] sm:$0xff] %vm1274, %v1347
        %1412 = vst.msk [vmem:[%s224 + $0x30] sm:$0xff] %vm1274, %v1348
        %1413 = vst.msk [vmem:[%s224 + $0x38] sm:$0xff] %vm1274, %v1349
        %1414 = vst.msk [vmem:[%s224 + $0x40] sm:$0xff] %vm1274, %v1350
        %1415 = vst.msk [vmem:[%s224 + $0x48] sm:$0xff] %vm1274, %v1351
        %1416 = vst.msk [vmem:[%s224 + $0x50] sm:$0xff] %vm1274, %v1352
        %1417 = vst.msk [vmem:[%s224 + $0x58] sm:$0xff] %vm1274, %v1353
        %1418 = vst.msk [vmem:[%s224 + $0x60] sm:$0xff] %vm1274, %v1354
        %1419 = vst.msk [vmem:[%s224 + $0x68] sm:$0xff] %vm1274, %v1355
        %1420 = vst.msk [vmem:[%s224 + $0x70] sm:$0xff] %vm1274, %v1356
        %1421 = vst.msk [vmem:[%s224 + $0x78] sm:$0xff] %vm1274, %v1357
        %1422 = vst.msk [vmem:[%s224 + $0x80] sm:$0xff] %vm1274, %v1358
        %1423 = vst.msk [vmem:[%s224 + $0x88] sm:$0xff] %vm1274, %v1359
        %1424 = vst.msk [vmem:[%s224 + $0x90] sm:$0xff] %vm1274, %v1360
        %1425 = vst.msk [vmem:[%s224 + $0x98] sm:$0xff] %vm1274, %v1361
        %1426 = vst.msk [vmem:[%s224 + $0xa0] sm:$0xff] %vm1274, %v1362
        %1427 = vst.msk [vmem:[%s224 + $0xa8] sm:$0xff] %vm1274, %v1363
        %1428 = vst.msk [vmem:[%s224 + $0xb0] sm:$0xff] %vm1274, %v1364
        %1429 = vst.msk [vmem:[%s224 + $0xb8] sm:$0xff] %vm1274, %v1365
        %1430 = vst.msk [vmem:[%s224 + $0xc0] sm:$0xff] %vm1274, %v1366
        %1431 = vst.msk [vmem:[%s224 + $0xc8] sm:$0xff] %vm1274, %v1367
        %1432 = vst.msk [vmem:[%s224 + $0xd0] sm:$0xff] %vm1274, %v1368
        %1433 = vst.msk [vmem:[%s224 + $0xd8] sm:$0xff] %vm1274, %v1369
        %1434 = vst.msk [vmem:[%s224 + $0xe0] sm:$0xff] %vm1274, %v1370
        %1435 = vst.msk [vmem:[%s224 + $0xe8] sm:$0xff] %vm1274, %v1371
        %1436 = vst.msk [vmem:[%s224 + $0xf0] sm:$0xff] %vm1274, %v1372
        %1437 = vst.msk [vmem:[%s224 + $0xf8] sm:$0xff] %vm1274, %v1373
        %1438 = vst.msk [vmem:[%s224 + $0x100] sm:$0xff] %vm1274, %v1374
        %1439 = vst.msk [vmem:[%s224 + $0x108] sm:$0xff] %vm1274, %v1375
        %1440 = vst.msk [vmem:[%s224 + $0x110] sm:$0xff] %vm1274, %v1376
        %1441 = vst.msk [vmem:[%s224 + $0x118] sm:$0xff] %vm1274, %v1377
        %1442 = vst.msk [vmem:[%s224 + $0x120] sm:$0xff] %vm1274, %v1378
        %1443 = vst.msk [vmem:[%s224 + $0x128] sm:$0xff] %vm1274, %v1379
        %1444 = vst.msk [vmem:[%s224 + $0x130] sm:$0xff] %vm1274, %v1380
        %1445 = vst.msk [vmem:[%s224 + $0x138] sm:$0xff] %vm1274, %v1381
        %1446 = vst.msk [vmem:[%s224 + $0x140] sm:$0xff] %vm1274, %v1382
        %1447 = vst.msk [vmem:[%s224 + $0x148] sm:$0xff] %vm1274, %v1383
        %1448 = vst.msk [vmem:[%s224 + $0x150] sm:$0xff] %vm1274, %v1384
        %1449 = vst.msk [vmem:[%s224 + $0x158] sm:$0xff] %vm1274, %v1385
        %1450 = vst.msk [vmem:[%s224 + $0x160] sm:$0xff] %vm1274, %v1386
        %1451 = vst.msk [vmem:[%s224 + $0x168] sm:$0xff] %vm1274, %v1387
        %1452 = vst.msk [vmem:[%s224 + $0x170] sm:$0xff] %vm1274, %v1388
        %1453 = vst.msk [vmem:[%s224 + $0x178] sm:$0xff] %vm1274, %v1389
        %1454 = vst.msk [vmem:[%s224 + $0x180] sm:$0xff] %vm1274, %v1390
        %1455 = vst.msk [vmem:[%s224 + $0x188] sm:$0xff] %vm1274, %v1391
        %1456 = vst.msk [vmem:[%s224 + $0x190] sm:$0xff] %vm1274, %v1392
        %1457 = vst.msk [vmem:[%s224 + $0x198] sm:$0xff] %vm1274, %v1393
        %1458 = vst.msk [vmem:[%s224 + $0x1a0] sm:$0xff] %vm1274, %v1394
        %1459 = vst.msk [vmem:[%s224 + $0x1a8] sm:$0xff] %vm1274, %v1395
        %1460 = vst.msk [vmem:[%s224 + $0x1b0] sm:$0xff] %vm1274, %v1396
        %1461 = vst.msk [vmem:[%s224 + $0x1b8] sm:$0xff] %vm1274, %v1397
        %1462 = vst.msk [vmem:[%s224 + $0x1c0] sm:$0xff] %vm1274, %v1398
        %1463 = vst.msk [vmem:[%s224 + $0x1c8] sm:$0xff] %vm1274, %v1399
        %1464 = vst.msk [vmem:[%s224 + $0x1d0] sm:$0xff] %vm1274, %v1400
        %1465 = vst.msk [vmem:[%s224 + $0x1d8] sm:$0xff] %vm1274, %v1401
        %1466 = vst.msk [vmem:[%s224 + $0x1e0] sm:$0xff] %vm1274, %v1402
        %1467 = vst.msk [vmem:[%s224 + $0x1e8] sm:$0xff] %vm1274, %v1403
        %1468 = vst.msk [vmem:[%s224 + $0x1f0] sm:$0xff] %vm1274, %v1404
        %1469 = vst.msk [vmem:[%s224 + $0x1f8] sm:$0xff] %vm1274, %v1405
      $region36: #{a_call__.11} parent=27 // pred_fallthru
        _
      %s1470 = smul.u32 64, %s18
      %p1471 = scmp.lt.s32.totalorder %s1470, 255
      %s1472 = scalar_select %p1471, %s1470, 255
      %p1473 = scmp.lt.s32.totalorder %s19, 0
      %s1474 = scalar_select %p1473, %s19, 0
      %s1475 = sadd.s32 %s1474, %s1472
      %s1476 = smul.addr %s1475, 8
      %s1477 = scalar_lea.vmem %s2, %s1476
      // Predicated region
      $region37: #{a_call__.11} parent=27 // pred_check
        %p1478 = pneg %p108
      $region38: #{a_call__.11} parent=27 // pred_check_branch
        %1480 = sbr.rel (%p1478) target = $region40
      $region39: #{a_call__.11} parent=27 // pred_region
        %s1481 = smul.u32 64, %s18
      $region40: #{a_call__.11} parent=27 // pred_fallthru
        _
    $region28: #{a_call__.11} parent=5 // pred_fallthru
      _
    %p1482 = scmp.le.s32.totalorder 2, %s8
    // Predicated region
    $region41: #{a_call__.11} parent=5 // pred_check
      %p1483 = pneg %p1482
    $region42: #{a_call__.11} parent=5 // pred_check_branch
      %1485 = sbr.rel (%p1483) target = $region44
    $region43: #{a_call__.11} parent=5 // pred_region
      %s1486 = ssub.s32 %s8, 2
      // Predicated region
      $region45: #{a_call__.11} parent=43 // pred_check
        %p1487 = pneg %p114
      $region46: #{a_call__.11} parent=43 // pred_check_branch
        %1489 = sbr.rel (%p1487) target = $region48
      $region47: #{a_call__.11} parent=43 // pred_region
        %s1490 = smul.u32 64, %s21
        %p1491 = scmp.lt.s32.totalorder %s1490, 255
        %s1492 = scalar_select %p1491, %s1490, 255
        %p1493 = scmp.lt.s32.totalorder %s22, 0
        %s1494 = scalar_select %p1493, %s22, 0
        %s1495 = sadd.s32 %s1494, %s1492
        %s1496 = smul.addr %s1495, 8
        %s1497 = scalar_lea.vmem %s2, %s1496
      $region48: #{a_call__.11} parent=43 // pred_fallthru
        _
    $region44: #{a_call__.11} parent=5 // pred_fallthru
      _
  $region6: #{a_call__.11} parent=0 // loop_footer
    %s12 = sadd.s32 1, %s8
  $region7: #{a_call__.11} parent=0 // loop_footer_branch
    %7 = sbr.rel target = $region3
  $region8: #{a_call__.11} parent=0 // loop_exit
    _

// kernel: a_call__.13
$region0: #{a_call__.13}
  #allocation0 [shape = 'u32[]', space=smem, size = 0x4, offset = 0x4, fixed_abs, tag = 'smem constant byte address 0x4 - core index']
  #allocation1 [shape = 'u32[144,128]{1,0:T(1,128)}', space=vmem, size = 0x12000, scoped, tag = 'internal scratch']
  #allocation2 [shape = 'f32[512,9]{1,0:T(8,128)}', space=vmem, size = 0x40000, scoped, tag = 'scratch operand']
  %s0 = inlined_call_operand.vmem [shape: bf16[2048,108], index: 0, kind: input, shape index: {}]
  %s1 = inlined_call_operand.vmem [shape: bf16[108,9], index: 1, kind: input, shape index: {}]
  %s2 = inlined_call_operand.vmem [shape: f32[2048,9], index: 2, kind: output, shape index: {}]
  %s3 = sld [smem:[#allocation0]]
  $region49: #{a_call__.13} parent=0
    _
  %s5 = ssub.s32 1, %s3
  %s6 = scalar_select 0, %s5, %s3
  loop: start=0, step=1, limit=6
  $region2: #{a_call__.13} parent=0 // loop_pre_header
    _
  $region3: #{a_call__.13} parent=0 // loop_header
    %s8 = sphi 0, %s12
    %p9 = scmp.ge.s32.totalorder %s8, 6
    %s15 = sphi 0, %s34
    %s16 = sphi 0, %s30
    %s17 = sphi 0, %s26
    %s18 = sphi 0, %s15
    %s19 = sphi 0, %s16
    %s20 = sphi 0, %s17
    %s21 = sphi 0, %s18
    %s22 = sphi 0, %s19
    %s23 = sphi 0, %s20
    %s39 = sphi 0, %s41
    %s42 = sphi 0, %s39
    %s43 = sphi 0, %s42
    %s59 = sphi 0, %s43
    %s67 = sphi 0, %s69
    %s70 = sphi 0, %s67
    %s71 = sphi 0, %s70
    %s87 = sphi 0, %s71
    %s95 = sphi 0, %s97
    %s98 = sphi 0, %s95
    %s99 = sphi 0, %s98
    %s115 = sphi 0, %s99
  $region4: #{a_call__.13} parent=0 // loop_header_branch
    %11 = sbr.rel (%p9) target = $region8
  $region5: #{a_call__.13} parent=0 // loop_body
    %s13 = ssub.s32 %s8, 1
    %s14 = ssub.s32 %s8, 2
    %s24 = sadd.s32 1, %s17
    %p25 = scmp.ge.s32.totalorder %s24, 1
    %s26 = scalar_select %p25, 0, %s24
    %s27 = sadd.s32 1, %s16
    %s28 = scalar_select %p25, %s27, %s16
    %p29 = scmp.ge.s32.totalorder %s28, 1
    %s30 = scalar_select %p29, 0, %s28
    %s31 = sadd.s32 1, %s15
    %s32 = scalar_select %p29, %s31, %s15
    %p33 = scmp.ge.s32.totalorder %s32, 4
    %s34 = scalar_select %p33, 0, %s32
    %s35 = ssub.s32 %s15, %s34
    %s36 = ssub.s32 %s17, %s26
    %s37 = sor.u32 %s35, %s36
    %p38 = scmp.eq.s32.totalorder %s37, 0
    %s40 = sadd.s32 %s39, 1
    %s41 = scalar_select %p38, %s39, %s40
    %p44 = pneg %p38
    %p45 = scmp.eq.s32.totalorder %s8, 3
    %p46 = por %p44, %p45
    %p47 = scmp.ne.s32.totalorder %s39, %s42
    %p48 = scmp.eq.s32.totalorder %s8, 0
    %p49 = por %p47, %p48
    %p50 = scmp.ne.s32.totalorder %s39, %s42
    %p51 = scmp.eq.s32.totalorder %s13, 3
    %p52 = por %p50, %p51
    %p53 = scmp.ne.s32.totalorder %s42, %s43
    %p54 = scmp.eq.s32.totalorder %s13, 0
    %p55 = por %p53, %p54
    %p56 = scmp.ne.s32.totalorder %s42, %s43
    %p57 = scmp.eq.s32.totalorder %s14, 3
    %p58 = por %p56, %p57
    %p60 = scmp.ne.s32.totalorder %s43, %s59
    %p61 = scmp.eq.s32.totalorder %s14, 0
    %p62 = por %p60, %p61
    %s63 = ssub.s32 %s17, %s26
    %s64 = ssub.s32 %s16, %s30
    %s65 = sor.u32 %s63, %s64
    %p66 = scmp.eq.s32.totalorder %s65, 0
    %s68 = sadd.s32 %s67, 1
    %s69 = scalar_select %p66, %s67, %s68
    %p72 = pneg %p66
    %p73 = scmp.eq.s32.totalorder %s8, 3
    %p74 = por %p72, %p73
    %p75 = scmp.ne.s32.totalorder %s67, %s70
    %p76 = scmp.eq.s32.totalorder %s8, 0
    %p77 = por %p75, %p76
    %p78 = scmp.ne.s32.totalorder %s67, %s70
    %p79 = scmp.eq.s32.totalorder %s13, 3
    %p80 = por %p78, %p79
    %p81 = scmp.ne.s32.totalorder %s70, %s71
    %p82 = scmp.eq.s32.totalorder %s13, 0
    %p83 = por %p81, %p82
    %p84 = scmp.ne.s32.totalorder %s70, %s71
    %p85 = scmp.eq.s32.totalorder %s14, 3
    %p86 = por %p84, %p85
    %p88 = scmp.ne.s32.totalorder %s71, %s87
    %p89 = scmp.eq.s32.totalorder %s14, 0
    %p90 = por %p88, %p89
    %s91 = ssub.s32 %s15, %s34
    %s92 = ssub.s32 %s16, %s30
    %s93 = sor.u32 %s91, %s92
    %p94 = scmp.eq.s32.totalorder %s93, 0
    %s96 = sadd.s32 %s95, 1
    %s97 = scalar_select %p94, %s95, %s96
    %p100 = pneg %p94
    %p101 = scmp.eq.s32.totalorder %s8, 3
    %p102 = por %p100, %p101
    %p103 = scmp.ne.s32.totalorder %s95, %s98
    %p104 = scmp.eq.s32.totalorder %s8, 0
    %p105 = por %p103, %p104
    %p106 = scmp.ne.s32.totalorder %s95, %s98
    %p107 = scmp.eq.s32.totalorder %s13, 3
    %p108 = por %p106, %p107
    %p109 = scmp.ne.s32.totalorder %s98, %s99
    %p110 = scmp.eq.s32.totalorder %s13, 0
    %p111 = por %p109, %p110
    %p112 = scmp.ne.s32.totalorder %s98, %s99
    %p113 = scmp.eq.s32.totalorder %s14, 3
    %p114 = por %p112, %p113
    %p116 = scmp.ne.s32.totalorder %s99, %s115
    %p117 = scmp.eq.s32.totalorder %s14, 0
    %p118 = por %p116, %p117
    %p119 = scmp.le.s32.totalorder 1, %s8
    %p120 = scmp.lt.s32.totalorder %s8, 5
    %p121 = pnand %p119, %p120
    %p122 = pneg %p121
    // Predicated region
    $region9: #{a_call__.13} parent=5 // pred_check
      _
    $region10: #{a_call__.13} parent=5 // pred_check_branch
      %124 = sbr.rel (%p121) target = $region12
    $region11: #{a_call__.13} parent=5 // pred_region
      %s125 = ssub.s32 %s8, 1
      // Predicated region
      $region13: #{a_call__.13} parent=11 // pred_check
        %p126 = pneg %p83
      $region14: #{a_call__.13} parent=11 // pred_check_branch
        %128 = sbr.rel (%p126) target = $region16
      $region15: #{a_call__.13} parent=11 // pred_region
        %s129 = smul.u32 14, %s20
        %p130 = scmp.lt.s32.totalorder %s129, 13
        %s131 = scalar_select %p130, %s129, 13
        %p132 = scmp.lt.s32.totalorder %s19, 0
        %s133 = scalar_select %p132, %s19, 0
        %s134 = sadd.s32 %s133, %s131
        %s135 = smul.addr %s134, 4
        %s136 = scalar_lea.vmem %s1, %s135
        %s137 = smul.u32 14, %s20
      $region16: #{a_call__.13} parent=11 // pred_fallthru
        _
    $region12: #{a_call__.13} parent=5 // pred_fallthru
      _
    %p138 = scmp.lt.s32.totalorder %s8, 4
    // Predicated region
    $region17: #{a_call__.13} parent=5 // pred_check
      %p139 = pneg %p138
    $region18: #{a_call__.13} parent=5 // pred_check_branch
      %141 = sbr.rel (%p139) target = $region20
    $region19: #{a_call__.13} parent=5 // pred_region
      // Predicated region
      $region21: #{a_call__.13} parent=19 // pred_check
        %p142 = pneg %p49
      $region22: #{a_call__.13} parent=19 // pred_check_branch
        %144 = sbr.rel (%p142) target = $region24
      $region23: #{a_call__.13} parent=19 // pred_region
        %s145 = smul.u32 64, %s15
        %p146 = scmp.lt.s32.totalorder %s145, 255
        %s147 = scalar_select %p146, %s145, 255
        %p148 = scmp.lt.s32.totalorder %s17, 0
        %s149 = scalar_select %p148, %s17, 0
        %s150 = sadd.s32 %s149, %s147
        %s151 = smul.addr %s150, 4
        %s152 = scalar_lea.vmem %s0, %s151
        %s153 = smul.u32 64, %s15
      $region24: #{a_call__.13} parent=19 // pred_fallthru
        _
    $region20: #{a_call__.13} parent=5 // pred_fallthru
      _
    %p154 = scmp.le.s32.totalorder 1, %s8
    %p155 = scmp.lt.s32.totalorder %s8, 5
    %p156 = pnand %p154, %p155
    %p157 = pneg %p156
    // Predicated region
    $region25: #{a_call__.13} parent=5 // pred_check
      _
    $region26: #{a_call__.13} parent=5 // pred_check_branch
      %159 = sbr.rel (%p156) target = $region28
    $region27: #{a_call__.13} parent=5 // pred_region
      %s160 = ssub.s32 %s8, 1
      %s161 = smul.u32 64, %s18
      %p162 = scmp.lt.s32.totalorder %s161, 255
      %s163 = scalar_select %p162, %s161, 255
      %p164 = scmp.lt.s32.totalorder %s20, 0
      %s165 = scalar_select %p164, %s20, 0
      %s166 = sadd.s32 %s165, %s163
      %s167 = smul.addr %s166, 4
      %s168 = scalar_lea.vmem %s0, %s167
      %p169 = pneg %p55
      %p170 = pneg %p52
      %s171 = smul.u32 14, %s20
      %p172 = scmp.lt.s32.totalorder %s171, 13
      %s173 = scalar_select %p172, %s171, 13
      %p174 = scmp.lt.s32.totalorder %s19, 0
      %s175 = scalar_select %p174, %s19, 0
      %s176 = sadd.s32 %s175, %s173
      %s177 = smul.addr %s176, 4
      %s178 = scalar_lea.vmem %s1, %s177
      %p179 = pneg %p83
      %p180 = pneg %p80
      %p181 = pneg %p111
      %p182 = pneg %p108
      %s183 = smul.u32 64, %s18
      %p184 = scmp.lt.s32.totalorder %s183, 255
      %s185 = scalar_select %p184, %s183, 255
      %p186 = scmp.lt.s32.totalorder %s19, 0
      %s187 = scalar_select %p186, %s19, 0
      %s188 = sadd.s32 %s187, %s185
      %s189 = smul.addr %s188, 8
      %s190 = scalar_lea.vmem %s2, %s189
      %s191 = smul.u32 64, %s18
      %p192 = scmp.lt.s32.totalorder %s191, 255
      %s193 = scalar_select %p192, %s191, 255
      %p194 = scmp.lt.s32.totalorder %s20, 0
      %s195 = scalar_select %p194, %s20, 0
      %s196 = sadd.s32 %s195, %s193
      %s197 = smul.addr %s196, 4
      %s198 = scalar_lea.vmem %s0, %s197
      %s199 = smul.u32 64, %s18
      %s200 = smul.u32 14, %s20
      %p201 = scmp.lt.s32.totalorder %s200, 13
      %s202 = scalar_select %p201, %s200, 13
      %p203 = scmp.lt.s32.totalorder %s19, 0
      %s204 = scalar_select %p203, %s19, 0
      %s205 = sadd.s32 %s204, %s202
      %s206 = smul.addr %s205, 4
      %s207 = scalar_lea.vmem %s1, %s206
      %s208 = smul.u32 14, %s20
      %s209 = smul.u32 64, %s18
      %p210 = scmp.lt.s32.totalorder %s209, 255
      %s211 = scalar_select %p210, %s209, 255
      %p212 = scmp.lt.s32.totalorder %s19, 0
      %s213 = scalar_select %p212, %s19, 0
      %s214 = sadd.s32 %s213, %s211
      %s215 = smul.addr %s214, 8
      %s216 = scalar_lea.vmem %s2, %s215
      %s217 = smul.u32 64, %s18
      %p219 = scmp.eq.s32.totalorder %s20, 0
      // Predicated region
      $region29: #{a_call__.13} parent=27 // pred_check
        %p220 = pneg %p219
      $region30: #{a_call__.13} parent=27 // pred_check_branch
        %222 = sbr.rel (%p220) target = $region32
      $region31: #{a_call__.13} parent=27 // pred_region
        %vm223 = vcmask 72704
        %224 = vst.msk [vmem:[#allocation2] sm:$0xff] %vm223, 0.0
        %225 = vst.msk [vmem:[#allocation2 + $0x8] sm:$0xff] %vm223, 0.0
        %226 = vst.msk [vmem:[#allocation2 + $0x10] sm:$0xff] %vm223, 0.0
        %227 = vst.msk [vmem:[#allocation2 + $0x18] sm:$0xff] %vm223, 0.0
        %228 = vst.msk [vmem:[#allocation2 + $0x20] sm:$0xff] %vm223, 0.0
        %229 = vst.msk [vmem:[#allocation2 + $0x28] sm:$0xff] %vm223, 0.0
        %230 = vst.msk [vmem:[#allocation2 + $0x30] sm:$0xff] %vm223, 0.0
        %231 = vst.msk [vmem:[#allocation2 + $0x38] sm:$0xff] %vm223, 0.0
        %232 = vst.msk [vmem:[#allocation2 + $0x40] sm:$0xff] %vm223, 0.0
        %233 = vst.msk [vmem:[#allocation2 + $0x48] sm:$0xff] %vm223, 0.0
        %234 = vst.msk [vmem:[#allocation2 + $0x50] sm:$0xff] %vm223, 0.0
        %235 = vst.msk [vmem:[#allocation2 + $0x58] sm:$0xff] %vm223, 0.0
        %236 = vst.msk [vmem:[#allocation2 + $0x60] sm:$0xff] %vm223, 0.0
        %237 = vst.msk [vmem:[#allocation2 + $0x68] sm:$0xff] %vm223, 0.0
        %238 = vst.msk [vmem:[#allocation2 + $0x70] sm:$0xff] %vm223, 0.0
        %239 = vst.msk [vmem:[#allocation2 + $0x78] sm:$0xff] %vm223, 0.0
        %240 = vst.msk [vmem:[#allocation2 + $0x80] sm:$0xff] %vm223, 0.0
        %241 = vst.msk [vmem:[#allocation2 + $0x88] sm:$0xff] %vm223, 0.0
        %242 = vst.msk [vmem:[#allocation2 + $0x90] sm:$0xff] %vm223, 0.0
        %243 = vst.msk [vmem:[#allocation2 + $0x98] sm:$0xff] %vm223, 0.0
        %244 = vst.msk [vmem:[#allocation2 + $0xa0] sm:$0xff] %vm223, 0.0
        %245 = vst.msk [vmem:[#allocation2 + $0xa8] sm:$0xff] %vm223, 0.0
        %246 = vst.msk [vmem:[#allocation2 + $0xb0] sm:$0xff] %vm223, 0.0
        %247 = vst.msk [vmem:[#allocation2 + $0xb8] sm:$0xff] %vm223, 0.0
        %248 = vst.msk [vmem:[#allocation2 + $0xc0] sm:$0xff] %vm223, 0.0
        %249 = vst.msk [vmem:[#allocation2 + $0xc8] sm:$0xff] %vm223, 0.0
        %250 = vst.msk [vmem:[#allocation2 + $0xd0] sm:$0xff] %vm223, 0.0
        %251 = vst.msk [vmem:[#allocation2 + $0xd8] sm:$0xff] %vm223, 0.0
        %252 = vst.msk [vmem:[#allocation2 + $0xe0] sm:$0xff] %vm223, 0.0
        %253 = vst.msk [vmem:[#allocation2 + $0xe8] sm:$0xff] %vm223, 0.0
        %254 = vst.msk [vmem:[#allocation2 + $0xf0] sm:$0xff] %vm223, 0.0
        %255 = vst.msk [vmem:[#allocation2 + $0xf8] sm:$0xff] %vm223, 0.0
        %256 = vst.msk [vmem:[#allocation2 + $0x100] sm:$0xff] %vm223, 0.0
        %257 = vst.msk [vmem:[#allocation2 + $0x108] sm:$0xff] %vm223, 0.0
        %258 = vst.msk [vmem:[#allocation2 + $0x110] sm:$0xff] %vm223, 0.0
        %259 = vst.msk [vmem:[#allocation2 + $0x118] sm:$0xff] %vm223, 0.0
        %260 = vst.msk [vmem:[#allocation2 + $0x120] sm:$0xff] %vm223, 0.0
        %261 = vst.msk [vmem:[#allocation2 + $0x128] sm:$0xff] %vm223, 0.0
        %262 = vst.msk [vmem:[#allocation2 + $0x130] sm:$0xff] %vm223, 0.0
        %263 = vst.msk [vmem:[#allocation2 + $0x138] sm:$0xff] %vm223, 0.0
        %264 = vst.msk [vmem:[#allocation2 + $0x140] sm:$0xff] %vm223, 0.0
        %265 = vst.msk [vmem:[#allocation2 + $0x148] sm:$0xff] %vm223, 0.0
        %266 = vst.msk [vmem:[#allocation2 + $0x150] sm:$0xff] %vm223, 0.0
        %267 = vst.msk [vmem:[#allocation2 + $0x158] sm:$0xff] %vm223, 0.0
        %268 = vst.msk [vmem:[#allocation2 + $0x160] sm:$0xff] %vm223, 0.0
        %269 = vst.msk [vmem:[#allocation2 + $0x168] sm:$0xff] %vm223, 0.0
        %270 = vst.msk [vmem:[#allocation2 + $0x170] sm:$0xff] %vm223, 0.0
        %271 = vst.msk [vmem:[#allocation2 + $0x178] sm:$0xff] %vm223, 0.0
        %272 = vst.msk [vmem:[#allocation2 + $0x180] sm:$0xff] %vm223, 0.0
        %273 = vst.msk [vmem:[#allocation2 + $0x188] sm:$0xff] %vm223, 0.0
        %274 = vst.msk [vmem:[#allocation2 + $0x190] sm:$0xff] %vm223, 0.0
        %275 = vst.msk [vmem:[#allocation2 + $0x198] sm:$0xff] %vm223, 0.0
        %276 = vst.msk [vmem:[#allocation2 + $0x1a0] sm:$0xff] %vm223, 0.0
        %277 = vst.msk [vmem:[#allocation2 + $0x1a8] sm:$0xff] %vm223, 0.0
        %278 = vst.msk [vmem:[#allocation2 + $0x1b0] sm:$0xff] %vm223, 0.0
        %279 = vst.msk [vmem:[#allocation2 + $0x1b8] sm:$0xff] %vm223, 0.0
        %280 = vst.msk [vmem:[#allocation2 + $0x1c0] sm:$0xff] %vm223, 0.0
        %281 = vst.msk [vmem:[#allocation2 + $0x1c8] sm:$0xff] %vm223, 0.0
        %282 = vst.msk [vmem:[#allocation2 + $0x1d0] sm:$0xff] %vm223, 0.0
        %283 = vst.msk [vmem:[#allocation2 + $0x1d8] sm:$0xff] %vm223, 0.0
        %284 = vst.msk [vmem:[#allocation2 + $0x1e0] sm:$0xff] %vm223, 0.0
        %285 = vst.msk [vmem:[#allocation2 + $0x1e8] sm:$0xff] %vm223, 0.0
        %286 = vst.msk [vmem:[#allocation2 + $0x1f0] sm:$0xff] %vm223, 0.0
        %287 = vst.msk [vmem:[#allocation2 + $0x1f8] sm:$0xff] %vm223, 0.0
      $region32: #{a_call__.13} parent=27 // pred_fallthru
        _
      %v288 = vld [vmem:[#allocation2] sm:$0xff]
      %v289 = vld [vmem:[#allocation2 + $0x8] sm:$0xff]
      %v290 = vld [vmem:[#allocation2 + $0x10] sm:$0xff]
      %v291 = vld [vmem:[#allocation2 + $0x18] sm:$0xff]
      %v292 = vld [vmem:[#allocation2 + $0x20] sm:$0xff]
      %v293 = vld [vmem:[#allocation2 + $0x28] sm:$0xff]
      %v294 = vld [vmem:[#allocation2 + $0x30] sm:$0xff]
      %v295 = vld [vmem:[#allocation2 + $0x38] sm:$0xff]
      %v296 = vld [vmem:[#allocation2 + $0x40] sm:$0xff]
      %v297 = vld [vmem:[#allocation2 + $0x48] sm:$0xff]
      %v298 = vld [vmem:[#allocation2 + $0x50] sm:$0xff]
      %v299 = vld [vmem:[#allocation2 + $0x58] sm:$0xff]
      %v300 = vld [vmem:[#allocation2 + $0x60] sm:$0xff]
      %v301 = vld [vmem:[#allocation2 + $0x68] sm:$0xff]
      %v302 = vld [vmem:[#allocation2 + $0x70] sm:$0xff]
      %v303 = vld [vmem:[#allocation2 + $0x78] sm:$0xff]
      %v304 = vld [vmem:[#allocation2 + $0x80] sm:$0xff]
      %v305 = vld [vmem:[#allocation2 + $0x88] sm:$0xff]
      %v306 = vld [vmem:[#allocation2 + $0x90] sm:$0xff]
      %v307 = vld [vmem:[#allocation2 + $0x98] sm:$0xff]
      %v308 = vld [vmem:[#allocation2 + $0xa0] sm:$0xff]
      %v309 = vld [vmem:[#allocation2 + $0xa8] sm:$0xff]
      %v310 = vld [vmem:[#allocation2 + $0xb0] sm:$0xff]
      %v311 = vld [vmem:[#allocation2 + $0xb8] sm:$0xff]
      %v312 = vld [vmem:[#allocation2 + $0xc0] sm:$0xff]
      %v313 = vld [vmem:[#allocation2 + $0xc8] sm:$0xff]
      %v314 = vld [vmem:[#allocation2 + $0xd0] sm:$0xff]
      %v315 = vld [vmem:[#allocation2 + $0xd8] sm:$0xff]
      %v316 = vld [vmem:[#allocation2 + $0xe0] sm:$0xff]
      %v317 = vld [vmem:[#allocation2 + $0xe8] sm:$0xff]
      %v318 = vld [vmem:[#allocation2 + $0xf0] sm:$0xff]
      %v319 = vld [vmem:[#allocation2 + $0xf8] sm:$0xff]
      %v320 = vld [vmem:[#allocation2 + $0x100] sm:$0xff]
      %v321 = vld [vmem:[#allocation2 + $0x108] sm:$0xff]
      %v322 = vld [vmem:[#allocation2 + $0x110] sm:$0xff]
      %v323 = vld [vmem:[#allocation2 + $0x118] sm:$0xff]
      %v324 = vld [vmem:[#allocation2 + $0x120] sm:$0xff]
      %v325 = vld [vmem:[#allocation2 + $0x128] sm:$0xff]
      %v326 = vld [vmem:[#allocation2 + $0x130] sm:$0xff]
      %v327 = vld [vmem:[#allocation2 + $0x138] sm:$0xff]
      %v328 = vld [vmem:[#allocation2 + $0x140] sm:$0xff]
      %v329 = vld [vmem:[#allocation2 + $0x148] sm:$0xff]
      %v330 = vld [vmem:[#allocation2 + $0x150] sm:$0xff]
      %v331 = vld [vmem:[#allocation2 + $0x158] sm:$0xff]
      %v332 = vld [vmem:[#allocation2 + $0x160] sm:$0xff]
      %v333 = vld [vmem:[#allocation2 + $0x168] sm:$0xff]
      %v334 = vld [vmem:[#allocation2 + $0x170] sm:$0xff]
      %v335 = vld [vmem:[#allocation2 + $0x178] sm:$0xff]
      %v336 = vld [vmem:[#allocation2 + $0x180] sm:$0xff]
      %v337 = vld [vmem:[#allocation2 + $0x188] sm:$0xff]
      %v338 = vld [vmem:[#allocation2 + $0x190] sm:$0xff]
      %v339 = vld [vmem:[#allocation2 + $0x198] sm:$0xff]
      %v340 = vld [vmem:[#allocation2 + $0x1a0] sm:$0xff]
      %v341 = vld [vmem:[#allocation2 + $0x1a8] sm:$0xff]
      %v342 = vld [vmem:[#allocation2 + $0x1b0] sm:$0xff]
      %v343 = vld [vmem:[#allocation2 + $0x1b8] sm:$0xff]
      %v344 = vld [vmem:[#allocation2 + $0x1c0] sm:$0xff]
      %v345 = vld [vmem:[#allocation2 + $0x1c8] sm:$0xff]
      %v346 = vld [vmem:[#allocation2 + $0x1d0] sm:$0xff]
      %v347 = vld [vmem:[#allocation2 + $0x1d8] sm:$0xff]
      %v348 = vld [vmem:[#allocation2 + $0x1e0] sm:$0xff]
      %v349 = vld [vmem:[#allocation2 + $0x1e8] sm:$0xff]
      %v350 = vld [vmem:[#allocation2 + $0x1f0] sm:$0xff]
      %v351 = vld [vmem:[#allocation2 + $0x1f8] sm:$0xff]
      %v352 = vld [vmem:[%s198] sm:$0xf]
      %v353 = vld [vmem:[%s198 + $0x4] sm:$0xf]
      %v354 = vld [vmem:[%s198 + $0x8] sm:$0xf]
      %v355 = vld [vmem:[%s198 + $0xc] sm:$0xf]
      %v356 = vld [vmem:[%s198 + $0x10] sm:$0xf]
      %v357 = vld [vmem:[%s198 + $0x14] sm:$0xf]
      %v358 = vld [vmem:[%s198 + $0x18] sm:$0xf]
      %v359 = vld [vmem:[%s198 + $0x1c] sm:$0xf]
      %v360 = vld [vmem:[%s198 + $0x20] sm:$0xf]
      %v361 = vld [vmem:[%s198 + $0x24] sm:$0xf]
      %v362 = vld [vmem:[%s198 + $0x28] sm:$0xf]
      %v363 = vld [vmem:[%s198 + $0x2c] sm:$0xf]
      %v364 = vld [vmem:[%s198 + $0x30] sm:$0xf]
      %v365 = vld [vmem:[%s198 + $0x34] sm:$0xf]
      %v366 = vld [vmem:[%s198 + $0x38] sm:$0xf]
      %v367 = vld [vmem:[%s198 + $0x3c] sm:$0xf]
      %v368 = vld [vmem:[%s198 + $0x40] sm:$0xf]
      %v369 = vld [vmem:[%s198 + $0x44] sm:$0xf]
      %v370 = vld [vmem:[%s198 + $0x48] sm:$0xf]
      %v371 = vld [vmem:[%s198 + $0x4c] sm:$0xf]
      %v372 = vld [vmem:[%s198 + $0x50] sm:$0xf]
      %v373 = vld [vmem:[%s198 + $0x54] sm:$0xf]
      %v374 = vld [vmem:[%s198 + $0x58] sm:$0xf]
      %v375 = vld [vmem:[%s198 + $0x5c] sm:$0xf]
      %v376 = vld [vmem:[%s198 + $0x60] sm:$0xf]
      %v377 = vld [vmem:[%s198 + $0x64] sm:$0xf]
      %v378 = vld [vmem:[%s198 + $0x68] sm:$0xf]
      %v379 = vld [vmem:[%s198 + $0x6c] sm:$0xf]
      %v380 = vld [vmem:[%s198 + $0x70] sm:$0xf]
      %v381 = vld [vmem:[%s198 + $0x74] sm:$0xf]
      %v382 = vld [vmem:[%s198 + $0x78] sm:$0xf]
      %v383 = vld [vmem:[%s198 + $0x7c] sm:$0xf]
      %v384 = vld [vmem:[%s198 + $0x80] sm:$0xf]
      %v385 = vld [vmem:[%s198 + $0x84] sm:$0xf]
      %v386 = vld [vmem:[%s198 + $0x88] sm:$0xf]
      %v387 = vld [vmem:[%s198 + $0x8c] sm:$0xf]
      %v388 = vld [vmem:[%s198 + $0x90] sm:$0xf]
      %v389 = vld [vmem:[%s198 + $0x94] sm:$0xf]
      %v390 = vld [vmem:[%s198 + $0x98] sm:$0xf]
      %v391 = vld [vmem:[%s198 + $0x9c] sm:$0xf]
      %v392 = vld [vmem:[%s198 + $0xa0] sm:$0xf]
      %v393 = vld [vmem:[%s198 + $0xa4] sm:$0xf]
      %v394 = vld [vmem:[%s198 + $0xa8] sm:$0xf]
      %v395 = vld [vmem:[%s198 + $0xac] sm:$0xf]
      %v396 = vld [vmem:[%s198 + $0xb0] sm:$0xf]
      %v397 = vld [vmem:[%s198 + $0xb4] sm:$0xf]
      %v398 = vld [vmem:[%s198 + $0xb8] sm:$0xf]
      %v399 = vld [vmem:[%s198 + $0xbc] sm:$0xf]
      %v400 = vld [vmem:[%s198 + $0xc0] sm:$0xf]
      %v401 = vld [vmem:[%s198 + $0xc4] sm:$0xf]
      %v402 = vld [vmem:[%s198 + $0xc8] sm:$0xf]
      %v403 = vld [vmem:[%s198 + $0xcc] sm:$0xf]
      %v404 = vld [vmem:[%s198 + $0xd0] sm:$0xf]
      %v405 = vld [vmem:[%s198 + $0xd4] sm:$0xf]
      %v406 = vld [vmem:[%s198 + $0xd8] sm:$0xf]
      %v407 = vld [vmem:[%s198 + $0xdc] sm:$0xf]
      %v408 = vld [vmem:[%s198 + $0xe0] sm:$0xf]
      %v409 = vld [vmem:[%s198 + $0xe4] sm:$0xf]
      %v410 = vld [vmem:[%s198 + $0xe8] sm:$0xf]
      %v411 = vld [vmem:[%s198 + $0xec] sm:$0xf]
      %v412 = vld [vmem:[%s198 + $0xf0] sm:$0xf]
      %v413 = vld [vmem:[%s198 + $0xf4] sm:$0xf]
      %v414 = vld [vmem:[%s198 + $0xf8] sm:$0xf]
      %v415 = vld [vmem:[%s198 + $0xfc] sm:$0xf]
      %v416 = vld [vmem:[%s207] sm:$0xf]
      %v417 = vld [vmem:[%s207 + $0x4] sm:$0xf]
      %v418 = vld [vmem:[%s207 + $0x8] sm:$0xf]
      %v419 = vld [vmem:[%s207 + $0xc] sm:$0xf]
      %v420 = vld [vmem:[%s207 + $0x10] sm:$0xf]
      %v421 = vld [vmem:[%s207 + $0x14] sm:$0xf]
      %v422 = vld [vmem:[%s207 + $0x18] sm:$0xf]
      %v423 = vld [vmem:[%s207 + $0x1c] sm:$0xf]
      %v424 = vld [vmem:[%s207 + $0x20] sm:$0xf]
      %v425 = vld [vmem:[%s207 + $0x24] sm:$0xf]
      %v426 = vld [vmem:[%s207 + $0x28] sm:$0xf]
      %v427 = vld [vmem:[%s207 + $0x2c] sm:$0xf]
      %v428 = vld [vmem:[%s207 + $0x30] sm:$0xf]
      %v429 = vld [vmem:[%s207 + $0x34] sm:$0x3]
      %v494 = vunpack.c.l.b16 %v352
      %v495 = vunpack.c.l.b16 %v353
      %v496 = vunpack.c.l.b16 %v354
      %v497 = vunpack.c.l.b16 %v355
      %v498 = vunpack.c.l.b16 %v356
      %v499 = vunpack.c.l.b16 %v357
      %v500 = vunpack.c.l.b16 %v358
      %v501 = vunpack.c.l.b16 %v359
      %v502 = vunpack.c.l.b16 %v360
      %v503 = vunpack.c.l.b16 %v361
      %v504 = vunpack.c.l.b16 %v362
      %v505 = vunpack.c.l.b16 %v363
      %v506 = vunpack.c.l.b16 %v364
      %v507 = vunpack.c.l.b16 %v365
      %v508 = vunpack.c.l.b16 %v366
      %v509 = vunpack.c.l.b16 %v367
      %v510 = vunpack.c.l.b16 %v368
      %v511 = vunpack.c.l.b16 %v369
      %v512 = vunpack.c.l.b16 %v370
      %v513 = vunpack.c.l.b16 %v371
      %v514 = vunpack.c.l.b16 %v372
      %v515 = vunpack.c.l.b16 %v373
      %v516 = vunpack.c.l.b16 %v374
      %v517 = vunpack.c.l.b16 %v375
      %v518 = vunpack.c.l.b16 %v376
      %v519 = vunpack.c.l.b16 %v377
      %v520 = vunpack.c.l.b16 %v378
      %v521 = vunpack.c.l.b16 %v379
      %v522 = vunpack.c.l.b16 %v380
      %v523 = vunpack.c.l.b16 %v381
      %v524 = vunpack.c.l.b16 %v382
      %v525 = vunpack.c.l.b16 %v383
      %v526 = vunpack.c.l.b16 %v384
      %v527 = vunpack.c.l.b16 %v385
      %v528 = vunpack.c.l.b16 %v386
      %v529 = vunpack.c.l.b16 %v387
      %v530 = vunpack.c.l.b16 %v388
      %v531 = vunpack.c.l.b16 %v389
      %v532 = vunpack.c.l.b16 %v390
      %v533 = vunpack.c.l.b16 %v391
      %v534 = vunpack.c.l.b16 %v392
      %v535 = vunpack.c.l.b16 %v393
      %v536 = vunpack.c.l.b16 %v394
      %v537 = vunpack.c.l.b16 %v395
      %v538 = vunpack.c.l.b16 %v396
      %v539 = vunpack.c.l.b16 %v397
      %v540 = vunpack.c.l.b16 %v398
      %v541 = vunpack.c.l.b16 %v399
      %v542 = vunpack.c.l.b16 %v400
      %v543 = vunpack.c.l.b16 %v401
      %v544 = vunpack.c.l.b16 %v402
      %v545 = vunpack.c.l.b16 %v403
      %v546 = vunpack.c.l.b16 %v404
      %v547 = vunpack.c.l.b16 %v405
      %v548 = vunpack.c.l.b16 %v406
      %v549 = vunpack.c.l.b16 %v407
      %v550 = vunpack.c.l.b16 %v408
      %v551 = vunpack.c.l.b16 %v409
      %v552 = vunpack.c.l.b16 %v410
      %v553 = vunpack.c.l.b16 %v411
      %v554 = vunpack.c.l.b16 %v412
      %v555 = vunpack.c.l.b16 %v413
      %v556 = vunpack.c.l.b16 %v414
      %v557 = vunpack.c.l.b16 %v415
      %v558 = vpack.c.b16 %v495, %v494
      %v559 = vpack.c.b16 %v497, %v496
      %v560 = vpack.c.b16 %v499, %v498
      %v561 = vpack.c.b16 %v501, %v500
      %v562 = vpack.c.b16 %v503, %v502
      %v563 = vpack.c.b16 %v505, %v504
      %v564 = vpack.c.b16 %v507, %v506
      %v565 = vpack.c.b16 %v509, %v508
      %v566 = vpack.c.b16 %v511, %v510
      %v567 = vpack.c.b16 %v513, %v512
      %v568 = vpack.c.b16 %v515, %v514
      %v569 = vpack.c.b16 %v517, %v516
      %v570 = vpack.c.b16 %v519, %v518
      %v571 = vpack.c.b16 %v521, %v520
      %v572 = vpack.c.b16 %v523, %v522
      %v573 = vpack.c.b16 %v525, %v524
      %v574 = vpack.c.b16 %v527, %v526
      %v575 = vpack.c.b16 %v529, %v528
      %v576 = vpack.c.b16 %v531, %v530
      %v577 = vpack.c.b16 %v533, %v532
      %v578 = vpack.c.b16 %v535, %v534
      %v579 = vpack.c.b16 %v537, %v536
      %v580 = vpack.c.b16 %v539, %v538
      %v581 = vpack.c.b16 %v541, %v540
      %v582 = vpack.c.b16 %v543, %v542
      %v583 = vpack.c.b16 %v545, %v544
      %v584 = vpack.c.b16 %v547, %v546
      %v585 = vpack.c.b16 %v549, %v548
      %v586 = vpack.c.b16 %v551, %v550
      %v587 = vpack.c.b16 %v553, %v552
      %v588 = vpack.c.b16 %v555, %v554
      %v589 = vpack.c.b16 %v557, %v556
      %v604 = vunpack.c.l.b16 %v416
      %v605 = vunpack.c.l.b16 %v417
      %v606 = vunpack.c.l.b16 %v418
      %v607 = vunpack.c.l.b16 %v419
      %v608 = vunpack.c.l.b16 %v420
      %v609 = vunpack.c.l.b16 %v421
      %v610 = vunpack.c.l.b16 %v422
      %v611 = vunpack.c.l.b16 %v423
      %v612 = vunpack.c.l.b16 %v424
      %v613 = vunpack.c.l.b16 %v425
      %v614 = vunpack.c.l.b16 %v426
      %v615 = vunpack.c.l.b16 %v427
      %v616 = vunpack.c.l.b16 %v428
      %v617 = vunpack.c.l.b16 %v429
      %v618 = vpack.c.b16 %v605, %v604
      %v619 = vpack.c.b16 %v607, %v606
      %v620 = vpack.c.b16 %v609, %v608
      %v621 = vpack.c.b16 %v611, %v610
      %v622 = vpack.c.b16 %v613, %v612
      %v623 = vpack.c.b16 %v615, %v614
      %v624 = vpack.c.b16 %v617, %v616
      %vm631 = vcmask 883712
      %v633 = vsel %vm631, %v558, 0
      %v636 = vsel %vm631, %v559, 0
      %v639 = vsel %vm631, %v560, 0
      %v642 = vsel %vm631, %v561, 0
      %v645 = vsel %vm631, %v562, 0
      %v648 = vsel %vm631, %v563, 0
      %v651 = vsel %vm631, %v564, 0
      %v654 = vsel %vm631, %v565, 0
      %v657 = vsel %vm631, %v566, 0
      %v660 = vsel %vm631, %v567, 0
      %v663 = vsel %vm631, %v568, 0
      %v666 = vsel %vm631, %v569, 0
      %v669 = vsel %vm631, %v570, 0
      %v672 = vsel %vm631, %v571, 0
      %v675 = vsel %vm631, %v572, 0
      %v678 = vsel %vm631, %v573, 0
      %v681 = vsel %vm631, %v574, 0
      %v684 = vsel %vm631, %v575, 0
      %v687 = vsel %vm631, %v576, 0
      %v690 = vsel %vm631, %v577, 0
      %v693 = vsel %vm631, %v578, 0
      %v696 = vsel %vm631, %v579, 0
      %v699 = vsel %vm631, %v580, 0
      %v702 = vsel %vm631, %v581, 0
      %v705 = vsel %vm631, %v582, 0
      %v708 = vsel %vm631, %v583, 0
      %v711 = vsel %vm631, %v584, 0
      %v714 = vsel %vm631, %v585, 0
      %v717 = vsel %vm631, %v586, 0
      %v720 = vsel %vm631, %v587, 0
      %v723 = vsel %vm631, %v588, 0
      %v726 = vsel %vm631, %v589, 0
      %vm728 = vcmask 1045504
      %v730 = vsel %vm728, %v624, 0
      %732 = vmatprep.subr.bf16.mxu0 0
      %733 = vmatpush1.bf16.msra.mxu0 %v618
      %734 = vmatprep.subr.bf16.mxu0 0
      %735 = vmatpush1.bf16.msra.mxu0 %v619
      %736 = vmatprep.subr.bf16.mxu0 0
      %737 = vmatpush1.bf16.msra.mxu0 %v620
      %738 = vmatprep.subr.bf16.mxu0 0
      %739 = vmatpush1.bf16.msra.mxu0 %v621
      %740 = vmatprep.subr.bf16.mxu0 0
      %741 = vmatpush1.bf16.msra.mxu0 %v622
      %742 = vmatprep.subr.bf16.mxu0 0
      %743 = vmatpush1.bf16.msra.mxu0 %v623
      %744 = vmatprep.subr.bf16.mxu0 0
      %745 = vmatpush1.bf16.msra.mxu0 %v730
      %746 = vmatprep.subr.bf16.mxu0 0
      %747 = vmatpush1.bf16.msra.mxu0 0
      %748 = vmatprep.subr.bf16.mxu0 0
      %749 = vmatpush1.bf16.msra.mxu0 0
      %750 = vmatprep.subr.bf16.mxu0 0
      %751 = vmatpush1.bf16.msra.mxu0 0
      %752 = vmatprep.subr.bf16.mxu0 0
      %753 = vmatpush1.bf16.msra.mxu0 0
      %754 = vmatprep.subr.bf16.mxu0 0
      %755 = vmatpush1.bf16.msra.mxu0 0
      %756 = vmatprep.subr.bf16.mxu0 0
      %757 = vmatpush1.bf16.msra.mxu0 0
      %758 = vmatprep.subr.bf16.mxu0 0
      %759 = vmatpush1.bf16.msra.mxu0 0
      %760 = vmatprep.subr.bf16.mxu0 0
      %761 = vmatpush1.bf16.msra.mxu0 0
      %762 = vmatprep.subr.bf16.mxu0 0
      %763 = vmatpush1.bf16.msra.mxu0 0
      %764 = vmatprep.mubr.bf16.mxu0 0
      %765 = vmatmul.mubr.bf16.gmra.mrb[0].mxu0 %v633
      %v766 = vpop.f32.mrb[0].mxu0
      %v767 = vadd.f32 0.0, %v766
      %v768 = vpop.f32.mrb[0].mxu0
      %v769 = vpop.f32.mrb[0].mxu0
      %v770 = vadd.f32 0.0, %v769
      %v771 = vpop.f32.mrb[0].mxu0
      %772 = vmatprep.mubr.bf16.mxu0 0
      %773 = vmatmul.mubr.bf16.gmra.mrb[0].mxu0 %v636
      %v774 = vpop.f32.mrb[0].mxu0
      %v775 = vadd.f32 0.0, %v774
      %v776 = vpop.f32.mrb[0].mxu0
      %v777 = vpop.f32.mrb[0].mxu0
      %v778 = vadd.f32 0.0, %v777
      %v779 = vpop.f32.mrb[0].mxu0
      %780 = vmatprep.mubr.bf16.mxu0 0
      %781 = vmatmul.mubr.bf16.gmra.mrb[0].mxu0 %v639
      %v782 = vpop.f32.mrb[0].mxu0
      %v783 = vadd.f32 0.0, %v782
      %v784 = vpop.f32.mrb[0].mxu0
      %v785 = vpop.f32.mrb[0].mxu0
      %v786 = vadd.f32 0.0, %v785
      %v787 = vpop.f32.mrb[0].mxu0
      %788 = vmatprep.mubr.bf16.mxu0 0
      %789 = vmatmul.mubr.bf16.gmra.mrb[0].mxu0 %v642
      %v790 = vpop.f32.mrb[0].mxu0
      %v791 = vadd.f32 0.0, %v790
      %v792 = vpop.f32.mrb[0].mxu0
      %v793 = vpop.f32.mrb[0].mxu0
      %v794 = vadd.f32 0.0, %v793
      %v795 = vpop.f32.mrb[0].mxu0
      %796 = vmatprep.mubr.bf16.mxu0 0
      %797 = vmatmul.mubr.bf16.gmra.mrb[0].mxu0 %v645
      %v798 = vpop.f32.mrb[0].mxu0
      %v799 = vadd.f32 0.0, %v798
      %v800 = vpop.f32.mrb[0].mxu0
      %v801 = vpop.f32.mrb[0].mxu0
      %v802 = vadd.f32 0.0, %v801
      %v803 = vpop.f32.mrb[0].mxu0
      %804 = vmatprep.mubr.bf16.mxu0 0
      %805 = vmatmul.mubr.bf16.gmra.mrb[0].mxu0 %v648
      %v806 = vpop.f32.mrb[0].mxu0
      %v807 = vadd.f32 0.0, %v806
      %v808 = vpop.f32.mrb[0].mxu0
      %v809 = vpop.f32.mrb[0].mxu0
      %v810 = vadd.f32 0.0, %v809
      %v811 = vpop.f32.mrb[0].mxu0
      %812 = vmatprep.mubr.bf16.mxu0 0
      %813 = vmatmul.mubr.bf16.gmra.mrb[0].mxu0 %v651
      %v814 = vpop.f32.mrb[0].mxu0
      %v815 = vadd.f32 0.0, %v814
      %v816 = vpop.f32.mrb[0].mxu0
      %v817 = vpop.f32.mrb[0].mxu0
      %v818 = vadd.f32 0.0, %v817
      %v819 = vpop.f32.mrb[0].mxu0
      %820 = vmatprep.mubr.bf16.mxu0 0
      %821 = vmatmul.mubr.bf16.gmra.mrb[0].mxu0 %v654
      %v822 = vpop.f32.mrb[0].mxu0
      %v823 = vadd.f32 0.0, %v822
      %v824 = vpop.f32.mrb[0].mxu0
      %v825 = vpop.f32.mrb[0].mxu0
      %v826 = vadd.f32 0.0, %v825
      %v827 = vpop.f32.mrb[0].mxu0
      %828 = vmatprep.mubr.bf16.mxu0 0
      %829 = vmatmul.mubr.bf16.gmra.mrb[0].mxu0 %v657
      %v830 = vpop.f32.mrb[0].mxu0
      %v831 = vadd.f32 0.0, %v830
      %v832 = vpop.f32.mrb[0].mxu0
      %v833 = vpop.f32.mrb[0].mxu0
      %v834 = vadd.f32 0.0, %v833
      %v835 = vpop.f32.mrb[0].mxu0
      %836 = vmatprep.mubr.bf16.mxu0 0
      %837 = vmatmul.mubr.bf16.gmra.mrb[0].mxu0 %v660
      %v838 = vpop.f32.mrb[0].mxu0
      %v839 = vadd.f32 0.0, %v838
      %v840 = vpop.f32.mrb[0].mxu0
      %v841 = vpop.f32.mrb[0].mxu0
      %v842 = vadd.f32 0.0, %v841
      %v843 = vpop.f32.mrb[0].mxu0
      %844 = vmatprep.mubr.bf16.mxu0 0
      %845 = vmatmul.mubr.bf16.gmra.mrb[0].mxu0 %v663
      %v846 = vpop.f32.mrb[0].mxu0
      %v847 = vadd.f32 0.0, %v846
      %v848 = vpop.f32.mrb[0].mxu0
      %v849 = vpop.f32.mrb[0].mxu0
      %v850 = vadd.f32 0.0, %v849
      %v851 = vpop.f32.mrb[0].mxu0
      %852 = vmatprep.mubr.bf16.mxu0 0
      %853 = vmatmul.mubr.bf16.gmra.mrb[0].mxu0 %v666
      %v854 = vpop.f32.mrb[0].mxu0
      %v855 = vadd.f32 0.0, %v854
      %v856 = vpop.f32.mrb[0].mxu0
      %v857 = vpop.f32.mrb[0].mxu0
      %v858 = vadd.f32 0.0, %v857
      %v859 = vpop.f32.mrb[0].mxu0
      %860 = vmatprep.mubr.bf16.mxu0 0
      %861 = vmatmul.mubr.bf16.gmra.mrb[0].mxu0 %v669
      %v862 = vpop.f32.mrb[0].mxu0
      %v863 = vadd.f32 0.0, %v862
      %v864 = vpop.f32.mrb[0].mxu0
      %v865 = vpop.f32.mrb[0].mxu0
      %v866 = vadd.f32 0.0, %v865
      %v867 = vpop.f32.mrb[0].mxu0
      %868 = vmatprep.mubr.bf16.mxu0 0
      %869 = vmatmul.mubr.bf16.gmra.mrb[0].mxu0 %v672
      %v870 = vpop.f32.mrb[0].mxu0
      %v871 = vadd.f32 0.0, %v870
      %v872 = vpop.f32.mrb[0].mxu0
      %v873 = vpop.f32.mrb[0].mxu0
      %v874 = vadd.f32 0.0, %v873
      %v875 = vpop.f32.mrb[0].mxu0
      %876 = vmatprep.mubr.bf16.mxu0 0
      %877 = vmatmul.mubr.bf16.gmra.mrb[0].mxu0 %v675
      %v878 = vpop.f32.mrb[0].mxu0
      %v879 = vadd.f32 0.0, %v878
      %v880 = vpop.f32.mrb[0].mxu0
      %v881 = vpop.f32.mrb[0].mxu0
      %v882 = vadd.f32 0.0, %v881
      %v883 = vpop.f32.mrb[0].mxu0
      %884 = vmatprep.mubr.bf16.mxu0 0
      %885 = vmatmul.mubr.bf16.gmra.mrb[0].mxu0 %v678
      %v886 = vpop.f32.mrb[0].mxu0
      %v887 = vadd.f32 0.0, %v886
      %v888 = vpop.f32.mrb[0].mxu0
      %v889 = vpop.f32.mrb[0].mxu0
      %v890 = vadd.f32 0.0, %v889
      %v891 = vpop.f32.mrb[0].mxu0
      %892 = vmatprep.mubr.bf16.mxu0 0
      %893 = vmatmul.mubr.bf16.gmra.mrb[0].mxu0 %v681
      %v894 = vpop.f32.mrb[0].mxu0
      %v895 = vadd.f32 0.0, %v894
      %v896 = vpop.f32.mrb[0].mxu0
      %v897 = vpop.f32.mrb[0].mxu0
      %v898 = vadd.f32 0.0, %v897
      %v899 = vpop.f32.mrb[0].mxu0
      %900 = vmatprep.mubr.bf16.mxu0 0
      %901 = vmatmul.mubr.bf16.gmra.mrb[0].mxu0 %v684
      %v902 = vpop.f32.mrb[0].mxu0
      %v903 = vadd.f32 0.0, %v902
      %v904 = vpop.f32.mrb[0].mxu0
      %v905 = vpop.f32.mrb[0].mxu0
      %v906 = vadd.f32 0.0, %v905
      %v907 = vpop.f32.mrb[0].mxu0
      %908 = vmatprep.mubr.bf16.mxu0 0
      %909 = vmatmul.mubr.bf16.gmra.mrb[0].mxu0 %v687
      %v910 = vpop.f32.mrb[0].mxu0
      %v911 = vadd.f32 0.0, %v910
      %v912 = vpop.f32.mrb[0].mxu0
      %v913 = vpop.f32.mrb[0].mxu0
      %v914 = vadd.f32 0.0, %v913
      %v915 = vpop.f32.mrb[0].mxu0
      %916 = vmatprep.mubr.bf16.mxu0 0
      %917 = vmatmul.mubr.bf16.gmra.mrb[0].mxu0 %v690
      %v918 = vpop.f32.mrb[0].mxu0
      %v919 = vadd.f32 0.0, %v918
      %v920 = vpop.f32.mrb[0].mxu0
      %v921 = vpop.f32.mrb[0].mxu0
      %v922 = vadd.f32 0.0, %v921
      %v923 = vpop.f32.mrb[0].mxu0
      %924 = vmatprep.mubr.bf16.mxu0 0
      %925 = vmatmul.mubr.bf16.gmra.mrb[0].mxu0 %v693
      %v926 = vpop.f32.mrb[0].mxu0
      %v927 = vadd.f32 0.0, %v926
      %v928 = vpop.f32.mrb[0].mxu0
      %v929 = vpop.f32.mrb[0].mxu0
      %v930 = vadd.f32 0.0, %v929
      %v931 = vpop.f32.mrb[0].mxu0
      %932 = vmatprep.mubr.bf16.mxu0 0
      %933 = vmatmul.mubr.bf16.gmra.mrb[0].mxu0 %v696
      %v934 = vpop.f32.mrb[0].mxu0
      %v935 = vadd.f32 0.0, %v934
      %v936 = vpop.f32.mrb[0].mxu0
      %v937 = vpop.f32.mrb[0].mxu0
      %v938 = vadd.f32 0.0, %v937
      %v939 = vpop.f32.mrb[0].mxu0
      %940 = vmatprep.mubr.bf16.mxu0 0
      %941 = vmatmul.mubr.bf16.gmra.mrb[0].mxu0 %v699
      %v942 = vpop.f32.mrb[0].mxu0
      %v943 = vadd.f32 0.0, %v942
      %v944 = vpop.f32.mrb[0].mxu0
      %v945 = vpop.f32.mrb[0].mxu0
      %v946 = vadd.f32 0.0, %v945
      %v947 = vpop.f32.mrb[0].mxu0
      %948 = vmatprep.mubr.bf16.mxu0 0
      %949 = vmatmul.mubr.bf16.gmra.mrb[0].mxu0 %v702
      %v950 = vpop.f32.mrb[0].mxu0
      %v951 = vadd.f32 0.0, %v950
      %v952 = vpop.f32.mrb[0].mxu0
      %v953 = vpop.f32.mrb[0].mxu0
      %v954 = vadd.f32 0.0, %v953
      %v955 = vpop.f32.mrb[0].mxu0
      %956 = vmatprep.mubr.bf16.mxu0 0
      %957 = vmatmul.mubr.bf16.gmra.mrb[0].mxu0 %v705
      %v958 = vpop.f32.mrb[0].mxu0
      %v959 = vadd.f32 0.0, %v958
      %v960 = vpop.f32.mrb[0].mxu0
      %v961 = vpop.f32.mrb[0].mxu0
      %v962 = vadd.f32 0.0, %v961
      %v963 = vpop.f32.mrb[0].mxu0
      %964 = vmatprep.mubr.bf16.mxu0 0
      %965 = vmatmul.mubr.bf16.gmra.mrb[0].mxu0 %v708
      %v966 = vpop.f32.mrb[0].mxu0
      %v967 = vadd.f32 0.0, %v966
      %v968 = vpop.f32.mrb[0].mxu0
      %v969 = vpop.f32.mrb[0].mxu0
      %v970 = vadd.f32 0.0, %v969
      %v971 = vpop.f32.mrb[0].mxu0
      %972 = vmatprep.mubr.bf16.mxu0 0
      %973 = vmatmul.mubr.bf16.gmra.mrb[0].mxu0 %v711
      %v974 = vpop.f32.mrb[0].mxu0
      %v975 = vadd.f32 0.0, %v974
      %v976 = vpop.f32.mrb[0].mxu0
      %v977 = vpop.f32.mrb[0].mxu0
      %v978 = vadd.f32 0.0, %v977
      %v979 = vpop.f32.mrb[0].mxu0
      %980 = vmatprep.mubr.bf16.mxu0 0
      %981 = vmatmul.mubr.bf16.gmra.mrb[0].mxu0 %v714
      %v982 = vpop.f32.mrb[0].mxu0
      %v983 = vadd.f32 0.0, %v982
      %v984 = vpop.f32.mrb[0].mxu0
      %v985 = vpop.f32.mrb[0].mxu0
      %v986 = vadd.f32 0.0, %v985
      %v987 = vpop.f32.mrb[0].mxu0
      %988 = vmatprep.mubr.bf16.mxu0 0
      %989 = vmatmul.mubr.bf16.gmra.mrb[0].mxu0 %v717
      %v990 = vpop.f32.mrb[0].mxu0
      %v991 = vadd.f32 0.0, %v990
      %v992 = vpop.f32.mrb[0].mxu0
      %v993 = vpop.f32.mrb[0].mxu0
      %v994 = vadd.f32 0.0, %v993
      %v995 = vpop.f32.mrb[0].mxu0
      %996 = vmatprep.mubr.bf16.mxu0 0
      %997 = vmatmul.mubr.bf16.gmra.mrb[0].mxu0 %v720
      %v998 = vpop.f32.mrb[0].mxu0
      %v999 = vadd.f32 0.0, %v998
      %v1000 = vpop.f32.mrb[0].mxu0
      %v1001 = vpop.f32.mrb[0].mxu0
      %v1002 = vadd.f32 0.0, %v1001
      %v1003 = vpop.f32.mrb[0].mxu0
      %1004 = vmatprep.mubr.bf16.mxu0 0
      %1005 = vmatmul.mubr.bf16.gmra.mrb[0].mxu0 %v723
      %v1006 = vpop.f32.mrb[0].mxu0
      %v1007 = vadd.f32 0.0, %v1006
      %v1008 = vpop.f32.mrb[0].mxu0
      %v1009 = vpop.f32.mrb[0].mxu0
      %v1010 = vadd.f32 0.0, %v1009
      %v1011 = vpop.f32.mrb[0].mxu0
      %1012 = vmatprep.mubr.bf16.mxu0 0
      %1013 = vmatmul.mubr.bf16.gmra.mrb[0].mxu0 %v726
      %v1014 = vpop.f32.mrb[0].mxu0
      %v1015 = vadd.f32 0.0, %v1014
      %v1016 = vpop.f32.mrb[0].mxu0
      %v1017 = vpop.f32.mrb[0].mxu0
      %v1018 = vadd.f32 0.0, %v1017
      %v1019 = vpop.f32.mrb[0].mxu0
      %1020 = vdwg.mxu0
      %v1021 = vadd.f32 %v288, %v767
      %v1022 = vadd.f32 %v289, %v770
      %v1023 = vadd.f32 %v290, %v775
      %v1024 = vadd.f32 %v291, %v778
      %v1025 = vadd.f32 %v292, %v783
      %v1026 = vadd.f32 %v293, %v786
      %v1027 = vadd.f32 %v294, %v791
      %v1028 = vadd.f32 %v295, %v794
      %v1029 = vadd.f32 %v296, %v799
      %v1030 = vadd.f32 %v297, %v802
      %v1031 = vadd.f32 %v298, %v807
      %v1032 = vadd.f32 %v299, %v810
      %v1033 = vadd.f32 %v300, %v815
      %v1034 = vadd.f32 %v301, %v818
      %v1035 = vadd.f32 %v302, %v823
      %v1036 = vadd.f32 %v303, %v826
      %v1037 = vadd.f32 %v304, %v831
      %v1038 = vadd.f32 %v305, %v834
      %v1039 = vadd.f32 %v306, %v839
      %v1040 = vadd.f32 %v307, %v842
      %v1041 = vadd.f32 %v308, %v847
      %v1042 = vadd.f32 %v309, %v850
      %v1043 = vadd.f32 %v310, %v855
      %v1044 = vadd.f32 %v311, %v858
      %v1045 = vadd.f32 %v312, %v863
      %v1046 = vadd.f32 %v313, %v866
      %v1047 = vadd.f32 %v314, %v871
      %v1048 = vadd.f32 %v315, %v874
      %v1049 = vadd.f32 %v316, %v879
      %v1050 = vadd.f32 %v317, %v882
      %v1051 = vadd.f32 %v318, %v887
      %v1052 = vadd.f32 %v319, %v890
      %v1053 = vadd.f32 %v320, %v895
      %v1054 = vadd.f32 %v321, %v898
      %v1055 = vadd.f32 %v322, %v903
      %v1056 = vadd.f32 %v323, %v906
      %v1057 = vadd.f32 %v324, %v911
      %v1058 = vadd.f32 %v325, %v914
      %v1059 = vadd.f32 %v326, %v919
      %v1060 = vadd.f32 %v327, %v922
      %v1061 = vadd.f32 %v328, %v927
      %v1062 = vadd.f32 %v329, %v930
      %v1063 = vadd.f32 %v330, %v935
      %v1064 = vadd.f32 %v331, %v938
      %v1065 = vadd.f32 %v332, %v943
      %v1066 = vadd.f32 %v333, %v946
      %v1067 = vadd.f32 %v334, %v951
      %v1068 = vadd.f32 %v335, %v954
      %v1069 = vadd.f32 %v336, %v959
      %v1070 = vadd.f32 %v337, %v962
      %v1071 = vadd.f32 %v338, %v967
      %v1072 = vadd.f32 %v339, %v970
      %v1073 = vadd.f32 %v340, %v975
      %v1074 = vadd.f32 %v341, %v978
      %v1075 = vadd.f32 %v342, %v983
      %v1076 = vadd.f32 %v343, %v986
      %v1077 = vadd.f32 %v344, %v991
      %v1078 = vadd.f32 %v345, %v994
      %v1079 = vadd.f32 %v346, %v999
      %v1080 = vadd.f32 %v347, %v1002
      %v1081 = vadd.f32 %v348, %v1007
      %v1082 = vadd.f32 %v349, %v1010
      %v1083 = vadd.f32 %v350, %v1015
      %v1084 = vadd.f32 %v351, %v1018
      %vm1085 = vcmask 72704
      %1086 = vst.msk [vmem:[#allocation2] sm:$0xff] %vm1085, %v1021
      %1087 = vst.msk [vmem:[#allocation2 + $0x8] sm:$0xff] %vm1085, %v1022
      %1088 = vst.msk [vmem:[#allocation2 + $0x10] sm:$0xff] %vm1085, %v1023
      %1089 = vst.msk [vmem:[#allocation2 + $0x18] sm:$0xff] %vm1085, %v1024
      %1090 = vst.msk [vmem:[#allocation2 + $0x20] sm:$0xff] %vm1085, %v1025
      %1091 = vst.msk [vmem:[#allocation2 + $0x28] sm:$0xff] %vm1085, %v1026
      %1092 = vst.msk [vmem:[#allocation2 + $0x30] sm:$0xff] %vm1085, %v1027
      %1093 = vst.msk [vmem:[#allocation2 + $0x38] sm:$0xff] %vm1085, %v1028
      %1094 = vst.msk [vmem:[#allocation2 + $0x40] sm:$0xff] %vm1085, %v1029
      %1095 = vst.msk [vmem:[#allocation2 + $0x48] sm:$0xff] %vm1085, %v1030
      %1096 = vst.msk [vmem:[#allocation2 + $0x50] sm:$0xff] %vm1085, %v1031
      %1097 = vst.msk [vmem:[#allocation2 + $0x58] sm:$0xff] %vm1085, %v1032
      %1098 = vst.msk [vmem:[#allocation2 + $0x60] sm:$0xff] %vm1085, %v1033
      %1099 = vst.msk [vmem:[#allocation2 + $0x68] sm:$0xff] %vm1085, %v1034
      %1100 = vst.msk [vmem:[#allocation2 + $0x70] sm:$0xff] %vm1085, %v1035
      %1101 = vst.msk [vmem:[#allocation2 + $0x78] sm:$0xff] %vm1085, %v1036
      %1102 = vst.msk [vmem:[#allocation2 + $0x80] sm:$0xff] %vm1085, %v1037
      %1103 = vst.msk [vmem:[#allocation2 + $0x88] sm:$0xff] %vm1085, %v1038
      %1104 = vst.msk [vmem:[#allocation2 + $0x90] sm:$0xff] %vm1085, %v1039
      %1105 = vst.msk [vmem:[#allocation2 + $0x98] sm:$0xff] %vm1085, %v1040
      %1106 = vst.msk [vmem:[#allocation2 + $0xa0] sm:$0xff] %vm1085, %v1041
      %1107 = vst.msk [vmem:[#allocation2 + $0xa8] sm:$0xff] %vm1085, %v1042
      %1108 = vst.msk [vmem:[#allocation2 + $0xb0] sm:$0xff] %vm1085, %v1043
      %1109 = vst.msk [vmem:[#allocation2 + $0xb8] sm:$0xff] %vm1085, %v1044
      %1110 = vst.msk [vmem:[#allocation2 + $0xc0] sm:$0xff] %vm1085, %v1045
      %1111 = vst.msk [vmem:[#allocation2 + $0xc8] sm:$0xff] %vm1085, %v1046
      %1112 = vst.msk [vmem:[#allocation2 + $0xd0] sm:$0xff] %vm1085, %v1047
      %1113 = vst.msk [vmem:[#allocation2 + $0xd8] sm:$0xff] %vm1085, %v1048
      %1114 = vst.msk [vmem:[#allocation2 + $0xe0] sm:$0xff] %vm1085, %v1049
      %1115 = vst.msk [vmem:[#allocation2 + $0xe8] sm:$0xff] %vm1085, %v1050
      %1116 = vst.msk [vmem:[#allocation2 + $0xf0] sm:$0xff] %vm1085, %v1051
      %1117 = vst.msk [vmem:[#allocation2 + $0xf8] sm:$0xff] %vm1085, %v1052
      %1118 = vst.msk [vmem:[#allocation2 + $0x100] sm:$0xff] %vm1085, %v1053
      %1119 = vst.msk [vmem:[#allocation2 + $0x108] sm:$0xff] %vm1085, %v1054
      %1120 = vst.msk [vmem:[#allocation2 + $0x110] sm:$0xff] %vm1085, %v1055
      %1121 = vst.msk [vmem:[#allocation2 + $0x118] sm:$0xff] %vm1085, %v1056
      %1122 = vst.msk [vmem:[#allocation2 + $0x120] sm:$0xff] %vm1085, %v1057
      %1123 = vst.msk [vmem:[#allocation2 + $0x128] sm:$0xff] %vm1085, %v1058
      %1124 = vst.msk [vmem:[#allocation2 + $0x130] sm:$0xff] %vm1085, %v1059
      %1125 = vst.msk [vmem:[#allocation2 + $0x138] sm:$0xff] %vm1085, %v1060
      %1126 = vst.msk [vmem:[#allocation2 + $0x140] sm:$0xff] %vm1085, %v1061
      %1127 = vst.msk [vmem:[#allocation2 + $0x148] sm:$0xff] %vm1085, %v1062
      %1128 = vst.msk [vmem:[#allocation2 + $0x150] sm:$0xff] %vm1085, %v1063
      %1129 = vst.msk [vmem:[#allocation2 + $0x158] sm:$0xff] %vm1085, %v1064
      %1130 = vst.msk [vmem:[#allocation2 + $0x160] sm:$0xff] %vm1085, %v1065
      %1131 = vst.msk [vmem:[#allocation2 + $0x168] sm:$0xff] %vm1085, %v1066
      %1132 = vst.msk [vmem:[#allocation2 + $0x170] sm:$0xff] %vm1085, %v1067
      %1133 = vst.msk [vmem:[#allocation2 + $0x178] sm:$0xff] %vm1085, %v1068
      %1134 = vst.msk [vmem:[#allocation2 + $0x180] sm:$0xff] %vm1085, %v1069
      %1135 = vst.msk [vmem:[#allocation2 + $0x188] sm:$0xff] %vm1085, %v1070
      %1136 = vst.msk [vmem:[#allocation2 + $0x190] sm:$0xff] %vm1085, %v1071
      %1137 = vst.msk [vmem:[#allocation2 + $0x198] sm:$0xff] %vm1085, %v1072
      %1138 = vst.msk [vmem:[#allocation2 + $0x1a0] sm:$0xff] %vm1085, %v1073
      %1139 = vst.msk [vmem:[#allocation2 + $0x1a8] sm:$0xff] %vm1085, %v1074
      %1140 = vst.msk [vmem:[#allocation2 + $0x1b0] sm:$0xff] %vm1085, %v1075
      %1141 = vst.msk [vmem:[#allocation2 + $0x1b8] sm:$0xff] %vm1085, %v1076
      %1142 = vst.msk [vmem:[#allocation2 + $0x1c0] sm:$0xff] %vm1085, %v1077
      %1143 = vst.msk [vmem:[#allocation2 + $0x1c8] sm:$0xff] %vm1085, %v1078
      %1144 = vst.msk [vmem:[#allocation2 + $0x1d0] sm:$0xff] %vm1085, %v1079
      %1145 = vst.msk [vmem:[#allocation2 + $0x1d8] sm:$0xff] %vm1085, %v1080
      %1146 = vst.msk [vmem:[#allocation2 + $0x1e0] sm:$0xff] %vm1085, %v1081
      %1147 = vst.msk [vmem:[#allocation2 + $0x1e8] sm:$0xff] %vm1085, %v1082
      %1148 = vst.msk [vmem:[#allocation2 + $0x1f0] sm:$0xff] %vm1085, %v1083
      %1149 = vst.msk [vmem:[#allocation2 + $0x1f8] sm:$0xff] %vm1085, %v1084
      // Predicated region
      $region33: #{a_call__.13} parent=27 // pred_check
        %p1150 = pneg %p219
      $region34: #{a_call__.13} parent=27 // pred_check_branch
        %1152 = sbr.rel (%p1150) target = $region36
      $region35: #{a_call__.13} parent=27 // pred_region
        %v1153 = vld [vmem:[#allocation2] sm:$0xff]
        %v1154 = vld [vmem:[#allocation2 + $0x8] sm:$0xff]
        %v1155 = vld [vmem:[#allocation2 + $0x10] sm:$0xff]
        %v1156 = vld [vmem:[#allocation2 + $0x18] sm:$0xff]
        %v1157 = vld [vmem:[#allocation2 + $0x20] sm:$0xff]
        %v1158 = vld [vmem:[#allocation2 + $0x28] sm:$0xff]
        %v1159 = vld [vmem:[#allocation2 + $0x30] sm:$0xff]
        %v1160 = vld [vmem:[#allocation2 + $0x38] sm:$0xff]
        %v1161 = vld [vmem:[#allocation2 + $0x40] sm:$0xff]
        %v1162 = vld [vmem:[#allocation2 + $0x48] sm:$0xff]
        %v1163 = vld [vmem:[#allocation2 + $0x50] sm:$0xff]
        %v1164 = vld [vmem:[#allocation2 + $0x58] sm:$0xff]
        %v1165 = vld [vmem:[#allocation2 + $0x60] sm:$0xff]
        %v1166 = vld [vmem:[#allocation2 + $0x68] sm:$0xff]
        %v1167 = vld [vmem:[#allocation2 + $0x70] sm:$0xff]
        %v1168 = vld [vmem:[#allocation2 + $0x78] sm:$0xff]
        %v1169 = vld [vmem:[#allocation2 + $0x80] sm:$0xff]
        %v1170 = vld [vmem:[#allocation2 + $0x88] sm:$0xff]
        %v1171 = vld [vmem:[#allocation2 + $0x90] sm:$0xff]
        %v1172 = vld [vmem:[#allocation2 + $0x98] sm:$0xff]
        %v1173 = vld [vmem:[#allocation2 + $0xa0] sm:$0xff]
        %v1174 = vld [vmem:[#allocation2 + $0xa8] sm:$0xff]
        %v1175 = vld [vmem:[#allocation2 + $0xb0] sm:$0xff]
        %v1176 = vld [vmem:[#allocation2 + $0xb8] sm:$0xff]
        %v1177 = vld [vmem:[#allocation2 + $0xc0] sm:$0xff]
        %v1178 = vld [vmem:[#allocation2 + $0xc8] sm:$0xff]
        %v1179 = vld [vmem:[#allocation2 + $0xd0] sm:$0xff]
        %v1180 = vld [vmem:[#allocation2 + $0xd8] sm:$0xff]
        %v1181 = vld [vmem:[#allocation2 + $0xe0] sm:$0xff]
        %v1182 = vld [vmem:[#allocation2 + $0xe8] sm:$0xff]
        %v1183 = vld [vmem:[#allocation2 + $0xf0] sm:$0xff]
        %v1184 = vld [vmem:[#allocation2 + $0xf8] sm:$0xff]
        %v1185 = vld [vmem:[#allocation2 + $0x100] sm:$0xff]
        %v1186 = vld [vmem:[#allocation2 + $0x108] sm:$0xff]
        %v1187 = vld [vmem:[#allocation2 + $0x110] sm:$0xff]
        %v1188 = vld [vmem:[#allocation2 + $0x118] sm:$0xff]
        %v1189 = vld [vmem:[#allocation2 + $0x120] sm:$0xff]
        %v1190 = vld [vmem:[#allocation2 + $0x128] sm:$0xff]
        %v1191 = vld [vmem:[#allocation2 + $0x130] sm:$0xff]
        %v1192 = vld [vmem:[#allocation2 + $0x138] sm:$0xff]
        %v1193 = vld [vmem:[#allocation2 + $0x140] sm:$0xff]
        %v1194 = vld [vmem:[#allocation2 + $0x148] sm:$0xff]
        %v1195 = vld [vmem:[#allocation2 + $0x150] sm:$0xff]
        %v1196 = vld [vmem:[#allocation2 + $0x158] sm:$0xff]
        %v1197 = vld [vmem:[#allocation2 + $0x160] sm:$0xff]
        %v1198 = vld [vmem:[#allocation2 + $0x168] sm:$0xff]
        %v1199 = vld [vmem:[#allocation2 + $0x170] sm:$0xff]
        %v1200 = vld [vmem:[#allocation2 + $0x178] sm:$0xff]
        %v1201 = vld [vmem:[#allocation2 + $0x180] sm:$0xff]
        %v1202 = vld [vmem:[#allocation2 + $0x188] sm:$0xff]
        %v1203 = vld [vmem:[#allocation2 + $0x190] sm:$0xff]
        %v1204 = vld [vmem:[#allocation2 + $0x198] sm:$0xff]
        %v1205 = vld [vmem:[#allocation2 + $0x1a0] sm:$0xff]
        %v1206 = vld [vmem:[#allocation2 + $0x1a8] sm:$0xff]
        %v1207 = vld [vmem:[#allocation2 + $0x1b0] sm:$0xff]
        %v1208 = vld [vmem:[#allocation2 + $0x1b8] sm:$0xff]
        %v1209 = vld [vmem:[#allocation2 + $0x1c0] sm:$0xff]
        %v1210 = vld [vmem:[#allocation2 + $0x1c8] sm:$0xff]
        %v1211 = vld [vmem:[#allocation2 + $0x1d0] sm:$0xff]
        %v1212 = vld [vmem:[#allocation2 + $0x1d8] sm:$0xff]
        %v1213 = vld [vmem:[#allocation2 + $0x1e0] sm:$0xff]
        %v1214 = vld [vmem:[#allocation2 + $0x1e8] sm:$0xff]
        %v1215 = vld [vmem:[#allocation2 + $0x1f0] sm:$0xff]
        %v1216 = vld [vmem:[#allocation2 + $0x1f8] sm:$0xff]
        %1217 = vst.msk [vmem:[%s216] sm:$0xff] %vm1085, %v1153
        %1218 = vst.msk [vmem:[%s216 + $0x8] sm:$0xff] %vm1085, %v1154
        %1219 = vst.msk [vmem:[%s216 + $0x10] sm:$0xff] %vm1085, %v1155
        %1220 = vst.msk [vmem:[%s216 + $0x18] sm:$0xff] %vm1085, %v1156
        %1221 = vst.msk [vmem:[%s216 + $0x20] sm:$0xff] %vm1085, %v1157
        %1222 = vst.msk [vmem:[%s216 + $0x28] sm:$0xff] %vm1085, %v1158
        %1223 = vst.msk [vmem:[%s216 + $0x30] sm:$0xff] %vm1085, %v1159
        %1224 = vst.msk [vmem:[%s216 + $0x38] sm:$0xff] %vm1085, %v1160
        %1225 = vst.msk [vmem:[%s216 + $0x40] sm:$0xff] %vm1085, %v1161
        %1226 = vst.msk [vmem:[%s216 + $0x48] sm:$0xff] %vm1085, %v1162
        %1227 = vst.msk [vmem:[%s216 + $0x50] sm:$0xff] %vm1085, %v1163
        %1228 = vst.msk [vmem:[%s216 + $0x58] sm:$0xff] %vm1085, %v1164
        %1229 = vst.msk [vmem:[%s216 + $0x60] sm:$0xff] %vm1085, %v1165
        %1230 = vst.msk [vmem:[%s216 + $0x68] sm:$0xff] %vm1085, %v1166
        %1231 = vst.msk [vmem:[%s216 + $0x70] sm:$0xff] %vm1085, %v1167
        %1232 = vst.msk [vmem:[%s216 + $0x78] sm:$0xff] %vm1085, %v1168
        %1233 = vst.msk [vmem:[%s216 + $0x80] sm:$0xff] %vm1085, %v1169
        %1234 = vst.msk [vmem:[%s216 + $0x88] sm:$0xff] %vm1085, %v1170
        %1235 = vst.msk [vmem:[%s216 + $0x90] sm:$0xff] %vm1085, %v1171
        %1236 = vst.msk [vmem:[%s216 + $0x98] sm:$0xff] %vm1085, %v1172
        %1237 = vst.msk [vmem:[%s216 + $0xa0] sm:$0xff] %vm1085, %v1173
        %1238 = vst.msk [vmem:[%s216 + $0xa8] sm:$0xff] %vm1085, %v1174
        %1239 = vst.msk [vmem:[%s216 + $0xb0] sm:$0xff] %vm1085, %v1175
        %1240 = vst.msk [vmem:[%s216 + $0xb8] sm:$0xff] %vm1085, %v1176
        %1241 = vst.msk [vmem:[%s216 + $0xc0] sm:$0xff] %vm1085, %v1177
        %1242 = vst.msk [vmem:[%s216 + $0xc8] sm:$0xff] %vm1085, %v1178
        %1243 = vst.msk [vmem:[%s216 + $0xd0] sm:$0xff] %vm1085, %v1179
        %1244 = vst.msk [vmem:[%s216 + $0xd8] sm:$0xff] %vm1085, %v1180
        %1245 = vst.msk [vmem:[%s216 + $0xe0] sm:$0xff] %vm1085, %v1181
        %1246 = vst.msk [vmem:[%s216 + $0xe8] sm:$0xff] %vm1085, %v1182
        %1247 = vst.msk [vmem:[%s216 + $0xf0] sm:$0xff] %vm1085, %v1183
        %1248 = vst.msk [vmem:[%s216 + $0xf8] sm:$0xff] %vm1085, %v1184
        %1249 = vst.msk [vmem:[%s216 + $0x100] sm:$0xff] %vm1085, %v1185
        %1250 = vst.msk [vmem:[%s216 + $0x108] sm:$0xff] %vm1085, %v1186
        %1251 = vst.msk [vmem:[%s216 + $0x110] sm:$0xff] %vm1085, %v1187
        %1252 = vst.msk [vmem:[%s216 + $0x118] sm:$0xff] %vm1085, %v1188
        %1253 = vst.msk [vmem:[%s216 + $0x120] sm:$0xff] %vm1085, %v1189
        %1254 = vst.msk [vmem:[%s216 + $0x128] sm:$0xff] %vm1085, %v1190
        %1255 = vst.msk [vmem:[%s216 + $0x130] sm:$0xff] %vm1085, %v1191
        %1256 = vst.msk [vmem:[%s216 + $0x138] sm:$0xff] %vm1085, %v1192
        %1257 = vst.msk [vmem:[%s216 + $0x140] sm:$0xff] %vm1085, %v1193
        %1258 = vst.msk [vmem:[%s216 + $0x148] sm:$0xff] %vm1085, %v1194
        %1259 = vst.msk [vmem:[%s216 + $0x150] sm:$0xff] %vm1085, %v1195
        %1260 = vst.msk [vmem:[%s216 + $0x158] sm:$0xff] %vm1085, %v1196
        %1261 = vst.msk [vmem:[%s216 + $0x160] sm:$0xff] %vm1085, %v1197
        %1262 = vst.msk [vmem:[%s216 + $0x168] sm:$0xff] %vm1085, %v1198
        %1263 = vst.msk [vmem:[%s216 + $0x170] sm:$0xff] %vm1085, %v1199
        %1264 = vst.msk [vmem:[%s216 + $0x178] sm:$0xff] %vm1085, %v1200
        %1265 = vst.msk [vmem:[%s216 + $0x180] sm:$0xff] %vm1085, %v1201
        %1266 = vst.msk [vmem:[%s216 + $0x188] sm:$0xff] %vm1085, %v1202
        %1267 = vst.msk [vmem:[%s216 + $0x190] sm:$0xff] %vm1085, %v1203
        %1268 = vst.msk [vmem:[%s216 + $0x198] sm:$0xff] %vm1085, %v1204
        %1269 = vst.msk [vmem:[%s216 + $0x1a0] sm:$0xff] %vm1085, %v1205
        %1270 = vst.msk [vmem:[%s216 + $0x1a8] sm:$0xff] %vm1085, %v1206
        %1271 = vst.msk [vmem:[%s216 + $0x1b0] sm:$0xff] %vm1085, %v1207
        %1272 = vst.msk [vmem:[%s216 + $0x1b8] sm:$0xff] %vm1085, %v1208
        %1273 = vst.msk [vmem:[%s216 + $0x1c0] sm:$0xff] %vm1085, %v1209
        %1274 = vst.msk [vmem:[%s216 + $0x1c8] sm:$0xff] %vm1085, %v1210
        %1275 = vst.msk [vmem:[%s216 + $0x1d0] sm:$0xff] %vm1085, %v1211
        %1276 = vst.msk [vmem:[%s216 + $0x1d8] sm:$0xff] %vm1085, %v1212
        %1277 = vst.msk [vmem:[%s216 + $0x1e0] sm:$0xff] %vm1085, %v1213
        %1278 = vst.msk [vmem:[%s216 + $0x1e8] sm:$0xff] %vm1085, %v1214
        %1279 = vst.msk [vmem:[%s216 + $0x1f0] sm:$0xff] %vm1085, %v1215
        %1280 = vst.msk [vmem:[%s216 + $0x1f8] sm:$0xff] %vm1085, %v1216
      $region36: #{a_call__.13} parent=27 // pred_fallthru
        _
      %s1281 = smul.u32 64, %s18
      %p1282 = scmp.lt.s32.totalorder %s1281, 255
      %s1283 = scalar_select %p1282, %s1281, 255
      %p1284 = scmp.lt.s32.totalorder %s19, 0
      %s1285 = scalar_select %p1284, %s19, 0
      %s1286 = sadd.s32 %s1285, %s1283
      %s1287 = smul.addr %s1286, 8
      %s1288 = scalar_lea.vmem %s2, %s1287
      // Predicated region
      $region37: #{a_call__.13} parent=27 // pred_check
        %p1289 = pneg %p108
      $region38: #{a_call__.13} parent=27 // pred_check_branch
        %1291 = sbr.rel (%p1289) target = $region40
      $region39: #{a_call__.13} parent=27 // pred_region
        %s1292 = smul.u32 64, %s18
      $region40: #{a_call__.13} parent=27 // pred_fallthru
        _
    $region28: #{a_call__.13} parent=5 // pred_fallthru
      _
    %p1293 = scmp.le.s32.totalorder 2, %s8
    // Predicated region
    $region41: #{a_call__.13} parent=5 // pred_check
      %p1294 = pneg %p1293
    $region42: #{a_call__.13} parent=5 // pred_check_branch
      %1296 = sbr.rel (%p1294) target = $region44
    $region43: #{a_call__.13} parent=5 // pred_region
      %s1297 = ssub.s32 %s8, 2
      // Predicated region
      $region45: #{a_call__.13} parent=43 // pred_check
        %p1298 = pneg %p114
      $region46: #{a_call__.13} parent=43 // pred_check_branch
        %1300 = sbr.rel (%p1298) target = $region48
      $region47: #{a_call__.13} parent=43 // pred_region
        %s1301 = smul.u32 64, %s21
        %p1302 = scmp.lt.s32.totalorder %s1301, 255
        %s1303 = scalar_select %p1302, %s1301, 255
        %p1304 = scmp.lt.s32.totalorder %s22, 0
        %s1305 = scalar_select %p1304, %s22, 0
        %s1306 = sadd.s32 %s1305, %s1303
        %s1307 = smul.addr %s1306, 8
        %s1308 = scalar_lea.vmem %s2, %s1307
      $region48: #{a_call__.13} parent=43 // pred_fallthru
        _
    $region44: #{a_call__.13} parent=5 // pred_fallthru
      _
  $region6: #{a_call__.13} parent=0 // loop_footer
    %s12 = sadd.s32 1, %s8
  $region7: #{a_call__.13} parent=0 // loop_footer_branch
    %7 = sbr.rel target = $region3
  $region8: #{a_call__.13} parent=0 // loop_exit
    _

</llo_original>
